<compile_context>
chip_gen: v7x
topology: tpu7x:2x2x1
jax: 0.10.0
libtpu: 0.0.40
codegen_flags: <defaults>
</compile_context>

<pallas_src>
import jax
import jax.numpy as jnp
from jax.experimental import pallas as pl
from jax.experimental.pallas import tpu as pltpu


# 30-stride flattened raster constants for the 28x28 / pad=1 convolutions.
_W = 30        # padded row stride
_S = 840       # 28 output rows * 30-stride raster
_XLEN = 904    # 900 (30x30 padded image) + 4 trailing zeros
_POOL = 809    # valid 2x2-window-max positions
_Q = 196       # 14 * 14 pooled positions


# ----------------------------- Pallas kernels ------------------------------

def _conv_pool_kernel(x_ref, w1_ref, w2f_ref, wmask_ref, gather_ref, o_ref):
    """conv1+ReLU -> conv2+ReLU -> maxpool2x2 for BIMG images, all in VMEM."""
    w1 = w1_ref[...]          # (32, 9)    bf16
    w2f = w2f_ref[...]        # (64, 288)  bf16 (tap-major, cin-minor columns)
    wmask = wmask_ref[...]    # (1, 840)   f32 junk-column mask
    gather = gather_ref[...]  # (809, 196) bf16 0/1 pool-gather matrix
    nimg = o_ref.shape[0]

    def body(b, carry):
        xrow = x_ref[b]                                        # (1, 904) bf16

        # ---- conv1: in-kernel im2col (9 shifted lane-slices) + one matmul ----
        a1 = jnp.concatenate(
            [xrow[:, _W * kh + kw: _W * kh + kw + _S]
             for kh in range(3) for kw in range(3)], axis=0)   # (9, 840) bf16
        h1 = jnp.dot(w1, a1, preferred_element_type=jnp.float32)  # (32, 840)
        # ReLU + zero the 2 junk columns of every 30-wide raster row (they
        # become conv2's W-padding).
        h1 = (jnp.maximum(h1, 0.0) * wmask).astype(jnp.bfloat16)

        # ---- conv2: pad the raster, single fused K=288 im2col matmul ----
        gp = jnp.concatenate(
            [jnp.zeros((32, 31), jnp.bfloat16), h1,
             jnp.zeros((32, 33), jnp.bfloat16)], axis=1)       # (32, 904)
        a2 = jnp.concatenate(
            [gp[:, _W * kh + kw: _W * kh + kw + _S]
             for kh in range(3) for kw in range(3)], axis=0)   # (288, 840) bf16
        h2 = jnp.dot(w2f, a2, preferred_element_type=jnp.float32)  # (64, 840)
        h2 = jnp.maximum(h2, 0.0).astype(jnp.bfloat16)

        # ---- 2x2/2 max pool: bf16 window max + 0/1 gather matmul ----
        bwin = jnp.maximum(
            jnp.maximum(h2[:, 0:_POOL], h2[:, 1:_POOL + 1]),
            jnp.maximum(h2[:, _W:_W + _POOL], h2[:, _W + 1:_W + 1 + _POOL]))
        p = jnp.dot(bwin, gather, preferred_element_type=jnp.float32)  # (64, 196)
        o_ref[b] = p.astype(o_ref.dtype)
        return carry

    jax.lax.fori_loop(0, nimg, body, 0)


def _fc_kernel(a_ref, w3_ref, w4_ref, o_ref):
    """conv1x1(12544,128)+ReLU -> conv1x1(128,10), fused; bf16 MXU, f32 acc."""
    a = a_ref[...]                                                       # (bm, 12544) bf16
    h = jnp.dot(a, w3_ref[...], preferred_element_type=jnp.float32)      # (bm, 128)
    h = jnp.maximum(h, 0.0).astype(jnp.bfloat16)
    o = jnp.dot(h, w4_ref[...], preferred_element_type=jnp.float32)      # (bm, 10)
    o_ref[...] = o.astype(o_ref.dtype)


# ------------------------------- wrappers -----------------------------------

def conv_pool(xg, w1t, w2f, wmask, gather, *, bimg):
    n = xg.shape[0]
    return pl.pallas_call(
        _conv_pool_kernel,
        out_shape=jax.ShapeDtypeStruct((n, 64, _Q), jnp.bfloat16),
        grid=(pl.cdiv(n, bimg),),
        in_specs=[
            pl.BlockSpec((bimg, 1, _XLEN), lambda i: (i, 0, 0)),  # padded image rasters
            pl.BlockSpec((32, 9), lambda i: (0, 0)),              # conv1 weight (loaded once)
            pl.BlockSpec((64, 288), lambda i: (0, 0)),            # conv2 fused im2col weight
            pl.BlockSpec((1, _S), lambda i: (0, 0)),              # junk-column mask
            pl.BlockSpec((_POOL, _Q), lambda i: (0, 0)),          # 0/1 pool-gather matrix
        ],
        out_specs=pl.BlockSpec((bimg, 64, _Q), lambda i: (i, 0, 0)),
        compiler_params=pltpu.CompilerParams(dimension_semantics=("parallel",)),
    )(xg, w1t, w2f, wmask, gather)


def fc_head(act, w3p, w4p, *, bm):
    n, k = act.shape
    return pl.pallas_call(
        _fc_kernel,
        out_shape=jax.ShapeDtypeStruct((n, 10), jnp.float32),
        grid=(pl.cdiv(n, bm),),
        in_specs=[
            pl.BlockSpec((bm, k), lambda i: (i, 0)),              # bf16 activations
            pl.BlockSpec((k, 128), lambda i: (0, 0)),             # w3 bf16, loaded once
            pl.BlockSpec((128, 10), lambda i: (0, 0)),
        ],
        out_specs=pl.BlockSpec((bm, 10), lambda i: (i, 0)),
        compiler_params=pltpu.CompilerParams(
            dimension_semantics=("parallel",),
            vmem_limit_bytes=40 * 1024 * 1024),
    )(act, w3p, w4p)


# --------------------------- params / prep / model --------------------------

def init_params(key):
    """Deterministic Kaiming-normal init, weights kept in PyTorch layouts."""
    k1, k2, k3, k4 = jax.random.split(key, 4)

    def kaiming(k, shape, fan_in):
        return jax.random.normal(k, shape, jnp.float32) * jnp.sqrt(2.0 / fan_in)

    return dict(
        w1=kaiming(k1, (32, 1, 3, 3), 1 * 9),          # conv3x3(1, 32)
        w2=kaiming(k2, (64, 32, 3, 3), 32 * 9),        # conv3x3(32, 64)
        w3=kaiming(k3, (128, 12544, 1, 1), 12544),     # conv1x1(12544, 128)
        w4=kaiming(k4, (10, 128, 1, 1), 128),          # conv1x1(128, 10)
    )


def prepare_params(params):
    """One-time weight/layout prep (hoisted out of the per-call forward)."""
    bf16 = jnp.bfloat16
    w1t = params["w1"].reshape(32, 9).astype(bf16)                       # (cout, 3*kh+kw)
    # fused conv2 weight: columns ordered tap-major, cin-minor -> (64, 288)
    w2f = jnp.transpose(params["w2"], (0, 2, 3, 1)).reshape(64, 288).astype(bf16)
    w3p = params["w3"].reshape(128, 64 * _Q).T.astype(bf16)              # (12544, 128)
    w4p = params["w4"].reshape(10, 128).T.astype(bf16)                   # (128, 10)
    # zero mask for the 2 junk columns of every 30-wide raster row
    wmask = (jnp.arange(_S) % _W < 28).astype(jnp.float32).reshape(1, _S)
    # 0/1 gather: pooled (ho, wo) <- window-max raster position 60*ho + 2*wo
    q = jnp.arange(_Q)
    src = 60 * (q // 14) + 2 * (q % 14)
    gather = (jnp.arange(_POOL)[:, None] == src[None, :]).astype(bf16)   # (809, 196)
    return dict(w1t=w1t, w2f=w2f, w3p=w3p, w4p=w4p, wmask=wmask, gather=gather)


def lenet_forward(prep, x):
    n = x.shape[0]
    # torch: out = x.view(N, 1, 28, 28); single channel -> NHW
    xs = x.reshape(n, 28, 28).astype(jnp.float32)
    # pad=1 once on the host, flatten to the 30-stride raster, cast to bf16
    xp = jnp.pad(xs, ((0, 0), (1, 1), (1, 1)))
    xg = jnp.pad(xp.reshape(n, 900), ((0, 0), (0, _XLEN - 900)))
    xg = xg.astype(jnp.bfloat16).reshape(n, 1, _XLEN)

    # >=2 grid steps keeps both v7x TensorCores busy; up to 16 images/step.
    bimg = max(1, min(16, n // 2))
    feat = conv_pool(xg, prep["w1t"], prep["w2f"], prep["wmask"], prep["gather"],
                     bimg=bimg)
    # (N, 64, 196) row-major == torch's (C, H, W) flatten -> free reshape
    act = feat.reshape(n, 64 * _Q)
    bm = min(n, 256)
    out = fc_head(act, prep["w3p"], prep["w4p"], bm=bm)                  # (N, 10)
    return jnp.squeeze(out)                                              # matches out.squeeze()


# ------------------------------ pure-JAX reference ---------------------------

def lenet_reference(params, x):
    """f32 XLA reference of the same bias-free LeNet forward."""
    n = x.shape[0]
    xs = x.reshape(n, 1, 28, 28).astype(jnp.float32)
    dn = ("NCHW", "OIHW", "NCHW")
    h = jax.lax.conv_general_dilated(xs, params["w1"], (1, 1), ((1, 1), (1, 1)),
                                     dimension_numbers=dn)
    h = jnp.maximum(h, 0.0)
    h = jax.lax.conv_general_dilated(h, params["w2"], (1, 1), ((1, 1), (1, 1)),
                                     dimension_numbers=dn)
    h = jnp.maximum(h, 0.0)
    h = jax.lax.reduce_window(h, -jnp.inf, jax.lax.max,
                              (1, 1, 2, 2), (1, 1, 2, 2), "VALID")
    a = h.reshape(n, 64 * _Q)
    h = jnp.maximum(a @ params["w3"].reshape(128, 64 * _Q).T, 0.0)
    return h @ params["w4"].reshape(10, 128).T


if __name__ == "__main__":
    key = jax.random.PRNGKey(0)
    pkey, xkey = jax.random.split(key)
    params = init_params(pkey)
    prep = prepare_params(params)

    # forward implies 28x28 single-channel input; batch = 2
    x = jax.random.normal(xkey, (2, 1, 28, 28), jnp.float32)

    out = jax.jit(lenet_forward)(prep, x)
    jax.block_until_ready(out)
    assert out.shape == (2, 10), out.shape
    assert bool(jnp.all(jnp.isfinite(out)))

    # bf16 MXU path vs f32 reference: expect ~1e-2 relative agreement.
    ref = lenet_reference(params, x)
    err = float(jnp.max(jnp.abs(out - ref)))
    scale = float(jnp.max(jnp.abs(ref)))
    assert err <= 0.05 * scale + 0.05, (err, scale)

    print("KERNEL_OK")
</pallas_src>

<mosaic_0001>
module attributes {stable_mosaic.version = 11 : i64} {
  func.func @_fc_kernel(%arg0: i32, %arg1: memref<2x12544xbf16, #tpu.memory_space<vmem>>, %arg2: memref<12544x128xbf16, #tpu.memory_space<vmem>>, %arg3: memref<128x10xbf16, #tpu.memory_space<vmem>>, %arg4: memref<2x10xf32, #tpu.memory_space<vmem>>) attributes {dimension_semantics = [#tpu.dimension_semantics<parallel>], iteration_bounds = array<i64: 1>, scalar_prefetch = 0 : i64, scratch_operands = 0 : i64, tpu.core_type = #tpu.core_type<tc>, window_params = [{transform_indices = @transform_0, window_bounds = array<i64: 2, 12544>}, {pipeline_mode = #tpu.pipeline_mode<synchronous>, transform_indices = @transform_1, window_bounds = array<i64: 12544, 128>}, {pipeline_mode = #tpu.pipeline_mode<synchronous>, transform_indices = @transform_2, window_bounds = array<i64: 128, 10>}, {transform_indices = @transform_3, window_bounds = array<i64: 2, 10>}]} {
    %c0 = arith.constant 0 : index
    %c0_0 = arith.constant 0 : index
    %0 = vector.load %arg1[%c0, %c0_0] : memref<2x12544xbf16, #tpu.memory_space<vmem>>, vector<2x12544xbf16>
    %c0_1 = arith.constant 0 : index
    %c0_2 = arith.constant 0 : index
    %1 = vector.load %arg2[%c0_1, %c0_2] : memref<12544x128xbf16, #tpu.memory_space<vmem>>, vector<12544x128xbf16>
    %cst = arith.constant dense<0.000000e+00> : vector<2x128xf32>
    %2 = tpu.matmul %0, %1, %cst {dimension_numbers = #tpu.dot_dimension_numbers<[1], [0], [0], [1], [0, 0, 1, 1], [], []>} : vector<2x12544xbf16>, vector<12544x128xbf16>, vector<2x128xf32> -> vector<2x128xf32>
    %cst_3 = arith.constant 0.000000e+00 : f32
    %3 = vector.broadcast %cst_3 : f32 to vector<2x128xf32>
    %4 = arith.maximumf %2, %3 : vector<2x128xf32>
    %5 = arith.truncf %4 : vector<2x128xf32> to vector<2x128xbf16>
    %c0_4 = arith.constant 0 : index
    %c0_5 = arith.constant 0 : index
    %6 = vector.load %arg3[%c0_4, %c0_5] : memref<128x10xbf16, #tpu.memory_space<vmem>>, vector<128x10xbf16>
    %cst_6 = arith.constant dense<0.000000e+00> : vector<2x10xf32>
    %7 = tpu.matmul %5, %6, %cst_6 {dimension_numbers = #tpu.dot_dimension_numbers<[1], [0], [0], [1], [0, 0, 1, 1], [], []>} : vector<2x128xbf16>, vector<128x10xbf16>, vector<2x10xf32> -> vector<2x10xf32>
    %c0_7 = arith.constant 0 : index
    %c0_8 = arith.constant 0 : index
    %8 = vector.load %arg4[%c0_7, %c0_8] : memref<2x10xf32, #tpu.memory_space<vmem>>, vector<2x10xf32>
    tpu.vector_store %arg4[%c0_7, %c0_8], %7 {strides = array<i32>} : memref<2x10xf32, #tpu.memory_space<vmem>>, vector<2x10xf32>,
    return
  }
  func.func @transform_0(%arg0: i32) -> (i32, i32) {
    %c0_i32 = arith.constant 0 : i32
    %c0_i32_0 = arith.constant 0 : i32
    return %arg0, %c0_i32 : i32, i32
  }
  func.func @transform_1(%arg0: i32) -> (i32, i32) {
    %c0_i32 = arith.constant 0 : i32
    %c0_i32_0 = arith.constant 0 : i32
    %c0_i32_1 = arith.constant 0 : i32
    return %c0_i32, %c0_i32_0 : i32, i32
  }
  func.func @transform_2(%arg0: i32) -> (i32, i32) {
    %c0_i32 = arith.constant 0 : i32
    %c0_i32_0 = arith.constant 0 : i32
    %c0_i32_1 = arith.constant 0 : i32
    return %c0_i32, %c0_i32_0 : i32, i32
  }
  func.func @transform_3(%arg0: i32) -> (i32, i32) {
    %c0_i32 = arith.constant 0 : i32
    %c0_i32_0 = arith.constant 0 : i32
    return %arg0, %c0_i32 : i32, i32
  }
}

module attributes {stable_mosaic.version = 11 : i64} {
  func.func @_conv_pool_kernel(%arg0: i32, %arg1: memref<1x1x904xbf16, #tpu.memory_space<vmem>>, %arg2: memref<32x9xbf16, #tpu.memory_space<vmem>>, %arg3: memref<64x288xbf16, #tpu.memory_space<vmem>>, %arg4: memref<1x840xf32, #tpu.memory_space<vmem>>, %arg5: memref<809x196xbf16, #tpu.memory_space<vmem>>, %arg6: memref<1x64x196xbf16, #tpu.memory_space<vmem>>) attributes {dimension_semantics = [#tpu.dimension_semantics<parallel>], iteration_bounds = array<i64: 2>, scalar_prefetch = 0 : i64, scratch_operands = 0 : i64, tpu.core_type = #tpu.core_type<tc>, window_params = [{transform_indices = @transform_0, window_bounds = array<i64: 1, 1, 904>}, {pipeline_mode = #tpu.pipeline_mode<synchronous>, transform_indices = @transform_1, window_bounds = array<i64: 32, 9>}, {pipeline_mode = #tpu.pipeline_mode<synchronous>, transform_indices = @transform_2, window_bounds = array<i64: 64, 288>}, {pipeline_mode = #tpu.pipeline_mode<synchronous>, transform_indices = @transform_3, window_bounds = array<i64: 1, 840>}, {pipeline_mode = #tpu.pipeline_mode<synchronous>, transform_indices = @transform_4, window_bounds = array<i64: 809, 196>}, {transform_indices = @transform_5, window_bounds = array<i64: 1, 64, 196>}]} {
    %c0 = arith.constant 0 : index
    %c0_0 = arith.constant 0 : index
    %0 = vector.load %arg2[%c0, %c0_0] : memref<32x9xbf16, #tpu.memory_space<vmem>>, vector<32x9xbf16>
    %c0_1 = arith.constant 0 : index
    %c0_2 = arith.constant 0 : index
    %1 = vector.load %arg3[%c0_1, %c0_2] : memref<64x288xbf16, #tpu.memory_space<vmem>>, vector<64x288xbf16>
    %c0_3 = arith.constant 0 : index
    %c0_4 = arith.constant 0 : index
    %2 = vector.load %arg4[%c0_3, %c0_4] : memref<1x840xf32, #tpu.memory_space<vmem>>, vector<1x840xf32>
    %c0_5 = arith.constant 0 : index
    %c0_6 = arith.constant 0 : index
    %3 = vector.load %arg5[%c0_5, %c0_6] : memref<809x196xbf16, #tpu.memory_space<vmem>>, vector<809x196xbf16>
    %c0_i32 = arith.constant 0 : i32
    %4 = arith.index_cast %c0_i32 : i32 to index
    %c0_7 = arith.constant 0 : index
    %c0_8 = arith.constant 0 : index
    %5 = vector.load %arg1[%4, %c0_7, %c0_8] : memref<1x1x904xbf16, #tpu.memory_space<vmem>>, vector<1x1x904xbf16>
    %6 = vector.shape_cast %5 : vector<1x1x904xbf16> to vector<1x904xbf16>
    %7 = vector.extract_strided_slice %6 {offsets = [0, 0], sizes = [1, 840], strides = [1, 1]} : vector<1x904xbf16> to vector<1x840xbf16>
    %8 = vector.extract_strided_slice %6 {offsets = [0, 1], sizes = [1, 840], strides = [1, 1]} : vector<1x904xbf16> to vector<1x840xbf16>
    %9 = vector.extract_strided_slice %6 {offsets = [0, 2], sizes = [1, 840], strides = [1, 1]} : vector<1x904xbf16> to vector<1x840xbf16>
    %10 = vector.extract_strided_slice %6 {offsets = [0, 30], sizes = [1, 840], strides = [1, 1]} : vector<1x904xbf16> to vector<1x840xbf16>
    %11 = vector.extract_strided_slice %6 {offsets = [0, 31], sizes = [1, 840], strides = [1, 1]} : vector<1x904xbf16> to vector<1x840xbf16>
    %12 = vector.extract_strided_slice %6 {offsets = [0, 32], sizes = [1, 840], strides = [1, 1]} : vector<1x904xbf16> to vector<1x840xbf16>
    %13 = vector.extract_strided_slice %6 {offsets = [0, 60], sizes = [1, 840], strides = [1, 1]} : vector<1x904xbf16> to vector<1x840xbf16>
    %14 = vector.extract_strided_slice %6 {offsets = [0, 61], sizes = [1, 840], strides = [1, 1]} : vector<1x904xbf16> to vector<1x840xbf16>
    %15 = vector.extract_strided_slice %6 {offsets = [0, 62], sizes = [1, 840], strides = [1, 1]} : vector<1x904xbf16> to vector<1x840xbf16>
    %16 = tpu.concatenate %7, %8, %9, %10, %11, %12, %13, %14, %15 in 0 : vector<1x840xbf16>, vector<1x840xbf16>, vector<1x840xbf16>, vector<1x840xbf16>, vector<1x840xbf16>, vector<1x840xbf16>, vector<1x840xbf16>, vector<1x840xbf16>, vector<1x840xbf16> -> vector<9x840xbf16>
    %cst = arith.constant dense<0.000000e+00> : vector<32x840xf32>
    %17 = tpu.matmul %0, %16, %cst {dimension_numbers = #tpu.dot_dimension_numbers<[1], [0], [0], [1], [0, 0, 1, 1], [], []>} : vector<32x9xbf16>, vector<9x840xbf16>, vector<32x840xf32> -> vector<32x840xf32>
    %cst_9 = arith.constant 0.000000e+00 : f32
    %18 = vector.broadcast %cst_9 : f32 to vector<32x840xf32>
    %19 = arith.maximumf %17, %18 : vector<32x840xf32>
    %20 = vector.broadcast %2 : vector<1x840xf32> to vector<32x840xf32>
    %21 = arith.mulf %19, %20 : vector<32x840xf32>
    %22 = arith.truncf %21 : vector<32x840xf32> to vector<32x840xbf16>
    %cst_10 = arith.constant 0.000000e+00 : bf16
    %23 = vector.broadcast %cst_10 : bf16 to vector<32x31xbf16>
    %cst_11 = arith.constant 0.000000e+00 : bf16
    %24 = vector.broadcast %cst_11 : bf16 to vector<32x33xbf16>
    %25 = tpu.concatenate %23, %22, %24 in 1 : vector<32x31xbf16>, vector<32x840xbf16>, vector<32x33xbf16> -> vector<32x904xbf16>
    %26 = vector.extract_strided_slice %25 {offsets = [0, 0], sizes = [32, 840], strides = [1, 1]} : vector<32x904xbf16> to vector<32x840xbf16>
    %27 = vector.extract_strided_slice %25 {offsets = [0, 1], sizes = [32, 840], strides = [1, 1]} : vector<32x904xbf16> to vector<32x840xbf16>
    %28 = vector.extract_strided_slice %25 {offsets = [0, 2], sizes = [32, 840], strides = [1, 1]} : vector<32x904xbf16> to vector<32x840xbf16>
    %29 = vector.extract_strided_slice %25 {offsets = [0, 30], sizes = [32, 840], strides = [1, 1]} : vector<32x904xbf16> to vector<32x840xbf16>
    %30 = vector.extract_strided_slice %25 {offsets = [0, 31], sizes = [32, 840], strides = [1, 1]} : vector<32x904xbf16> to vector<32x840xbf16>
    %31 = vector.extract_strided_slice %25 {offsets = [0, 32], sizes = [32, 840], strides = [1, 1]} : vector<32x904xbf16> to vector<32x840xbf16>
    %32 = vector.extract_strided_slice %25 {offsets = [0, 60], sizes = [32, 840], strides = [1, 1]} : vector<32x904xbf16> to vector<32x840xbf16>
    %33 = vector.extract_strided_slice %25 {offsets = [0, 61], sizes = [32, 840], strides = [1, 1]} : vector<32x904xbf16> to vector<32x840xbf16>
    %34 = vector.extract_strided_slice %25 {offsets = [0, 62], sizes = [32, 840], strides = [1, 1]} : vector<32x904xbf16> to vector<32x840xbf16>
    %35 = tpu.concatenate %26, %27, %28, %29, %30, %31, %32, %33, %34 in 0 : vector<32x840xbf16>, vector<32x840xbf16>, vector<32x840xbf16>, vector<32x840xbf16>, vector<32x840xbf16>, vector<32x840xbf16>, vector<32x840xbf16>, vector<32x840xbf16>, vector<32x840xbf16> -> vector<288x840xbf16>
    %cst_12 = arith.constant dense<0.000000e+00> : vector<64x840xf32>
    %36 = tpu.matmul %1, %35, %cst_12 {dimension_numbers = #tpu.dot_dimension_numbers<[1], [0], [0], [1], [0, 0, 1, 1], [], []>} : vector<64x288xbf16>, vector<288x840xbf16>, vector<64x840xf32> -> vector<64x840xf32>
    %cst_13 = arith.constant 0.000000e+00 : f32
    %37 = vector.broadcast %cst_13 : f32 to vector<64x840xf32>
    %38 = arith.maximumf %36, %37 : vector<64x840xf32>
    %39 = arith.truncf %38 : vector<64x840xf32> to vector<64x840xbf16>
    %40 = vector.extract_strided_slice %39 {offsets = [0, 0], sizes = [64, 809], strides = [1, 1]} : vector<64x840xbf16> to vector<64x809xbf16>
    %41 = vector.extract_strided_slice %39 {offsets = [0, 1], sizes = [64, 809], strides = [1, 1]} : vector<64x840xbf16> to vector<64x809xbf16>
    %42 = arith.maximumf %40, %41 : vector<64x809xbf16>
    %43 = vector.extract_strided_slice %39 {offsets = [0, 30], sizes = [64, 809], strides = [1, 1]} : vector<64x840xbf16> to vector<64x809xbf16>
    %44 = vector.extract_strided_slice %39 {offsets = [0, 31], sizes = [64, 809], strides = [1, 1]} : vector<64x840xbf16> to vector<64x809xbf16>
    %45 = arith.maximumf %43, %44 : vector<64x809xbf16>
    %46 = arith.maximumf %42, %45 : vector<64x809xbf16>
    %cst_14 = arith.constant dense<0.000000e+00> : vector<64x196xf32>
    %47 = tpu.matmul %46, %3, %cst_14 {dimension_numbers = #tpu.dot_dimension_numbers<[1], [0], [0], [1], [0, 0, 1, 1], [], []>} : vector<64x809xbf16>, vector<809x196xbf16>, vector<64x196xf32> -> vector<64x196xf32>
    %48 = arith.truncf %47 : vector<64x196xf32> to vector<64x196xbf16>
    %49 = arith.index_cast %c0_i32 : i32 to index
    %c0_15 = arith.constant 0 : index
    %c0_16 = arith.constant 0 : index
    %50 = vector.load %arg6[%49, %c0_15, %c0_16] : memref<1x64x196xbf16, #tpu.memory_space<vmem>>, vector<1x64x196xbf16>
    %51 = vector.shape_cast %50 : vector<1x64x196xbf16> to vector<64x196xbf16>
    %52 = vector.shape_cast %48 : vector<64x196xbf16> to vector<1x64x196xbf16>
    tpu.vector_store %arg6[%49, %c0_15, %c0_16], %52 {strides = array<i32>} : memref<1x64x196xbf16, #tpu.memory_space<vmem>>, vector<1x64x196xbf16>,
    %c1_i32 = arith.constant 1 : i32
    return
  }
  func.func @transform_0(%arg0: i32) -> (i32, i32, i32) {
    %c0_i32 = arith.constant 0 : i32
    %c0_i32_0 = arith.constant 0 : i32
    %c0_i32_1 = arith.constant 0 : i32
    return %arg0, %c0_i32, %c0_i32_0 : i32, i32, i32
  }
  func.func @transform_1(%arg0: i32) -> (i32, i32) {
    %c0_i32 = arith.constant 0 : i32
    %c0_i32_0 = arith.constant 0 : i32
    %c0_i32_1 = arith.constant 0 : i32
    return %c0_i32, %c0_i32_0 : i32, i32
  }
  func.func @transform_2(%arg0: i32) -> (i32, i32) {
    %c0_i32 = arith.constant 0 : i32
    %c0_i32_0 = arith.constant 0 : i32
    %c0_i32_1 = arith.constant 0 : i32
    return %c0_i32, %c0_i32_0 : i32, i32
  }
  func.func @transform_3(%arg0: i32) -> (i32, i32) {
    %c0_i32 = arith.constant 0 : i32
    %c0_i32_0 = arith.constant 0 : i32
    %c0_i32_1 = arith.constant 0 : i32
    return %c0_i32, %c0_i32_0 : i32, i32
  }
  func.func @transform_4(%arg0: i32) -> (i32, i32) {
    %c0_i32 = arith.constant 0 : i32
    %c0_i32_0 = arith.constant 0 : i32
    %c0_i32_1 = arith.constant 0 : i32
    return %c0_i32, %c0_i32_0 : i32, i32
  }
  func.func @transform_5(%arg0: i32) -> (i32, i32, i32) {
    %c0_i32 = arith.constant 0 : i32
    %c0_i32_0 = arith.constant 0 : i32
    %c0_i32_1 = arith.constant 0 : i32
    return %arg0, %c0_i32, %c0_i32_0 : i32, i32, i32
  }
}

</mosaic_0001>

<llo_original>
// kernel: lenet_forward.2
$region0: #{lenet_forward.2}
  #allocation0 [shape = 'u32[]', space=smem, size = 0x4, offset = 0x4, fixed_abs, tag = 'smem constant byte address 0x4 - core index']
  #allocation1 [shape = 'u32[144,128]{1,0:T(1,128)}', space=vmem, size = 0x12000, scoped, tag = 'internal scratch']
  %s0 = inlined_call_operand.vmem [shape: bf16[2,1,904], index: 0, kind: input, shape index: {}]
  %s1 = inlined_call_operand.vmem [shape: bf16[32,9], index: 1, kind: input, shape index: {}]
  %s2 = inlined_call_operand.hbm [shape: bf16[64,288], index: 2, kind: input, shape index: {}]
  %s3 = inlined_call_operand.hbm [shape: f32[1,840], index: 3, kind: input, shape index: {}]
  %s4 = inlined_call_operand.vmem [shape: bf16[809,196], index: 4, kind: input, shape index: {}]
  %s5 = inlined_call_operand.vmem [shape: bf16[2,64,196], index: 5, kind: output, shape index: {}]
  %s6 = sld [smem:[#allocation0]]
  $region61: #{lenet_forward.2} parent=0
    _
  %s8 = ssub.s32 1, %s6
  %s9 = scalar_select 0, %s8, %s6
  $region1: #{lenet_forward.2} parent=0
    #allocation2 [shape = 'u8[49152]{0}', space=vmem, size = 0xc000, scoped, tag = 'input window, operand 2, single buffered']
    #allocation3 [shape = 's32[2]{0}', space=sflag, size = 0x8, scoped, tag = 'scoped memory for lenet_forward.2']
    #allocation4 [shape = 'u8[3584]{0}', space=vmem, size = 0x1000, scoped, tag = 'input window, operand 3, single buffered']
    #allocation5 [shape = 's32[1]{0}', space=sflag, size = 0x4, scoped, tag = 'scoped memory for lenet_forward.2']
    %10 = vsyncpa [#allocation3], 0
    %11 = vsyncpa [#allocation5], 0
    loop: start=0, step=1, limit=4
    $region2: #{lenet_forward.2} parent=1 // loop_pre_header
      _
    $region3: #{lenet_forward.2} parent=1 // loop_header
      %s13 = sphi 0, %s17
      %p14 = scmp.ge.s32.totalorder %s13, 4
      %s23 = sphi 0, %s25
      %s26 = sphi 0, %s23
      %s27 = sphi 0, %s26
      %s43 = sphi 0, %s27
      %s47 = sphi 0, %s47
      %s49 = sphi 0, %s47
      %s50 = sphi 0, %s49
      %s64 = sphi 0, %s50
      %s68 = sphi 0, %s68
      %s70 = sphi 0, %s68
      %s71 = sphi 0, %s70
      %s85 = sphi 0, %s71
      %s89 = sphi 0, %s89
      %s91 = sphi 0, %s89
      %s92 = sphi 0, %s91
      %s106 = sphi 0, %s92
      %s110 = sphi 0, %s110
      %s112 = sphi 0, %s110
      %s113 = sphi 0, %s112
      %s127 = sphi 0, %s113
      %s133 = sphi 0, %s135
      %s136 = sphi 0, %s133
      %s137 = sphi 0, %s136
      %s153 = sphi 0, %s137
    $region4: #{lenet_forward.2} parent=1 // loop_header_branch
      %16 = sbr.rel (%p14) target = $region8
    $region5: #{lenet_forward.2} parent=1 // loop_body
      %s18 = ssub.s32 %s13, 1
      %s19 = ssub.s32 %s13, 2
      %s20 = sadd.s32 %s13, 1
      %s21 = ssub.s32 %s13, %s20
      %p22 = scmp.eq.s32.totalorder %s21, 0
      %s24 = sadd.s32 %s23, 1
      %s25 = scalar_select %p22, %s23, %s24
      %p28 = pneg %p22
      %p29 = scmp.eq.s32.totalorder %s13, 1
      %p30 = por %p28, %p29
      %p31 = scmp.ne.s32.totalorder %s23, %s26
      %p32 = scmp.eq.s32.totalorder %s13, 0
      %p33 = por %p31, %p32
      %p34 = scmp.ne.s32.totalorder %s23, %s26
      %p35 = scmp.eq.s32.totalorder %s18, 1
      %p36 = por %p34, %p35
      %p37 = scmp.ne.s32.totalorder %s26, %s27
      %p38 = scmp.eq.s32.totalorder %s18, 0
      %p39 = por %p37, %p38
      %p40 = scmp.ne.s32.totalorder %s26, %s27
      %p41 = scmp.eq.s32.totalorder %s19, 1
      %p42 = por %p40, %p41
      %p44 = scmp.ne.s32.totalorder %s27, %s43
      %p45 = scmp.eq.s32.totalorder %s19, 0
      %p46 = por %p44, %p45
      %s48 = sadd.s32 %s47, 1
      %p51 = scmp.eq.s32.totalorder %s13, 1
      %p52 = scmp.ne.s32.totalorder %s47, %s49
      %p53 = scmp.eq.s32.totalorder %s13, 0
      %p54 = por %p52, %p53
      %p55 = scmp.ne.s32.totalorder %s47, %s49
      %p56 = scmp.eq.s32.totalorder %s18, 1
      %p57 = por %p55, %p56
      %p58 = scmp.ne.s32.totalorder %s49, %s50
      %p59 = scmp.eq.s32.totalorder %s18, 0
      %p60 = por %p58, %p59
      %p61 = scmp.ne.s32.totalorder %s49, %s50
      %p62 = scmp.eq.s32.totalorder %s19, 1
      %p63 = por %p61, %p62
      %p65 = scmp.ne.s32.totalorder %s50, %s64
      %p66 = scmp.eq.s32.totalorder %s19, 0
      %p67 = por %p65, %p66
      %s69 = sadd.s32 %s68, 1
      %p72 = scmp.eq.s32.totalorder %s13, 1
      %p73 = scmp.ne.s32.totalorder %s68, %s70
      %p74 = scmp.eq.s32.totalorder %s13, 0
      %p75 = por %p73, %p74
      %p76 = scmp.ne.s32.totalorder %s68, %s70
      %p77 = scmp.eq.s32.totalorder %s18, 1
      %p78 = por %p76, %p77
      %p79 = scmp.ne.s32.totalorder %s70, %s71
      %p80 = scmp.eq.s32.totalorder %s18, 0
      %p81 = por %p79, %p80
      %p82 = scmp.ne.s32.totalorder %s70, %s71
      %p83 = scmp.eq.s32.totalorder %s19, 1
      %p84 = por %p82, %p83
      %p86 = scmp.ne.s32.totalorder %s71, %s85
      %p87 = scmp.eq.s32.totalorder %s19, 0
      %p88 = por %p86, %p87
      %s90 = sadd.s32 %s89, 1
      %p93 = scmp.eq.s32.totalorder %s13, 1
      %p94 = scmp.ne.s32.totalorder %s89, %s91
      %p95 = scmp.eq.s32.totalorder %s13, 0
      %p96 = por %p94, %p95
      %p97 = scmp.ne.s32.totalorder %s89, %s91
      %p98 = scmp.eq.s32.totalorder %s18, 1
      %p99 = por %p97, %p98
      %p100 = scmp.ne.s32.totalorder %s91, %s92
      %p101 = scmp.eq.s32.totalorder %s18, 0
      %p102 = por %p100, %p101
      %p103 = scmp.ne.s32.totalorder %s91, %s92
      %p104 = scmp.eq.s32.totalorder %s19, 1
      %p105 = por %p103, %p104
      %p107 = scmp.ne.s32.totalorder %s92, %s106
      %p108 = scmp.eq.s32.totalorder %s19, 0
      %p109 = por %p107, %p108
      %s111 = sadd.s32 %s110, 1
      %p114 = scmp.eq.s32.totalorder %s13, 1
      %p115 = scmp.ne.s32.totalorder %s110, %s112
      %p116 = scmp.eq.s32.totalorder %s13, 0
      %p117 = por %p115, %p116
      %p118 = scmp.ne.s32.totalorder %s110, %s112
      %p119 = scmp.eq.s32.totalorder %s18, 1
      %p120 = por %p118, %p119
      %p121 = scmp.ne.s32.totalorder %s112, %s113
      %p122 = scmp.eq.s32.totalorder %s18, 0
      %p123 = por %p121, %p122
      %p124 = scmp.ne.s32.totalorder %s112, %s113
      %p125 = scmp.eq.s32.totalorder %s19, 1
      %p126 = por %p124, %p125
      %p128 = scmp.ne.s32.totalorder %s113, %s127
      %p129 = scmp.eq.s32.totalorder %s19, 0
      %p130 = por %p128, %p129
      %s131 = ssub.s32 %s13, %s20
      %p132 = scmp.eq.s32.totalorder %s131, 0
      %s134 = sadd.s32 %s133, 1
      %s135 = scalar_select %p132, %s133, %s134
      %p138 = pneg %p132
      %p139 = scmp.eq.s32.totalorder %s13, 1
      %p140 = por %p138, %p139
      %p141 = scmp.ne.s32.totalorder %s133, %s136
      %p142 = scmp.eq.s32.totalorder %s13, 0
      %p143 = por %p141, %p142
      %p144 = scmp.ne.s32.totalorder %s133, %s136
      %p145 = scmp.eq.s32.totalorder %s18, 1
      %p146 = por %p144, %p145
      %p147 = scmp.ne.s32.totalorder %s136, %s137
      %p148 = scmp.eq.s32.totalorder %s18, 0
      %p149 = por %p147, %p148
      %p150 = scmp.ne.s32.totalorder %s136, %s137
      %p151 = scmp.eq.s32.totalorder %s19, 1
      %p152 = por %p150, %p151
      %p154 = scmp.ne.s32.totalorder %s137, %s153
      %p155 = scmp.eq.s32.totalorder %s19, 0
      %p156 = por %p154, %p155
      %p157 = scmp.le.s32.totalorder 1, %s13
      %p158 = scmp.lt.s32.totalorder %s13, 3
      %p159 = pnand %p157, %p158
      %p160 = pneg %p159
      // Predicated region
      $region9: #{lenet_forward.2} parent=5 // pred_check
        _
      $region10: #{lenet_forward.2} parent=5 // pred_check_branch
        %162 = sbr.rel (%p159) target = $region12
      $region11: #{lenet_forward.2} parent=5 // pred_region
        %s163 = ssub.s32 %s13, 1
        // Predicated region
        $region13: #{lenet_forward.2} parent=11 // pred_check
          %p164 = pneg %p60
        $region14: #{lenet_forward.2} parent=11 // pred_check_branch
          %166 = sbr.rel (%p164) target = $region16
        $region15: #{lenet_forward.2} parent=11 // pred_region
          _
        $region16: #{lenet_forward.2} parent=11 // pred_fallthru
          _
        // Predicated region
        $region17: #{lenet_forward.2} parent=11 // pred_check
          %p167 = pneg %p81
        $region18: #{lenet_forward.2} parent=11 // pred_check_branch
          %169 = sbr.rel (%p167) target = $region20
        $region19: #{lenet_forward.2} parent=11 // pred_region
          %s171 = ssub.s32 1536, 1536
          %172 = vsyncadd [#allocation3], %s171
          %s173 = sshll.u32 [#allocation2], 4
          %s174 = int_to_ptr.vmem [resolvable:$true] %s173
          %179 = dma.hbm_to_vmem [thread:$0]  %s2, 1536, %s174, [#allocation3], 192, 192, 12
        $region20: #{lenet_forward.2} parent=11 // pred_fallthru
          _
        // Predicated region
        $region21: #{lenet_forward.2} parent=11 // pred_check
          %p180 = pneg %p102
        $region22: #{lenet_forward.2} parent=11 // pred_check_branch
          %182 = sbr.rel (%p180) target = $region24
        $region23: #{lenet_forward.2} parent=11 // pred_region
          %s184 = ssub.s32 112, 112
          %185 = vsyncadd [#allocation5], %s184
          %s187 = sshll.u32 [#allocation4], 4
          %s188 = int_to_ptr.vmem [resolvable:$true] %s187
          %190 = dma.hbm_to_vmem [thread:$0]  %s3, 112, %s188, [#allocation5]
        $region24: #{lenet_forward.2} parent=11 // pred_fallthru
          _
        // Predicated region
        $region25: #{lenet_forward.2} parent=11 // pred_check
          %p191 = pneg %p123
        $region26: #{lenet_forward.2} parent=11 // pred_check_branch
          %193 = sbr.rel (%p191) target = $region28
        $region27: #{lenet_forward.2} parent=11 // pred_region
          _
        $region28: #{lenet_forward.2} parent=11 // pred_fallthru
          _
      $region12: #{lenet_forward.2} parent=5 // pred_fallthru
        _
      %p194 = scmp.lt.s32.totalorder %s13, 2
      // Predicated region
      $region29: #{lenet_forward.2} parent=5 // pred_check
        %p195 = pneg %p194
      $region30: #{lenet_forward.2} parent=5 // pred_check_branch
        %197 = sbr.rel (%p195) target = $region32
      $region31: #{lenet_forward.2} parent=5 // pred_region
        // Predicated region
        $region33: #{lenet_forward.2} parent=31 // pred_check
          %p198 = pneg %p33
        $region34: #{lenet_forward.2} parent=31 // pred_check_branch
          %200 = sbr.rel (%p198) target = $region36
        $region35: #{lenet_forward.2} parent=31 // pred_region
          %p201 = scmp.lt.s32.totalorder %s13, 1
          %s202 = scalar_select %p201, %s13, 1
          %s203 = smul.addr %s202, 8
          %s204 = scalar_lea.vmem %s0, %s203
        $region36: #{lenet_forward.2} parent=31 // pred_fallthru
          _
      $region32: #{lenet_forward.2} parent=5 // pred_fallthru
        _
      %p205 = scmp.le.s32.totalorder 1, %s13
      %p206 = scmp.lt.s32.totalorder %s13, 3
      %p207 = pnand %p205, %p206
      %p208 = pneg %p207
      // Predicated region
      $region37: #{lenet_forward.2} parent=5 // pred_check
        _
      $region38: #{lenet_forward.2} parent=5 // pred_check_branch
        %210 = sbr.rel (%p207) target = $region40
      $region39: #{lenet_forward.2} parent=5 // pred_region
        %s211 = ssub.s32 %s13, 1
        // Predicated region
        $region41: #{lenet_forward.2} parent=39 // pred_check
          %p212 = pneg %p81
        $region42: #{lenet_forward.2} parent=39 // pred_check_branch
          %214 = sbr.rel (%p212) target = $region44
        $region43: #{lenet_forward.2} parent=39 // pred_region
          %215 = dma.done [#allocation3], 1536
        $region44: #{lenet_forward.2} parent=39 // pred_fallthru
          _
        // Predicated region
        $region45: #{lenet_forward.2} parent=39 // pred_check
          %p216 = pneg %p102
        $region46: #{lenet_forward.2} parent=39 // pred_check_branch
          %218 = sbr.rel (%p216) target = $region48
        $region47: #{lenet_forward.2} parent=39 // pred_region
          %219 = dma.done [#allocation5], 112
        $region48: #{lenet_forward.2} parent=39 // pred_fallthru
          _
        %p220 = scmp.lt.s32.totalorder %s18, 1
        %s221 = scalar_select %p220, %s18, 1
        %s222 = smul.addr %s221, 8
        %s223 = scalar_lea.vmem %s0, %s222
        %p224 = pneg %p39
        %p225 = pneg %p36
        %p226 = pneg %p60
        %p227 = pneg %p57
        %p228 = pneg %p81
        %p229 = pneg %p78
        %p230 = pneg %p102
        %p231 = pneg %p99
        %p232 = pneg %p123
        %p233 = pneg %p120
        %p234 = pneg %p149
        %p235 = pneg %p146
        %p236 = scmp.lt.s32.totalorder %s18, 1
        %s237 = scalar_select %p236, %s18, 1
        %s238 = smul.addr %s237, 16
        %s239 = smul.addr %s238, 4
        %s240 = scalar_lea.vmem %s5, %s239
        %p241 = scmp.lt.s32.totalorder %s18, 1
        %s242 = scalar_select %p241, %s18, 1
        %s243 = smul.addr %s242, 8
        %s244 = scalar_lea.vmem %s0, %s243
        %p245 = scmp.lt.s32.totalorder %s18, 1
        %s246 = scalar_select %p245, %s18, 1
        %s247 = smul.addr %s246, 16
        %s248 = smul.addr %s247, 4
        %s249 = scalar_lea.vmem %s5, %s248
        %v251 = vld [vmem:[%s1] sm:$0xf]
        %v252 = vld [vmem:[%s1 + $0x4] sm:$0xf]
        %v253 = vld [vmem:[%s1 + $0x8] sm:$0xf]
        %v254 = vld [vmem:[%s1 + $0xc] sm:$0xf]
        %v255 = vld [vmem:[#allocation2] sm:$0xff]
        %v256 = vld [vmem:[#allocation2 + $0x8] sm:$0xf]
        %v257 = vld [vmem:[#allocation2 + $0xc] sm:$0xff]
        %v258 = vld [vmem:[#allocation2 + $0x14] sm:$0xf]
        %v259 = vld [vmem:[#allocation2 + $0x18] sm:$0xff]
        %v260 = vld [vmem:[#allocation2 + $0x20] sm:$0xf]
        %v261 = vld [vmem:[#allocation2 + $0x24] sm:$0xff]
        %v262 = vld [vmem:[#allocation2 + $0x2c] sm:$0xf]
        %v263 = vld [vmem:[#allocation2 + $0x30] sm:$0xff]
        %v264 = vld [vmem:[#allocation2 + $0x38] sm:$0xf]
        %v265 = vld [vmem:[#allocation2 + $0x3c] sm:$0xff]
        %v266 = vld [vmem:[#allocation2 + $0x44] sm:$0xf]
        %v267 = vld [vmem:[#allocation2 + $0x48] sm:$0xff]
        %v268 = vld [vmem:[#allocation2 + $0x50] sm:$0xf]
        %v269 = vld [vmem:[#allocation2 + $0x54] sm:$0xff]
        %v270 = vld [vmem:[#allocation2 + $0x5c] sm:$0xf]
        %v271 = vld [vmem:[#allocation4] sm:$0x7f]
        %v272 = vld [vmem:[%s4] sm:$0xff]
        %v273 = vld [vmem:[%s4 + $0x8] sm:$0xff]
        %v274 = vld [vmem:[%s4 + $0x10] sm:$0xff]
        %v275 = vld [vmem:[%s4 + $0x18] sm:$0xff]
        %v276 = vld [vmem:[%s4 + $0x20] sm:$0xff]
        %v277 = vld [vmem:[%s4 + $0x28] sm:$0xff]
        %v278 = vld [vmem:[%s4 + $0x30] sm:$0xff]
        %v279 = vld [vmem:[%s4 + $0x38] sm:$0xff]
        %v280 = vld [vmem:[%s4 + $0x40] sm:$0xff]
        %v281 = vld [vmem:[%s4 + $0x48] sm:$0xff]
        %v282 = vld [vmem:[%s4 + $0x50] sm:$0xff]
        %v283 = vld [vmem:[%s4 + $0x58] sm:$0xff]
        %v284 = vld [vmem:[%s4 + $0x60] sm:$0xff]
        %v285 = vld [vmem:[%s4 + $0x68] sm:$0xff]
        %v286 = vld [vmem:[%s4 + $0x70] sm:$0xff]
        %v287 = vld [vmem:[%s4 + $0x78] sm:$0xff]
        %v288 = vld [vmem:[%s4 + $0x80] sm:$0xff]
        %v289 = vld [vmem:[%s4 + $0x88] sm:$0xff]
        %v290 = vld [vmem:[%s4 + $0x90] sm:$0xff]
        %v291 = vld [vmem:[%s4 + $0x98] sm:$0xff]
        %v292 = vld [vmem:[%s4 + $0xa0] sm:$0xff]
        %v293 = vld [vmem:[%s4 + $0xa8] sm:$0xff]
        %v294 = vld [vmem:[%s4 + $0xb0] sm:$0xff]
        %v295 = vld [vmem:[%s4 + $0xb8] sm:$0xff]
        %v296 = vld [vmem:[%s4 + $0xc0] sm:$0xff]
        %v297 = vld [vmem:[%s4 + $0xc8] sm:$0xff]
        %v298 = vld [vmem:[%s4 + $0xd0] sm:$0xff]
        %v299 = vld [vmem:[%s4 + $0xd8] sm:$0xff]
        %v300 = vld [vmem:[%s4 + $0xe0] sm:$0xff]
        %v301 = vld [vmem:[%s4 + $0xe8] sm:$0xff]
        %v302 = vld [vmem:[%s4 + $0xf0] sm:$0xff]
        %v303 = vld [vmem:[%s4 + $0xf8] sm:$0xff]
        %v304 = vld [vmem:[%s4 + $0x100] sm:$0xff]
        %v305 = vld [vmem:[%s4 + $0x108] sm:$0xff]
        %v306 = vld [vmem:[%s4 + $0x110] sm:$0xff]
        %v307 = vld [vmem:[%s4 + $0x118] sm:$0xff]
        %v308 = vld [vmem:[%s4 + $0x120] sm:$0xff]
        %v309 = vld [vmem:[%s4 + $0x128] sm:$0xff]
        %v310 = vld [vmem:[%s4 + $0x130] sm:$0xff]
        %v311 = vld [vmem:[%s4 + $0x138] sm:$0xff]
        %v312 = vld [vmem:[%s4 + $0x140] sm:$0xff]
        %v313 = vld [vmem:[%s4 + $0x148] sm:$0xff]
        %v314 = vld [vmem:[%s4 + $0x150] sm:$0xff]
        %v315 = vld [vmem:[%s4 + $0x158] sm:$0xff]
        %v316 = vld [vmem:[%s4 + $0x160] sm:$0xff]
        %v317 = vld [vmem:[%s4 + $0x168] sm:$0xff]
        %v318 = vld [vmem:[%s4 + $0x170] sm:$0xff]
        %v319 = vld [vmem:[%s4 + $0x178] sm:$0xff]
        %v320 = vld [vmem:[%s4 + $0x180] sm:$0xff]
        %v321 = vld [vmem:[%s4 + $0x188] sm:$0xff]
        %v322 = vld [vmem:[%s4 + $0x190] sm:$0xff]
        %v323 = vld [vmem:[%s4 + $0x198] sm:$0xff]
        %v324 = vld [vmem:[%s4 + $0x1a0] sm:$0xff]
        %v325 = vld [vmem:[%s4 + $0x1a8] sm:$0xff]
        %v326 = vld [vmem:[%s4 + $0x1b0] sm:$0xff]
        %v327 = vld [vmem:[%s4 + $0x1b8] sm:$0xff]
        %v328 = vld [vmem:[%s4 + $0x1c0] sm:$0xff]
        %v329 = vld [vmem:[%s4 + $0x1c8] sm:$0xff]
        %v330 = vld [vmem:[%s4 + $0x1d0] sm:$0xff]
        %v331 = vld [vmem:[%s4 + $0x1d8] sm:$0xff]
        %v332 = vld [vmem:[%s4 + $0x1e0] sm:$0xff]
        %v333 = vld [vmem:[%s4 + $0x1e8] sm:$0xff]
        %v334 = vld [vmem:[%s4 + $0x1f0] sm:$0xff]
        %v335 = vld [vmem:[%s4 + $0x1f8] sm:$0xff]
        %v336 = vld [vmem:[%s4 + $0x200] sm:$0xff]
        %v337 = vld [vmem:[%s4 + $0x208] sm:$0xff]
        %v338 = vld [vmem:[%s4 + $0x210] sm:$0xff]
        %v339 = vld [vmem:[%s4 + $0x218] sm:$0xff]
        %v340 = vld [vmem:[%s4 + $0x220] sm:$0xff]
        %v341 = vld [vmem:[%s4 + $0x228] sm:$0xff]
        %v342 = vld [vmem:[%s4 + $0x230] sm:$0xff]
        %v343 = vld [vmem:[%s4 + $0x238] sm:$0xff]
        %v344 = vld [vmem:[%s4 + $0x240] sm:$0xff]
        %v345 = vld [vmem:[%s4 + $0x248] sm:$0xff]
        %v346 = vld [vmem:[%s4 + $0x250] sm:$0xff]
        %v347 = vld [vmem:[%s4 + $0x258] sm:$0xff]
        %v348 = vld [vmem:[%s4 + $0x260] sm:$0xff]
        %v349 = vld [vmem:[%s4 + $0x268] sm:$0xff]
        %v350 = vld [vmem:[%s4 + $0x270] sm:$0xff]
        %v351 = vld [vmem:[%s4 + $0x278] sm:$0xff]
        %v352 = vld [vmem:[%s4 + $0x280] sm:$0xff]
        %v353 = vld [vmem:[%s4 + $0x288] sm:$0xff]
        %v354 = vld [vmem:[%s4 + $0x290] sm:$0xff]
        %v355 = vld [vmem:[%s4 + $0x298] sm:$0xff]
        %v356 = vld [vmem:[%s4 + $0x2a0] sm:$0xff]
        %v357 = vld [vmem:[%s4 + $0x2a8] sm:$0xff]
        %v358 = vld [vmem:[%s4 + $0x2b0] sm:$0xff]
        %v359 = vld [vmem:[%s4 + $0x2b8] sm:$0xff]
        %v360 = vld [vmem:[%s4 + $0x2c0] sm:$0xff]
        %v361 = vld [vmem:[%s4 + $0x2c8] sm:$0xff]
        %v362 = vld [vmem:[%s4 + $0x2d0] sm:$0xff]
        %v363 = vld [vmem:[%s4 + $0x2d8] sm:$0xff]
        %v364 = vld [vmem:[%s4 + $0x2e0] sm:$0xff]
        %v365 = vld [vmem:[%s4 + $0x2e8] sm:$0xff]
        %v366 = vld [vmem:[%s4 + $0x2f0] sm:$0xff]
        %v367 = vld [vmem:[%s4 + $0x2f8] sm:$0xff]
        %v368 = vld [vmem:[%s4 + $0x300] sm:$0xff]
        %v369 = vld [vmem:[%s4 + $0x308] sm:$0xff]
        %v370 = vld [vmem:[%s4 + $0x310] sm:$0xff]
        %v371 = vld [vmem:[%s4 + $0x318] sm:$0xff]
        %v372 = vld [vmem:[%s4 + $0x320] sm:$0xff]
        %v373 = vld [vmem:[%s4 + $0x328] sm:$0x11]
        %v374 = vld [vmem:[%s244] sm:$0xff]
        %v376 = vcombine.high %v374, %v374
        %v378 = vunpack.c.l.s4 1966171168
        %v379 = vunpack.c.0.s8 %v378
        %v380 = vlaneseq
        %v381 = vshrl.u32 %v380, 7
        %v382 = vsub.s32 %v379, %v381
        %v383 = vrot.slane %v374, %v382
        %v385 = vunpack.c.l.s4 1966171168
        %v386 = vunpack.c.0.s8 %v385
        %v387 = vlaneseq
        %v388 = vshrl.u32 %v387, 7
        %v389 = vsub.s32 %v386, %v388
        %v390 = vrot.slane %v376, %v389
        %v391 = vcombine.high %v383, %v383
        %v392 = vcombine.high %v390, %v390
        %v394 = vunpack.c.l.s4 1966171168
        %v395 = vunpack.c.0.s8 %v394
        %v396 = vlaneseq
        %v397 = vshrl.u32 %v396, 7
        %v398 = vsub.s32 %v395, %v397
        %v399 = vrot.slane %v383, %v398
        %v401 = vunpack.c.l.s4 1966171168
        %v402 = vunpack.c.0.s8 %v401
        %v403 = vlaneseq
        %v404 = vshrl.u32 %v403, 7
        %v405 = vsub.s32 %v402, %v404
        %v406 = vrot.slane %v390, %v405
        %v408 = vunpack.c.l.s4 1966171168
        %v409 = vunpack.c.0.s8 %v408
        %v410 = vlaneseq
        %v411 = vshrl.u32 %v410, 7
        %v412 = vsub.s32 %v409, %v411
        %v413 = vrot.slane %v391, %v412
        %v415 = vunpack.c.l.s4 1966171168
        %v416 = vunpack.c.0.s8 %v415
        %v417 = vlaneseq
        %v418 = vshrl.u32 %v417, 7
        %v419 = vsub.s32 %v416, %v418
        %v420 = vrot.slane %v392, %v419
        %v421 = vcombine.high %v399, %v399
        %v422 = vcombine.high %v406, %v406
        %v423 = vcombine.high %v413, %v413
        %v432 = vshll.u32 %v399, 16
        %v435 = vshll.u32 %v413, 16
        %v438 = vshll.u32 %v421, 16
        %v441 = vshll.u32 %v423, 16
        %v444 = vshll.u32 %v406, 16
        %v447 = vshll.u32 %v420, 16
        %v450 = vshll.u32 %v422, 16
        %452 = vrot.lane.b32.xlu0 %v432, 127
        %v453 = vpop.permute.xlu0 %452
        %454 = vrot.lane.b32.xlu0 %v435, 127
        %v455 = vpop.permute.xlu0 %454
        %456 = vrot.lane.b32.xlu0 %v438, 127
        %v457 = vpop.permute.xlu0 %456
        %458 = vrot.lane.b32.xlu0 %v441, 127
        %v459 = vpop.permute.xlu0 %458
        %460 = vrot.lane.b32.xlu0 %v444, 127
        %v461 = vpop.permute.xlu0 %460
        %462 = vrot.lane.b32.xlu0 %v447, 127
        %v463 = vpop.permute.xlu0 %462
        %464 = vrot.lane.b32.xlu0 %v450, 127
        %v465 = vpop.permute.xlu0 %464
        %vm466 = vcmask 1039360
        %v467 = vsel %vm466, %v453, %v455
        %v468 = vsel %vm466, %v455, %v457
        %v469 = vsel %vm466, %v457, %v459
        %v470 = vsel %vm466, %v459, %v461
        %v471 = vsel %vm466, %v461, %v463
        %v472 = vsel %vm466, %v463, %v465
        %v480 = vcombine.low %v374, %v374
        %v482 = vunpack.c.l.s4 1966171168
        %v483 = vunpack.c.0.s8 %v482
        %v484 = vlaneseq
        %v485 = vshrl.u32 %v484, 7
        %v486 = vsub.s32 %v483, %v485
        %v487 = vrot.slane %v480, %v486
        %v488 = vcombine.high %v487, %v487
        %v490 = vunpack.c.l.s4 1966171168
        %v491 = vunpack.c.0.s8 %v490
        %v492 = vlaneseq
        %v493 = vshrl.u32 %v492, 7
        %v494 = vsub.s32 %v491, %v493
        %v495 = vrot.slane %v487, %v494
        %v497 = vunpack.c.l.s4 1966171168
        %v498 = vunpack.c.0.s8 %v497
        %v499 = vlaneseq
        %v500 = vshrl.u32 %v499, 7
        %v501 = vsub.s32 %v498, %v500
        %v502 = vrot.slane %v488, %v501
        %v503 = vcombine.high %v495, %v495
        %v504 = vcombine.high %v502, %v502
        %505 = vrot.lane.b32.xlu0 %v495, 126
        %v506 = vpop.permute.xlu0 %505
        %507 = vrot.lane.b32.xlu0 %v502, 126
        %v508 = vpop.permute.xlu0 %507
        %509 = vrot.lane.b32.xlu0 %v503, 126
        %v510 = vpop.permute.xlu0 %509
        %511 = vrot.lane.b32.xlu0 %v504, 126
        %v512 = vpop.permute.xlu0 %511
        %513 = vrot.lane.b32.xlu0 %v399, 126
        %v514 = vpop.permute.xlu0 %513
        %515 = vrot.lane.b32.xlu0 %v413, 126
        %v516 = vpop.permute.xlu0 %515
        %517 = vrot.lane.b32.xlu0 %v421, 126
        %v518 = vpop.permute.xlu0 %517
        %vm519 = vcmask 1031168
        %v520 = vsel %vm519, %v506, %v508
        %v521 = vsel %vm519, %v508, %v510
        %v522 = vsel %vm519, %v510, %v512
        %v523 = vsel %vm519, %v512, %v514
        %v524 = vsel %vm519, %v514, %v516
        %v525 = vsel %vm519, %v516, %v518
        %v526 = vrot.slane %v432, 7
        %v527 = vrot.slane %v435, 7
        %v528 = vrot.slane %v438, 7
        %v529 = vrot.slane %v441, 7
        %v530 = vrot.slane %v444, 7
        %v531 = vrot.slane %v447, 7
        %v532 = vrot.slane %v450, 7
        %533 = vrot.lane.b32.xlu0 %v526, 98
        %v534 = vpop.permute.xlu0 %533
        %535 = vrot.lane.b32.xlu0 %v527, 98
        %v536 = vpop.permute.xlu0 %535
        %537 = vrot.lane.b32.xlu0 %v528, 98
        %v538 = vpop.permute.xlu0 %537
        %539 = vrot.lane.b32.xlu0 %v529, 98
        %v540 = vpop.permute.xlu0 %539
        %541 = vrot.lane.b32.xlu0 %v530, 98
        %v542 = vpop.permute.xlu0 %541
        %543 = vrot.lane.b32.xlu0 %v531, 98
        %v544 = vpop.permute.xlu0 %543
        %545 = vrot.lane.b32.xlu0 %v532, 98
        %v546 = vpop.permute.xlu0 %545
        %vm547 = vcmask 801792
        %v548 = vsel %vm547, %v534, %v536
        %v549 = vsel %vm547, %v536, %v538
        %v550 = vsel %vm547, %v538, %v540
        %v551 = vsel %vm547, %v540, %v542
        %v552 = vsel %vm547, %v542, %v544
        %v553 = vsel %vm547, %v544, %v546
        %v561 = vcombine.low %v383, %v383
        %v562 = vcombine.low %v390, %v390
        %v564 = vunpack.c.l.s4 1966171168
        %v565 = vunpack.c.0.s8 %v564
        %v566 = vlaneseq
        %v567 = vshrl.u32 %v566, 7
        %v568 = vsub.s32 %v565, %v567
        %v569 = vrot.slane %v561, %v568
        %v571 = vunpack.c.l.s4 1966171168
        %v572 = vunpack.c.0.s8 %v571
        %v573 = vlaneseq
        %v574 = vshrl.u32 %v573, 7
        %v575 = vsub.s32 %v572, %v574
        %v576 = vrot.slane %v562, %v575
        %v577 = vcombine.high %v569, %v569
        %v578 = vcombine.high %v576, %v576
        %579 = vrot.lane.b32.xlu0 %v569, 97
        %v580 = vpop.permute.xlu0 %579
        %581 = vrot.lane.b32.xlu0 %v399, 97
        %v582 = vpop.permute.xlu0 %581
        %583 = vrot.lane.b32.xlu0 %v577, 97
        %v584 = vpop.permute.xlu0 %583
        %585 = vrot.lane.b32.xlu0 %v421, 97
        %v586 = vpop.permute.xlu0 %585
        %587 = vrot.lane.b32.xlu0 %v576, 97
        %v588 = vpop.permute.xlu0 %587
        %589 = vrot.lane.b32.xlu0 %v406, 97
        %v590 = vpop.permute.xlu0 %589
        %591 = vrot.lane.b32.xlu0 %v578, 97
        %v592 = vpop.permute.xlu0 %591
        %vm593 = vcmask 793600
        %v594 = vsel %vm593, %v580, %v582
        %v595 = vsel %vm593, %v582, %v584
        %v596 = vsel %vm593, %v584, %v586
        %v597 = vsel %vm593, %v586, %v588
        %v598 = vsel %vm593, %v588, %v590
        %v599 = vsel %vm593, %v590, %v592
        %v600 = vrot.slane %v432, 6
        %v601 = vrot.slane %v435, 6
        %v602 = vrot.slane %v438, 6
        %v603 = vrot.slane %v441, 6
        %v604 = vrot.slane %v444, 6
        %v605 = vrot.slane %v447, 6
        %v606 = vrot.slane %v450, 6
        %607 = vrot.lane.b32.xlu0 %v600, 96
        %v608 = vpop.permute.xlu0 %607
        %609 = vrot.lane.b32.xlu0 %v601, 96
        %v610 = vpop.permute.xlu0 %609
        %611 = vrot.lane.b32.xlu0 %v602, 96
        %v612 = vpop.permute.xlu0 %611
        %613 = vrot.lane.b32.xlu0 %v603, 96
        %v614 = vpop.permute.xlu0 %613
        %615 = vrot.lane.b32.xlu0 %v604, 96
        %v616 = vpop.permute.xlu0 %615
        %617 = vrot.lane.b32.xlu0 %v605, 96
        %v618 = vpop.permute.xlu0 %617
        %619 = vrot.lane.b32.xlu0 %v606, 96
        %v620 = vpop.permute.xlu0 %619
        %vm621 = vcmask 785408
        %v622 = vsel %vm621, %v608, %v610
        %v623 = vsel %vm621, %v610, %v612
        %v624 = vsel %vm621, %v612, %v614
        %v625 = vsel %vm621, %v614, %v616
        %v626 = vsel %vm621, %v616, %v618
        %v627 = vsel %vm621, %v618, %v620
        %v635 = vcombine.low %v487, %v487
        %v637 = vunpack.c.l.s4 1966171168
        %v638 = vunpack.c.0.s8 %v637
        %v639 = vlaneseq
        %v640 = vshrl.u32 %v639, 7
        %v641 = vsub.s32 %v638, %v640
        %v642 = vrot.slane %v635, %v641
        %v643 = vcombine.high %v642, %v642
        %644 = vrot.lane.b32.xlu0 %v642, 68
        %v645 = vpop.permute.xlu0 %644
        %646 = vrot.lane.b32.xlu0 %v495, 68
        %v647 = vpop.permute.xlu0 %646
        %648 = vrot.lane.b32.xlu0 %v643, 68
        %v649 = vpop.permute.xlu0 %648
        %650 = vrot.lane.b32.xlu0 %v503, 68
        %v651 = vpop.permute.xlu0 %650
        %652 = vrot.lane.b32.xlu0 %v569, 68
        %v653 = vpop.permute.xlu0 %652
        %654 = vrot.lane.b32.xlu0 %v399, 68
        %v655 = vpop.permute.xlu0 %654
        %656 = vrot.lane.b32.xlu0 %v577, 68
        %v657 = vpop.permute.xlu0 %656
        %658 = vrot.lane.b32.xlu0 %v421, 68
        %v659 = vpop.permute.xlu0 %658
        %vm660 = vcmask 556032
        %v661 = vsel %vm660, %v645, %v647
        %v662 = vsel %vm660, %v647, %v649
        %v663 = vsel %vm660, %v649, %v651
        %v664 = vsel %vm660, %v651, %v653
        %v665 = vsel %vm660, %v653, %v655
        %v666 = vsel %vm660, %v655, %v657
        %v667 = vsel %vm660, %v657, %v659
        %v668 = vcombine.high %v420, %v420
        %v669 = vrot.slane %v432, 5
        %v670 = vrot.slane %v435, 5
        %v671 = vrot.slane %v438, 5
        %v672 = vrot.slane %v441, 5
        %v673 = vrot.slane %v444, 5
        %v674 = vrot.slane %v447, 5
        %v675 = vrot.slane %v450, 5
        %v677 = vshll.u32 %v668, 16
        %v679 = vrot.slane %v677, 5
        %680 = vrot.lane.b32.xlu0 %v669, 67
        %v681 = vpop.permute.xlu0 %680
        %682 = vrot.lane.b32.xlu0 %v670, 67
        %v683 = vpop.permute.xlu0 %682
        %684 = vrot.lane.b32.xlu0 %v671, 67
        %v685 = vpop.permute.xlu0 %684
        %686 = vrot.lane.b32.xlu0 %v672, 67
        %v687 = vpop.permute.xlu0 %686
        %688 = vrot.lane.b32.xlu0 %v673, 67
        %v689 = vpop.permute.xlu0 %688
        %690 = vrot.lane.b32.xlu0 %v674, 67
        %v691 = vpop.permute.xlu0 %690
        %692 = vrot.lane.b32.xlu0 %v675, 67
        %v693 = vpop.permute.xlu0 %692
        %694 = vrot.lane.b32.xlu0 %v679, 67
        %v695 = vpop.permute.xlu0 %694
        %vm696 = vcmask 547840
        %v697 = vsel %vm696, %v681, %v683
        %v698 = vsel %vm696, %v683, %v685
        %v699 = vsel %vm696, %v685, %v687
        %v700 = vsel %vm696, %v687, %v689
        %v701 = vsel %vm696, %v689, %v691
        %v702 = vsel %vm696, %v691, %v693
        %v703 = vsel %vm696, %v693, %v695
        %v711 = vcombine.low %v399, %v399
        %v712 = vcombine.low %v406, %v406
        %v713 = vcombine.low %v413, %v413
        %v714 = vcombine.low %v420, %v420
        %715 = vrot.lane.b32.xlu0 %v711, 66
        %v716 = vpop.permute.xlu0 %715
        %717 = vrot.lane.b32.xlu0 %v713, 66
        %v718 = vpop.permute.xlu0 %717
        %719 = vrot.lane.b32.xlu0 %v399, 66
        %v720 = vpop.permute.xlu0 %719
        %721 = vrot.lane.b32.xlu0 %v413, 66
        %v722 = vpop.permute.xlu0 %721
        %723 = vrot.lane.b32.xlu0 %v712, 66
        %v724 = vpop.permute.xlu0 %723
        %725 = vrot.lane.b32.xlu0 %v714, 66
        %v726 = vpop.permute.xlu0 %725
        %727 = vrot.lane.b32.xlu0 %v406, 66
        %v728 = vpop.permute.xlu0 %727
        %729 = vrot.lane.b32.xlu0 %v420, 66
        %v730 = vpop.permute.xlu0 %729
        %vm731 = vcmask 539648
        %v732 = vsel %vm731, %v716, %v718
        %v733 = vsel %vm731, %v718, %v720
        %v734 = vsel %vm731, %v720, %v722
        %v735 = vsel %vm731, %v722, %v724
        %v736 = vsel %vm731, %v724, %v726
        %v737 = vsel %vm731, %v726, %v728
        %v738 = vsel %vm731, %v728, %v730
        %vm739 = vcmask 1040384
        %vm740 = vsmask.f32 256
        %vm741 = vmand %vm739, %vm740
        %v742 = vsel %vm741, %v399, %v467
        %v743 = vsel %vm741, %v413, %v468
        %v744 = vsel %vm741, %v421, %v469
        %v745 = vsel %vm741, %v423, %v470
        %v746 = vsel %vm741, %v406, %v471
        %v747 = vsel %vm741, %v420, %v472
        %v748 = vsel %vm741, %v422, %v465
        %vm749 = vcmask 1040384
        %v752 = vsel %vm749, %v742, %v520
        %v756 = vsel %vm749, %v743, %v521
        %v760 = vsel %vm749, %v744, %v522
        %v764 = vsel %vm749, %v745, %v523
        %v768 = vsel %vm749, %v746, %v524
        %v772 = vsel %vm749, %v747, %v525
        %v776 = vsel %vm749, %v748, %v518
        %vm778 = vcmask 1041408
        %vm779 = vsmask.f32 1280
        %vm780 = vmand %vm778, %vm779
        %v781 = vsel %vm780, %v752, %v548
        %v782 = vsel %vm780, %v756, %v549
        %v783 = vsel %vm780, %v760, %v550
        %v784 = vsel %vm780, %v764, %v551
        %v785 = vsel %vm780, %v768, %v552
        %v786 = vsel %vm780, %v772, %v553
        %v787 = vsel %vm780, %v776, %v546
        %vm788 = vcmask 1041408
        %v791 = vsel %vm788, %v781, %v594
        %v795 = vsel %vm788, %v782, %v595
        %v799 = vsel %vm788, %v783, %v596
        %v803 = vsel %vm788, %v784, %v597
        %v807 = vsel %vm788, %v785, %v598
        %v811 = vsel %vm788, %v786, %v599
        %v815 = vsel %vm788, %v787, %v592
        %vm817 = vcmask 1042432
        %vm818 = vsmask.f32 2304
        %vm819 = vmand %vm817, %vm818
        %v820 = vsel %vm819, %v791, %v622
        %v821 = vsel %vm819, %v795, %v623
        %v822 = vsel %vm819, %v799, %v624
        %v823 = vsel %vm819, %v803, %v625
        %v824 = vsel %vm819, %v807, %v626
        %v825 = vsel %vm819, %v811, %v627
        %v826 = vsel %vm819, %v815, %v620
        %vm827 = vcmask 1042432
        %v830 = vsel %vm827, %v820, %v661
        %v834 = vsel %vm827, %v821, %v662
        %v838 = vsel %vm827, %v822, %v663
        %v842 = vsel %vm827, %v823, %v664
        %v846 = vsel %vm827, %v824, %v665
        %v850 = vsel %vm827, %v825, %v666
        %v854 = vsel %vm827, %v826, %v667
        %vm856 = vcmask 1043456
        %vm857 = vsmask.f32 3328
        %vm858 = vmand %vm856, %vm857
        %v859 = vsel %vm858, %v830, %v697
        %v860 = vsel %vm858, %v834, %v698
        %v861 = vsel %vm858, %v838, %v699
        %v862 = vsel %vm858, %v842, %v700
        %v863 = vsel %vm858, %v846, %v701
        %v864 = vsel %vm858, %v850, %v702
        %v865 = vsel %vm858, %v854, %v703
        %vm866 = vcmask 1043456
        %v869 = vsel %vm866, %v859, %v732
        %v872 = vsel %vm866, %v860, %v733
        %v875 = vsel %vm866, %v861, %v734
        %v878 = vsel %vm866, %v862, %v735
        %v881 = vsel %vm866, %v863, %v736
        %v884 = vsel %vm866, %v864, %v737
        %v887 = vsel %vm866, %v865, %v738
        %v892 = vunpack.c.l.b16 %v251
        %v893 = vunpack.c.l.b16 %v252
        %v894 = vunpack.c.l.b16 %v253
        %v895 = vunpack.c.l.b16 %v254
        %v896 = vpack.c.b16 %v893, %v892
        %v897 = vpack.c.b16 %v895, %v894
        %vm898 = vcmask 72704
        %v900 = vsel %vm898, %v896, 0
        %v903 = vsel %vm898, %v897, 0
        %vm905 = vcmask 1044480
        %v906 = vsel %vm866, 4294967295, 65535
        %v907 = vsel %vm905, %v906, 0
        %v908 = vand.u32 %v869, %v907
        %v910 = vand.u32 %v872, %v907
        %v912 = vand.u32 %v875, %v907
        %v914 = vand.u32 %v878, %v907
        %v916 = vand.u32 %v881, %v907
        %v918 = vand.u32 %v884, %v907
        %v920 = vand.u32 %v887, %v907
        %922 = vmatprep.subr.bf16.mxu0 %v910
        %923 = vmatpush1.bf16.msra.mxu0 %v908
        %924 = vmatprep.subr.bf16.mxu0 0
        %925 = vmatpush1.bf16.msra.mxu0 0
        %926 = vmatprep.subr.bf16.mxu0 0
        %927 = vmatpush1.bf16.msra.mxu0 0
        %928 = vmatprep.subr.bf16.mxu0 0
        %929 = vmatpush1.bf16.msra.mxu0 0
        %930 = vmatprep.subr.bf16.mxu0 0
        %931 = vmatpush1.bf16.msra.mxu0 0
        %932 = vmatprep.subr.bf16.mxu0 0
        %933 = vmatpush1.bf16.msra.mxu0 0
        %934 = vmatprep.subr.bf16.mxu0 0
        %935 = vmatpush1.bf16.msra.mxu0 0
        %936 = vmatprep.subr.bf16.mxu0 0
        %937 = vmatpush1.bf16.msra.mxu0 0
        %938 = vmatprep.subr.bf16.mxu0 0
        %939 = vmatpush1.bf16.msra.mxu0 0
        %940 = vmatprep.subr.bf16.mxu0 0
        %941 = vmatpush1.bf16.msra.mxu0 0
        %942 = vmatprep.subr.bf16.mxu0 0
        %943 = vmatpush1.bf16.msra.mxu0 0
        %944 = vmatprep.subr.bf16.mxu0 0
        %945 = vmatpush1.bf16.msra.mxu0 0
        %946 = vmatprep.subr.bf16.mxu0 0
        %947 = vmatpush1.bf16.msra.mxu0 0
        %948 = vmatprep.subr.bf16.mxu0 0
        %949 = vmatpush1.bf16.msra.mxu0 0
        %950 = vmatprep.subr.bf16.mxu0 0
        %951 = vmatpush1.bf16.msra.mxu0 0
        %952 = vmatprep.subr.bf16.mxu0 0
        %953 = vmatpush1.bf16.msra.mxu0 0
        %954 = vmatprep.mubr.bf16.mxu0 0
        %955 = vmatmul.mubr.bf16.gmra.mrb[0].mxu0 %v900
        %v956 = vpop.f32.mrb[0].mxu0
        %v957 = vadd.f32 0.0, %v956
        %v958 = vpop.f32.mrb[0].mxu0
        %v959 = vadd.f32 0.0, %v958
        %v960 = vpop.f32.mrb[0].mxu0
        %v961 = vadd.f32 0.0, %v960
        %v962 = vpop.f32.mrb[0].mxu0
        %v963 = vadd.f32 0.0, %v962
        %964 = vmatprep.mubr.bf16.mxu0 0
        %965 = vmatmul.mubr.bf16.gmra.mrb[0].mxu0 %v903
        %v966 = vpop.f32.mrb[0].mxu0
        %v967 = vadd.f32 0.0, %v966
        %v968 = vpop.f32.mrb[0].mxu0
        %v969 = vadd.f32 0.0, %v968
        %v970 = vpop.f32.mrb[0].mxu0
        %v971 = vadd.f32 0.0, %v970
        %v972 = vpop.f32.mrb[0].mxu0
        %v973 = vadd.f32 0.0, %v972
        %974 = vdwg.mxu0
        %975 = vmatprep.subr.bf16.mxu0 %v914
        %976 = vmatpush1.bf16.msra.mxu0 %v912
        %977 = vmatprep.subr.bf16.mxu0 0
        %978 = vmatpush1.bf16.msra.mxu0 0
        %979 = vmatprep.subr.bf16.mxu0 0
        %980 = vmatpush1.bf16.msra.mxu0 0
        %981 = vmatprep.subr.bf16.mxu0 0
        %982 = vmatpush1.bf16.msra.mxu0 0
        %983 = vmatprep.subr.bf16.mxu0 0
        %984 = vmatpush1.bf16.msra.mxu0 0
        %985 = vmatprep.subr.bf16.mxu0 0
        %986 = vmatpush1.bf16.msra.mxu0 0
        %987 = vmatprep.subr.bf16.mxu0 0
        %988 = vmatpush1.bf16.msra.mxu0 0
        %989 = vmatprep.subr.bf16.mxu0 0
        %990 = vmatpush1.bf16.msra.mxu0 0
        %991 = vmatprep.subr.bf16.mxu0 0
        %992 = vmatpush1.bf16.msra.mxu0 0
        %993 = vmatprep.subr.bf16.mxu0 0
        %994 = vmatpush1.bf16.msra.mxu0 0
        %995 = vmatprep.subr.bf16.mxu0 0
        %996 = vmatpush1.bf16.msra.mxu0 0
        %997 = vmatprep.subr.bf16.mxu0 0
        %998 = vmatpush1.bf16.msra.mxu0 0
        %999 = vmatprep.subr.bf16.mxu0 0
        %1000 = vmatpush1.bf16.msra.mxu0 0
        %1001 = vmatprep.subr.bf16.mxu0 0
        %1002 = vmatpush1.bf16.msra.mxu0 0
        %1003 = vmatprep.subr.bf16.mxu0 0
        %1004 = vmatpush1.bf16.msra.mxu0 0
        %1005 = vmatprep.subr.bf16.mxu0 0
        %1006 = vmatpush1.bf16.msra.mxu0 0
        %1007 = vmatprep.mubr.bf16.mxu0 0
        %1008 = vmatmul.mubr.bf16.gmra.mrb[0].mxu0 %v900
        %v1009 = vpop.f32.mrb[0].mxu0
        %v1010 = vadd.f32 0.0, %v1009
        %v1011 = vpop.f32.mrb[0].mxu0
        %v1012 = vadd.f32 0.0, %v1011
        %v1013 = vpop.f32.mrb[0].mxu0
        %v1014 = vadd.f32 0.0, %v1013
        %v1015 = vpop.f32.mrb[0].mxu0
        %v1016 = vadd.f32 0.0, %v1015
        %1017 = vmatprep.mubr.bf16.mxu0 0
        %1018 = vmatmul.mubr.bf16.gmra.mrb[0].mxu0 %v903
        %v1019 = vpop.f32.mrb[0].mxu0
        %v1020 = vadd.f32 0.0, %v1019
        %v1021 = vpop.f32.mrb[0].mxu0
        %v1022 = vadd.f32 0.0, %v1021
        %v1023 = vpop.f32.mrb[0].mxu0
        %v1024 = vadd.f32 0.0, %v1023
        %v1025 = vpop.f32.mrb[0].mxu0
        %v1026 = vadd.f32 0.0, %v1025
        %1027 = vdwg.mxu0
        %1028 = vmatprep.subr.bf16.mxu0 %v918
        %1029 = vmatpush1.bf16.msra.mxu0 %v916
        %1030 = vmatprep.subr.bf16.mxu0 0
        %1031 = vmatpush1.bf16.msra.mxu0 0
        %1032 = vmatprep.subr.bf16.mxu0 0
        %1033 = vmatpush1.bf16.msra.mxu0 0
        %1034 = vmatprep.subr.bf16.mxu0 0
        %1035 = vmatpush1.bf16.msra.mxu0 0
        %1036 = vmatprep.subr.bf16.mxu0 0
        %1037 = vmatpush1.bf16.msra.mxu0 0
        %1038 = vmatprep.subr.bf16.mxu0 0
        %1039 = vmatpush1.bf16.msra.mxu0 0
        %1040 = vmatprep.subr.bf16.mxu0 0
        %1041 = vmatpush1.bf16.msra.mxu0 0
        %1042 = vmatprep.subr.bf16.mxu0 0
        %1043 = vmatpush1.bf16.msra.mxu0 0
        %1044 = vmatprep.subr.bf16.mxu0 0
        %1045 = vmatpush1.bf16.msra.mxu0 0
        %1046 = vmatprep.subr.bf16.mxu0 0
        %1047 = vmatpush1.bf16.msra.mxu0 0
        %1048 = vmatprep.subr.bf16.mxu0 0
        %1049 = vmatpush1.bf16.msra.mxu0 0
        %1050 = vmatprep.subr.bf16.mxu0 0
        %1051 = vmatpush1.bf16.msra.mxu0 0
        %1052 = vmatprep.subr.bf16.mxu0 0
        %1053 = vmatpush1.bf16.msra.mxu0 0
        %1054 = vmatprep.subr.bf16.mxu0 0
        %1055 = vmatpush1.bf16.msra.mxu0 0
        %1056 = vmatprep.subr.bf16.mxu0 0
        %1057 = vmatpush1.bf16.msra.mxu0 0
        %1058 = vmatprep.subr.bf16.mxu0 0
        %1059 = vmatpush1.bf16.msra.mxu0 0
        %1060 = vmatprep.mubr.bf16.mxu0 0
        %1061 = vmatmul.mubr.bf16.gmra.mrb[0].mxu0 %v900
        %v1062 = vpop.f32.mrb[0].mxu0
        %v1063 = vadd.f32 0.0, %v1062
        %v1064 = vpop.f32.mrb[0].mxu0
        %v1065 = vadd.f32 0.0, %v1064
        %v1066 = vpop.f32.mrb[0].mxu0
        %v1067 = vadd.f32 0.0, %v1066
        %v1068 = vpop.f32.mrb[0].mxu0
        %v1069 = vadd.f32 0.0, %v1068
        %1070 = vmatprep.mubr.bf16.mxu0 0
        %1071 = vmatmul.mubr.bf16.gmra.mrb[0].mxu0 %v903
        %v1072 = vpop.f32.mrb[0].mxu0
        %v1073 = vadd.f32 0.0, %v1072
        %v1074 = vpop.f32.mrb[0].mxu0
        %v1075 = vadd.f32 0.0, %v1074
        %v1076 = vpop.f32.mrb[0].mxu0
        %v1077 = vadd.f32 0.0, %v1076
        %v1078 = vpop.f32.mrb[0].mxu0
        %v1079 = vadd.f32 0.0, %v1078
        %1080 = vdwg.mxu0
        %1081 = vmatprep.subr.bf16.mxu0 0
        %1082 = vmatpush1.bf16.msra.mxu0 %v920
        %1083 = vmatprep.subr.bf16.mxu0 0
        %1084 = vmatpush1.bf16.msra.mxu0 0
        %1085 = vmatprep.subr.bf16.mxu0 0
        %1086 = vmatpush1.bf16.msra.mxu0 0
        %1087 = vmatprep.subr.bf16.mxu0 0
        %1088 = vmatpush1.bf16.msra.mxu0 0
        %1089 = vmatprep.subr.bf16.mxu0 0
        %1090 = vmatpush1.bf16.msra.mxu0 0
        %1091 = vmatprep.subr.bf16.mxu0 0
        %1092 = vmatpush1.bf16.msra.mxu0 0
        %1093 = vmatprep.subr.bf16.mxu0 0
        %1094 = vmatpush1.bf16.msra.mxu0 0
        %1095 = vmatprep.subr.bf16.mxu0 0
        %1096 = vmatpush1.bf16.msra.mxu0 0
        %1097 = vmatprep.subr.bf16.mxu0 0
        %1098 = vmatpush1.bf16.msra.mxu0 0
        %1099 = vmatprep.subr.bf16.mxu0 0
        %1100 = vmatpush1.bf16.msra.mxu0 0
        %1101 = vmatprep.subr.bf16.mxu0 0
        %1102 = vmatpush1.bf16.msra.mxu0 0
        %1103 = vmatprep.subr.bf16.mxu0 0
        %1104 = vmatpush1.bf16.msra.mxu0 0
        %1105 = vmatprep.subr.bf16.mxu0 0
        %1106 = vmatpush1.bf16.msra.mxu0 0
        %1107 = vmatprep.subr.bf16.mxu0 0
        %1108 = vmatpush1.bf16.msra.mxu0 0
        %1109 = vmatprep.subr.bf16.mxu0 0
        %1110 = vmatpush1.bf16.msra.mxu0 0
        %1111 = vmatprep.subr.bf16.mxu0 0
        %1112 = vmatpush1.bf16.msra.mxu0 0
        %1113 = vmatprep.mubr.bf16.mxu0 0
        %1114 = vmatmul.mubr.bf16.gmra.mrb[0].mxu0 %v900
        %v1115 = vpop.f32.mrb[0].mxu0
        %v1116 = vadd.f32 0.0, %v1115
        %v1117 = vpop.f32.mrb[0].mxu0
        %v1118 = vpop.f32.mrb[0].mxu0
        %v1119 = vadd.f32 0.0, %v1118
        %v1120 = vpop.f32.mrb[0].mxu0
        %1121 = vmatprep.mubr.bf16.mxu0 0
        %1122 = vmatmul.mubr.bf16.gmra.mrb[0].mxu0 %v903
        %v1123 = vpop.f32.mrb[0].mxu0
        %v1124 = vadd.f32 0.0, %v1123
        %v1125 = vpop.f32.mrb[0].mxu0
        %v1126 = vpop.f32.mrb[0].mxu0
        %v1127 = vadd.f32 0.0, %v1126
        %v1128 = vpop.f32.mrb[0].mxu0
        %1129 = vdwg.mxu0
        %v1130 = vmax.f32 %v957, 0.0
        %v1131 = vmax.f32 %v959, 0.0
        %v1132 = vmax.f32 %v1010, 0.0
        %v1133 = vmax.f32 %v1012, 0.0
        %v1134 = vmax.f32 %v1063, 0.0
        %v1135 = vmax.f32 %v1065, 0.0
        %v1136 = vmax.f32 %v1116, 0.0
        %v1137 = vmax.f32 %v961, 0.0
        %v1138 = vmax.f32 %v963, 0.0
        %v1139 = vmax.f32 %v1014, 0.0
        %v1140 = vmax.f32 %v1016, 0.0
        %v1141 = vmax.f32 %v1067, 0.0
        %v1142 = vmax.f32 %v1069, 0.0
        %v1143 = vmax.f32 %v1119, 0.0
        %v1144 = vmax.f32 %v967, 0.0
        %v1145 = vmax.f32 %v969, 0.0
        %v1146 = vmax.f32 %v1020, 0.0
        %v1147 = vmax.f32 %v1022, 0.0
        %v1148 = vmax.f32 %v1073, 0.0
        %v1149 = vmax.f32 %v1075, 0.0
        %v1150 = vmax.f32 %v1124, 0.0
        %v1151 = vmax.f32 %v971, 0.0
        %v1152 = vmax.f32 %v973, 0.0
        %v1153 = vmax.f32 %v1024, 0.0
        %v1154 = vmax.f32 %v1026, 0.0
        %v1155 = vmax.f32 %v1077, 0.0
        %v1156 = vmax.f32 %v1079, 0.0
        %v1157 = vmax.f32 %v1127, 0.0
        %v1159 = vlaneseq
        %v1160 = vshrl.u32 %v1159, 7
        %v1161 = vsub.s32 0, %v1160
        %v1162 = vrot.slane %v271, %v1161
        %v1163 = vlaneseq
        %v1164 = vshrl.u32 %v1163, 7
        %v1165 = vsub.s32 1, %v1164
        %v1166 = vrot.slane %v271, %v1165
        %v1167 = vlaneseq
        %v1168 = vshrl.u32 %v1167, 7
        %v1169 = vsub.s32 2, %v1168
        %v1170 = vrot.slane %v271, %v1169
        %v1171 = vlaneseq
        %v1172 = vshrl.u32 %v1171, 7
        %v1173 = vsub.s32 3, %v1172
        %v1174 = vrot.slane %v271, %v1173
        %v1175 = vlaneseq
        %v1176 = vshrl.u32 %v1175, 7
        %v1177 = vsub.s32 4, %v1176
        %v1178 = vrot.slane %v271, %v1177
        %v1179 = vlaneseq
        %v1180 = vshrl.u32 %v1179, 7
        %v1181 = vsub.s32 5, %v1180
        %v1182 = vrot.slane %v271, %v1181
        %v1183 = vlaneseq
        %v1184 = vshrl.u32 %v1183, 7
        %v1185 = vsub.s32 6, %v1184
        %v1186 = vrot.slane %v271, %v1185
        %v1194 = vmul.f32 %v1130, %v1162
        %v1195 = vmul.f32 %v1131, %v1166
        %v1196 = vmul.f32 %v1132, %v1170
        %v1197 = vmul.f32 %v1133, %v1174
        %v1198 = vmul.f32 %v1134, %v1178
        %v1199 = vmul.f32 %v1135, %v1182
        %v1200 = vmul.f32 %v1136, %v1186
        %v1201 = vmul.f32 %v1137, %v1162
        %v1202 = vmul.f32 %v1138, %v1166
        %v1203 = vmul.f32 %v1139, %v1170
        %v1204 = vmul.f32 %v1140, %v1174
        %v1205 = vmul.f32 %v1141, %v1178
        %v1206 = vmul.f32 %v1142, %v1182
        %v1207 = vmul.f32 %v1143, %v1186
        %v1208 = vmul.f32 %v1144, %v1162
        %v1209 = vmul.f32 %v1145, %v1166
        %v1210 = vmul.f32 %v1146, %v1170
        %v1211 = vmul.f32 %v1147, %v1174
        %v1212 = vmul.f32 %v1148, %v1178
        %v1213 = vmul.f32 %v1149, %v1182
        %v1214 = vmul.f32 %v1150, %v1186
        %v1215 = vmul.f32 %v1151, %v1162
        %v1216 = vmul.f32 %v1152, %v1166
        %v1217 = vmul.f32 %v1153, %v1170
        %v1218 = vmul.f32 %v1154, %v1174
        %v1219 = vmul.f32 %v1155, %v1178
        %v1220 = vmul.f32 %v1156, %v1182
        %v1221 = vmul.f32 %v1157, %v1186
        %v1222 = vpack.c.bf16 %v1201, %v1194
        %v1223 = vpack.c.bf16 %v1202, %v1195
        %v1224 = vpack.c.bf16 %v1203, %v1196
        %v1225 = vpack.c.bf16 %v1204, %v1197
        %v1226 = vpack.c.bf16 %v1205, %v1198
        %v1227 = vpack.c.bf16 %v1206, %v1199
        %v1228 = vpack.c.bf16 %v1207, %v1200
        %v1229 = vpack.c.bf16 %v1215, %v1208
        %v1230 = vpack.c.bf16 %v1216, %v1209
        %v1231 = vpack.c.bf16 %v1217, %v1210
        %v1232 = vpack.c.bf16 %v1218, %v1211
        %v1233 = vpack.c.bf16 %v1219, %v1212
        %v1234 = vpack.c.bf16 %v1220, %v1213
        %v1235 = vpack.c.bf16 %v1221, %v1214
        %1250 = vrot.lane.b32.xlu0 %v1222, 31
        %v1251 = vpop.permute.xlu0 %1250
        %1252 = vrot.lane.b32.xlu0 %v1223, 31
        %v1253 = vpop.permute.xlu0 %1252
        %1254 = vrot.lane.b32.xlu0 %v1224, 31
        %v1255 = vpop.permute.xlu0 %1254
        %1256 = vrot.lane.b32.xlu0 %v1225, 31
        %v1257 = vpop.permute.xlu0 %1256
        %1258 = vrot.lane.b32.xlu0 %v1226, 31
        %v1259 = vpop.permute.xlu0 %1258
        %1260 = vrot.lane.b32.xlu0 %v1227, 31
        %v1261 = vpop.permute.xlu0 %1260
        %1262 = vrot.lane.b32.xlu0 %v1228, 31
        %v1263 = vpop.permute.xlu0 %1262
        %1264 = vrot.lane.b32.xlu0 %v1229, 31
        %v1265 = vpop.permute.xlu0 %1264
        %1266 = vrot.lane.b32.xlu0 %v1230, 31
        %v1267 = vpop.permute.xlu0 %1266
        %1268 = vrot.lane.b32.xlu0 %v1231, 31
        %v1269 = vpop.permute.xlu0 %1268
        %1270 = vrot.lane.b32.xlu0 %v1232, 31
        %v1271 = vpop.permute.xlu0 %1270
        %1272 = vrot.lane.b32.xlu0 %v1233, 31
        %v1273 = vpop.permute.xlu0 %1272
        %1274 = vrot.lane.b32.xlu0 %v1234, 31
        %v1275 = vpop.permute.xlu0 %1274
        %1276 = vrot.lane.b32.xlu0 %v1235, 31
        %v1277 = vpop.permute.xlu0 %1276
        %vm1278 = vcmask 252928
        %v1279 = vsel %vm1278, %v1251, %v1253
        %v1280 = vsel %vm1278, %v1253, %v1255
        %v1281 = vsel %vm1278, %v1255, %v1257
        %v1282 = vsel %vm1278, %v1257, %v1259
        %v1283 = vsel %vm1278, %v1259, %v1261
        %v1284 = vsel %vm1278, %v1261, %v1263
        %v1285 = vsel %vm1278, %v1265, %v1267
        %v1286 = vsel %vm1278, %v1267, %v1269
        %v1287 = vsel %vm1278, %v1269, %v1271
        %v1288 = vsel %vm1278, %v1271, %v1273
        %v1289 = vsel %vm1278, %v1273, %v1275
        %v1290 = vsel %vm1278, %v1275, %v1277
        %vm1301 = vcmask 252928
        %v1304 = vsel %vm1301, 0, %v1251
        %v1307 = vsel %vm1301, 0, %v1265
        %vm1309 = vcmask 842752
        %v1311 = vsel %vm1309, %v1284, 0
        %v1314 = vsel %vm1309, %v1290, 0
        %1320 = vrot.lane.b32.xlu0 %v1304, 127
        %v1321 = vpop.permute.xlu0 %1320
        %1322 = vrot.lane.b32.xlu0 %v1279, 127
        %v1323 = vpop.permute.xlu0 %1322
        %1324 = vrot.lane.b32.xlu0 %v1280, 127
        %v1325 = vpop.permute.xlu0 %1324
        %1326 = vrot.lane.b32.xlu0 %v1281, 127
        %v1327 = vpop.permute.xlu0 %1326
        %1328 = vrot.lane.b32.xlu0 %v1282, 127
        %v1329 = vpop.permute.xlu0 %1328
        %1330 = vrot.lane.b32.xlu0 %v1283, 127
        %v1331 = vpop.permute.xlu0 %1330
        %1332 = vrot.lane.b32.xlu0 %v1311, 127
        %v1333 = vpop.permute.xlu0 %1332
        %1334 = vrot.lane.b32.xlu0 %v1307, 127
        %v1335 = vpop.permute.xlu0 %1334
        %1336 = vrot.lane.b32.xlu0 %v1285, 127
        %v1337 = vpop.permute.xlu0 %1336
        %1338 = vrot.lane.b32.xlu0 %v1286, 127
        %v1339 = vpop.permute.xlu0 %1338
        %1340 = vrot.lane.b32.xlu0 %v1287, 127
        %v1341 = vpop.permute.xlu0 %1340
        %1342 = vrot.lane.b32.xlu0 %v1288, 127
        %v1343 = vpop.permute.xlu0 %1342
        %1344 = vrot.lane.b32.xlu0 %v1289, 127
        %v1345 = vpop.permute.xlu0 %1344
        %1346 = vrot.lane.b32.xlu0 %v1314, 127
        %v1347 = vpop.permute.xlu0 %1346
        %v1348 = vsel %vm466, %v1321, %v1323
        %v1349 = vsel %vm466, %v1323, %v1325
        %v1350 = vsel %vm466, %v1325, %v1327
        %v1351 = vsel %vm466, %v1327, %v1329
        %v1352 = vsel %vm466, %v1329, %v1331
        %v1353 = vsel %vm466, %v1331, %v1333
        %v1354 = vsel %vm466, %v1335, %v1337
        %v1355 = vsel %vm466, %v1337, %v1339
        %v1356 = vsel %vm466, %v1339, %v1341
        %v1357 = vsel %vm466, %v1341, %v1343
        %v1358 = vsel %vm466, %v1343, %v1345
        %v1359 = vsel %vm466, %v1345, %v1347
        %1374 = vrot.lane.b32.xlu0 %v1304, 126
        %v1375 = vpop.permute.xlu0 %1374
        %1376 = vrot.lane.b32.xlu0 %v1279, 126
        %v1377 = vpop.permute.xlu0 %1376
        %1378 = vrot.lane.b32.xlu0 %v1280, 126
        %v1379 = vpop.permute.xlu0 %1378
        %1380 = vrot.lane.b32.xlu0 %v1281, 126
        %v1381 = vpop.permute.xlu0 %1380
        %1382 = vrot.lane.b32.xlu0 %v1282, 126
        %v1383 = vpop.permute.xlu0 %1382
        %1384 = vrot.lane.b32.xlu0 %v1283, 126
        %v1385 = vpop.permute.xlu0 %1384
        %1386 = vrot.lane.b32.xlu0 %v1311, 126
        %v1387 = vpop.permute.xlu0 %1386
        %1388 = vrot.lane.b32.xlu0 %v1307, 126
        %v1389 = vpop.permute.xlu0 %1388
        %1390 = vrot.lane.b32.xlu0 %v1285, 126
        %v1391 = vpop.permute.xlu0 %1390
        %1392 = vrot.lane.b32.xlu0 %v1286, 126
        %v1393 = vpop.permute.xlu0 %1392
        %1394 = vrot.lane.b32.xlu0 %v1287, 126
        %v1395 = vpop.permute.xlu0 %1394
        %1396 = vrot.lane.b32.xlu0 %v1288, 126
        %v1397 = vpop.permute.xlu0 %1396
        %1398 = vrot.lane.b32.xlu0 %v1289, 126
        %v1399 = vpop.permute.xlu0 %1398
        %1400 = vrot.lane.b32.xlu0 %v1314, 126
        %v1401 = vpop.permute.xlu0 %1400
        %v1402 = vsel %vm519, %v1375, %v1377
        %v1403 = vsel %vm519, %v1377, %v1379
        %v1404 = vsel %vm519, %v1379, %v1381
        %v1405 = vsel %vm519, %v1381, %v1383
        %v1406 = vsel %vm519, %v1383, %v1385
        %v1407 = vsel %vm519, %v1385, %v1387
        %v1408 = vsel %vm519, %v1389, %v1391
        %v1409 = vsel %vm519, %v1391, %v1393
        %v1410 = vsel %vm519, %v1393, %v1395
        %v1411 = vsel %vm519, %v1395, %v1397
        %v1412 = vsel %vm519, %v1397, %v1399
        %v1413 = vsel %vm519, %v1399, %v1401
        %1428 = vrot.lane.b32.xlu0 %v1304, 98
        %v1429 = vpop.permute.xlu0 %1428
        %1430 = vrot.lane.b32.xlu0 %v1279, 98
        %v1431 = vpop.permute.xlu0 %1430
        %1432 = vrot.lane.b32.xlu0 %v1280, 98
        %v1433 = vpop.permute.xlu0 %1432
        %1434 = vrot.lane.b32.xlu0 %v1281, 98
        %v1435 = vpop.permute.xlu0 %1434
        %1436 = vrot.lane.b32.xlu0 %v1282, 98
        %v1437 = vpop.permute.xlu0 %1436
        %1438 = vrot.lane.b32.xlu0 %v1283, 98
        %v1439 = vpop.permute.xlu0 %1438
        %1440 = vrot.lane.b32.xlu0 %v1311, 98
        %v1441 = vpop.permute.xlu0 %1440
        %1442 = vrot.lane.b32.xlu0 %v1307, 98
        %v1443 = vpop.permute.xlu0 %1442
        %1444 = vrot.lane.b32.xlu0 %v1285, 98
        %v1445 = vpop.permute.xlu0 %1444
        %1446 = vrot.lane.b32.xlu0 %v1286, 98
        %v1447 = vpop.permute.xlu0 %1446
        %1448 = vrot.lane.b32.xlu0 %v1287, 98
        %v1449 = vpop.permute.xlu0 %1448
        %1450 = vrot.lane.b32.xlu0 %v1288, 98
        %v1451 = vpop.permute.xlu0 %1450
        %1452 = vrot.lane.b32.xlu0 %v1289, 98
        %v1453 = vpop.permute.xlu0 %1452
        %1454 = vrot.lane.b32.xlu0 %v1314, 98
        %v1455 = vpop.permute.xlu0 %1454
        %v1456 = vsel %vm547, %v1429, %v1431
        %v1457 = vsel %vm547, %v1431, %v1433
        %v1458 = vsel %vm547, %v1433, %v1435
        %v1459 = vsel %vm547, %v1435, %v1437
        %v1460 = vsel %vm547, %v1437, %v1439
        %v1461 = vsel %vm547, %v1439, %v1441
        %v1462 = vsel %vm547, %v1443, %v1445
        %v1463 = vsel %vm547, %v1445, %v1447
        %v1464 = vsel %vm547, %v1447, %v1449
        %v1465 = vsel %vm547, %v1449, %v1451
        %v1466 = vsel %vm547, %v1451, %v1453
        %v1467 = vsel %vm547, %v1453, %v1455
        %1482 = vrot.lane.b32.xlu0 %v1304, 97
        %v1483 = vpop.permute.xlu0 %1482
        %1484 = vrot.lane.b32.xlu0 %v1279, 97
        %v1485 = vpop.permute.xlu0 %1484
        %1486 = vrot.lane.b32.xlu0 %v1280, 97
        %v1487 = vpop.permute.xlu0 %1486
        %1488 = vrot.lane.b32.xlu0 %v1281, 97
        %v1489 = vpop.permute.xlu0 %1488
        %1490 = vrot.lane.b32.xlu0 %v1282, 97
        %v1491 = vpop.permute.xlu0 %1490
        %1492 = vrot.lane.b32.xlu0 %v1283, 97
        %v1493 = vpop.permute.xlu0 %1492
        %1494 = vrot.lane.b32.xlu0 %v1311, 97
        %v1495 = vpop.permute.xlu0 %1494
        %1496 = vrot.lane.b32.xlu0 %v1307, 97
        %v1497 = vpop.permute.xlu0 %1496
        %1498 = vrot.lane.b32.xlu0 %v1285, 97
        %v1499 = vpop.permute.xlu0 %1498
        %1500 = vrot.lane.b32.xlu0 %v1286, 97
        %v1501 = vpop.permute.xlu0 %1500
        %1502 = vrot.lane.b32.xlu0 %v1287, 97
        %v1503 = vpop.permute.xlu0 %1502
        %1504 = vrot.lane.b32.xlu0 %v1288, 97
        %v1505 = vpop.permute.xlu0 %1504
        %1506 = vrot.lane.b32.xlu0 %v1289, 97
        %v1507 = vpop.permute.xlu0 %1506
        %1508 = vrot.lane.b32.xlu0 %v1314, 97
        %v1509 = vpop.permute.xlu0 %1508
        %v1510 = vsel %vm593, %v1483, %v1485
        %v1511 = vsel %vm593, %v1485, %v1487
        %v1512 = vsel %vm593, %v1487, %v1489
        %v1513 = vsel %vm593, %v1489, %v1491
        %v1514 = vsel %vm593, %v1491, %v1493
        %v1515 = vsel %vm593, %v1493, %v1495
        %v1516 = vsel %vm593, %v1497, %v1499
        %v1517 = vsel %vm593, %v1499, %v1501
        %v1518 = vsel %vm593, %v1501, %v1503
        %v1519 = vsel %vm593, %v1503, %v1505
        %v1520 = vsel %vm593, %v1505, %v1507
        %v1521 = vsel %vm593, %v1507, %v1509
        %1536 = vrot.lane.b32.xlu0 %v1304, 96
        %v1537 = vpop.permute.xlu0 %1536
        %1538 = vrot.lane.b32.xlu0 %v1279, 96
        %v1539 = vpop.permute.xlu0 %1538
        %1540 = vrot.lane.b32.xlu0 %v1280, 96
        %v1541 = vpop.permute.xlu0 %1540
        %1542 = vrot.lane.b32.xlu0 %v1281, 96
        %v1543 = vpop.permute.xlu0 %1542
        %1544 = vrot.lane.b32.xlu0 %v1282, 96
        %v1545 = vpop.permute.xlu0 %1544
        %1546 = vrot.lane.b32.xlu0 %v1283, 96
        %v1547 = vpop.permute.xlu0 %1546
        %1548 = vrot.lane.b32.xlu0 %v1311, 96
        %v1549 = vpop.permute.xlu0 %1548
        %1550 = vrot.lane.b32.xlu0 %v1307, 96
        %v1551 = vpop.permute.xlu0 %1550
        %1552 = vrot.lane.b32.xlu0 %v1285, 96
        %v1553 = vpop.permute.xlu0 %1552
        %1554 = vrot.lane.b32.xlu0 %v1286, 96
        %v1555 = vpop.permute.xlu0 %1554
        %1556 = vrot.lane.b32.xlu0 %v1287, 96
        %v1557 = vpop.permute.xlu0 %1556
        %1558 = vrot.lane.b32.xlu0 %v1288, 96
        %v1559 = vpop.permute.xlu0 %1558
        %1560 = vrot.lane.b32.xlu0 %v1289, 96
        %v1561 = vpop.permute.xlu0 %1560
        %1562 = vrot.lane.b32.xlu0 %v1314, 96
        %v1563 = vpop.permute.xlu0 %1562
        %v1564 = vsel %vm621, %v1537, %v1539
        %v1565 = vsel %vm621, %v1539, %v1541
        %v1566 = vsel %vm621, %v1541, %v1543
        %v1567 = vsel %vm621, %v1543, %v1545
        %v1568 = vsel %vm621, %v1545, %v1547
        %v1569 = vsel %vm621, %v1547, %v1549
        %v1570 = vsel %vm621, %v1551, %v1553
        %v1571 = vsel %vm621, %v1553, %v1555
        %v1572 = vsel %vm621, %v1555, %v1557
        %v1573 = vsel %vm621, %v1557, %v1559
        %v1574 = vsel %vm621, %v1559, %v1561
        %v1575 = vsel %vm621, %v1561, %v1563
        %1591 = vrot.lane.b32.xlu0 %v1304, 68
        %v1592 = vpop.permute.xlu0 %1591
        %1593 = vrot.lane.b32.xlu0 %v1279, 68
        %v1594 = vpop.permute.xlu0 %1593
        %1595 = vrot.lane.b32.xlu0 %v1280, 68
        %v1596 = vpop.permute.xlu0 %1595
        %1597 = vrot.lane.b32.xlu0 %v1281, 68
        %v1598 = vpop.permute.xlu0 %1597
        %1599 = vrot.lane.b32.xlu0 %v1282, 68
        %v1600 = vpop.permute.xlu0 %1599
        %1601 = vrot.lane.b32.xlu0 %v1283, 68
        %v1602 = vpop.permute.xlu0 %1601
        %1603 = vrot.lane.b32.xlu0 %v1311, 68
        %v1604 = vpop.permute.xlu0 %1603
        %1605 = vrot.lane.b32.xlu0 0, 68
        %v1606 = vpop.permute.xlu0 %1605
        %1607 = vrot.lane.b32.xlu0 %v1307, 68
        %v1608 = vpop.permute.xlu0 %1607
        %1609 = vrot.lane.b32.xlu0 %v1285, 68
        %v1610 = vpop.permute.xlu0 %1609
        %1611 = vrot.lane.b32.xlu0 %v1286, 68
        %v1612 = vpop.permute.xlu0 %1611
        %1613 = vrot.lane.b32.xlu0 %v1287, 68
        %v1614 = vpop.permute.xlu0 %1613
        %1615 = vrot.lane.b32.xlu0 %v1288, 68
        %v1616 = vpop.permute.xlu0 %1615
        %1617 = vrot.lane.b32.xlu0 %v1289, 68
        %v1618 = vpop.permute.xlu0 %1617
        %1619 = vrot.lane.b32.xlu0 %v1314, 68
        %v1620 = vpop.permute.xlu0 %1619
        %v1621 = vsel %vm660, %v1592, %v1594
        %v1622 = vsel %vm660, %v1594, %v1596
        %v1623 = vsel %vm660, %v1596, %v1598
        %v1624 = vsel %vm660, %v1598, %v1600
        %v1625 = vsel %vm660, %v1600, %v1602
        %v1626 = vsel %vm660, %v1602, %v1604
        %v1627 = vsel %vm660, %v1604, %v1606
        %v1628 = vsel %vm660, %v1608, %v1610
        %v1629 = vsel %vm660, %v1610, %v1612
        %v1630 = vsel %vm660, %v1612, %v1614
        %v1631 = vsel %vm660, %v1614, %v1616
        %v1632 = vsel %vm660, %v1616, %v1618
        %v1633 = vsel %vm660, %v1618, %v1620
        %v1634 = vsel %vm660, %v1620, %v1606
        %1649 = vrot.lane.b32.xlu0 %v1304, 67
        %v1650 = vpop.permute.xlu0 %1649
        %1651 = vrot.lane.b32.xlu0 %v1279, 67
        %v1652 = vpop.permute.xlu0 %1651
        %1653 = vrot.lane.b32.xlu0 %v1280, 67
        %v1654 = vpop.permute.xlu0 %1653
        %1655 = vrot.lane.b32.xlu0 %v1281, 67
        %v1656 = vpop.permute.xlu0 %1655
        %1657 = vrot.lane.b32.xlu0 %v1282, 67
        %v1658 = vpop.permute.xlu0 %1657
        %1659 = vrot.lane.b32.xlu0 %v1283, 67
        %v1660 = vpop.permute.xlu0 %1659
        %1661 = vrot.lane.b32.xlu0 %v1311, 67
        %v1662 = vpop.permute.xlu0 %1661
        %1663 = vrot.lane.b32.xlu0 0, 67
        %v1664 = vpop.permute.xlu0 %1663
        %1665 = vrot.lane.b32.xlu0 %v1307, 67
        %v1666 = vpop.permute.xlu0 %1665
        %1667 = vrot.lane.b32.xlu0 %v1285, 67
        %v1668 = vpop.permute.xlu0 %1667
        %1669 = vrot.lane.b32.xlu0 %v1286, 67
        %v1670 = vpop.permute.xlu0 %1669
        %1671 = vrot.lane.b32.xlu0 %v1287, 67
        %v1672 = vpop.permute.xlu0 %1671
        %1673 = vrot.lane.b32.xlu0 %v1288, 67
        %v1674 = vpop.permute.xlu0 %1673
        %1675 = vrot.lane.b32.xlu0 %v1289, 67
        %v1676 = vpop.permute.xlu0 %1675
        %1677 = vrot.lane.b32.xlu0 %v1314, 67
        %v1678 = vpop.permute.xlu0 %1677
        %v1679 = vsel %vm696, %v1650, %v1652
        %v1680 = vsel %vm696, %v1652, %v1654
        %v1681 = vsel %vm696, %v1654, %v1656
        %v1682 = vsel %vm696, %v1656, %v1658
        %v1683 = vsel %vm696, %v1658, %v1660
        %v1684 = vsel %vm696, %v1660, %v1662
        %v1685 = vsel %vm696, %v1662, %v1664
        %v1686 = vsel %vm696, %v1666, %v1668
        %v1687 = vsel %vm696, %v1668, %v1670
        %v1688 = vsel %vm696, %v1670, %v1672
        %v1689 = vsel %vm696, %v1672, %v1674
        %v1690 = vsel %vm696, %v1674, %v1676
        %v1691 = vsel %vm696, %v1676, %v1678
        %v1692 = vsel %vm696, %v1678, %v1664
        %1707 = vrot.lane.b32.xlu0 %v1304, 66
        %v1708 = vpop.permute.xlu0 %1707
        %1709 = vrot.lane.b32.xlu0 %v1279, 66
        %v1710 = vpop.permute.xlu0 %1709
        %1711 = vrot.lane.b32.xlu0 %v1280, 66
        %v1712 = vpop.permute.xlu0 %1711
        %1713 = vrot.lane.b32.xlu0 %v1281, 66
        %v1714 = vpop.permute.xlu0 %1713
        %1715 = vrot.lane.b32.xlu0 %v1282, 66
        %v1716 = vpop.permute.xlu0 %1715
        %1717 = vrot.lane.b32.xlu0 %v1283, 66
        %v1718 = vpop.permute.xlu0 %1717
        %1719 = vrot.lane.b32.xlu0 %v1311, 66
        %v1720 = vpop.permute.xlu0 %1719
        %1721 = vrot.lane.b32.xlu0 0, 66
        %v1722 = vpop.permute.xlu0 %1721
        %1723 = vrot.lane.b32.xlu0 %v1307, 66
        %v1724 = vpop.permute.xlu0 %1723
        %1725 = vrot.lane.b32.xlu0 %v1285, 66
        %v1726 = vpop.permute.xlu0 %1725
        %1727 = vrot.lane.b32.xlu0 %v1286, 66
        %v1728 = vpop.permute.xlu0 %1727
        %1729 = vrot.lane.b32.xlu0 %v1287, 66
        %v1730 = vpop.permute.xlu0 %1729
        %1731 = vrot.lane.b32.xlu0 %v1288, 66
        %v1732 = vpop.permute.xlu0 %1731
        %1733 = vrot.lane.b32.xlu0 %v1289, 66
        %v1734 = vpop.permute.xlu0 %1733
        %1735 = vrot.lane.b32.xlu0 %v1314, 66
        %v1736 = vpop.permute.xlu0 %1735
        %v1737 = vsel %vm731, %v1708, %v1710
        %v1738 = vsel %vm731, %v1710, %v1712
        %v1739 = vsel %vm731, %v1712, %v1714
        %v1740 = vsel %vm731, %v1714, %v1716
        %v1741 = vsel %vm731, %v1716, %v1718
        %v1742 = vsel %vm731, %v1718, %v1720
        %v1743 = vsel %vm731, %v1720, %v1722
        %v1744 = vsel %vm731, %v1724, %v1726
        %v1745 = vsel %vm731, %v1726, %v1728
        %v1746 = vsel %vm731, %v1728, %v1730
        %v1747 = vsel %vm731, %v1730, %v1732
        %v1748 = vsel %vm731, %v1732, %v1734
        %v1749 = vsel %vm731, %v1734, %v1736
        %v1750 = vsel %vm731, %v1736, %v1722
        %v1781 = vunpack.c.l.b16 %v255
        %v1782 = vunpack.c.h.b16 %v255
        %v1783 = vunpack.c.l.b16 %v256
        %v1784 = vunpack.c.l.b16 %v257
        %v1785 = vunpack.c.h.b16 %v257
        %v1786 = vunpack.c.l.b16 %v258
        %v1787 = vunpack.c.l.b16 %v259
        %v1788 = vunpack.c.h.b16 %v259
        %v1789 = vunpack.c.l.b16 %v260
        %v1790 = vunpack.c.l.b16 %v261
        %v1791 = vunpack.c.h.b16 %v261
        %v1792 = vunpack.c.l.b16 %v262
        %v1793 = vunpack.c.l.b16 %v263
        %v1794 = vunpack.c.h.b16 %v263
        %v1795 = vunpack.c.l.b16 %v264
        %v1796 = vunpack.c.l.b16 %v265
        %v1797 = vunpack.c.h.b16 %v265
        %v1798 = vunpack.c.l.b16 %v266
        %v1799 = vunpack.c.l.b16 %v267
        %v1800 = vunpack.c.h.b16 %v267
        %v1801 = vunpack.c.l.b16 %v268
        %v1802 = vunpack.c.l.b16 %v269
        %v1803 = vunpack.c.h.b16 %v269
        %v1804 = vunpack.c.l.b16 %v270
        %v1805 = vpack.c.b16 %v1784, %v1781
        %v1806 = vpack.c.b16 %v1785, %v1782
        %v1807 = vpack.c.b16 %v1786, %v1783
        %v1808 = vpack.c.b16 %v1790, %v1787
        %v1809 = vpack.c.b16 %v1791, %v1788
        %v1810 = vpack.c.b16 %v1792, %v1789
        %v1811 = vpack.c.b16 %v1796, %v1793
        %v1812 = vpack.c.b16 %v1797, %v1794
        %v1813 = vpack.c.b16 %v1798, %v1795
        %v1814 = vpack.c.b16 %v1802, %v1799
        %v1815 = vpack.c.b16 %v1803, %v1800
        %v1816 = vpack.c.b16 %v1804, %v1801
        %vm1825 = vcmask 261120
        %v1827 = vsel %vm1825, %v1807, 0
        %v1830 = vsel %vm1825, %v1810, 0
        %v1833 = vsel %vm1825, %v1813, 0
        %v1836 = vsel %vm1825, %v1816, 0
        %1838 = vmatprep.subr.bf16.mxu0 %v1279
        %1839 = vmatpush1.bf16.msra.mxu0 %v1304
        %1840 = vmatprep.subr.bf16.mxu0 %v1285
        %1841 = vmatpush1.bf16.msra.mxu0 %v1307
        %1842 = vmatprep.subr.bf16.mxu0 %v1349
        %1843 = vmatpush1.bf16.msra.mxu0 %v1348
        %1844 = vmatprep.subr.bf16.mxu0 %v1355
        %1845 = vmatpush1.bf16.msra.mxu0 %v1354
        %1846 = vmatprep.subr.bf16.mxu0 %v1403
        %1847 = vmatpush1.bf16.msra.mxu0 %v1402
        %1848 = vmatprep.subr.bf16.mxu0 %v1409
        %1849 = vmatpush1.bf16.msra.mxu0 %v1408
        %1850 = vmatprep.subr.bf16.mxu0 %v1457
        %1851 = vmatpush1.bf16.msra.mxu0 %v1456
        %1852 = vmatprep.subr.bf16.mxu0 %v1463
        %1853 = vmatpush1.bf16.msra.mxu0 %v1462
        %1854 = vmatprep.subr.bf16.mxu0 %v1511
        %1855 = vmatpush1.bf16.msra.mxu0 %v1510
        %1856 = vmatprep.subr.bf16.mxu0 %v1517
        %1857 = vmatpush1.bf16.msra.mxu0 %v1516
        %1858 = vmatprep.subr.bf16.mxu0 %v1565
        %1859 = vmatpush1.bf16.msra.mxu0 %v1564
        %1860 = vmatprep.subr.bf16.mxu0 %v1571
        %1861 = vmatpush1.bf16.msra.mxu0 %v1570
        %1862 = vmatprep.subr.bf16.mxu0 %v1622
        %1863 = vmatpush1.bf16.msra.mxu0 %v1621
        %1864 = vmatprep.subr.bf16.mxu0 %v1629
        %1865 = vmatpush1.bf16.msra.mxu0 %v1628
        %1866 = vmatprep.subr.bf16.mxu0 %v1680
        %1867 = vmatpush1.bf16.msra.mxu0 %v1679
        %1868 = vmatprep.subr.bf16.mxu0 %v1687
        %1869 = vmatpush1.bf16.msra.mxu0 %v1686
        %1870 = vmatprep.mubr.bf16.mxu0 %v1806
        %1871 = vmatmul.mubr.bf16.gmra.mrb[0].mxu0 %v1805
        %v1872 = vpop.f32.mrb[0].mxu0
        %v1873 = vadd.f32 0.0, %v1872
        %v1874 = vpop.f32.mrb[0].mxu0
        %v1875 = vadd.f32 0.0, %v1874
        %v1876 = vpop.f32.mrb[0].mxu0
        %v1877 = vadd.f32 0.0, %v1876
        %v1878 = vpop.f32.mrb[0].mxu0
        %v1879 = vadd.f32 0.0, %v1878
        %1880 = vmatprep.mubr.bf16.mxu0 %v1809
        %1881 = vmatmul.mubr.bf16.gmra.mrb[0].mxu0 %v1808
        %v1882 = vpop.f32.mrb[0].mxu0
        %v1883 = vadd.f32 0.0, %v1882
        %v1884 = vpop.f32.mrb[0].mxu0
        %v1885 = vadd.f32 0.0, %v1884
        %v1886 = vpop.f32.mrb[0].mxu0
        %v1887 = vadd.f32 0.0, %v1886
        %v1888 = vpop.f32.mrb[0].mxu0
        %v1889 = vadd.f32 0.0, %v1888
        %1890 = vmatprep.mubr.bf16.mxu0 %v1812
        %1891 = vmatmul.mubr.bf16.gmra.mrb[0].mxu0 %v1811
        %v1892 = vpop.f32.mrb[0].mxu0
        %v1893 = vadd.f32 0.0, %v1892
        %v1894 = vpop.f32.mrb[0].mxu0
        %v1895 = vadd.f32 0.0, %v1894
        %v1896 = vpop.f32.mrb[0].mxu0
        %v1897 = vadd.f32 0.0, %v1896
        %v1898 = vpop.f32.mrb[0].mxu0
        %v1899 = vadd.f32 0.0, %v1898
        %1900 = vmatprep.mubr.bf16.mxu0 %v1815
        %1901 = vmatmul.mubr.bf16.gmra.mrb[0].mxu0 %v1814
        %v1902 = vpop.f32.mrb[0].mxu0
        %v1903 = vadd.f32 0.0, %v1902
        %v1904 = vpop.f32.mrb[0].mxu0
        %v1905 = vadd.f32 0.0, %v1904
        %v1906 = vpop.f32.mrb[0].mxu0
        %v1907 = vadd.f32 0.0, %v1906
        %v1908 = vpop.f32.mrb[0].mxu0
        %v1909 = vadd.f32 0.0, %v1908
        %1910 = vdwg.mxu0
        %1911 = vmatprep.subr.bf16.mxu0 %v1738
        %1912 = vmatpush1.bf16.msra.mxu0 %v1737
        %1913 = vmatprep.subr.bf16.mxu0 %v1745
        %1914 = vmatpush1.bf16.msra.mxu0 %v1744
        %1915 = vmatprep.subr.bf16.mxu0 0
        %1916 = vmatpush1.bf16.msra.mxu0 0
        %1917 = vmatprep.subr.bf16.mxu0 0
        %1918 = vmatpush1.bf16.msra.mxu0 0
        %1919 = vmatprep.subr.bf16.mxu0 0
        %1920 = vmatpush1.bf16.msra.mxu0 0
        %1921 = vmatprep.subr.bf16.mxu0 0
        %1922 = vmatpush1.bf16.msra.mxu0 0
        %1923 = vmatprep.subr.bf16.mxu0 0
        %1924 = vmatpush1.bf16.msra.mxu0 0
        %1925 = vmatprep.subr.bf16.mxu0 0
        %1926 = vmatpush1.bf16.msra.mxu0 0
        %1927 = vmatprep.subr.bf16.mxu0 0
        %1928 = vmatpush1.bf16.msra.mxu0 0
        %1929 = vmatprep.subr.bf16.mxu0 0
        %1930 = vmatpush1.bf16.msra.mxu0 0
        %1931 = vmatprep.subr.bf16.mxu0 0
        %1932 = vmatpush1.bf16.msra.mxu0 0
        %1933 = vmatprep.subr.bf16.mxu0 0
        %1934 = vmatpush1.bf16.msra.mxu0 0
        %1935 = vmatprep.subr.bf16.mxu0 0
        %1936 = vmatpush1.bf16.msra.mxu0 0
        %1937 = vmatprep.subr.bf16.mxu0 0
        %1938 = vmatpush1.bf16.msra.mxu0 0
        %1939 = vmatprep.subr.bf16.mxu0 0
        %1940 = vmatpush1.bf16.msra.mxu0 0
        %1941 = vmatprep.subr.bf16.mxu0 0
        %1942 = vmatpush1.bf16.msra.mxu0 0
        %1943 = vmatprep.mubr.bf16.mxu0 0
        %1944 = vmatmul.mubr.bf16.gmra.mrb[0].mxu0 %v1827
        %v1945 = vpop.f32.mrb[0].mxu0
        %v1946 = vadd.f32 %v1873, %v1945
        %v1947 = vpop.f32.mrb[0].mxu0
        %v1948 = vadd.f32 %v1875, %v1947
        %v1949 = vpop.f32.mrb[0].mxu0
        %v1950 = vadd.f32 %v1877, %v1949
        %v1951 = vpop.f32.mrb[0].mxu0
        %v1952 = vadd.f32 %v1879, %v1951
        %1953 = vmatprep.mubr.bf16.mxu0 0
        %1954 = vmatmul.mubr.bf16.gmra.mrb[0].mxu0 %v1830
        %v1955 = vpop.f32.mrb[0].mxu0
        %v1956 = vadd.f32 %v1883, %v1955
        %v1957 = vpop.f32.mrb[0].mxu0
        %v1958 = vadd.f32 %v1885, %v1957
        %v1959 = vpop.f32.mrb[0].mxu0
        %v1960 = vadd.f32 %v1887, %v1959
        %v1961 = vpop.f32.mrb[0].mxu0
        %v1962 = vadd.f32 %v1889, %v1961
        %1963 = vmatprep.mubr.bf16.mxu0 0
        %1964 = vmatmul.mubr.bf16.gmra.mrb[0].mxu0 %v1833
        %v1965 = vpop.f32.mrb[0].mxu0
        %v1966 = vadd.f32 %v1893, %v1965
        %v1967 = vpop.f32.mrb[0].mxu0
        %v1968 = vadd.f32 %v1895, %v1967
        %v1969 = vpop.f32.mrb[0].mxu0
        %v1970 = vadd.f32 %v1897, %v1969
        %v1971 = vpop.f32.mrb[0].mxu0
        %v1972 = vadd.f32 %v1899, %v1971
        %1973 = vmatprep.mubr.bf16.mxu0 0
        %1974 = vmatmul.mubr.bf16.gmra.mrb[0].mxu0 %v1836
        %v1975 = vpop.f32.mrb[0].mxu0
        %v1976 = vadd.f32 %v1903, %v1975
        %v1977 = vpop.f32.mrb[0].mxu0
        %v1978 = vadd.f32 %v1905, %v1977
        %v1979 = vpop.f32.mrb[0].mxu0
        %v1980 = vadd.f32 %v1907, %v1979
        %v1981 = vpop.f32.mrb[0].mxu0
        %v1982 = vadd.f32 %v1909, %v1981
        %1983 = vdwg.mxu0
        %1984 = vmatprep.subr.bf16.mxu0 %v1281
        %1985 = vmatpush1.bf16.msra.mxu0 %v1280
        %1986 = vmatprep.subr.bf16.mxu0 %v1287
        %1987 = vmatpush1.bf16.msra.mxu0 %v1286
        %1988 = vmatprep.subr.bf16.mxu0 %v1351
        %1989 = vmatpush1.bf16.msra.mxu0 %v1350
        %1990 = vmatprep.subr.bf16.mxu0 %v1357
        %1991 = vmatpush1.bf16.msra.mxu0 %v1356
        %1992 = vmatprep.subr.bf16.mxu0 %v1405
        %1993 = vmatpush1.bf16.msra.mxu0 %v1404
        %1994 = vmatprep.subr.bf16.mxu0 %v1411
        %1995 = vmatpush1.bf16.msra.mxu0 %v1410
        %1996 = vmatprep.subr.bf16.mxu0 %v1459
        %1997 = vmatpush1.bf16.msra.mxu0 %v1458
        %1998 = vmatprep.subr.bf16.mxu0 %v1465
        %1999 = vmatpush1.bf16.msra.mxu0 %v1464
        %2000 = vmatprep.subr.bf16.mxu0 %v1513
        %2001 = vmatpush1.bf16.msra.mxu0 %v1512
        %2002 = vmatprep.subr.bf16.mxu0 %v1519
        %2003 = vmatpush1.bf16.msra.mxu0 %v1518
        %2004 = vmatprep.subr.bf16.mxu0 %v1567
        %2005 = vmatpush1.bf16.msra.mxu0 %v1566
        %2006 = vmatprep.subr.bf16.mxu0 %v1573
        %2007 = vmatpush1.bf16.msra.mxu0 %v1572
        %2008 = vmatprep.subr.bf16.mxu0 %v1624
        %2009 = vmatpush1.bf16.msra.mxu0 %v1623
        %2010 = vmatprep.subr.bf16.mxu0 %v1631
        %2011 = vmatpush1.bf16.msra.mxu0 %v1630
        %2012 = vmatprep.subr.bf16.mxu0 %v1682
        %2013 = vmatpush1.bf16.msra.mxu0 %v1681
        %2014 = vmatprep.subr.bf16.mxu0 %v1689
        %2015 = vmatpush1.bf16.msra.mxu0 %v1688
        %2016 = vmatprep.mubr.bf16.mxu0 %v1806
        %2017 = vmatmul.mubr.bf16.gmra.mrb[0].mxu0 %v1805
        %v2018 = vpop.f32.mrb[0].mxu0
        %v2019 = vadd.f32 0.0, %v2018
        %v2020 = vpop.f32.mrb[0].mxu0
        %v2021 = vadd.f32 0.0, %v2020
        %v2022 = vpop.f32.mrb[0].mxu0
        %v2023 = vadd.f32 0.0, %v2022
        %v2024 = vpop.f32.mrb[0].mxu0
        %v2025 = vadd.f32 0.0, %v2024
        %2026 = vmatprep.mubr.bf16.mxu0 %v1809
        %2027 = vmatmul.mubr.bf16.gmra.mrb[0].mxu0 %v1808
        %v2028 = vpop.f32.mrb[0].mxu0
        %v2029 = vadd.f32 0.0, %v2028
        %v2030 = vpop.f32.mrb[0].mxu0
        %v2031 = vadd.f32 0.0, %v2030
        %v2032 = vpop.f32.mrb[0].mxu0
        %v2033 = vadd.f32 0.0, %v2032
        %v2034 = vpop.f32.mrb[0].mxu0
        %v2035 = vadd.f32 0.0, %v2034
        %2036 = vmatprep.mubr.bf16.mxu0 %v1812
        %2037 = vmatmul.mubr.bf16.gmra.mrb[0].mxu0 %v1811
        %v2038 = vpop.f32.mrb[0].mxu0
        %v2039 = vadd.f32 0.0, %v2038
        %v2040 = vpop.f32.mrb[0].mxu0
        %v2041 = vadd.f32 0.0, %v2040
        %v2042 = vpop.f32.mrb[0].mxu0
        %v2043 = vadd.f32 0.0, %v2042
        %v2044 = vpop.f32.mrb[0].mxu0
        %v2045 = vadd.f32 0.0, %v2044
        %2046 = vmatprep.mubr.bf16.mxu0 %v1815
        %2047 = vmatmul.mubr.bf16.gmra.mrb[0].mxu0 %v1814
        %v2048 = vpop.f32.mrb[0].mxu0
        %v2049 = vadd.f32 0.0, %v2048
        %v2050 = vpop.f32.mrb[0].mxu0
        %v2051 = vadd.f32 0.0, %v2050
        %v2052 = vpop.f32.mrb[0].mxu0
        %v2053 = vadd.f32 0.0, %v2052
        %v2054 = vpop.f32.mrb[0].mxu0
        %v2055 = vadd.f32 0.0, %v2054
        %2056 = vdwg.mxu0
        %2057 = vmatprep.subr.bf16.mxu0 %v1740
        %2058 = vmatpush1.bf16.msra.mxu0 %v1739
        %2059 = vmatprep.subr.bf16.mxu0 %v1747
        %2060 = vmatpush1.bf16.msra.mxu0 %v1746
        %2061 = vmatprep.subr.bf16.mxu0 0
        %2062 = vmatpush1.bf16.msra.mxu0 0
        %2063 = vmatprep.subr.bf16.mxu0 0
        %2064 = vmatpush1.bf16.msra.mxu0 0
        %2065 = vmatprep.subr.bf16.mxu0 0
        %2066 = vmatpush1.bf16.msra.mxu0 0
        %2067 = vmatprep.subr.bf16.mxu0 0
        %2068 = vmatpush1.bf16.msra.mxu0 0
        %2069 = vmatprep.subr.bf16.mxu0 0
        %2070 = vmatpush1.bf16.msra.mxu0 0
        %2071 = vmatprep.subr.bf16.mxu0 0
        %2072 = vmatpush1.bf16.msra.mxu0 0
        %2073 = vmatprep.subr.bf16.mxu0 0
        %2074 = vmatpush1.bf16.msra.mxu0 0
        %2075 = vmatprep.subr.bf16.mxu0 0
        %2076 = vmatpush1.bf16.msra.mxu0 0
        %2077 = vmatprep.subr.bf16.mxu0 0
        %2078 = vmatpush1.bf16.msra.mxu0 0
        %2079 = vmatprep.subr.bf16.mxu0 0
        %2080 = vmatpush1.bf16.msra.mxu0 0
        %2081 = vmatprep.subr.bf16.mxu0 0
        %2082 = vmatpush1.bf16.msra.mxu0 0
        %2083 = vmatprep.subr.bf16.mxu0 0
        %2084 = vmatpush1.bf16.msra.mxu0 0
        %2085 = vmatprep.subr.bf16.mxu0 0
        %2086 = vmatpush1.bf16.msra.mxu0 0
        %2087 = vmatprep.subr.bf16.mxu0 0
        %2088 = vmatpush1.bf16.msra.mxu0 0
        %2089 = vmatprep.mubr.bf16.mxu0 0
        %2090 = vmatmul.mubr.bf16.gmra.mrb[0].mxu0 %v1827
        %v2091 = vpop.f32.mrb[0].mxu0
        %v2092 = vadd.f32 %v2019, %v2091
        %v2093 = vpop.f32.mrb[0].mxu0
        %v2094 = vadd.f32 %v2021, %v2093
        %v2095 = vpop.f32.mrb[0].mxu0
        %v2096 = vadd.f32 %v2023, %v2095
        %v2097 = vpop.f32.mrb[0].mxu0
        %v2098 = vadd.f32 %v2025, %v2097
        %2099 = vmatprep.mubr.bf16.mxu0 0
        %2100 = vmatmul.mubr.bf16.gmra.mrb[0].mxu0 %v1830
        %v2101 = vpop.f32.mrb[0].mxu0
        %v2102 = vadd.f32 %v2029, %v2101
        %v2103 = vpop.f32.mrb[0].mxu0
        %v2104 = vadd.f32 %v2031, %v2103
        %v2105 = vpop.f32.mrb[0].mxu0
        %v2106 = vadd.f32 %v2033, %v2105
        %v2107 = vpop.f32.mrb[0].mxu0
        %v2108 = vadd.f32 %v2035, %v2107
        %2109 = vmatprep.mubr.bf16.mxu0 0
        %2110 = vmatmul.mubr.bf16.gmra.mrb[0].mxu0 %v1833
        %v2111 = vpop.f32.mrb[0].mxu0
        %v2112 = vadd.f32 %v2039, %v2111
        %v2113 = vpop.f32.mrb[0].mxu0
        %v2114 = vadd.f32 %v2041, %v2113
        %v2115 = vpop.f32.mrb[0].mxu0
        %v2116 = vadd.f32 %v2043, %v2115
        %v2117 = vpop.f32.mrb[0].mxu0
        %v2118 = vadd.f32 %v2045, %v2117
        %2119 = vmatprep.mubr.bf16.mxu0 0
        %2120 = vmatmul.mubr.bf16.gmra.mrb[0].mxu0 %v1836
        %v2121 = vpop.f32.mrb[0].mxu0
        %v2122 = vadd.f32 %v2049, %v2121
        %v2123 = vpop.f32.mrb[0].mxu0
        %v2124 = vadd.f32 %v2051, %v2123
        %v2125 = vpop.f32.mrb[0].mxu0
        %v2126 = vadd.f32 %v2053, %v2125
        %v2127 = vpop.f32.mrb[0].mxu0
        %v2128 = vadd.f32 %v2055, %v2127
        %2129 = vdwg.mxu0
        %2130 = vmatprep.subr.bf16.mxu0 %v1283
        %2131 = vmatpush1.bf16.msra.mxu0 %v1282
        %2132 = vmatprep.subr.bf16.mxu0 %v1289
        %2133 = vmatpush1.bf16.msra.mxu0 %v1288
        %2134 = vmatprep.subr.bf16.mxu0 %v1353
        %2135 = vmatpush1.bf16.msra.mxu0 %v1352
        %2136 = vmatprep.subr.bf16.mxu0 %v1359
        %2137 = vmatpush1.bf16.msra.mxu0 %v1358
        %2138 = vmatprep.subr.bf16.mxu0 %v1407
        %2139 = vmatpush1.bf16.msra.mxu0 %v1406
        %2140 = vmatprep.subr.bf16.mxu0 %v1413
        %2141 = vmatpush1.bf16.msra.mxu0 %v1412
        %2142 = vmatprep.subr.bf16.mxu0 %v1461
        %2143 = vmatpush1.bf16.msra.mxu0 %v1460
        %2144 = vmatprep.subr.bf16.mxu0 %v1467
        %2145 = vmatpush1.bf16.msra.mxu0 %v1466
        %2146 = vmatprep.subr.bf16.mxu0 %v1515
        %2147 = vmatpush1.bf16.msra.mxu0 %v1514
        %2148 = vmatprep.subr.bf16.mxu0 %v1521
        %2149 = vmatpush1.bf16.msra.mxu0 %v1520
        %2150 = vmatprep.subr.bf16.mxu0 %v1569
        %2151 = vmatpush1.bf16.msra.mxu0 %v1568
        %2152 = vmatprep.subr.bf16.mxu0 %v1575
        %2153 = vmatpush1.bf16.msra.mxu0 %v1574
        %2154 = vmatprep.subr.bf16.mxu0 %v1626
        %2155 = vmatpush1.bf16.msra.mxu0 %v1625
        %2156 = vmatprep.subr.bf16.mxu0 %v1633
        %2157 = vmatpush1.bf16.msra.mxu0 %v1632
        %2158 = vmatprep.subr.bf16.mxu0 %v1684
        %2159 = vmatpush1.bf16.msra.mxu0 %v1683
        %2160 = vmatprep.subr.bf16.mxu0 %v1691
        %2161 = vmatpush1.bf16.msra.mxu0 %v1690
        %2162 = vmatprep.mubr.bf16.mxu0 %v1806
        %2163 = vmatmul.mubr.bf16.gmra.mrb[0].mxu0 %v1805
        %v2164 = vpop.f32.mrb[0].mxu0
        %v2165 = vadd.f32 0.0, %v2164
        %v2166 = vpop.f32.mrb[0].mxu0
        %v2167 = vadd.f32 0.0, %v2166
        %v2168 = vpop.f32.mrb[0].mxu0
        %v2169 = vadd.f32 0.0, %v2168
        %v2170 = vpop.f32.mrb[0].mxu0
        %v2171 = vadd.f32 0.0, %v2170
        %2172 = vmatprep.mubr.bf16.mxu0 %v1809
        %2173 = vmatmul.mubr.bf16.gmra.mrb[0].mxu0 %v1808
        %v2174 = vpop.f32.mrb[0].mxu0
        %v2175 = vadd.f32 0.0, %v2174
        %v2176 = vpop.f32.mrb[0].mxu0
        %v2177 = vadd.f32 0.0, %v2176
        %v2178 = vpop.f32.mrb[0].mxu0
        %v2179 = vadd.f32 0.0, %v2178
        %v2180 = vpop.f32.mrb[0].mxu0
        %v2181 = vadd.f32 0.0, %v2180
        %2182 = vmatprep.mubr.bf16.mxu0 %v1812
        %2183 = vmatmul.mubr.bf16.gmra.mrb[0].mxu0 %v1811
        %v2184 = vpop.f32.mrb[0].mxu0
        %v2185 = vadd.f32 0.0, %v2184
        %v2186 = vpop.f32.mrb[0].mxu0
        %v2187 = vadd.f32 0.0, %v2186
        %v2188 = vpop.f32.mrb[0].mxu0
        %v2189 = vadd.f32 0.0, %v2188
        %v2190 = vpop.f32.mrb[0].mxu0
        %v2191 = vadd.f32 0.0, %v2190
        %2192 = vmatprep.mubr.bf16.mxu0 %v1815
        %2193 = vmatmul.mubr.bf16.gmra.mrb[0].mxu0 %v1814
        %v2194 = vpop.f32.mrb[0].mxu0
        %v2195 = vadd.f32 0.0, %v2194
        %v2196 = vpop.f32.mrb[0].mxu0
        %v2197 = vadd.f32 0.0, %v2196
        %v2198 = vpop.f32.mrb[0].mxu0
        %v2199 = vadd.f32 0.0, %v2198
        %v2200 = vpop.f32.mrb[0].mxu0
        %v2201 = vadd.f32 0.0, %v2200
        %2202 = vdwg.mxu0
        %2203 = vmatprep.subr.bf16.mxu0 %v1742
        %2204 = vmatpush1.bf16.msra.mxu0 %v1741
        %2205 = vmatprep.subr.bf16.mxu0 %v1749
        %2206 = vmatpush1.bf16.msra.mxu0 %v1748
        %2207 = vmatprep.subr.bf16.mxu0 0
        %2208 = vmatpush1.bf16.msra.mxu0 0
        %2209 = vmatprep.subr.bf16.mxu0 0
        %2210 = vmatpush1.bf16.msra.mxu0 0
        %2211 = vmatprep.subr.bf16.mxu0 0
        %2212 = vmatpush1.bf16.msra.mxu0 0
        %2213 = vmatprep.subr.bf16.mxu0 0
        %2214 = vmatpush1.bf16.msra.mxu0 0
        %2215 = vmatprep.subr.bf16.mxu0 0
        %2216 = vmatpush1.bf16.msra.mxu0 0
        %2217 = vmatprep.subr.bf16.mxu0 0
        %2218 = vmatpush1.bf16.msra.mxu0 0
        %2219 = vmatprep.subr.bf16.mxu0 0
        %2220 = vmatpush1.bf16.msra.mxu0 0
        %2221 = vmatprep.subr.bf16.mxu0 0
        %2222 = vmatpush1.bf16.msra.mxu0 0
        %2223 = vmatprep.subr.bf16.mxu0 0
        %2224 = vmatpush1.bf16.msra.mxu0 0
        %2225 = vmatprep.subr.bf16.mxu0 0
        %2226 = vmatpush1.bf16.msra.mxu0 0
        %2227 = vmatprep.subr.bf16.mxu0 0
        %2228 = vmatpush1.bf16.msra.mxu0 0
        %2229 = vmatprep.subr.bf16.mxu0 0
        %2230 = vmatpush1.bf16.msra.mxu0 0
        %2231 = vmatprep.subr.bf16.mxu0 0
        %2232 = vmatpush1.bf16.msra.mxu0 0
        %2233 = vmatprep.subr.bf16.mxu0 0
        %2234 = vmatpush1.bf16.msra.mxu0 0
        %2235 = vmatprep.mubr.bf16.mxu0 0
        %2236 = vmatmul.mubr.bf16.gmra.mrb[0].mxu0 %v1827
        %v2237 = vpop.f32.mrb[0].mxu0
        %v2238 = vadd.f32 %v2165, %v2237
        %v2239 = vpop.f32.mrb[0].mxu0
        %v2240 = vadd.f32 %v2167, %v2239
        %v2241 = vpop.f32.mrb[0].mxu0
        %v2242 = vadd.f32 %v2169, %v2241
        %v2243 = vpop.f32.mrb[0].mxu0
        %v2244 = vadd.f32 %v2171, %v2243
        %2245 = vmatprep.mubr.bf16.mxu0 0
        %2246 = vmatmul.mubr.bf16.gmra.mrb[0].mxu0 %v1830
        %v2247 = vpop.f32.mrb[0].mxu0
        %v2248 = vadd.f32 %v2175, %v2247
        %v2249 = vpop.f32.mrb[0].mxu0
        %v2250 = vadd.f32 %v2177, %v2249
        %v2251 = vpop.f32.mrb[0].mxu0
        %v2252 = vadd.f32 %v2179, %v2251
        %v2253 = vpop.f32.mrb[0].mxu0
        %v2254 = vadd.f32 %v2181, %v2253
        %2255 = vmatprep.mubr.bf16.mxu0 0
        %2256 = vmatmul.mubr.bf16.gmra.mrb[0].mxu0 %v1833
        %v2257 = vpop.f32.mrb[0].mxu0
        %v2258 = vadd.f32 %v2185, %v2257
        %v2259 = vpop.f32.mrb[0].mxu0
        %v2260 = vadd.f32 %v2187, %v2259
        %v2261 = vpop.f32.mrb[0].mxu0
        %v2262 = vadd.f32 %v2189, %v2261
        %v2263 = vpop.f32.mrb[0].mxu0
        %v2264 = vadd.f32 %v2191, %v2263
        %2265 = vmatprep.mubr.bf16.mxu0 0
        %2266 = vmatmul.mubr.bf16.gmra.mrb[0].mxu0 %v1836
        %v2267 = vpop.f32.mrb[0].mxu0
        %v2268 = vadd.f32 %v2195, %v2267
        %v2269 = vpop.f32.mrb[0].mxu0
        %v2270 = vadd.f32 %v2197, %v2269
        %v2271 = vpop.f32.mrb[0].mxu0
        %v2272 = vadd.f32 %v2199, %v2271
        %v2273 = vpop.f32.mrb[0].mxu0
        %v2274 = vadd.f32 %v2201, %v2273
        %2275 = vdwg.mxu0
        %2276 = vmatprep.subr.bf16.mxu0 0
        %2277 = vmatpush1.bf16.msra.mxu0 %v1311
        %2278 = vmatprep.subr.bf16.mxu0 0
        %2279 = vmatpush1.bf16.msra.mxu0 %v1314
        %2280 = vmatprep.subr.bf16.mxu0 0
        %2281 = vmatpush1.bf16.msra.mxu0 %v1333
        %2282 = vmatprep.subr.bf16.mxu0 0
        %2283 = vmatpush1.bf16.msra.mxu0 %v1347
        %2284 = vmatprep.subr.bf16.mxu0 0
        %2285 = vmatpush1.bf16.msra.mxu0 %v1387
        %2286 = vmatprep.subr.bf16.mxu0 0
        %2287 = vmatpush1.bf16.msra.mxu0 %v1401
        %2288 = vmatprep.subr.bf16.mxu0 0
        %2289 = vmatpush1.bf16.msra.mxu0 %v1441
        %2290 = vmatprep.subr.bf16.mxu0 0
        %2291 = vmatpush1.bf16.msra.mxu0 %v1455
        %2292 = vmatprep.subr.bf16.mxu0 0
        %2293 = vmatpush1.bf16.msra.mxu0 %v1495
        %2294 = vmatprep.subr.bf16.mxu0 0
        %2295 = vmatpush1.bf16.msra.mxu0 %v1509
        %2296 = vmatprep.subr.bf16.mxu0 0
        %2297 = vmatpush1.bf16.msra.mxu0 %v1549
        %2298 = vmatprep.subr.bf16.mxu0 0
        %2299 = vmatpush1.bf16.msra.mxu0 %v1563
        %2300 = vmatprep.subr.bf16.mxu0 0
        %2301 = vmatpush1.bf16.msra.mxu0 %v1627
        %2302 = vmatprep.subr.bf16.mxu0 0
        %2303 = vmatpush1.bf16.msra.mxu0 %v1634
        %2304 = vmatprep.subr.bf16.mxu0 0
        %2305 = vmatpush1.bf16.msra.mxu0 %v1685
        %2306 = vmatprep.subr.bf16.mxu0 0
        %2307 = vmatpush1.bf16.msra.mxu0 %v1692
        %2308 = vmatprep.mubr.bf16.mxu0 %v1806
        %2309 = vmatmul.mubr.bf16.gmra.mrb[0].mxu0 %v1805
        %v2310 = vpop.f32.mrb[0].mxu0
        %v2311 = vadd.f32 0.0, %v2310
        %v2312 = vpop.f32.mrb[0].mxu0
        %v2313 = vpop.f32.mrb[0].mxu0
        %v2314 = vadd.f32 0.0, %v2313
        %v2315 = vpop.f32.mrb[0].mxu0
        %2316 = vmatprep.mubr.bf16.mxu0 %v1809
        %2317 = vmatmul.mubr.bf16.gmra.mrb[0].mxu0 %v1808
        %v2318 = vpop.f32.mrb[0].mxu0
        %v2319 = vadd.f32 0.0, %v2318
        %v2320 = vpop.f32.mrb[0].mxu0
        %v2321 = vpop.f32.mrb[0].mxu0
        %v2322 = vadd.f32 0.0, %v2321
        %v2323 = vpop.f32.mrb[0].mxu0
        %2324 = vmatprep.mubr.bf16.mxu0 %v1812
        %2325 = vmatmul.mubr.bf16.gmra.mrb[0].mxu0 %v1811
        %v2326 = vpop.f32.mrb[0].mxu0
        %v2327 = vadd.f32 0.0, %v2326
        %v2328 = vpop.f32.mrb[0].mxu0
        %v2329 = vpop.f32.mrb[0].mxu0
        %v2330 = vadd.f32 0.0, %v2329
        %v2331 = vpop.f32.mrb[0].mxu0
        %2332 = vmatprep.mubr.bf16.mxu0 %v1815
        %2333 = vmatmul.mubr.bf16.gmra.mrb[0].mxu0 %v1814
        %v2334 = vpop.f32.mrb[0].mxu0
        %v2335 = vadd.f32 0.0, %v2334
        %v2336 = vpop.f32.mrb[0].mxu0
        %v2337 = vpop.f32.mrb[0].mxu0
        %v2338 = vadd.f32 0.0, %v2337
        %v2339 = vpop.f32.mrb[0].mxu0
        %2340 = vdwg.mxu0
        %2341 = vmatprep.subr.bf16.mxu0 0
        %2342 = vmatpush1.bf16.msra.mxu0 %v1743
        %2343 = vmatprep.subr.bf16.mxu0 0
        %2344 = vmatpush1.bf16.msra.mxu0 %v1750
        %2345 = vmatprep.subr.bf16.mxu0 0
        %2346 = vmatpush1.bf16.msra.mxu0 0
        %2347 = vmatprep.subr.bf16.mxu0 0
        %2348 = vmatpush1.bf16.msra.mxu0 0
        %2349 = vmatprep.subr.bf16.mxu0 0
        %2350 = vmatpush1.bf16.msra.mxu0 0
        %2351 = vmatprep.subr.bf16.mxu0 0
        %2352 = vmatpush1.bf16.msra.mxu0 0
        %2353 = vmatprep.subr.bf16.mxu0 0
        %2354 = vmatpush1.bf16.msra.mxu0 0
        %2355 = vmatprep.subr.bf16.mxu0 0
        %2356 = vmatpush1.bf16.msra.mxu0 0
        %2357 = vmatprep.subr.bf16.mxu0 0
        %2358 = vmatpush1.bf16.msra.mxu0 0
        %2359 = vmatprep.subr.bf16.mxu0 0
        %2360 = vmatpush1.bf16.msra.mxu0 0
        %2361 = vmatprep.subr.bf16.mxu0 0
        %2362 = vmatpush1.bf16.msra.mxu0 0
        %2363 = vmatprep.subr.bf16.mxu0 0
        %2364 = vmatpush1.bf16.msra.mxu0 0
        %2365 = vmatprep.subr.bf16.mxu0 0
        %2366 = vmatpush1.bf16.msra.mxu0 0
        %2367 = vmatprep.subr.bf16.mxu0 0
        %2368 = vmatpush1.bf16.msra.mxu0 0
        %2369 = vmatprep.subr.bf16.mxu0 0
        %2370 = vmatpush1.bf16.msra.mxu0 0
        %2371 = vmatprep.subr.bf16.mxu0 0
        %2372 = vmatpush1.bf16.msra.mxu0 0
        %2373 = vmatprep.mubr.bf16.mxu0 0
        %2374 = vmatmul.mubr.bf16.gmra.mrb[0].mxu0 %v1827
        %v2375 = vpop.f32.mrb[0].mxu0
        %v2376 = vadd.f32 %v2311, %v2375
        %v2377 = vpop.f32.mrb[0].mxu0
        %v2378 = vpop.f32.mrb[0].mxu0
        %v2379 = vadd.f32 %v2314, %v2378
        %v2380 = vpop.f32.mrb[0].mxu0
        %2381 = vmatprep.mubr.bf16.mxu0 0
        %2382 = vmatmul.mubr.bf16.gmra.mrb[0].mxu0 %v1830
        %v2383 = vpop.f32.mrb[0].mxu0
        %v2384 = vadd.f32 %v2319, %v2383
        %v2385 = vpop.f32.mrb[0].mxu0
        %v2386 = vpop.f32.mrb[0].mxu0
        %v2387 = vadd.f32 %v2322, %v2386
        %v2388 = vpop.f32.mrb[0].mxu0
        %2389 = vmatprep.mubr.bf16.mxu0 0
        %2390 = vmatmul.mubr.bf16.gmra.mrb[0].mxu0 %v1833
        %v2391 = vpop.f32.mrb[0].mxu0
        %v2392 = vadd.f32 %v2327, %v2391
        %v2393 = vpop.f32.mrb[0].mxu0
        %v2394 = vpop.f32.mrb[0].mxu0
        %v2395 = vadd.f32 %v2330, %v2394
        %v2396 = vpop.f32.mrb[0].mxu0
        %2397 = vmatprep.mubr.bf16.mxu0 0
        %2398 = vmatmul.mubr.bf16.gmra.mrb[0].mxu0 %v1836
        %v2399 = vpop.f32.mrb[0].mxu0
        %v2400 = vadd.f32 %v2335, %v2399
        %v2401 = vpop.f32.mrb[0].mxu0
        %v2402 = vpop.f32.mrb[0].mxu0
        %v2403 = vadd.f32 %v2338, %v2402
        %v2404 = vpop.f32.mrb[0].mxu0
        %2405 = vdwg.mxu0
        %v2406 = vmax.f32 %v1946, 0.0
        %v2407 = vmax.f32 %v1948, 0.0
        %v2408 = vmax.f32 %v2092, 0.0
        %v2409 = vmax.f32 %v2094, 0.0
        %v2410 = vmax.f32 %v2238, 0.0
        %v2411 = vmax.f32 %v2240, 0.0
        %v2412 = vmax.f32 %v2376, 0.0
        %v2413 = vmax.f32 %v1950, 0.0
        %v2414 = vmax.f32 %v1952, 0.0
        %v2415 = vmax.f32 %v2096, 0.0
        %v2416 = vmax.f32 %v2098, 0.0
        %v2417 = vmax.f32 %v2242, 0.0
        %v2418 = vmax.f32 %v2244, 0.0
        %v2419 = vmax.f32 %v2379, 0.0
        %v2420 = vmax.f32 %v1956, 0.0
        %v2421 = vmax.f32 %v1958, 0.0
        %v2422 = vmax.f32 %v2102, 0.0
        %v2423 = vmax.f32 %v2104, 0.0
        %v2424 = vmax.f32 %v2248, 0.0
        %v2425 = vmax.f32 %v2250, 0.0
        %v2426 = vmax.f32 %v2384, 0.0
        %v2427 = vmax.f32 %v1960, 0.0
        %v2428 = vmax.f32 %v1962, 0.0
        %v2429 = vmax.f32 %v2106, 0.0
        %v2430 = vmax.f32 %v2108, 0.0
        %v2431 = vmax.f32 %v2252, 0.0
        %v2432 = vmax.f32 %v2254, 0.0
        %v2433 = vmax.f32 %v2387, 0.0
        %v2434 = vmax.f32 %v1966, 0.0
        %v2435 = vmax.f32 %v1968, 0.0
        %v2436 = vmax.f32 %v2112, 0.0
        %v2437 = vmax.f32 %v2114, 0.0
        %v2438 = vmax.f32 %v2258, 0.0
        %v2439 = vmax.f32 %v2260, 0.0
        %v2440 = vmax.f32 %v2392, 0.0
        %v2441 = vmax.f32 %v1970, 0.0
        %v2442 = vmax.f32 %v1972, 0.0
        %v2443 = vmax.f32 %v2116, 0.0
        %v2444 = vmax.f32 %v2118, 0.0
        %v2445 = vmax.f32 %v2262, 0.0
        %v2446 = vmax.f32 %v2264, 0.0
        %v2447 = vmax.f32 %v2395, 0.0
        %v2448 = vmax.f32 %v1976, 0.0
        %v2449 = vmax.f32 %v1978, 0.0
        %v2450 = vmax.f32 %v2122, 0.0
        %v2451 = vmax.f32 %v2124, 0.0
        %v2452 = vmax.f32 %v2268, 0.0
        %v2453 = vmax.f32 %v2270, 0.0
        %v2454 = vmax.f32 %v2400, 0.0
        %v2455 = vmax.f32 %v1980, 0.0
        %v2456 = vmax.f32 %v1982, 0.0
        %v2457 = vmax.f32 %v2126, 0.0
        %v2458 = vmax.f32 %v2128, 0.0
        %v2459 = vmax.f32 %v2272, 0.0
        %v2460 = vmax.f32 %v2274, 0.0
        %v2461 = vmax.f32 %v2403, 0.0
        %v2462 = vpack.c.bf16 %v2413, %v2406
        %v2463 = vpack.c.bf16 %v2414, %v2407
        %v2464 = vpack.c.bf16 %v2415, %v2408
        %v2465 = vpack.c.bf16 %v2416, %v2409
        %v2466 = vpack.c.bf16 %v2417, %v2410
        %v2467 = vpack.c.bf16 %v2418, %v2411
        %v2468 = vpack.c.bf16 %v2419, %v2412
        %v2469 = vpack.c.bf16 %v2427, %v2420
        %v2470 = vpack.c.bf16 %v2428, %v2421
        %v2471 = vpack.c.bf16 %v2429, %v2422
        %v2472 = vpack.c.bf16 %v2430, %v2423
        %v2473 = vpack.c.bf16 %v2431, %v2424
        %v2474 = vpack.c.bf16 %v2432, %v2425
        %v2475 = vpack.c.bf16 %v2433, %v2426
        %v2476 = vpack.c.bf16 %v2441, %v2434
        %v2477 = vpack.c.bf16 %v2442, %v2435
        %v2478 = vpack.c.bf16 %v2443, %v2436
        %v2479 = vpack.c.bf16 %v2444, %v2437
        %v2480 = vpack.c.bf16 %v2445, %v2438
        %v2481 = vpack.c.bf16 %v2446, %v2439
        %v2482 = vpack.c.bf16 %v2447, %v2440
        %v2483 = vpack.c.bf16 %v2455, %v2448
        %v2484 = vpack.c.bf16 %v2456, %v2449
        %v2485 = vpack.c.bf16 %v2457, %v2450
        %v2486 = vpack.c.bf16 %v2458, %v2451
        %v2487 = vpack.c.bf16 %v2459, %v2452
        %v2488 = vpack.c.bf16 %v2460, %v2453
        %v2489 = vpack.c.bf16 %v2461, %v2454
        %2518 = vrot.lane.b32.xlu0 %v2462, 127
        %v2519 = vpop.permute.xlu0 %2518
        %2520 = vrot.lane.b32.xlu0 %v2463, 127
        %v2521 = vpop.permute.xlu0 %2520
        %2522 = vrot.lane.b32.xlu0 %v2464, 127
        %v2523 = vpop.permute.xlu0 %2522
        %2524 = vrot.lane.b32.xlu0 %v2465, 127
        %v2525 = vpop.permute.xlu0 %2524
        %2526 = vrot.lane.b32.xlu0 %v2466, 127
        %v2527 = vpop.permute.xlu0 %2526
        %2528 = vrot.lane.b32.xlu0 %v2467, 127
        %v2529 = vpop.permute.xlu0 %2528
        %2530 = vrot.lane.b32.xlu0 %v2468, 127
        %v2531 = vpop.permute.xlu0 %2530
        %2532 = vrot.lane.b32.xlu0 %v2469, 127
        %v2533 = vpop.permute.xlu0 %2532
        %2534 = vrot.lane.b32.xlu0 %v2470, 127
        %v2535 = vpop.permute.xlu0 %2534
        %2536 = vrot.lane.b32.xlu0 %v2471, 127
        %v2537 = vpop.permute.xlu0 %2536
        %2538 = vrot.lane.b32.xlu0 %v2472, 127
        %v2539 = vpop.permute.xlu0 %2538
        %2540 = vrot.lane.b32.xlu0 %v2473, 127
        %v2541 = vpop.permute.xlu0 %2540
        %2542 = vrot.lane.b32.xlu0 %v2474, 127
        %v2543 = vpop.permute.xlu0 %2542
        %2544 = vrot.lane.b32.xlu0 %v2475, 127
        %v2545 = vpop.permute.xlu0 %2544
        %2546 = vrot.lane.b32.xlu0 %v2476, 127
        %v2547 = vpop.permute.xlu0 %2546
        %2548 = vrot.lane.b32.xlu0 %v2477, 127
        %v2549 = vpop.permute.xlu0 %2548
        %2550 = vrot.lane.b32.xlu0 %v2478, 127
        %v2551 = vpop.permute.xlu0 %2550
        %2552 = vrot.lane.b32.xlu0 %v2479, 127
        %v2553 = vpop.permute.xlu0 %2552
        %2554 = vrot.lane.b32.xlu0 %v2480, 127
        %v2555 = vpop.permute.xlu0 %2554
        %2556 = vrot.lane.b32.xlu0 %v2481, 127
        %v2557 = vpop.permute.xlu0 %2556
        %2558 = vrot.lane.b32.xlu0 %v2482, 127
        %v2559 = vpop.permute.xlu0 %2558
        %2560 = vrot.lane.b32.xlu0 %v2483, 127
        %v2561 = vpop.permute.xlu0 %2560
        %2562 = vrot.lane.b32.xlu0 %v2484, 127
        %v2563 = vpop.permute.xlu0 %2562
        %2564 = vrot.lane.b32.xlu0 %v2485, 127
        %v2565 = vpop.permute.xlu0 %2564
        %2566 = vrot.lane.b32.xlu0 %v2486, 127
        %v2567 = vpop.permute.xlu0 %2566
        %2568 = vrot.lane.b32.xlu0 %v2487, 127
        %v2569 = vpop.permute.xlu0 %2568
        %2570 = vrot.lane.b32.xlu0 %v2488, 127
        %v2571 = vpop.permute.xlu0 %2570
        %2572 = vrot.lane.b32.xlu0 %v2489, 127
        %v2573 = vpop.permute.xlu0 %2572
        %v2574 = vsel %vm466, %v2519, %v2521
        %v2575 = vsel %vm466, %v2521, %v2523
        %v2576 = vsel %vm466, %v2523, %v2525
        %v2577 = vsel %vm466, %v2525, %v2527
        %v2578 = vsel %vm466, %v2527, %v2529
        %v2579 = vsel %vm466, %v2529, %v2531
        %v2580 = vsel %vm466, %v2533, %v2535
        %v2581 = vsel %vm466, %v2535, %v2537
        %v2582 = vsel %vm466, %v2537, %v2539
        %v2583 = vsel %vm466, %v2539, %v2541
        %v2584 = vsel %vm466, %v2541, %v2543
        %v2585 = vsel %vm466, %v2543, %v2545
        %v2586 = vsel %vm466, %v2547, %v2549
        %v2587 = vsel %vm466, %v2549, %v2551
        %v2588 = vsel %vm466, %v2551, %v2553
        %v2589 = vsel %vm466, %v2553, %v2555
        %v2590 = vsel %vm466, %v2555, %v2557
        %v2591 = vsel %vm466, %v2557, %v2559
        %v2592 = vsel %vm466, %v2561, %v2563
        %v2593 = vsel %vm466, %v2563, %v2565
        %v2594 = vsel %vm466, %v2565, %v2567
        %v2595 = vsel %vm466, %v2567, %v2569
        %v2596 = vsel %vm466, %v2569, %v2571
        %v2597 = vsel %vm466, %v2571, %v2573
        %v2626 = vmax.bf16 %v2462, %v2574
        %v2627 = vmax.bf16 %v2463, %v2575
        %v2628 = vmax.bf16 %v2464, %v2576
        %v2629 = vmax.bf16 %v2465, %v2577
        %v2630 = vmax.bf16 %v2466, %v2578
        %v2631 = vmax.bf16 %v2467, %v2579
        %v2632 = vmax.bf16 %v2468, %v2531
        %v2633 = vmax.bf16 %v2469, %v2580
        %v2634 = vmax.bf16 %v2470, %v2581
        %v2635 = vmax.bf16 %v2471, %v2582
        %v2636 = vmax.bf16 %v2472, %v2583
        %v2637 = vmax.bf16 %v2473, %v2584
        %v2638 = vmax.bf16 %v2474, %v2585
        %v2639 = vmax.bf16 %v2475, %v2545
        %v2640 = vmax.bf16 %v2476, %v2586
        %v2641 = vmax.bf16 %v2477, %v2587
        %v2642 = vmax.bf16 %v2478, %v2588
        %v2643 = vmax.bf16 %v2479, %v2589
        %v2644 = vmax.bf16 %v2480, %v2590
        %v2645 = vmax.bf16 %v2481, %v2591
        %v2646 = vmax.bf16 %v2482, %v2559
        %v2647 = vmax.bf16 %v2483, %v2592
        %v2648 = vmax.bf16 %v2484, %v2593
        %v2649 = vmax.bf16 %v2485, %v2594
        %v2650 = vmax.bf16 %v2486, %v2595
        %v2651 = vmax.bf16 %v2487, %v2596
        %v2652 = vmax.bf16 %v2488, %v2597
        %v2653 = vmax.bf16 %v2489, %v2573
        %2682 = vrot.lane.b32.xlu0 %v2626, 98
        %v2683 = vpop.permute.xlu0 %2682
        %2684 = vrot.lane.b32.xlu0 %v2627, 98
        %v2685 = vpop.permute.xlu0 %2684
        %2686 = vrot.lane.b32.xlu0 %v2628, 98
        %v2687 = vpop.permute.xlu0 %2686
        %2688 = vrot.lane.b32.xlu0 %v2629, 98
        %v2689 = vpop.permute.xlu0 %2688
        %2690 = vrot.lane.b32.xlu0 %v2630, 98
        %v2691 = vpop.permute.xlu0 %2690
        %2692 = vrot.lane.b32.xlu0 %v2631, 98
        %v2693 = vpop.permute.xlu0 %2692
        %2694 = vrot.lane.b32.xlu0 %v2632, 98
        %v2695 = vpop.permute.xlu0 %2694
        %2696 = vrot.lane.b32.xlu0 %v2633, 98
        %v2697 = vpop.permute.xlu0 %2696
        %2698 = vrot.lane.b32.xlu0 %v2634, 98
        %v2699 = vpop.permute.xlu0 %2698
        %2700 = vrot.lane.b32.xlu0 %v2635, 98
        %v2701 = vpop.permute.xlu0 %2700
        %2702 = vrot.lane.b32.xlu0 %v2636, 98
        %v2703 = vpop.permute.xlu0 %2702
        %2704 = vrot.lane.b32.xlu0 %v2637, 98
        %v2705 = vpop.permute.xlu0 %2704
        %2706 = vrot.lane.b32.xlu0 %v2638, 98
        %v2707 = vpop.permute.xlu0 %2706
        %2708 = vrot.lane.b32.xlu0 %v2639, 98
        %v2709 = vpop.permute.xlu0 %2708
        %2710 = vrot.lane.b32.xlu0 %v2640, 98
        %v2711 = vpop.permute.xlu0 %2710
        %2712 = vrot.lane.b32.xlu0 %v2641, 98
        %v2713 = vpop.permute.xlu0 %2712
        %2714 = vrot.lane.b32.xlu0 %v2642, 98
        %v2715 = vpop.permute.xlu0 %2714
        %2716 = vrot.lane.b32.xlu0 %v2643, 98
        %v2717 = vpop.permute.xlu0 %2716
        %2718 = vrot.lane.b32.xlu0 %v2644, 98
        %v2719 = vpop.permute.xlu0 %2718
        %2720 = vrot.lane.b32.xlu0 %v2645, 98
        %v2721 = vpop.permute.xlu0 %2720
        %2722 = vrot.lane.b32.xlu0 %v2646, 98
        %v2723 = vpop.permute.xlu0 %2722
        %2724 = vrot.lane.b32.xlu0 %v2647, 98
        %v2725 = vpop.permute.xlu0 %2724
        %2726 = vrot.lane.b32.xlu0 %v2648, 98
        %v2727 = vpop.permute.xlu0 %2726
        %2728 = vrot.lane.b32.xlu0 %v2649, 98
        %v2729 = vpop.permute.xlu0 %2728
        %2730 = vrot.lane.b32.xlu0 %v2650, 98
        %v2731 = vpop.permute.xlu0 %2730
        %2732 = vrot.lane.b32.xlu0 %v2651, 98
        %v2733 = vpop.permute.xlu0 %2732
        %2734 = vrot.lane.b32.xlu0 %v2652, 98
        %v2735 = vpop.permute.xlu0 %2734
        %2736 = vrot.lane.b32.xlu0 %v2653, 98
        %v2737 = vpop.permute.xlu0 %2736
        %v2738 = vsel %vm547, %v2683, %v2685
        %v2739 = vsel %vm547, %v2685, %v2687
        %v2740 = vsel %vm547, %v2687, %v2689
        %v2741 = vsel %vm547, %v2689, %v2691
        %v2742 = vsel %vm547, %v2691, %v2693
        %v2743 = vsel %vm547, %v2693, %v2695
        %v2744 = vsel %vm547, %v2697, %v2699
        %v2745 = vsel %vm547, %v2699, %v2701
        %v2746 = vsel %vm547, %v2701, %v2703
        %v2747 = vsel %vm547, %v2703, %v2705
        %v2748 = vsel %vm547, %v2705, %v2707
        %v2749 = vsel %vm547, %v2707, %v2709
        %v2750 = vsel %vm547, %v2711, %v2713
        %v2751 = vsel %vm547, %v2713, %v2715
        %v2752 = vsel %vm547, %v2715, %v2717
        %v2753 = vsel %vm547, %v2717, %v2719
        %v2754 = vsel %vm547, %v2719, %v2721
        %v2755 = vsel %vm547, %v2721, %v2723
        %v2756 = vsel %vm547, %v2725, %v2727
        %v2757 = vsel %vm547, %v2727, %v2729
        %v2758 = vsel %vm547, %v2729, %v2731
        %v2759 = vsel %vm547, %v2731, %v2733
        %v2760 = vsel %vm547, %v2733, %v2735
        %v2761 = vsel %vm547, %v2735, %v2737
        %v2790 = vmax.bf16 %v2626, %v2738
        %v2791 = vmax.bf16 %v2627, %v2739
        %v2792 = vmax.bf16 %v2628, %v2740
        %v2793 = vmax.bf16 %v2629, %v2741
        %v2794 = vmax.bf16 %v2630, %v2742
        %v2795 = vmax.bf16 %v2631, %v2743
        %v2796 = vmax.bf16 %v2632, %v2695
        %v2797 = vmax.bf16 %v2633, %v2744
        %v2798 = vmax.bf16 %v2634, %v2745
        %v2799 = vmax.bf16 %v2635, %v2746
        %v2800 = vmax.bf16 %v2636, %v2747
        %v2801 = vmax.bf16 %v2637, %v2748
        %v2802 = vmax.bf16 %v2638, %v2749
        %v2803 = vmax.bf16 %v2639, %v2709
        %v2804 = vmax.bf16 %v2640, %v2750
        %v2805 = vmax.bf16 %v2641, %v2751
        %v2806 = vmax.bf16 %v2642, %v2752
        %v2807 = vmax.bf16 %v2643, %v2753
        %v2808 = vmax.bf16 %v2644, %v2754
        %v2809 = vmax.bf16 %v2645, %v2755
        %v2810 = vmax.bf16 %v2646, %v2723
        %v2811 = vmax.bf16 %v2647, %v2756
        %v2812 = vmax.bf16 %v2648, %v2757
        %v2813 = vmax.bf16 %v2649, %v2758
        %v2814 = vmax.bf16 %v2650, %v2759
        %v2815 = vmax.bf16 %v2651, %v2760
        %v2816 = vmax.bf16 %v2652, %v2761
        %v2817 = vmax.bf16 %v2653, %v2737
        %v2920 = vunpack.c.l.b16 %v272
        %v2921 = vunpack.c.h.b16 %v272
        %v2922 = vunpack.c.l.b16 %v273
        %v2923 = vunpack.c.h.b16 %v273
        %v2924 = vunpack.c.l.b16 %v274
        %v2925 = vunpack.c.h.b16 %v274
        %v2926 = vunpack.c.l.b16 %v275
        %v2927 = vunpack.c.h.b16 %v275
        %v2928 = vunpack.c.l.b16 %v276
        %v2929 = vunpack.c.h.b16 %v276
        %v2930 = vunpack.c.l.b16 %v277
        %v2931 = vunpack.c.h.b16 %v277
        %v2932 = vunpack.c.l.b16 %v278
        %v2933 = vunpack.c.h.b16 %v278
        %v2934 = vunpack.c.l.b16 %v279
        %v2935 = vunpack.c.h.b16 %v279
        %v2936 = vunpack.c.l.b16 %v280
        %v2937 = vunpack.c.h.b16 %v280
        %v2938 = vunpack.c.l.b16 %v281
        %v2939 = vunpack.c.h.b16 %v281
        %v2940 = vunpack.c.l.b16 %v282
        %v2941 = vunpack.c.h.b16 %v282
        %v2942 = vunpack.c.l.b16 %v283
        %v2943 = vunpack.c.h.b16 %v283
        %v2944 = vunpack.c.l.b16 %v284
        %v2945 = vunpack.c.h.b16 %v284
        %v2946 = vunpack.c.l.b16 %v285
        %v2947 = vunpack.c.h.b16 %v285
        %v2948 = vunpack.c.l.b16 %v286
        %v2949 = vunpack.c.h.b16 %v286
        %v2950 = vunpack.c.l.b16 %v287
        %v2951 = vunpack.c.h.b16 %v287
        %v2952 = vunpack.c.l.b16 %v288
        %v2953 = vunpack.c.h.b16 %v288
        %v2954 = vunpack.c.l.b16 %v289
        %v2955 = vunpack.c.h.b16 %v289
        %v2956 = vunpack.c.l.b16 %v290
        %v2957 = vunpack.c.h.b16 %v290
        %v2958 = vunpack.c.l.b16 %v291
        %v2959 = vunpack.c.h.b16 %v291
        %v2960 = vunpack.c.l.b16 %v292
        %v2961 = vunpack.c.h.b16 %v292
        %v2962 = vunpack.c.l.b16 %v293
        %v2963 = vunpack.c.h.b16 %v293
        %v2964 = vunpack.c.l.b16 %v294
        %v2965 = vunpack.c.h.b16 %v294
        %v2966 = vunpack.c.l.b16 %v295
        %v2967 = vunpack.c.h.b16 %v295
        %v2968 = vunpack.c.l.b16 %v296
        %v2969 = vunpack.c.h.b16 %v296
        %v2970 = vunpack.c.l.b16 %v297
        %v2971 = vunpack.c.h.b16 %v297
        %v2972 = vunpack.c.l.b16 %v298
        %v2973 = vunpack.c.h.b16 %v298
        %v2974 = vunpack.c.l.b16 %v299
        %v2975 = vunpack.c.h.b16 %v299
        %v2976 = vunpack.c.l.b16 %v300
        %v2977 = vunpack.c.h.b16 %v300
        %v2978 = vunpack.c.l.b16 %v301
        %v2979 = vunpack.c.h.b16 %v301
        %v2980 = vunpack.c.l.b16 %v302
        %v2981 = vunpack.c.h.b16 %v302
        %v2982 = vunpack.c.l.b16 %v303
        %v2983 = vunpack.c.h.b16 %v303
        %v2984 = vunpack.c.l.b16 %v304
        %v2985 = vunpack.c.h.b16 %v304
        %v2986 = vunpack.c.l.b16 %v305
        %v2987 = vunpack.c.h.b16 %v305
        %v2988 = vunpack.c.l.b16 %v306
        %v2989 = vunpack.c.h.b16 %v306
        %v2990 = vunpack.c.l.b16 %v307
        %v2991 = vunpack.c.h.b16 %v307
        %v2992 = vunpack.c.l.b16 %v308
        %v2993 = vunpack.c.h.b16 %v308
        %v2994 = vunpack.c.l.b16 %v309
        %v2995 = vunpack.c.h.b16 %v309
        %v2996 = vunpack.c.l.b16 %v310
        %v2997 = vunpack.c.h.b16 %v310
        %v2998 = vunpack.c.l.b16 %v311
        %v2999 = vunpack.c.h.b16 %v311
        %v3000 = vunpack.c.l.b16 %v312
        %v3001 = vunpack.c.h.b16 %v312
        %v3002 = vunpack.c.l.b16 %v313
        %v3003 = vunpack.c.h.b16 %v313
        %v3004 = vunpack.c.l.b16 %v314
        %v3005 = vunpack.c.h.b16 %v314
        %v3006 = vunpack.c.l.b16 %v315
        %v3007 = vunpack.c.h.b16 %v315
        %v3008 = vunpack.c.l.b16 %v316
        %v3009 = vunpack.c.h.b16 %v316
        %v3010 = vunpack.c.l.b16 %v317
        %v3011 = vunpack.c.h.b16 %v317
        %v3012 = vunpack.c.l.b16 %v318
        %v3013 = vunpack.c.h.b16 %v318
        %v3014 = vunpack.c.l.b16 %v319
        %v3015 = vunpack.c.h.b16 %v319
        %v3016 = vunpack.c.l.b16 %v320
        %v3017 = vunpack.c.h.b16 %v320
        %v3018 = vunpack.c.l.b16 %v321
        %v3019 = vunpack.c.h.b16 %v321
        %v3020 = vunpack.c.l.b16 %v322
        %v3021 = vunpack.c.h.b16 %v322
        %v3022 = vunpack.c.l.b16 %v323
        %v3023 = vunpack.c.h.b16 %v323
        %v3024 = vunpack.c.l.b16 %v324
        %v3025 = vunpack.c.h.b16 %v324
        %v3026 = vunpack.c.l.b16 %v325
        %v3027 = vunpack.c.h.b16 %v325
        %v3028 = vunpack.c.l.b16 %v326
        %v3029 = vunpack.c.h.b16 %v326
        %v3030 = vunpack.c.l.b16 %v327
        %v3031 = vunpack.c.h.b16 %v327
        %v3032 = vunpack.c.l.b16 %v328
        %v3033 = vunpack.c.h.b16 %v328
        %v3034 = vunpack.c.l.b16 %v329
        %v3035 = vunpack.c.h.b16 %v329
        %v3036 = vunpack.c.l.b16 %v330
        %v3037 = vunpack.c.h.b16 %v330
        %v3038 = vunpack.c.l.b16 %v331
        %v3039 = vunpack.c.h.b16 %v331
        %v3040 = vunpack.c.l.b16 %v332
        %v3041 = vunpack.c.h.b16 %v332
        %v3042 = vunpack.c.l.b16 %v333
        %v3043 = vunpack.c.h.b16 %v333
        %v3044 = vunpack.c.l.b16 %v334
        %v3045 = vunpack.c.h.b16 %v334
        %v3046 = vunpack.c.l.b16 %v335
        %v3047 = vunpack.c.h.b16 %v335
        %v3048 = vunpack.c.l.b16 %v336
        %v3049 = vunpack.c.h.b16 %v336
        %v3050 = vunpack.c.l.b16 %v337
        %v3051 = vunpack.c.h.b16 %v337
        %v3052 = vunpack.c.l.b16 %v338
        %v3053 = vunpack.c.h.b16 %v338
        %v3054 = vunpack.c.l.b16 %v339
        %v3055 = vunpack.c.h.b16 %v339
        %v3056 = vunpack.c.l.b16 %v340
        %v3057 = vunpack.c.h.b16 %v340
        %v3058 = vunpack.c.l.b16 %v341
        %v3059 = vunpack.c.h.b16 %v341
        %v3060 = vunpack.c.l.b16 %v342
        %v3061 = vunpack.c.h.b16 %v342
        %v3062 = vunpack.c.l.b16 %v343
        %v3063 = vunpack.c.h.b16 %v343
        %v3064 = vunpack.c.l.b16 %v344
        %v3065 = vunpack.c.h.b16 %v344
        %v3066 = vunpack.c.l.b16 %v345
        %v3067 = vunpack.c.h.b16 %v345
        %v3068 = vunpack.c.l.b16 %v346
        %v3069 = vunpack.c.h.b16 %v346
        %v3070 = vunpack.c.l.b16 %v347
        %v3071 = vunpack.c.h.b16 %v347
        %v3072 = vunpack.c.l.b16 %v348
        %v3073 = vunpack.c.h.b16 %v348
        %v3074 = vunpack.c.l.b16 %v349
        %v3075 = vunpack.c.h.b16 %v349
        %v3076 = vunpack.c.l.b16 %v350
        %v3077 = vunpack.c.h.b16 %v350
        %v3078 = vunpack.c.l.b16 %v351
        %v3079 = vunpack.c.h.b16 %v351
        %v3080 = vunpack.c.l.b16 %v352
        %v3081 = vunpack.c.h.b16 %v352
        %v3082 = vunpack.c.l.b16 %v353
        %v3083 = vunpack.c.h.b16 %v353
        %v3084 = vunpack.c.l.b16 %v354
        %v3085 = vunpack.c.h.b16 %v354
        %v3086 = vunpack.c.l.b16 %v355
        %v3087 = vunpack.c.h.b16 %v355
        %v3088 = vunpack.c.l.b16 %v356
        %v3089 = vunpack.c.h.b16 %v356
        %v3090 = vunpack.c.l.b16 %v357
        %v3091 = vunpack.c.h.b16 %v357
        %v3092 = vunpack.c.l.b16 %v358
        %v3093 = vunpack.c.h.b16 %v358
        %v3094 = vunpack.c.l.b16 %v359
        %v3095 = vunpack.c.h.b16 %v359
        %v3096 = vunpack.c.l.b16 %v360
        %v3097 = vunpack.c.h.b16 %v360
        %v3098 = vunpack.c.l.b16 %v361
        %v3099 = vunpack.c.h.b16 %v361
        %v3100 = vunpack.c.l.b16 %v362
        %v3101 = vunpack.c.h.b16 %v362
        %v3102 = vunpack.c.l.b16 %v363
        %v3103 = vunpack.c.h.b16 %v363
        %v3104 = vunpack.c.l.b16 %v364
        %v3105 = vunpack.c.h.b16 %v364
        %v3106 = vunpack.c.l.b16 %v365
        %v3107 = vunpack.c.h.b16 %v365
        %v3108 = vunpack.c.l.b16 %v366
        %v3109 = vunpack.c.h.b16 %v366
        %v3110 = vunpack.c.l.b16 %v367
        %v3111 = vunpack.c.h.b16 %v367
        %v3112 = vunpack.c.l.b16 %v368
        %v3113 = vunpack.c.h.b16 %v368
        %v3114 = vunpack.c.l.b16 %v369
        %v3115 = vunpack.c.h.b16 %v369
        %v3116 = vunpack.c.l.b16 %v370
        %v3117 = vunpack.c.h.b16 %v370
        %v3118 = vunpack.c.l.b16 %v371
        %v3119 = vunpack.c.h.b16 %v371
        %v3120 = vunpack.c.l.b16 %v372
        %v3121 = vunpack.c.h.b16 %v372
        %v3122 = vunpack.c.l.b16 %v373
        %v3123 = vunpack.c.h.b16 %v373
        %v3124 = vpack.c.b16 %v2922, %v2920
        %v3125 = vpack.c.b16 %v2923, %v2921
        %v3126 = vpack.c.b16 %v2926, %v2924
        %v3127 = vpack.c.b16 %v2927, %v2925
        %v3128 = vpack.c.b16 %v2930, %v2928
        %v3129 = vpack.c.b16 %v2931, %v2929
        %v3130 = vpack.c.b16 %v2934, %v2932
        %v3131 = vpack.c.b16 %v2935, %v2933
        %v3132 = vpack.c.b16 %v2938, %v2936
        %v3133 = vpack.c.b16 %v2939, %v2937
        %v3134 = vpack.c.b16 %v2942, %v2940
        %v3135 = vpack.c.b16 %v2943, %v2941
        %v3136 = vpack.c.b16 %v2946, %v2944
        %v3137 = vpack.c.b16 %v2947, %v2945
        %v3138 = vpack.c.b16 %v2950, %v2948
        %v3139 = vpack.c.b16 %v2951, %v2949
        %v3140 = vpack.c.b16 %v2954, %v2952
        %v3141 = vpack.c.b16 %v2955, %v2953
        %v3142 = vpack.c.b16 %v2958, %v2956
        %v3143 = vpack.c.b16 %v2959, %v2957
        %v3144 = vpack.c.b16 %v2962, %v2960
        %v3145 = vpack.c.b16 %v2963, %v2961
        %v3146 = vpack.c.b16 %v2966, %v2964
        %v3147 = vpack.c.b16 %v2967, %v2965
        %v3148 = vpack.c.b16 %v2970, %v2968
        %v3149 = vpack.c.b16 %v2971, %v2969
        %v3150 = vpack.c.b16 %v2974, %v2972
        %v3151 = vpack.c.b16 %v2975, %v2973
        %v3152 = vpack.c.b16 %v2978, %v2976
        %v3153 = vpack.c.b16 %v2979, %v2977
        %v3154 = vpack.c.b16 %v2982, %v2980
        %v3155 = vpack.c.b16 %v2983, %v2981
        %v3156 = vpack.c.b16 %v2986, %v2984
        %v3157 = vpack.c.b16 %v2987, %v2985
        %v3158 = vpack.c.b16 %v2990, %v2988
        %v3159 = vpack.c.b16 %v2991, %v2989
        %v3160 = vpack.c.b16 %v2994, %v2992
        %v3161 = vpack.c.b16 %v2995, %v2993
        %v3162 = vpack.c.b16 %v2998, %v2996
        %v3163 = vpack.c.b16 %v2999, %v2997
        %v3164 = vpack.c.b16 %v3002, %v3000
        %v3165 = vpack.c.b16 %v3003, %v3001
        %v3166 = vpack.c.b16 %v3006, %v3004
        %v3167 = vpack.c.b16 %v3007, %v3005
        %v3168 = vpack.c.b16 %v3010, %v3008
        %v3169 = vpack.c.b16 %v3011, %v3009
        %v3170 = vpack.c.b16 %v3014, %v3012
        %v3171 = vpack.c.b16 %v3015, %v3013
        %v3172 = vpack.c.b16 %v3018, %v3016
        %v3173 = vpack.c.b16 %v3019, %v3017
        %v3174 = vpack.c.b16 %v3022, %v3020
        %v3175 = vpack.c.b16 %v3023, %v3021
        %v3176 = vpack.c.b16 %v3026, %v3024
        %v3177 = vpack.c.b16 %v3027, %v3025
        %v3178 = vpack.c.b16 %v3030, %v3028
        %v3179 = vpack.c.b16 %v3031, %v3029
        %v3180 = vpack.c.b16 %v3034, %v3032
        %v3181 = vpack.c.b16 %v3035, %v3033
        %v3182 = vpack.c.b16 %v3038, %v3036
        %v3183 = vpack.c.b16 %v3039, %v3037
        %v3184 = vpack.c.b16 %v3042, %v3040
        %v3185 = vpack.c.b16 %v3043, %v3041
        %v3186 = vpack.c.b16 %v3046, %v3044
        %v3187 = vpack.c.b16 %v3047, %v3045
        %v3188 = vpack.c.b16 %v3050, %v3048
        %v3189 = vpack.c.b16 %v3051, %v3049
        %v3190 = vpack.c.b16 %v3054, %v3052
        %v3191 = vpack.c.b16 %v3055, %v3053
        %v3192 = vpack.c.b16 %v3058, %v3056
        %v3193 = vpack.c.b16 %v3059, %v3057
        %v3194 = vpack.c.b16 %v3062, %v3060
        %v3195 = vpack.c.b16 %v3063, %v3061
        %v3196 = vpack.c.b16 %v3066, %v3064
        %v3197 = vpack.c.b16 %v3067, %v3065
        %v3198 = vpack.c.b16 %v3070, %v3068
        %v3199 = vpack.c.b16 %v3071, %v3069
        %v3200 = vpack.c.b16 %v3074, %v3072
        %v3201 = vpack.c.b16 %v3075, %v3073
        %v3202 = vpack.c.b16 %v3078, %v3076
        %v3203 = vpack.c.b16 %v3079, %v3077
        %v3204 = vpack.c.b16 %v3082, %v3080
        %v3205 = vpack.c.b16 %v3083, %v3081
        %v3206 = vpack.c.b16 %v3086, %v3084
        %v3207 = vpack.c.b16 %v3087, %v3085
        %v3208 = vpack.c.b16 %v3090, %v3088
        %v3209 = vpack.c.b16 %v3091, %v3089
        %v3210 = vpack.c.b16 %v3094, %v3092
        %v3211 = vpack.c.b16 %v3095, %v3093
        %v3212 = vpack.c.b16 %v3098, %v3096
        %v3213 = vpack.c.b16 %v3099, %v3097
        %v3214 = vpack.c.b16 %v3102, %v3100
        %v3215 = vpack.c.b16 %v3103, %v3101
        %v3216 = vpack.c.b16 %v3106, %v3104
        %v3217 = vpack.c.b16 %v3107, %v3105
        %v3218 = vpack.c.b16 %v3110, %v3108
        %v3219 = vpack.c.b16 %v3111, %v3109
        %v3220 = vpack.c.b16 %v3114, %v3112
        %v3221 = vpack.c.b16 %v3115, %v3113
        %v3222 = vpack.c.b16 %v3118, %v3116
        %v3223 = vpack.c.b16 %v3119, %v3117
        %v3224 = vpack.c.b16 %v3122, %v3120
        %v3225 = vpack.c.b16 %v3123, %v3121
        %vm3326 = vcmask 334848
        %v3328 = vsel %vm3326, %v2796, 0
        %v3331 = vsel %vm3326, %v2803, 0
        %v3334 = vsel %vm3326, %v2810, 0
        %v3337 = vsel %vm3326, %v2817, 0
        %v3340 = vand.u32 %v3224, %v907
        %v3343 = vand.u32 %v3225, %v907
        %3345 = vmatprep.subr.bf16.mxu0 %v3125
        %3346 = vmatpush1.bf16.msra.mxu0 %v3124
        %3347 = vmatprep.subr.bf16.mxu0 %v3127
        %3348 = vmatpush1.bf16.msra.mxu0 %v3126
        %3349 = vmatprep.subr.bf16.mxu0 %v3129
        %3350 = vmatpush1.bf16.msra.mxu0 %v3128
        %3351 = vmatprep.subr.bf16.mxu0 %v3131
        %3352 = vmatpush1.bf16.msra.mxu0 %v3130
        %3353 = vmatprep.subr.bf16.mxu0 %v3133
        %3354 = vmatpush1.bf16.msra.mxu0 %v3132
        %3355 = vmatprep.subr.bf16.mxu0 %v3135
        %3356 = vmatpush1.bf16.msra.mxu0 %v3134
        %3357 = vmatprep.subr.bf16.mxu0 %v3137
        %3358 = vmatpush1.bf16.msra.mxu0 %v3136
        %3359 = vmatprep.subr.bf16.mxu0 %v3139
        %3360 = vmatpush1.bf16.msra.mxu0 %v3138
        %3361 = vmatprep.subr.bf16.mxu0 %v3141
        %3362 = vmatpush1.bf16.msra.mxu0 %v3140
        %3363 = vmatprep.subr.bf16.mxu0 %v3143
        %3364 = vmatpush1.bf16.msra.mxu0 %v3142
        %3365 = vmatprep.subr.bf16.mxu0 %v3145
        %3366 = vmatpush1.bf16.msra.mxu0 %v3144
        %3367 = vmatprep.subr.bf16.mxu0 %v3147
        %3368 = vmatpush1.bf16.msra.mxu0 %v3146
        %3369 = vmatprep.subr.bf16.mxu0 %v3149
        %3370 = vmatpush1.bf16.msra.mxu0 %v3148
        %3371 = vmatprep.subr.bf16.mxu0 %v3151
        %3372 = vmatpush1.bf16.msra.mxu0 %v3150
        %3373 = vmatprep.subr.bf16.mxu0 %v3153
        %3374 = vmatpush1.bf16.msra.mxu0 %v3152
        %3375 = vmatprep.subr.bf16.mxu0 %v3155
        %3376 = vmatpush1.bf16.msra.mxu0 %v3154
        %3377 = vmatprep.mubr.bf16.mxu0 %v2791
        %3378 = vmatmul.mubr.bf16.gmra.mrb[0].mxu0 %v2790
        %v3379 = vpop.f32.mrb[0].mxu0
        %v3380 = vadd.f32 0.0, %v3379
        %v3381 = vpop.f32.mrb[0].mxu0
        %v3382 = vadd.f32 0.0, %v3381
        %v3383 = vpop.f32.mrb[0].mxu0
        %v3384 = vadd.f32 0.0, %v3383
        %v3385 = vpop.f32.mrb[0].mxu0
        %v3386 = vadd.f32 0.0, %v3385
        %3387 = vmatprep.mubr.bf16.mxu0 %v2798
        %3388 = vmatmul.mubr.bf16.gmra.mrb[0].mxu0 %v2797
        %v3389 = vpop.f32.mrb[0].mxu0
        %v3390 = vadd.f32 0.0, %v3389
        %v3391 = vpop.f32.mrb[0].mxu0
        %v3392 = vadd.f32 0.0, %v3391
        %v3393 = vpop.f32.mrb[0].mxu0
        %v3394 = vadd.f32 0.0, %v3393
        %v3395 = vpop.f32.mrb[0].mxu0
        %v3396 = vadd.f32 0.0, %v3395
        %3397 = vmatprep.mubr.bf16.mxu0 %v2805
        %3398 = vmatmul.mubr.bf16.gmra.mrb[0].mxu0 %v2804
        %v3399 = vpop.f32.mrb[0].mxu0
        %v3400 = vadd.f32 0.0, %v3399
        %v3401 = vpop.f32.mrb[0].mxu0
        %v3402 = vadd.f32 0.0, %v3401
        %v3403 = vpop.f32.mrb[0].mxu0
        %v3404 = vadd.f32 0.0, %v3403
        %v3405 = vpop.f32.mrb[0].mxu0
        %v3406 = vadd.f32 0.0, %v3405
        %3407 = vmatprep.mubr.bf16.mxu0 %v2812
        %3408 = vmatmul.mubr.bf16.gmra.mrb[0].mxu0 %v2811
        %v3409 = vpop.f32.mrb[0].mxu0
        %v3410 = vadd.f32 0.0, %v3409
        %v3411 = vpop.f32.mrb[0].mxu0
        %v3412 = vadd.f32 0.0, %v3411
        %v3413 = vpop.f32.mrb[0].mxu0
        %v3414 = vadd.f32 0.0, %v3413
        %v3415 = vpop.f32.mrb[0].mxu0
        %v3416 = vadd.f32 0.0, %v3415
        %3417 = vdwg.mxu0
        %3418 = vmatprep.subr.bf16.mxu0 %v3157
        %3419 = vmatpush1.bf16.msra.mxu0 %v3156
        %3420 = vmatprep.subr.bf16.mxu0 %v3159
        %3421 = vmatpush1.bf16.msra.mxu0 %v3158
        %3422 = vmatprep.subr.bf16.mxu0 %v3161
        %3423 = vmatpush1.bf16.msra.mxu0 %v3160
        %3424 = vmatprep.subr.bf16.mxu0 %v3163
        %3425 = vmatpush1.bf16.msra.mxu0 %v3162
        %3426 = vmatprep.subr.bf16.mxu0 %v3165
        %3427 = vmatpush1.bf16.msra.mxu0 %v3164
        %3428 = vmatprep.subr.bf16.mxu0 %v3167
        %3429 = vmatpush1.bf16.msra.mxu0 %v3166
        %3430 = vmatprep.subr.bf16.mxu0 %v3169
        %3431 = vmatpush1.bf16.msra.mxu0 %v3168
        %3432 = vmatprep.subr.bf16.mxu0 %v3171
        %3433 = vmatpush1.bf16.msra.mxu0 %v3170
        %3434 = vmatprep.subr.bf16.mxu0 %v3173
        %3435 = vmatpush1.bf16.msra.mxu0 %v3172
        %3436 = vmatprep.subr.bf16.mxu0 %v3175
        %3437 = vmatpush1.bf16.msra.mxu0 %v3174
        %3438 = vmatprep.subr.bf16.mxu0 %v3177
        %3439 = vmatpush1.bf16.msra.mxu0 %v3176
        %3440 = vmatprep.subr.bf16.mxu0 %v3179
        %3441 = vmatpush1.bf16.msra.mxu0 %v3178
        %3442 = vmatprep.subr.bf16.mxu0 %v3181
        %3443 = vmatpush1.bf16.msra.mxu0 %v3180
        %3444 = vmatprep.subr.bf16.mxu0 %v3183
        %3445 = vmatpush1.bf16.msra.mxu0 %v3182
        %3446 = vmatprep.subr.bf16.mxu0 %v3185
        %3447 = vmatpush1.bf16.msra.mxu0 %v3184
        %3448 = vmatprep.subr.bf16.mxu0 %v3187
        %3449 = vmatpush1.bf16.msra.mxu0 %v3186
        %3450 = vmatprep.mubr.bf16.mxu0 %v2793
        %3451 = vmatmul.mubr.bf16.gmra.mrb[0].mxu0 %v2792
        %v3452 = vpop.f32.mrb[0].mxu0
        %v3453 = vadd.f32 %v3380, %v3452
        %v3454 = vpop.f32.mrb[0].mxu0
        %v3455 = vadd.f32 %v3382, %v3454
        %v3456 = vpop.f32.mrb[0].mxu0
        %v3457 = vadd.f32 %v3384, %v3456
        %v3458 = vpop.f32.mrb[0].mxu0
        %v3459 = vadd.f32 %v3386, %v3458
        %3460 = vmatprep.mubr.bf16.mxu0 %v2800
        %3461 = vmatmul.mubr.bf16.gmra.mrb[0].mxu0 %v2799
        %v3462 = vpop.f32.mrb[0].mxu0
        %v3463 = vadd.f32 %v3390, %v3462
        %v3464 = vpop.f32.mrb[0].mxu0
        %v3465 = vadd.f32 %v3392, %v3464
        %v3466 = vpop.f32.mrb[0].mxu0
        %v3467 = vadd.f32 %v3394, %v3466
        %v3468 = vpop.f32.mrb[0].mxu0
        %v3469 = vadd.f32 %v3396, %v3468
        %3470 = vmatprep.mubr.bf16.mxu0 %v2807
        %3471 = vmatmul.mubr.bf16.gmra.mrb[0].mxu0 %v2806
        %v3472 = vpop.f32.mrb[0].mxu0
        %v3473 = vadd.f32 %v3400, %v3472
        %v3474 = vpop.f32.mrb[0].mxu0
        %v3475 = vadd.f32 %v3402, %v3474
        %v3476 = vpop.f32.mrb[0].mxu0
        %v3477 = vadd.f32 %v3404, %v3476
        %v3478 = vpop.f32.mrb[0].mxu0
        %v3479 = vadd.f32 %v3406, %v3478
        %3480 = vmatprep.mubr.bf16.mxu0 %v2814
        %3481 = vmatmul.mubr.bf16.gmra.mrb[0].mxu0 %v2813
        %v3482 = vpop.f32.mrb[0].mxu0
        %v3483 = vadd.f32 %v3410, %v3482
        %v3484 = vpop.f32.mrb[0].mxu0
        %v3485 = vadd.f32 %v3412, %v3484
        %v3486 = vpop.f32.mrb[0].mxu0
        %v3487 = vadd.f32 %v3414, %v3486
        %v3488 = vpop.f32.mrb[0].mxu0
        %v3489 = vadd.f32 %v3416, %v3488
        %3490 = vdwg.mxu0
        %3491 = vmatprep.subr.bf16.mxu0 %v3189
        %3492 = vmatpush1.bf16.msra.mxu0 %v3188
        %3493 = vmatprep.subr.bf16.mxu0 %v3191
        %3494 = vmatpush1.bf16.msra.mxu0 %v3190
        %3495 = vmatprep.subr.bf16.mxu0 %v3193
        %3496 = vmatpush1.bf16.msra.mxu0 %v3192
        %3497 = vmatprep.subr.bf16.mxu0 %v3195
        %3498 = vmatpush1.bf16.msra.mxu0 %v3194
        %3499 = vmatprep.subr.bf16.mxu0 %v3197
        %3500 = vmatpush1.bf16.msra.mxu0 %v3196
        %3501 = vmatprep.subr.bf16.mxu0 %v3199
        %3502 = vmatpush1.bf16.msra.mxu0 %v3198
        %3503 = vmatprep.subr.bf16.mxu0 %v3201
        %3504 = vmatpush1.bf16.msra.mxu0 %v3200
        %3505 = vmatprep.subr.bf16.mxu0 %v3203
        %3506 = vmatpush1.bf16.msra.mxu0 %v3202
        %3507 = vmatprep.subr.bf16.mxu0 %v3205
        %3508 = vmatpush1.bf16.msra.mxu0 %v3204
        %3509 = vmatprep.subr.bf16.mxu0 %v3207
        %3510 = vmatpush1.bf16.msra.mxu0 %v3206
        %3511 = vmatprep.subr.bf16.mxu0 %v3209
        %3512 = vmatpush1.bf16.msra.mxu0 %v3208
        %3513 = vmatprep.subr.bf16.mxu0 %v3211
        %3514 = vmatpush1.bf16.msra.mxu0 %v3210
        %3515 = vmatprep.subr.bf16.mxu0 %v3213
        %3516 = vmatpush1.bf16.msra.mxu0 %v3212
        %3517 = vmatprep.subr.bf16.mxu0 %v3215
        %3518 = vmatpush1.bf16.msra.mxu0 %v3214
        %3519 = vmatprep.subr.bf16.mxu0 %v3217
        %3520 = vmatpush1.bf16.msra.mxu0 %v3216
        %3521 = vmatprep.subr.bf16.mxu0 %v3219
        %3522 = vmatpush1.bf16.msra.mxu0 %v3218
        %3523 = vmatprep.mubr.bf16.mxu0 %v2795
        %3524 = vmatmul.mubr.bf16.gmra.mrb[0].mxu0 %v2794
        %v3525 = vpop.f32.mrb[0].mxu0
        %v3526 = vadd.f32 %v3453, %v3525
        %v3527 = vpop.f32.mrb[0].mxu0
        %v3528 = vadd.f32 %v3455, %v3527
        %v3529 = vpop.f32.mrb[0].mxu0
        %v3530 = vadd.f32 %v3457, %v3529
        %v3531 = vpop.f32.mrb[0].mxu0
        %v3532 = vadd.f32 %v3459, %v3531
        %3533 = vmatprep.mubr.bf16.mxu0 %v2802
        %3534 = vmatmul.mubr.bf16.gmra.mrb[0].mxu0 %v2801
        %v3535 = vpop.f32.mrb[0].mxu0
        %v3536 = vadd.f32 %v3463, %v3535
        %v3537 = vpop.f32.mrb[0].mxu0
        %v3538 = vadd.f32 %v3465, %v3537
        %v3539 = vpop.f32.mrb[0].mxu0
        %v3540 = vadd.f32 %v3467, %v3539
        %v3541 = vpop.f32.mrb[0].mxu0
        %v3542 = vadd.f32 %v3469, %v3541
        %3543 = vmatprep.mubr.bf16.mxu0 %v2809
        %3544 = vmatmul.mubr.bf16.gmra.mrb[0].mxu0 %v2808
        %v3545 = vpop.f32.mrb[0].mxu0
        %v3546 = vadd.f32 %v3473, %v3545
        %v3547 = vpop.f32.mrb[0].mxu0
        %v3548 = vadd.f32 %v3475, %v3547
        %v3549 = vpop.f32.mrb[0].mxu0
        %v3550 = vadd.f32 %v3477, %v3549
        %v3551 = vpop.f32.mrb[0].mxu0
        %v3552 = vadd.f32 %v3479, %v3551
        %3553 = vmatprep.mubr.bf16.mxu0 %v2816
        %3554 = vmatmul.mubr.bf16.gmra.mrb[0].mxu0 %v2815
        %v3555 = vpop.f32.mrb[0].mxu0
        %v3556 = vadd.f32 %v3483, %v3555
        %v3557 = vpop.f32.mrb[0].mxu0
        %v3558 = vadd.f32 %v3485, %v3557
        %v3559 = vpop.f32.mrb[0].mxu0
        %v3560 = vadd.f32 %v3487, %v3559
        %v3561 = vpop.f32.mrb[0].mxu0
        %v3562 = vadd.f32 %v3489, %v3561
        %3563 = vdwg.mxu0
        %3564 = vmatprep.subr.bf16.mxu0 %v3221
        %3565 = vmatpush1.bf16.msra.mxu0 %v3220
        %3566 = vmatprep.subr.bf16.mxu0 %v3223
        %3567 = vmatpush1.bf16.msra.mxu0 %v3222
        %3568 = vmatprep.subr.bf16.mxu0 %v3343
        %3569 = vmatpush1.bf16.msra.mxu0 %v3340
        %3570 = vmatprep.subr.bf16.mxu0 0
        %3571 = vmatpush1.bf16.msra.mxu0 0
        %3572 = vmatprep.subr.bf16.mxu0 0
        %3573 = vmatpush1.bf16.msra.mxu0 0
        %3574 = vmatprep.subr.bf16.mxu0 0
        %3575 = vmatpush1.bf16.msra.mxu0 0
        %3576 = vmatprep.subr.bf16.mxu0 0
        %3577 = vmatpush1.bf16.msra.mxu0 0
        %3578 = vmatprep.subr.bf16.mxu0 0
        %3579 = vmatpush1.bf16.msra.mxu0 0
        %3580 = vmatprep.subr.bf16.mxu0 0
        %3581 = vmatpush1.bf16.msra.mxu0 0
        %3582 = vmatprep.subr.bf16.mxu0 0
        %3583 = vmatpush1.bf16.msra.mxu0 0
        %3584 = vmatprep.subr.bf16.mxu0 0
        %3585 = vmatpush1.bf16.msra.mxu0 0
        %3586 = vmatprep.subr.bf16.mxu0 0
        %3587 = vmatpush1.bf16.msra.mxu0 0
        %3588 = vmatprep.subr.bf16.mxu0 0
        %3589 = vmatpush1.bf16.msra.mxu0 0
        %3590 = vmatprep.subr.bf16.mxu0 0
        %3591 = vmatpush1.bf16.msra.mxu0 0
        %3592 = vmatprep.subr.bf16.mxu0 0
        %3593 = vmatpush1.bf16.msra.mxu0 0
        %3594 = vmatprep.subr.bf16.mxu0 0
        %3595 = vmatpush1.bf16.msra.mxu0 0
        %3596 = vmatprep.mubr.bf16.mxu0 0
        %3597 = vmatmul.mubr.bf16.gmra.mrb[0].mxu0 %v3328
        %v3598 = vpop.f32.mrb[0].mxu0
        %v3599 = vadd.f32 %v3526, %v3598
        %v3600 = vpop.f32.mrb[0].mxu0
        %v3601 = vadd.f32 %v3528, %v3600
        %v3602 = vpop.f32.mrb[0].mxu0
        %v3603 = vadd.f32 %v3530, %v3602
        %v3604 = vpop.f32.mrb[0].mxu0
        %v3605 = vadd.f32 %v3532, %v3604
        %3606 = vmatprep.mubr.bf16.mxu0 0
        %3607 = vmatmul.mubr.bf16.gmra.mrb[0].mxu0 %v3331
        %v3608 = vpop.f32.mrb[0].mxu0
        %v3609 = vadd.f32 %v3536, %v3608
        %v3610 = vpop.f32.mrb[0].mxu0
        %v3611 = vadd.f32 %v3538, %v3610
        %v3612 = vpop.f32.mrb[0].mxu0
        %v3613 = vadd.f32 %v3540, %v3612
        %v3614 = vpop.f32.mrb[0].mxu0
        %v3615 = vadd.f32 %v3542, %v3614
        %3616 = vmatprep.mubr.bf16.mxu0 0
        %3617 = vmatmul.mubr.bf16.gmra.mrb[0].mxu0 %v3334
        %v3618 = vpop.f32.mrb[0].mxu0
        %v3619 = vadd.f32 %v3546, %v3618
        %v3620 = vpop.f32.mrb[0].mxu0
        %v3621 = vadd.f32 %v3548, %v3620
        %v3622 = vpop.f32.mrb[0].mxu0
        %v3623 = vadd.f32 %v3550, %v3622
        %v3624 = vpop.f32.mrb[0].mxu0
        %v3625 = vadd.f32 %v3552, %v3624
        %3626 = vmatprep.mubr.bf16.mxu0 0
        %3627 = vmatmul.mubr.bf16.gmra.mrb[0].mxu0 %v3337
        %v3628 = vpop.f32.mrb[0].mxu0
        %v3629 = vadd.f32 %v3556, %v3628
        %v3630 = vpop.f32.mrb[0].mxu0
        %v3631 = vadd.f32 %v3558, %v3630
        %v3632 = vpop.f32.mrb[0].mxu0
        %v3633 = vadd.f32 %v3560, %v3632
        %v3634 = vpop.f32.mrb[0].mxu0
        %v3635 = vadd.f32 %v3562, %v3634
        %3636 = vdwg.mxu0
        %v3637 = vpack.c.bf16 %v3603, %v3599
        %v3638 = vpack.c.bf16 %v3605, %v3601
        %v3639 = vpack.c.bf16 %v3613, %v3609
        %v3640 = vpack.c.bf16 %v3615, %v3611
        %v3641 = vpack.c.bf16 %v3623, %v3619
        %v3642 = vpack.c.bf16 %v3625, %v3621
        %v3643 = vpack.c.bf16 %v3633, %v3629
        %v3644 = vpack.c.bf16 %v3635, %v3631
        %v3653 = vunpack.c.l.b16 %v3637
        %v3654 = vunpack.c.l.b16 %v3638
        %v3655 = vunpack.c.h.b16 %v3637
        %v3656 = vunpack.c.h.b16 %v3638
        %v3657 = vunpack.c.l.b16 %v3639
        %v3658 = vunpack.c.l.b16 %v3640
        %v3659 = vunpack.c.h.b16 %v3639
        %v3660 = vunpack.c.h.b16 %v3640
        %v3661 = vunpack.c.l.b16 %v3641
        %v3662 = vunpack.c.l.b16 %v3642
        %v3663 = vunpack.c.h.b16 %v3641
        %v3664 = vunpack.c.h.b16 %v3642
        %v3665 = vunpack.c.l.b16 %v3643
        %v3666 = vunpack.c.l.b16 %v3644
        %v3667 = vunpack.c.h.b16 %v3643
        %v3668 = vunpack.c.h.b16 %v3644
        %v3669 = vpack.c.b16 %v3654, %v3653
        %v3670 = vpack.c.b16 %v3656, %v3655
        %v3671 = vpack.c.b16 %v3658, %v3657
        %v3672 = vpack.c.b16 %v3660, %v3659
        %v3673 = vpack.c.b16 %v3662, %v3661
        %v3674 = vpack.c.b16 %v3664, %v3663
        %v3675 = vpack.c.b16 %v3666, %v3665
        %v3676 = vpack.c.b16 %v3668, %v3667
        %vm3685 = vcmask 556036
        %vm3686 = vmor %vm3685, %vm866
        %3687 = vst.msk [vmem:[%s249] sm:$0xff] %vm3686, %v3669
        %3688 = vst.msk [vmem:[%s249 + $0x8] sm:$0xff] %vm3686, %v3670
        %3689 = vst.msk [vmem:[%s249 + $0x10] sm:$0xff] %vm3686, %v3671
        %3690 = vst.msk [vmem:[%s249 + $0x18] sm:$0xff] %vm3686, %v3672
        %3691 = vst.msk [vmem:[%s249 + $0x20] sm:$0xff] %vm3686, %v3673
        %3692 = vst.msk [vmem:[%s249 + $0x28] sm:$0xff] %vm3686, %v3674
        %3693 = vst.msk [vmem:[%s249 + $0x30] sm:$0xff] %vm3686, %v3675
        %3694 = vst.msk [vmem:[%s249 + $0x38] sm:$0xff] %vm3686, %v3676
        %p3695 = scmp.lt.s32.totalorder %s18, 1
        %s3696 = scalar_select %p3695, %s18, 1
        %s3697 = smul.addr %s3696, 16
        %s3698 = smul.addr %s3697, 4
        %s3699 = scalar_lea.vmem %s5, %s3698
        // Predicated region
        $region49: #{lenet_forward.2} parent=39 // pred_check
          %p3700 = pneg %p146
        $region50: #{lenet_forward.2} parent=39 // pred_check_branch
          %3702 = sbr.rel (%p3700) target = $region52
        $region51: #{lenet_forward.2} parent=39 // pred_region
          _
        $region52: #{lenet_forward.2} parent=39 // pred_fallthru
          _
      $region40: #{lenet_forward.2} parent=5 // pred_fallthru
        _
      %p3703 = scmp.le.s32.totalorder 2, %s13
      // Predicated region
      $region53: #{lenet_forward.2} parent=5 // pred_check
        %p3704 = pneg %p3703
      $region54: #{lenet_forward.2} parent=5 // pred_check_branch
        %3706 = sbr.rel (%p3704) target = $region56
      $region55: #{lenet_forward.2} parent=5 // pred_region
        %s3707 = ssub.s32 %s13, 2
        // Predicated region
        $region57: #{lenet_forward.2} parent=55 // pred_check
          %p3708 = pneg %p152
        $region58: #{lenet_forward.2} parent=55 // pred_check_branch
          %3710 = sbr.rel (%p3708) target = $region60
        $region59: #{lenet_forward.2} parent=55 // pred_region
          %p3711 = scmp.lt.s32.totalorder %s19, 1
          %s3712 = scalar_select %p3711, %s19, 1
          %s3713 = smul.addr %s3712, 16
          %s3714 = smul.addr %s3713, 4
          %s3715 = scalar_lea.vmem %s5, %s3714
        $region60: #{lenet_forward.2} parent=55 // pred_fallthru
          _
      $region56: #{lenet_forward.2} parent=5 // pred_fallthru
        _
    $region6: #{lenet_forward.2} parent=1 // loop_footer
      %s17 = sadd.s32 1, %s13
    $region7: #{lenet_forward.2} parent=1 // loop_footer_branch
      %12 = sbr.rel target = $region3
    $region8: #{lenet_forward.2} parent=1 // loop_exit
      _
    %3716 = vsyncpa [#allocation3], 1
    %s3717 = scalar_lea.sflag [#allocation3], 1
    %3718 = vsyncpa %s3717, 1
    %3719 = vsyncpa [#allocation5], 1

// kernel: lenet_forward.3
$region0: #{lenet_forward.3}
  #allocation0 [shape = 'u32[]', space=smem, size = 0x4, offset = 0x4, fixed_abs, tag = 'smem constant byte address 0x4 - core index']
  #allocation1 [shape = 'u32[144,128]{1,0:T(1,128)}', space=vmem, size = 0x12000, scoped, tag = 'internal scratch']
  %s0 = inlined_call_operand.vmem [shape: bf16[2,12544], index: 0, kind: input, shape index: {}]
  %s1 = inlined_call_operand.hbm [shape: bf16[12544,128], index: 1, kind: input, shape index: {}]
  %s2 = inlined_call_operand.vmem [shape: bf16[128,10], index: 2, kind: input, shape index: {}]
  %s3 = inlined_call_operand.hbm [shape: f32[2,10], index: 3, kind: output, shape index: {}]
  %s4 = sld [smem:[#allocation0]]
  $region26: #{lenet_forward.3} parent=0
    _
  %s6 = ssub.s32 1, %s4
  %s7 = scalar_select 0, %s6, %s4
  $region1: #{lenet_forward.3} parent=0
    #allocation2 [shape = 'u8[3211264]{0}', space=vmem, size = 0x310000, scoped, tag = 'input window, operand 1, single buffered']
    #allocation3 [shape = 's32[1]{0}', space=sflag, size = 0x4, scoped, tag = 'scoped memory for lenet_forward.3']
    #allocation4 [shape = 's32[1]{0}', space=sflag, size = 0x4, scoped, tag = 'scoped memory for lenet_forward.3']
    #allocation5 [shape = 'u8[1024]{0}', space=vmem, size = 0x400, scoped, tag = 'output window, operand 0, single buffered']
    %8 = vsyncpa [#allocation3], 0
    %9 = vsyncpa [#allocation4], 0
    // Predicated region
    $region2: #{lenet_forward.3} parent=1 // pred_check
      _
    $region3: #{lenet_forward.3} parent=1 // pred_check_branch
      %11 = sbr.rel (0) target = $region5
    $region4: #{lenet_forward.3} parent=1 // pred_region
      _
    $region5: #{lenet_forward.3} parent=1 // pred_fallthru
      _
    // Predicated region
    $region6: #{lenet_forward.3} parent=1 // pred_check
      _
    $region7: #{lenet_forward.3} parent=1 // pred_check_branch
      %13 = sbr.rel (0) target = $region9
    $region8: #{lenet_forward.3} parent=1 // pred_region
      %s15 = ssub.s32 100352, 100352
      %16 = vsyncadd [#allocation3], %s15
      %s17 = sshll.u32 [#allocation2], 4
      %s18 = int_to_ptr.vmem [resolvable:$true] %s17
      %23 = dma.hbm_to_vmem [thread:$0]  %s1, 100352, %s18, [#allocation3], 64, 64, 4
    $region9: #{lenet_forward.3} parent=1 // pred_fallthru
      _
    // Predicated region
    $region10: #{lenet_forward.3} parent=1 // pred_check
      _
    $region11: #{lenet_forward.3} parent=1 // pred_check_branch
      %25 = sbr.rel (0) target = $region13
    $region12: #{lenet_forward.3} parent=1 // pred_region
      _
    $region13: #{lenet_forward.3} parent=1 // pred_fallthru
      _
    // Predicated region
    $region14: #{lenet_forward.3} parent=1 // pred_check
      _
    $region15: #{lenet_forward.3} parent=1 // pred_check_branch
      %27 = sbr.rel (0) target = $region17
    $region16: #{lenet_forward.3} parent=1 // pred_region
      %28 = dma.done [#allocation3], 100352
    $region17: #{lenet_forward.3} parent=1 // pred_fallthru
      _
    %v30 = vld [vmem:[%s0] sm:$0xff]
    %v31 = vld [vmem:[%s0 + $0x8] sm:$0xff]
    %v32 = vld [vmem:[%s0 + $0x10] sm:$0xff]
    %v33 = vld [vmem:[%s0 + $0x18] sm:$0xff]
    %v34 = vld [vmem:[%s0 + $0x20] sm:$0xff]
    %v35 = vld [vmem:[%s0 + $0x28] sm:$0xff]
    %v36 = vld [vmem:[%s0 + $0x30] sm:$0xff]
    %v37 = vld [vmem:[%s0 + $0x38] sm:$0xff]
    %v38 = vld [vmem:[%s0 + $0x40] sm:$0xff]
    %v39 = vld [vmem:[%s0 + $0x48] sm:$0xff]
    %v40 = vld [vmem:[%s0 + $0x50] sm:$0xff]
    %v41 = vld [vmem:[%s0 + $0x58] sm:$0xff]
    %v42 = vld [vmem:[%s0 + $0x60] sm:$0x3]
    %v43 = vld [vmem:[#allocation2] sm:$0xf]
    %v44 = vld [vmem:[#allocation2 + $0x4] sm:$0xf]
    %v45 = vld [vmem:[#allocation2 + $0x8] sm:$0xf]
    %v46 = vld [vmem:[#allocation2 + $0xc] sm:$0xf]
    %v47 = vld [vmem:[#allocation2 + $0x10] sm:$0xf]
    %v48 = vld [vmem:[#allocation2 + $0x14] sm:$0xf]
    %v49 = vld [vmem:[#allocation2 + $0x18] sm:$0xf]
    %v50 = vld [vmem:[#allocation2 + $0x1c] sm:$0xf]
    %v51 = vld [vmem:[#allocation2 + $0x20] sm:$0xf]
    %v52 = vld [vmem:[#allocation2 + $0x24] sm:$0xf]
    %v53 = vld [vmem:[#allocation2 + $0x28] sm:$0xf]
    %v54 = vld [vmem:[#allocation2 + $0x2c] sm:$0xf]
    %v55 = vld [vmem:[#allocation2 + $0x30] sm:$0xf]
    %v56 = vld [vmem:[#allocation2 + $0x34] sm:$0xf]
    %v57 = vld [vmem:[#allocation2 + $0x38] sm:$0xf]
    %v58 = vld [vmem:[#allocation2 + $0x3c] sm:$0xf]
    %v59 = vld [vmem:[#allocation2 + $0x40] sm:$0xf]
    %v60 = vld [vmem:[#allocation2 + $0x44] sm:$0xf]
    %v61 = vld [vmem:[#allocation2 + $0x48] sm:$0xf]
    %v62 = vld [vmem:[#allocation2 + $0x4c] sm:$0xf]
    %v63 = vld [vmem:[#allocation2 + $0x50] sm:$0xf]
    %v64 = vld [vmem:[#allocation2 + $0x54] sm:$0xf]
    %v65 = vld [vmem:[#allocation2 + $0x58] sm:$0xf]
    %v66 = vld [vmem:[#allocation2 + $0x5c] sm:$0xf]
    %v67 = vld [vmem:[#allocation2 + $0x60] sm:$0xf]
    %v68 = vld [vmem:[#allocation2 + $0x64] sm:$0xf]
    %v69 = vld [vmem:[#allocation2 + $0x68] sm:$0xf]
    %v70 = vld [vmem:[#allocation2 + $0x6c] sm:$0xf]
    %v71 = vld [vmem:[#allocation2 + $0x70] sm:$0xf]
    %v72 = vld [vmem:[#allocation2 + $0x74] sm:$0xf]
    %v73 = vld [vmem:[#allocation2 + $0x78] sm:$0xf]
    %v74 = vld [vmem:[#allocation2 + $0x7c] sm:$0xf]
    %v75 = vld [vmem:[#allocation2 + $0x80] sm:$0xf]
    %v76 = vld [vmem:[#allocation2 + $0x84] sm:$0xf]
    %v77 = vld [vmem:[#allocation2 + $0x88] sm:$0xf]
    %v78 = vld [vmem:[#allocation2 + $0x8c] sm:$0xf]
    %v79 = vld [vmem:[#allocation2 + $0x90] sm:$0xf]
    %v80 = vld [vmem:[#allocation2 + $0x94] sm:$0xf]
    %v81 = vld [vmem:[#allocation2 + $0x98] sm:$0xf]
    %v82 = vld [vmem:[#allocation2 + $0x9c] sm:$0xf]
    %v83 = vld [vmem:[#allocation2 + $0xa0] sm:$0xf]
    %v84 = vld [vmem:[#allocation2 + $0xa4] sm:$0xf]
    %v85 = vld [vmem:[#allocation2 + $0xa8] sm:$0xf]
    %v86 = vld [vmem:[#allocation2 + $0xac] sm:$0xf]
    %v87 = vld [vmem:[#allocation2 + $0xb0] sm:$0xf]
    %v88 = vld [vmem:[#allocation2 + $0xb4] sm:$0xf]
    %v89 = vld [vmem:[#allocation2 + $0xb8] sm:$0xf]
    %v90 = vld [vmem:[#allocation2 + $0xbc] sm:$0xf]
    %v91 = vld [vmem:[#allocation2 + $0xc0] sm:$0xf]
    %v92 = vld [vmem:[#allocation2 + $0xc4] sm:$0xf]
    %v93 = vld [vmem:[#allocation2 + $0xc8] sm:$0xf]
    %v94 = vld [vmem:[#allocation2 + $0xcc] sm:$0xf]
    %v95 = vld [vmem:[#allocation2 + $0xd0] sm:$0xf]
    %v96 = vld [vmem:[#allocation2 + $0xd4] sm:$0xf]
    %v97 = vld [vmem:[#allocation2 + $0xd8] sm:$0xf]
    %v98 = vld [vmem:[#allocation2 + $0xdc] sm:$0xf]
    %v99 = vld [vmem:[#allocation2 + $0xe0] sm:$0xf]
    %v100 = vld [vmem:[#allocation2 + $0xe4] sm:$0xf]
    %v101 = vld [vmem:[#allocation2 + $0xe8] sm:$0xf]
    %v102 = vld [vmem:[#allocation2 + $0xec] sm:$0xf]
    %v103 = vld [vmem:[#allocation2 + $0xf0] sm:$0xf]
    %v104 = vld [vmem:[#allocation2 + $0xf4] sm:$0xf]
    %v105 = vld [vmem:[#allocation2 + $0xf8] sm:$0xf]
    %v106 = vld [vmem:[#allocation2 + $0xfc] sm:$0xf]
    %v107 = vld [vmem:[#allocation2 + $0x100] sm:$0xf]
    %v108 = vld [vmem:[#allocation2 + $0x104] sm:$0xf]
    %v109 = vld [vmem:[#allocation2 + $0x108] sm:$0xf]
    %v110 = vld [vmem:[#allocation2 + $0x10c] sm:$0xf]
    %v111 = vld [vmem:[#allocation2 + $0x110] sm:$0xf]
    %v112 = vld [vmem:[#allocation2 + $0x114] sm:$0xf]
    %v113 = vld [vmem:[#allocation2 + $0x118] sm:$0xf]
    %v114 = vld [vmem:[#allocation2 + $0x11c] sm:$0xf]
    %v115 = vld [vmem:[#allocation2 + $0x120] sm:$0xf]
    %v116 = vld [vmem:[#allocation2 + $0x124] sm:$0xf]
    %v117 = vld [vmem:[#allocation2 + $0x128] sm:$0xf]
    %v118 = vld [vmem:[#allocation2 + $0x12c] sm:$0xf]
    %v119 = vld [vmem:[#allocation2 + $0x130] sm:$0xf]
    %v120 = vld [vmem:[#allocation2 + $0x134] sm:$0xf]
    %v121 = vld [vmem:[#allocation2 + $0x138] sm:$0xf]
    %v122 = vld [vmem:[#allocation2 + $0x13c] sm:$0xf]
    %v123 = vld [vmem:[#allocation2 + $0x140] sm:$0xf]
    %v124 = vld [vmem:[#allocation2 + $0x144] sm:$0xf]
    %v125 = vld [vmem:[#allocation2 + $0x148] sm:$0xf]
    %v126 = vld [vmem:[#allocation2 + $0x14c] sm:$0xf]
    %v127 = vld [vmem:[#allocation2 + $0x150] sm:$0xf]
    %v128 = vld [vmem:[#allocation2 + $0x154] sm:$0xf]
    %v129 = vld [vmem:[#allocation2 + $0x158] sm:$0xf]
    %v130 = vld [vmem:[#allocation2 + $0x15c] sm:$0xf]
    %v131 = vld [vmem:[#allocation2 + $0x160] sm:$0xf]
    %v132 = vld [vmem:[#allocation2 + $0x164] sm:$0xf]
    %v133 = vld [vmem:[#allocation2 + $0x168] sm:$0xf]
    %v134 = vld [vmem:[#allocation2 + $0x16c] sm:$0xf]
    %v135 = vld [vmem:[#allocation2 + $0x170] sm:$0xf]
    %v136 = vld [vmem:[#allocation2 + $0x174] sm:$0xf]
    %v137 = vld [vmem:[#allocation2 + $0x178] sm:$0xf]
    %v138 = vld [vmem:[#allocation2 + $0x17c] sm:$0xf]
    %v139 = vld [vmem:[#allocation2 + $0x180] sm:$0xf]
    %v140 = vld [vmem:[#allocation2 + $0x184] sm:$0xf]
    %v141 = vld [vmem:[#allocation2 + $0x188] sm:$0xf]
    %v142 = vld [vmem:[#allocation2 + $0x18c] sm:$0xf]
    %v143 = vld [vmem:[#allocation2 + $0x190] sm:$0xf]
    %v144 = vld [vmem:[#allocation2 + $0x194] sm:$0xf]
    %v145 = vld [vmem:[#allocation2 + $0x198] sm:$0xf]
    %v146 = vld [vmem:[#allocation2 + $0x19c] sm:$0xf]
    %v147 = vld [vmem:[#allocation2 + $0x1a0] sm:$0xf]
    %v148 = vld [vmem:[#allocation2 + $0x1a4] sm:$0xf]
    %v149 = vld [vmem:[#allocation2 + $0x1a8] sm:$0xf]
    %v150 = vld [vmem:[#allocation2 + $0x1ac] sm:$0xf]
    %v151 = vld [vmem:[#allocation2 + $0x1b0] sm:$0xf]
    %v152 = vld [vmem:[#allocation2 + $0x1b4] sm:$0xf]
    %v153 = vld [vmem:[#allocation2 + $0x1b8] sm:$0xf]
    %v154 = vld [vmem:[#allocation2 + $0x1bc] sm:$0xf]
    %v155 = vld [vmem:[#allocation2 + $0x1c0] sm:$0xf]
    %v156 = vld [vmem:[#allocation2 + $0x1c4] sm:$0xf]
    %v157 = vld [vmem:[#allocation2 + $0x1c8] sm:$0xf]
    %v158 = vld [vmem:[#allocation2 + $0x1cc] sm:$0xf]
    %v159 = vld [vmem:[#allocation2 + $0x1d0] sm:$0xf]
    %v160 = vld [vmem:[#allocation2 + $0x1d4] sm:$0xf]
    %v161 = vld [vmem:[#allocation2 + $0x1d8] sm:$0xf]
    %v162 = vld [vmem:[#allocation2 + $0x1dc] sm:$0xf]
    %v163 = vld [vmem:[#allocation2 + $0x1e0] sm:$0xf]
    %v164 = vld [vmem:[#allocation2 + $0x1e4] sm:$0xf]
    %v165 = vld [vmem:[#allocation2 + $0x1e8] sm:$0xf]
    %v166 = vld [vmem:[#allocation2 + $0x1ec] sm:$0xf]
    %v167 = vld [vmem:[#allocation2 + $0x1f0] sm:$0xf]
    %v168 = vld [vmem:[#allocation2 + $0x1f4] sm:$0xf]
    %v169 = vld [vmem:[#allocation2 + $0x1f8] sm:$0xf]
    %v170 = vld [vmem:[#allocation2 + $0x1fc] sm:$0xf]
    %v171 = vld [vmem:[#allocation2 + $0x200] sm:$0xf]
    %v172 = vld [vmem:[#allocation2 + $0x204] sm:$0xf]
    %v173 = vld [vmem:[#allocation2 + $0x208] sm:$0xf]
    %v174 = vld [vmem:[#allocation2 + $0x20c] sm:$0xf]
    %v175 = vld [vmem:[#allocation2 + $0x210] sm:$0xf]
    %v176 = vld [vmem:[#allocation2 + $0x214] sm:$0xf]
    %v177 = vld [vmem:[#allocation2 + $0x218] sm:$0xf]
    %v178 = vld [vmem:[#allocation2 + $0x21c] sm:$0xf]
    %v179 = vld [vmem:[#allocation2 + $0x220] sm:$0xf]
    %v180 = vld [vmem:[#allocation2 + $0x224] sm:$0xf]
    %v181 = vld [vmem:[#allocation2 + $0x228] sm:$0xf]
    %v182 = vld [vmem:[#allocation2 + $0x22c] sm:$0xf]
    %v183 = vld [vmem:[#allocation2 + $0x230] sm:$0xf]
    %v184 = vld [vmem:[#allocation2 + $0x234] sm:$0xf]
    %v185 = vld [vmem:[#allocation2 + $0x238] sm:$0xf]
    %v186 = vld [vmem:[#allocation2 + $0x23c] sm:$0xf]
    %v187 = vld [vmem:[#allocation2 + $0x240] sm:$0xf]
    %v188 = vld [vmem:[#allocation2 + $0x244] sm:$0xf]
    %v189 = vld [vmem:[#allocation2 + $0x248] sm:$0xf]
    %v190 = vld [vmem:[#allocation2 + $0x24c] sm:$0xf]
    %v191 = vld [vmem:[#allocation2 + $0x250] sm:$0xf]
    %v192 = vld [vmem:[#allocation2 + $0x254] sm:$0xf]
    %v193 = vld [vmem:[#allocation2 + $0x258] sm:$0xf]
    %v194 = vld [vmem:[#allocation2 + $0x25c] sm:$0xf]
    %v195 = vld [vmem:[#allocation2 + $0x260] sm:$0xf]
    %v196 = vld [vmem:[#allocation2 + $0x264] sm:$0xf]
    %v197 = vld [vmem:[#allocation2 + $0x268] sm:$0xf]
    %v198 = vld [vmem:[#allocation2 + $0x26c] sm:$0xf]
    %v199 = vld [vmem:[#allocation2 + $0x270] sm:$0xf]
    %v200 = vld [vmem:[#allocation2 + $0x274] sm:$0xf]
    %v201 = vld [vmem:[#allocation2 + $0x278] sm:$0xf]
    %v202 = vld [vmem:[#allocation2 + $0x27c] sm:$0xf]
    %v203 = vld [vmem:[#allocation2 + $0x280] sm:$0xf]
    %v204 = vld [vmem:[#allocation2 + $0x284] sm:$0xf]
    %v205 = vld [vmem:[#allocation2 + $0x288] sm:$0xf]
    %v206 = vld [vmem:[#allocation2 + $0x28c] sm:$0xf]
    %v207 = vld [vmem:[#allocation2 + $0x290] sm:$0xf]
    %v208 = vld [vmem:[#allocation2 + $0x294] sm:$0xf]
    %v209 = vld [vmem:[#allocation2 + $0x298] sm:$0xf]
    %v210 = vld [vmem:[#allocation2 + $0x29c] sm:$0xf]
    %v211 = vld [vmem:[#allocation2 + $0x2a0] sm:$0xf]
    %v212 = vld [vmem:[#allocation2 + $0x2a4] sm:$0xf]
    %v213 = vld [vmem:[#allocation2 + $0x2a8] sm:$0xf]
    %v214 = vld [vmem:[#allocation2 + $0x2ac] sm:$0xf]
    %v215 = vld [vmem:[#allocation2 + $0x2b0] sm:$0xf]
    %v216 = vld [vmem:[#allocation2 + $0x2b4] sm:$0xf]
    %v217 = vld [vmem:[#allocation2 + $0x2b8] sm:$0xf]
    %v218 = vld [vmem:[#allocation2 + $0x2bc] sm:$0xf]
    %v219 = vld [vmem:[#allocation2 + $0x2c0] sm:$0xf]
    %v220 = vld [vmem:[#allocation2 + $0x2c4] sm:$0xf]
    %v221 = vld [vmem:[#allocation2 + $0x2c8] sm:$0xf]
    %v222 = vld [vmem:[#allocation2 + $0x2cc] sm:$0xf]
    %v223 = vld [vmem:[#allocation2 + $0x2d0] sm:$0xf]
    %v224 = vld [vmem:[#allocation2 + $0x2d4] sm:$0xf]
    %v225 = vld [vmem:[#allocation2 + $0x2d8] sm:$0xf]
    %v226 = vld [vmem:[#allocation2 + $0x2dc] sm:$0xf]
    %v227 = vld [vmem:[#allocation2 + $0x2e0] sm:$0xf]
    %v228 = vld [vmem:[#allocation2 + $0x2e4] sm:$0xf]
    %v229 = vld [vmem:[#allocation2 + $0x2e8] sm:$0xf]
    %v230 = vld [vmem:[#allocation2 + $0x2ec] sm:$0xf]
    %v231 = vld [vmem:[#allocation2 + $0x2f0] sm:$0xf]
    %v232 = vld [vmem:[#allocation2 + $0x2f4] sm:$0xf]
    %v233 = vld [vmem:[#allocation2 + $0x2f8] sm:$0xf]
    %v234 = vld [vmem:[#allocation2 + $0x2fc] sm:$0xf]
    %v235 = vld [vmem:[#allocation2 + $0x300] sm:$0xf]
    %v236 = vld [vmem:[#allocation2 + $0x304] sm:$0xf]
    %v237 = vld [vmem:[#allocation2 + $0x308] sm:$0xf]
    %v238 = vld [vmem:[#allocation2 + $0x30c] sm:$0xf]
    %v239 = vld [vmem:[#allocation2 + $0x310] sm:$0xf]
    %v240 = vld [vmem:[#allocation2 + $0x314] sm:$0xf]
    %v241 = vld [vmem:[#allocation2 + $0x318] sm:$0xf]
    %v242 = vld [vmem:[#allocation2 + $0x31c] sm:$0xf]
    %v243 = vld [vmem:[#allocation2 + $0x320] sm:$0xf]
    %v244 = vld [vmem:[#allocation2 + $0x324] sm:$0xf]
    %v245 = vld [vmem:[#allocation2 + $0x328] sm:$0xf]
    %v246 = vld [vmem:[#allocation2 + $0x32c] sm:$0xf]
    %v247 = vld [vmem:[#allocation2 + $0x330] sm:$0xf]
    %v248 = vld [vmem:[#allocation2 + $0x334] sm:$0xf]
    %v249 = vld [vmem:[#allocation2 + $0x338] sm:$0xf]
    %v250 = vld [vmem:[#allocation2 + $0x33c] sm:$0xf]
    %v251 = vld [vmem:[#allocation2 + $0x340] sm:$0xf]
    %v252 = vld [vmem:[#allocation2 + $0x344] sm:$0xf]
    %v253 = vld [vmem:[#allocation2 + $0x348] sm:$0xf]
    %v254 = vld [vmem:[#allocation2 + $0x34c] sm:$0xf]
    %v255 = vld [vmem:[#allocation2 + $0x350] sm:$0xf]
    %v256 = vld [vmem:[#allocation2 + $0x354] sm:$0xf]
    %v257 = vld [vmem:[#allocation2 + $0x358] sm:$0xf]
    %v258 = vld [vmem:[#allocation2 + $0x35c] sm:$0xf]
    %v259 = vld [vmem:[#allocation2 + $0x360] sm:$0xf]
    %v260 = vld [vmem:[#allocation2 + $0x364] sm:$0xf]
    %v261 = vld [vmem:[#allocation2 + $0x368] sm:$0xf]
    %v262 = vld [vmem:[#allocation2 + $0x36c] sm:$0xf]
    %v263 = vld [vmem:[#allocation2 + $0x370] sm:$0xf]
    %v264 = vld [vmem:[#allocation2 + $0x374] sm:$0xf]
    %v265 = vld [vmem:[#allocation2 + $0x378] sm:$0xf]
    %v266 = vld [vmem:[#allocation2 + $0x37c] sm:$0xf]
    %v267 = vld [vmem:[#allocation2 + $0x380] sm:$0xf]
    %v268 = vld [vmem:[#allocation2 + $0x384] sm:$0xf]
    %v269 = vld [vmem:[#allocation2 + $0x388] sm:$0xf]
    %v270 = vld [vmem:[#allocation2 + $0x38c] sm:$0xf]
    %v271 = vld [vmem:[#allocation2 + $0x390] sm:$0xf]
    %v272 = vld [vmem:[#allocation2 + $0x394] sm:$0xf]
    %v273 = vld [vmem:[#allocation2 + $0x398] sm:$0xf]
    %v274 = vld [vmem:[#allocation2 + $0x39c] sm:$0xf]
    %v275 = vld [vmem:[#allocation2 + $0x3a0] sm:$0xf]
    %v276 = vld [vmem:[#allocation2 + $0x3a4] sm:$0xf]
    %v277 = vld [vmem:[#allocation2 + $0x3a8] sm:$0xf]
    %v278 = vld [vmem:[#allocation2 + $0x3ac] sm:$0xf]
    %v279 = vld [vmem:[#allocation2 + $0x3b0] sm:$0xf]
    %v280 = vld [vmem:[#allocation2 + $0x3b4] sm:$0xf]
    %v281 = vld [vmem:[#allocation2 + $0x3b8] sm:$0xf]
    %v282 = vld [vmem:[#allocation2 + $0x3bc] sm:$0xf]
    %v283 = vld [vmem:[#allocation2 + $0x3c0] sm:$0xf]
    %v284 = vld [vmem:[#allocation2 + $0x3c4] sm:$0xf]
    %v285 = vld [vmem:[#allocation2 + $0x3c8] sm:$0xf]
    %v286 = vld [vmem:[#allocation2 + $0x3cc] sm:$0xf]
    %v287 = vld [vmem:[#allocation2 + $0x3d0] sm:$0xf]
    %v288 = vld [vmem:[#allocation2 + $0x3d4] sm:$0xf]
    %v289 = vld [vmem:[#allocation2 + $0x3d8] sm:$0xf]
    %v290 = vld [vmem:[#allocation2 + $0x3dc] sm:$0xf]
    %v291 = vld [vmem:[#allocation2 + $0x3e0] sm:$0xf]
    %v292 = vld [vmem:[#allocation2 + $0x3e4] sm:$0xf]
    %v293 = vld [vmem:[#allocation2 + $0x3e8] sm:$0xf]
    %v294 = vld [vmem:[#allocation2 + $0x3ec] sm:$0xf]
    %v295 = vld [vmem:[#allocation2 + $0x3f0] sm:$0xf]
    %v296 = vld [vmem:[#allocation2 + $0x3f4] sm:$0xf]
    %v297 = vld [vmem:[#allocation2 + $0x3f8] sm:$0xf]
    %v298 = vld [vmem:[#allocation2 + $0x3fc] sm:$0xf]
    %v299 = vld [vmem:[#allocation2 + $0x400] sm:$0xf]
    %v300 = vld [vmem:[#allocation2 + $0x404] sm:$0xf]
    %v301 = vld [vmem:[#allocation2 + $0x408] sm:$0xf]
    %v302 = vld [vmem:[#allocation2 + $0x40c] sm:$0xf]
    %v303 = vld [vmem:[#allocation2 + $0x410] sm:$0xf]
    %v304 = vld [vmem:[#allocation2 + $0x414] sm:$0xf]
    %v305 = vld [vmem:[#allocation2 + $0x418] sm:$0xf]
    %v306 = vld [vmem:[#allocation2 + $0x41c] sm:$0xf]
    %v307 = vld [vmem:[#allocation2 + $0x420] sm:$0xf]
    %v308 = vld [vmem:[#allocation2 + $0x424] sm:$0xf]
    %v309 = vld [vmem:[#allocation2 + $0x428] sm:$0xf]
    %v310 = vld [vmem:[#allocation2 + $0x42c] sm:$0xf]
    %v311 = vld [vmem:[#allocation2 + $0x430] sm:$0xf]
    %v312 = vld [vmem:[#allocation2 + $0x434] sm:$0xf]
    %v313 = vld [vmem:[#allocation2 + $0x438] sm:$0xf]
    %v314 = vld [vmem:[#allocation2 + $0x43c] sm:$0xf]
    %v315 = vld [vmem:[#allocation2 + $0x440] sm:$0xf]
    %v316 = vld [vmem:[#allocation2 + $0x444] sm:$0xf]
    %v317 = vld [vmem:[#allocation2 + $0x448] sm:$0xf]
    %v318 = vld [vmem:[#allocation2 + $0x44c] sm:$0xf]
    %v319 = vld [vmem:[#allocation2 + $0x450] sm:$0xf]
    %v320 = vld [vmem:[#allocation2 + $0x454] sm:$0xf]
    %v321 = vld [vmem:[#allocation2 + $0x458] sm:$0xf]
    %v322 = vld [vmem:[#allocation2 + $0x45c] sm:$0xf]
    %v323 = vld [vmem:[#allocation2 + $0x460] sm:$0xf]
    %v324 = vld [vmem:[#allocation2 + $0x464] sm:$0xf]
    %v325 = vld [vmem:[#allocation2 + $0x468] sm:$0xf]
    %v326 = vld [vmem:[#allocation2 + $0x46c] sm:$0xf]
    %v327 = vld [vmem:[#allocation2 + $0x470] sm:$0xf]
    %v328 = vld [vmem:[#allocation2 + $0x474] sm:$0xf]
    %v329 = vld [vmem:[#allocation2 + $0x478] sm:$0xf]
    %v330 = vld [vmem:[#allocation2 + $0x47c] sm:$0xf]
    %v331 = vld [vmem:[#allocation2 + $0x480] sm:$0xf]
    %v332 = vld [vmem:[#allocation2 + $0x484] sm:$0xf]
    %v333 = vld [vmem:[#allocation2 + $0x488] sm:$0xf]
    %v334 = vld [vmem:[#allocation2 + $0x48c] sm:$0xf]
    %v335 = vld [vmem:[#allocation2 + $0x490] sm:$0xf]
    %v336 = vld [vmem:[#allocation2 + $0x494] sm:$0xf]
    %v337 = vld [vmem:[#allocation2 + $0x498] sm:$0xf]
    %v338 = vld [vmem:[#allocation2 + $0x49c] sm:$0xf]
    %v339 = vld [vmem:[#allocation2 + $0x4a0] sm:$0xf]
    %v340 = vld [vmem:[#allocation2 + $0x4a4] sm:$0xf]
    %v341 = vld [vmem:[#allocation2 + $0x4a8] sm:$0xf]
    %v342 = vld [vmem:[#allocation2 + $0x4ac] sm:$0xf]
    %v343 = vld [vmem:[#allocation2 + $0x4b0] sm:$0xf]
    %v344 = vld [vmem:[#allocation2 + $0x4b4] sm:$0xf]
    %v345 = vld [vmem:[#allocation2 + $0x4b8] sm:$0xf]
    %v346 = vld [vmem:[#allocation2 + $0x4bc] sm:$0xf]
    %v347 = vld [vmem:[#allocation2 + $0x4c0] sm:$0xf]
    %v348 = vld [vmem:[#allocation2 + $0x4c4] sm:$0xf]
    %v349 = vld [vmem:[#allocation2 + $0x4c8] sm:$0xf]
    %v350 = vld [vmem:[#allocation2 + $0x4cc] sm:$0xf]
    %v351 = vld [vmem:[#allocation2 + $0x4d0] sm:$0xf]
    %v352 = vld [vmem:[#allocation2 + $0x4d4] sm:$0xf]
    %v353 = vld [vmem:[#allocation2 + $0x4d8] sm:$0xf]
    %v354 = vld [vmem:[#allocation2 + $0x4dc] sm:$0xf]
    %v355 = vld [vmem:[#allocation2 + $0x4e0] sm:$0xf]
    %v356 = vld [vmem:[#allocation2 + $0x4e4] sm:$0xf]
    %v357 = vld [vmem:[#allocation2 + $0x4e8] sm:$0xf]
    %v358 = vld [vmem:[#allocation2 + $0x4ec] sm:$0xf]
    %v359 = vld [vmem:[#allocation2 + $0x4f0] sm:$0xf]
    %v360 = vld [vmem:[#allocation2 + $0x4f4] sm:$0xf]
    %v361 = vld [vmem:[#allocation2 + $0x4f8] sm:$0xf]
    %v362 = vld [vmem:[#allocation2 + $0x4fc] sm:$0xf]
    %v363 = vld [vmem:[#allocation2 + $0x500] sm:$0xf]
    %v364 = vld [vmem:[#allocation2 + $0x504] sm:$0xf]
    %v365 = vld [vmem:[#allocation2 + $0x508] sm:$0xf]
    %v366 = vld [vmem:[#allocation2 + $0x50c] sm:$0xf]
    %v367 = vld [vmem:[#allocation2 + $0x510] sm:$0xf]
    %v368 = vld [vmem:[#allocation2 + $0x514] sm:$0xf]
    %v369 = vld [vmem:[#allocation2 + $0x518] sm:$0xf]
    %v370 = vld [vmem:[#allocation2 + $0x51c] sm:$0xf]
    %v371 = vld [vmem:[#allocation2 + $0x520] sm:$0xf]
    %v372 = vld [vmem:[#allocation2 + $0x524] sm:$0xf]
    %v373 = vld [vmem:[#allocation2 + $0x528] sm:$0xf]
    %v374 = vld [vmem:[#allocation2 + $0x52c] sm:$0xf]
    %v375 = vld [vmem:[#allocation2 + $0x530] sm:$0xf]
    %v376 = vld [vmem:[#allocation2 + $0x534] sm:$0xf]
    %v377 = vld [vmem:[#allocation2 + $0x538] sm:$0xf]
    %v378 = vld [vmem:[#allocation2 + $0x53c] sm:$0xf]
    %v379 = vld [vmem:[#allocation2 + $0x540] sm:$0xf]
    %v380 = vld [vmem:[#allocation2 + $0x544] sm:$0xf]
    %v381 = vld [vmem:[#allocation2 + $0x548] sm:$0xf]
    %v382 = vld [vmem:[#allocation2 + $0x54c] sm:$0xf]
    %v383 = vld [vmem:[#allocation2 + $0x550] sm:$0xf]
    %v384 = vld [vmem:[#allocation2 + $0x554] sm:$0xf]
    %v385 = vld [vmem:[#allocation2 + $0x558] sm:$0xf]
    %v386 = vld [vmem:[#allocation2 + $0x55c] sm:$0xf]
    %v387 = vld [vmem:[#allocation2 + $0x560] sm:$0xf]
    %v388 = vld [vmem:[#allocation2 + $0x564] sm:$0xf]
    %v389 = vld [vmem:[#allocation2 + $0x568] sm:$0xf]
    %v390 = vld [vmem:[#allocation2 + $0x56c] sm:$0xf]
    %v391 = vld [vmem:[#allocation2 + $0x570] sm:$0xf]
    %v392 = vld [vmem:[#allocation2 + $0x574] sm:$0xf]
    %v393 = vld [vmem:[#allocation2 + $0x578] sm:$0xf]
    %v394 = vld [vmem:[#allocation2 + $0x57c] sm:$0xf]
    %v395 = vld [vmem:[#allocation2 + $0x580] sm:$0xf]
    %v396 = vld [vmem:[#allocation2 + $0x584] sm:$0xf]
    %v397 = vld [vmem:[#allocation2 + $0x588] sm:$0xf]
    %v398 = vld [vmem:[#allocation2 + $0x58c] sm:$0xf]
    %v399 = vld [vmem:[#allocation2 + $0x590] sm:$0xf]
    %v400 = vld [vmem:[#allocation2 + $0x594] sm:$0xf]
    %v401 = vld [vmem:[#allocation2 + $0x598] sm:$0xf]
    %v402 = vld [vmem:[#allocation2 + $0x59c] sm:$0xf]
    %v403 = vld [vmem:[#allocation2 + $0x5a0] sm:$0xf]
    %v404 = vld [vmem:[#allocation2 + $0x5a4] sm:$0xf]
    %v405 = vld [vmem:[#allocation2 + $0x5a8] sm:$0xf]
    %v406 = vld [vmem:[#allocation2 + $0x5ac] sm:$0xf]
    %v407 = vld [vmem:[#allocation2 + $0x5b0] sm:$0xf]
    %v408 = vld [vmem:[#allocation2 + $0x5b4] sm:$0xf]
    %v409 = vld [vmem:[#allocation2 + $0x5b8] sm:$0xf]
    %v410 = vld [vmem:[#allocation2 + $0x5bc] sm:$0xf]
    %v411 = vld [vmem:[#allocation2 + $0x5c0] sm:$0xf]
    %v412 = vld [vmem:[#allocation2 + $0x5c4] sm:$0xf]
    %v413 = vld [vmem:[#allocation2 + $0x5c8] sm:$0xf]
    %v414 = vld [vmem:[#allocation2 + $0x5cc] sm:$0xf]
    %v415 = vld [vmem:[#allocation2 + $0x5d0] sm:$0xf]
    %v416 = vld [vmem:[#allocation2 + $0x5d4] sm:$0xf]
    %v417 = vld [vmem:[#allocation2 + $0x5d8] sm:$0xf]
    %v418 = vld [vmem:[#allocation2 + $0x5dc] sm:$0xf]
    %v419 = vld [vmem:[#allocation2 + $0x5e0] sm:$0xf]
    %v420 = vld [vmem:[#allocation2 + $0x5e4] sm:$0xf]
    %v421 = vld [vmem:[#allocation2 + $0x5e8] sm:$0xf]
    %v422 = vld [vmem:[#allocation2 + $0x5ec] sm:$0xf]
    %v423 = vld [vmem:[#allocation2 + $0x5f0] sm:$0xf]
    %v424 = vld [vmem:[#allocation2 + $0x5f4] sm:$0xf]
    %v425 = vld [vmem:[#allocation2 + $0x5f8] sm:$0xf]
    %v426 = vld [vmem:[#allocation2 + $0x5fc] sm:$0xf]
    %v427 = vld [vmem:[#allocation2 + $0x600] sm:$0xf]
    %v428 = vld [vmem:[#allocation2 + $0x604] sm:$0xf]
    %v429 = vld [vmem:[#allocation2 + $0x608] sm:$0xf]
    %v430 = vld [vmem:[#allocation2 + $0x60c] sm:$0xf]
    %v431 = vld [vmem:[#allocation2 + $0x610] sm:$0xf]
    %v432 = vld [vmem:[#allocation2 + $0x614] sm:$0xf]
    %v433 = vld [vmem:[#allocation2 + $0x618] sm:$0xf]
    %v434 = vld [vmem:[#allocation2 + $0x61c] sm:$0xf]
    %v435 = vld [vmem:[#allocation2 + $0x620] sm:$0xf]
    %v436 = vld [vmem:[#allocation2 + $0x624] sm:$0xf]
    %v437 = vld [vmem:[#allocation2 + $0x628] sm:$0xf]
    %v438 = vld [vmem:[#allocation2 + $0x62c] sm:$0xf]
    %v439 = vld [vmem:[#allocation2 + $0x630] sm:$0xf]
    %v440 = vld [vmem:[#allocation2 + $0x634] sm:$0xf]
    %v441 = vld [vmem:[#allocation2 + $0x638] sm:$0xf]
    %v442 = vld [vmem:[#allocation2 + $0x63c] sm:$0xf]
    %v443 = vld [vmem:[#allocation2 + $0x640] sm:$0xf]
    %v444 = vld [vmem:[#allocation2 + $0x644] sm:$0xf]
    %v445 = vld [vmem:[#allocation2 + $0x648] sm:$0xf]
    %v446 = vld [vmem:[#allocation2 + $0x64c] sm:$0xf]
    %v447 = vld [vmem:[#allocation2 + $0x650] sm:$0xf]
    %v448 = vld [vmem:[#allocation2 + $0x654] sm:$0xf]
    %v449 = vld [vmem:[#allocation2 + $0x658] sm:$0xf]
    %v450 = vld [vmem:[#allocation2 + $0x65c] sm:$0xf]
    %v451 = vld [vmem:[#allocation2 + $0x660] sm:$0xf]
    %v452 = vld [vmem:[#allocation2 + $0x664] sm:$0xf]
    %v453 = vld [vmem:[#allocation2 + $0x668] sm:$0xf]
    %v454 = vld [vmem:[#allocation2 + $0x66c] sm:$0xf]
    %v455 = vld [vmem:[#allocation2 + $0x670] sm:$0xf]
    %v456 = vld [vmem:[#allocation2 + $0x674] sm:$0xf]
    %v457 = vld [vmem:[#allocation2 + $0x678] sm:$0xf]
    %v458 = vld [vmem:[#allocation2 + $0x67c] sm:$0xf]
    %v459 = vld [vmem:[#allocation2 + $0x680] sm:$0xf]
    %v460 = vld [vmem:[#allocation2 + $0x684] sm:$0xf]
    %v461 = vld [vmem:[#allocation2 + $0x688] sm:$0xf]
    %v462 = vld [vmem:[#allocation2 + $0x68c] sm:$0xf]
    %v463 = vld [vmem:[#allocation2 + $0x690] sm:$0xf]
    %v464 = vld [vmem:[#allocation2 + $0x694] sm:$0xf]
    %v465 = vld [vmem:[#allocation2 + $0x698] sm:$0xf]
    %v466 = vld [vmem:[#allocation2 + $0x69c] sm:$0xf]
    %v467 = vld [vmem:[#allocation2 + $0x6a0] sm:$0xf]
    %v468 = vld [vmem:[#allocation2 + $0x6a4] sm:$0xf]
    %v469 = vld [vmem:[#allocation2 + $0x6a8] sm:$0xf]
    %v470 = vld [vmem:[#allocation2 + $0x6ac] sm:$0xf]
    %v471 = vld [vmem:[#allocation2 + $0x6b0] sm:$0xf]
    %v472 = vld [vmem:[#allocation2 + $0x6b4] sm:$0xf]
    %v473 = vld [vmem:[#allocation2 + $0x6b8] sm:$0xf]
    %v474 = vld [vmem:[#allocation2 + $0x6bc] sm:$0xf]
    %v475 = vld [vmem:[#allocation2 + $0x6c0] sm:$0xf]
    %v476 = vld [vmem:[#allocation2 + $0x6c4] sm:$0xf]
    %v477 = vld [vmem:[#allocation2 + $0x6c8] sm:$0xf]
    %v478 = vld [vmem:[#allocation2 + $0x6cc] sm:$0xf]
    %v479 = vld [vmem:[#allocation2 + $0x6d0] sm:$0xf]
    %v480 = vld [vmem:[#allocation2 + $0x6d4] sm:$0xf]
    %v481 = vld [vmem:[#allocation2 + $0x6d8] sm:$0xf]
    %v482 = vld [vmem:[#allocation2 + $0x6dc] sm:$0xf]
    %v483 = vld [vmem:[#allocation2 + $0x6e0] sm:$0xf]
    %v484 = vld [vmem:[#allocation2 + $0x6e4] sm:$0xf]
    %v485 = vld [vmem:[#allocation2 + $0x6e8] sm:$0xf]
    %v486 = vld [vmem:[#allocation2 + $0x6ec] sm:$0xf]
    %v487 = vld [vmem:[#allocation2 + $0x6f0] sm:$0xf]
    %v488 = vld [vmem:[#allocation2 + $0x6f4] sm:$0xf]
    %v489 = vld [vmem:[#allocation2 + $0x6f8] sm:$0xf]
    %v490 = vld [vmem:[#allocation2 + $0x6fc] sm:$0xf]
    %v491 = vld [vmem:[#allocation2 + $0x700] sm:$0xf]
    %v492 = vld [vmem:[#allocation2 + $0x704] sm:$0xf]
    %v493 = vld [vmem:[#allocation2 + $0x708] sm:$0xf]
    %v494 = vld [vmem:[#allocation2 + $0x70c] sm:$0xf]
    %v495 = vld [vmem:[#allocation2 + $0x710] sm:$0xf]
    %v496 = vld [vmem:[#allocation2 + $0x714] sm:$0xf]
    %v497 = vld [vmem:[#allocation2 + $0x718] sm:$0xf]
    %v498 = vld [vmem:[#allocation2 + $0x71c] sm:$0xf]
    %v499 = vld [vmem:[#allocation2 + $0x720] sm:$0xf]
    %v500 = vld [vmem:[#allocation2 + $0x724] sm:$0xf]
    %v501 = vld [vmem:[#allocation2 + $0x728] sm:$0xf]
    %v502 = vld [vmem:[#allocation2 + $0x72c] sm:$0xf]
    %v503 = vld [vmem:[#allocation2 + $0x730] sm:$0xf]
    %v504 = vld [vmem:[#allocation2 + $0x734] sm:$0xf]
    %v505 = vld [vmem:[#allocation2 + $0x738] sm:$0xf]
    %v506 = vld [vmem:[#allocation2 + $0x73c] sm:$0xf]
    %v507 = vld [vmem:[#allocation2 + $0x740] sm:$0xf]
    %v508 = vld [vmem:[#allocation2 + $0x744] sm:$0xf]
    %v509 = vld [vmem:[#allocation2 + $0x748] sm:$0xf]
    %v510 = vld [vmem:[#allocation2 + $0x74c] sm:$0xf]
    %v511 = vld [vmem:[#allocation2 + $0x750] sm:$0xf]
    %v512 = vld [vmem:[#allocation2 + $0x754] sm:$0xf]
    %v513 = vld [vmem:[#allocation2 + $0x758] sm:$0xf]
    %v514 = vld [vmem:[#allocation2 + $0x75c] sm:$0xf]
    %v515 = vld [vmem:[#allocation2 + $0x760] sm:$0xf]
    %v516 = vld [vmem:[#allocation2 + $0x764] sm:$0xf]
    %v517 = vld [vmem:[#allocation2 + $0x768] sm:$0xf]
    %v518 = vld [vmem:[#allocation2 + $0x76c] sm:$0xf]
    %v519 = vld [vmem:[#allocation2 + $0x770] sm:$0xf]
    %v520 = vld [vmem:[#allocation2 + $0x774] sm:$0xf]
    %v521 = vld [vmem:[#allocation2 + $0x778] sm:$0xf]
    %v522 = vld [vmem:[#allocation2 + $0x77c] sm:$0xf]
    %v523 = vld [vmem:[#allocation2 + $0x780] sm:$0xf]
    %v524 = vld [vmem:[#allocation2 + $0x784] sm:$0xf]
    %v525 = vld [vmem:[#allocation2 + $0x788] sm:$0xf]
    %v526 = vld [vmem:[#allocation2 + $0x78c] sm:$0xf]
    %v527 = vld [vmem:[#allocation2 + $0x790] sm:$0xf]
    %v528 = vld [vmem:[#allocation2 + $0x794] sm:$0xf]
    %v529 = vld [vmem:[#allocation2 + $0x798] sm:$0xf]
    %v530 = vld [vmem:[#allocation2 + $0x79c] sm:$0xf]
    %v531 = vld [vmem:[#allocation2 + $0x7a0] sm:$0xf]
    %v532 = vld [vmem:[#allocation2 + $0x7a4] sm:$0xf]
    %v533 = vld [vmem:[#allocation2 + $0x7a8] sm:$0xf]
    %v534 = vld [vmem:[#allocation2 + $0x7ac] sm:$0xf]
    %v535 = vld [vmem:[#allocation2 + $0x7b0] sm:$0xf]
    %v536 = vld [vmem:[#allocation2 + $0x7b4] sm:$0xf]
    %v537 = vld [vmem:[#allocation2 + $0x7b8] sm:$0xf]
    %v538 = vld [vmem:[#allocation2 + $0x7bc] sm:$0xf]
    %v539 = vld [vmem:[#allocation2 + $0x7c0] sm:$0xf]
    %v540 = vld [vmem:[#allocation2 + $0x7c4] sm:$0xf]
    %v541 = vld [vmem:[#allocation2 + $0x7c8] sm:$0xf]
    %v542 = vld [vmem:[#allocation2 + $0x7cc] sm:$0xf]
    %v543 = vld [vmem:[#allocation2 + $0x7d0] sm:$0xf]
    %v544 = vld [vmem:[#allocation2 + $0x7d4] sm:$0xf]
    %v545 = vld [vmem:[#allocation2 + $0x7d8] sm:$0xf]
    %v546 = vld [vmem:[#allocation2 + $0x7dc] sm:$0xf]
    %v547 = vld [vmem:[#allocation2 + $0x7e0] sm:$0xf]
    %v548 = vld [vmem:[#allocation2 + $0x7e4] sm:$0xf]
    %v549 = vld [vmem:[#allocation2 + $0x7e8] sm:$0xf]
    %v550 = vld [vmem:[#allocation2 + $0x7ec] sm:$0xf]
    %v551 = vld [vmem:[#allocation2 + $0x7f0] sm:$0xf]
    %v552 = vld [vmem:[#allocation2 + $0x7f4] sm:$0xf]
    %v553 = vld [vmem:[#allocation2 + $0x7f8] sm:$0xf]
    %v554 = vld [vmem:[#allocation2 + $0x7fc] sm:$0xf]
    %v555 = vld [vmem:[#allocation2 + $0x800] sm:$0xf]
    %v556 = vld [vmem:[#allocation2 + $0x804] sm:$0xf]
    %v557 = vld [vmem:[#allocation2 + $0x808] sm:$0xf]
    %v558 = vld [vmem:[#allocation2 + $0x80c] sm:$0xf]
    %v559 = vld [vmem:[#allocation2 + $0x810] sm:$0xf]
    %v560 = vld [vmem:[#allocation2 + $0x814] sm:$0xf]
    %v561 = vld [vmem:[#allocation2 + $0x818] sm:$0xf]
    %v562 = vld [vmem:[#allocation2 + $0x81c] sm:$0xf]
    %v563 = vld [vmem:[#allocation2 + $0x820] sm:$0xf]
    %v564 = vld [vmem:[#allocation2 + $0x824] sm:$0xf]
    %v565 = vld [vmem:[#allocation2 + $0x828] sm:$0xf]
    %v566 = vld [vmem:[#allocation2 + $0x82c] sm:$0xf]
    %v567 = vld [vmem:[#allocation2 + $0x830] sm:$0xf]
    %v568 = vld [vmem:[#allocation2 + $0x834] sm:$0xf]
    %v569 = vld [vmem:[#allocation2 + $0x838] sm:$0xf]
    %v570 = vld [vmem:[#allocation2 + $0x83c] sm:$0xf]
    %v571 = vld [vmem:[#allocation2 + $0x840] sm:$0xf]
    %v572 = vld [vmem:[#allocation2 + $0x844] sm:$0xf]
    %v573 = vld [vmem:[#allocation2 + $0x848] sm:$0xf]
    %v574 = vld [vmem:[#allocation2 + $0x84c] sm:$0xf]
    %v575 = vld [vmem:[#allocation2 + $0x850] sm:$0xf]
    %v576 = vld [vmem:[#allocation2 + $0x854] sm:$0xf]
    %v577 = vld [vmem:[#allocation2 + $0x858] sm:$0xf]
    %v578 = vld [vmem:[#allocation2 + $0x85c] sm:$0xf]
    %v579 = vld [vmem:[#allocation2 + $0x860] sm:$0xf]
    %v580 = vld [vmem:[#allocation2 + $0x864] sm:$0xf]
    %v581 = vld [vmem:[#allocation2 + $0x868] sm:$0xf]
    %v582 = vld [vmem:[#allocation2 + $0x86c] sm:$0xf]
    %v583 = vld [vmem:[#allocation2 + $0x870] sm:$0xf]
    %v584 = vld [vmem:[#allocation2 + $0x874] sm:$0xf]
    %v585 = vld [vmem:[#allocation2 + $0x878] sm:$0xf]
    %v586 = vld [vmem:[#allocation2 + $0x87c] sm:$0xf]
    %v587 = vld [vmem:[#allocation2 + $0x880] sm:$0xf]
    %v588 = vld [vmem:[#allocation2 + $0x884] sm:$0xf]
    %v589 = vld [vmem:[#allocation2 + $0x888] sm:$0xf]
    %v590 = vld [vmem:[#allocation2 + $0x88c] sm:$0xf]
    %v591 = vld [vmem:[#allocation2 + $0x890] sm:$0xf]
    %v592 = vld [vmem:[#allocation2 + $0x894] sm:$0xf]
    %v593 = vld [vmem:[#allocation2 + $0x898] sm:$0xf]
    %v594 = vld [vmem:[#allocation2 + $0x89c] sm:$0xf]
    %v595 = vld [vmem:[#allocation2 + $0x8a0] sm:$0xf]
    %v596 = vld [vmem:[#allocation2 + $0x8a4] sm:$0xf]
    %v597 = vld [vmem:[#allocation2 + $0x8a8] sm:$0xf]
    %v598 = vld [vmem:[#allocation2 + $0x8ac] sm:$0xf]
    %v599 = vld [vmem:[#allocation2 + $0x8b0] sm:$0xf]
    %v600 = vld [vmem:[#allocation2 + $0x8b4] sm:$0xf]
    %v601 = vld [vmem:[#allocation2 + $0x8b8] sm:$0xf]
    %v602 = vld [vmem:[#allocation2 + $0x8bc] sm:$0xf]
    %v603 = vld [vmem:[#allocation2 + $0x8c0] sm:$0xf]
    %v604 = vld [vmem:[#allocation2 + $0x8c4] sm:$0xf]
    %v605 = vld [vmem:[#allocation2 + $0x8c8] sm:$0xf]
    %v606 = vld [vmem:[#allocation2 + $0x8cc] sm:$0xf]
    %v607 = vld [vmem:[#allocation2 + $0x8d0] sm:$0xf]
    %v608 = vld [vmem:[#allocation2 + $0x8d4] sm:$0xf]
    %v609 = vld [vmem:[#allocation2 + $0x8d8] sm:$0xf]
    %v610 = vld [vmem:[#allocation2 + $0x8dc] sm:$0xf]
    %v611 = vld [vmem:[#allocation2 + $0x8e0] sm:$0xf]
    %v612 = vld [vmem:[#allocation2 + $0x8e4] sm:$0xf]
    %v613 = vld [vmem:[#allocation2 + $0x8e8] sm:$0xf]
    %v614 = vld [vmem:[#allocation2 + $0x8ec] sm:$0xf]
    %v615 = vld [vmem:[#allocation2 + $0x8f0] sm:$0xf]
    %v616 = vld [vmem:[#allocation2 + $0x8f4] sm:$0xf]
    %v617 = vld [vmem:[#allocation2 + $0x8f8] sm:$0xf]
    %v618 = vld [vmem:[#allocation2 + $0x8fc] sm:$0xf]
    %v619 = vld [vmem:[#allocation2 + $0x900] sm:$0xf]
    %v620 = vld [vmem:[#allocation2 + $0x904] sm:$0xf]
    %v621 = vld [vmem:[#allocation2 + $0x908] sm:$0xf]
    %v622 = vld [vmem:[#allocation2 + $0x90c] sm:$0xf]
    %v623 = vld [vmem:[#allocation2 + $0x910] sm:$0xf]
    %v624 = vld [vmem:[#allocation2 + $0x914] sm:$0xf]
    %v625 = vld [vmem:[#allocation2 + $0x918] sm:$0xf]
    %v626 = vld [vmem:[#allocation2 + $0x91c] sm:$0xf]
    %v627 = vld [vmem:[#allocation2 + $0x920] sm:$0xf]
    %v628 = vld [vmem:[#allocation2 + $0x924] sm:$0xf]
    %v629 = vld [vmem:[#allocation2 + $0x928] sm:$0xf]
    %v630 = vld [vmem:[#allocation2 + $0x92c] sm:$0xf]
    %v631 = vld [vmem:[#allocation2 + $0x930] sm:$0xf]
    %v632 = vld [vmem:[#allocation2 + $0x934] sm:$0xf]
    %v633 = vld [vmem:[#allocation2 + $0x938] sm:$0xf]
    %v634 = vld [vmem:[#allocation2 + $0x93c] sm:$0xf]
    %v635 = vld [vmem:[#allocation2 + $0x940] sm:$0xf]
    %v636 = vld [vmem:[#allocation2 + $0x944] sm:$0xf]
    %v637 = vld [vmem:[#allocation2 + $0x948] sm:$0xf]
    %v638 = vld [vmem:[#allocation2 + $0x94c] sm:$0xf]
    %v639 = vld [vmem:[#allocation2 + $0x950] sm:$0xf]
    %v640 = vld [vmem:[#allocation2 + $0x954] sm:$0xf]
    %v641 = vld [vmem:[#allocation2 + $0x958] sm:$0xf]
    %v642 = vld [vmem:[#allocation2 + $0x95c] sm:$0xf]
    %v643 = vld [vmem:[#allocation2 + $0x960] sm:$0xf]
    %v644 = vld [vmem:[#allocation2 + $0x964] sm:$0xf]
    %v645 = vld [vmem:[#allocation2 + $0x968] sm:$0xf]
    %v646 = vld [vmem:[#allocation2 + $0x96c] sm:$0xf]
    %v647 = vld [vmem:[#allocation2 + $0x970] sm:$0xf]
    %v648 = vld [vmem:[#allocation2 + $0x974] sm:$0xf]
    %v649 = vld [vmem:[#allocation2 + $0x978] sm:$0xf]
    %v650 = vld [vmem:[#allocation2 + $0x97c] sm:$0xf]
    %v651 = vld [vmem:[#allocation2 + $0x980] sm:$0xf]
    %v652 = vld [vmem:[#allocation2 + $0x984] sm:$0xf]
    %v653 = vld [vmem:[#allocation2 + $0x988] sm:$0xf]
    %v654 = vld [vmem:[#allocation2 + $0x98c] sm:$0xf]
    %v655 = vld [vmem:[#allocation2 + $0x990] sm:$0xf]
    %v656 = vld [vmem:[#allocation2 + $0x994] sm:$0xf]
    %v657 = vld [vmem:[#allocation2 + $0x998] sm:$0xf]
    %v658 = vld [vmem:[#allocation2 + $0x99c] sm:$0xf]
    %v659 = vld [vmem:[#allocation2 + $0x9a0] sm:$0xf]
    %v660 = vld [vmem:[#allocation2 + $0x9a4] sm:$0xf]
    %v661 = vld [vmem:[#allocation2 + $0x9a8] sm:$0xf]
    %v662 = vld [vmem:[#allocation2 + $0x9ac] sm:$0xf]
    %v663 = vld [vmem:[#allocation2 + $0x9b0] sm:$0xf]
    %v664 = vld [vmem:[#allocation2 + $0x9b4] sm:$0xf]
    %v665 = vld [vmem:[#allocation2 + $0x9b8] sm:$0xf]
    %v666 = vld [vmem:[#allocation2 + $0x9bc] sm:$0xf]
    %v667 = vld [vmem:[#allocation2 + $0x9c0] sm:$0xf]
    %v668 = vld [vmem:[#allocation2 + $0x9c4] sm:$0xf]
    %v669 = vld [vmem:[#allocation2 + $0x9c8] sm:$0xf]
    %v670 = vld [vmem:[#allocation2 + $0x9cc] sm:$0xf]
    %v671 = vld [vmem:[#allocation2 + $0x9d0] sm:$0xf]
    %v672 = vld [vmem:[#allocation2 + $0x9d4] sm:$0xf]
    %v673 = vld [vmem:[#allocation2 + $0x9d8] sm:$0xf]
    %v674 = vld [vmem:[#allocation2 + $0x9dc] sm:$0xf]
    %v675 = vld [vmem:[#allocation2 + $0x9e0] sm:$0xf]
    %v676 = vld [vmem:[#allocation2 + $0x9e4] sm:$0xf]
    %v677 = vld [vmem:[#allocation2 + $0x9e8] sm:$0xf]
    %v678 = vld [vmem:[#allocation2 + $0x9ec] sm:$0xf]
    %v679 = vld [vmem:[#allocation2 + $0x9f0] sm:$0xf]
    %v680 = vld [vmem:[#allocation2 + $0x9f4] sm:$0xf]
    %v681 = vld [vmem:[#allocation2 + $0x9f8] sm:$0xf]
    %v682 = vld [vmem:[#allocation2 + $0x9fc] sm:$0xf]
    %v683 = vld [vmem:[#allocation2 + $0xa00] sm:$0xf]
    %v684 = vld [vmem:[#allocation2 + $0xa04] sm:$0xf]
    %v685 = vld [vmem:[#allocation2 + $0xa08] sm:$0xf]
    %v686 = vld [vmem:[#allocation2 + $0xa0c] sm:$0xf]
    %v687 = vld [vmem:[#allocation2 + $0xa10] sm:$0xf]
    %v688 = vld [vmem:[#allocation2 + $0xa14] sm:$0xf]
    %v689 = vld [vmem:[#allocation2 + $0xa18] sm:$0xf]
    %v690 = vld [vmem:[#allocation2 + $0xa1c] sm:$0xf]
    %v691 = vld [vmem:[#allocation2 + $0xa20] sm:$0xf]
    %v692 = vld [vmem:[#allocation2 + $0xa24] sm:$0xf]
    %v693 = vld [vmem:[#allocation2 + $0xa28] sm:$0xf]
    %v694 = vld [vmem:[#allocation2 + $0xa2c] sm:$0xf]
    %v695 = vld [vmem:[#allocation2 + $0xa30] sm:$0xf]
    %v696 = vld [vmem:[#allocation2 + $0xa34] sm:$0xf]
    %v697 = vld [vmem:[#allocation2 + $0xa38] sm:$0xf]
    %v698 = vld [vmem:[#allocation2 + $0xa3c] sm:$0xf]
    %v699 = vld [vmem:[#allocation2 + $0xa40] sm:$0xf]
    %v700 = vld [vmem:[#allocation2 + $0xa44] sm:$0xf]
    %v701 = vld [vmem:[#allocation2 + $0xa48] sm:$0xf]
    %v702 = vld [vmem:[#allocation2 + $0xa4c] sm:$0xf]
    %v703 = vld [vmem:[#allocation2 + $0xa50] sm:$0xf]
    %v704 = vld [vmem:[#allocation2 + $0xa54] sm:$0xf]
    %v705 = vld [vmem:[#allocation2 + $0xa58] sm:$0xf]
    %v706 = vld [vmem:[#allocation2 + $0xa5c] sm:$0xf]
    %v707 = vld [vmem:[#allocation2 + $0xa60] sm:$0xf]
    %v708 = vld [vmem:[#allocation2 + $0xa64] sm:$0xf]
    %v709 = vld [vmem:[#allocation2 + $0xa68] sm:$0xf]
    %v710 = vld [vmem:[#allocation2 + $0xa6c] sm:$0xf]
    %v711 = vld [vmem:[#allocation2 + $0xa70] sm:$0xf]
    %v712 = vld [vmem:[#allocation2 + $0xa74] sm:$0xf]
    %v713 = vld [vmem:[#allocation2 + $0xa78] sm:$0xf]
    %v714 = vld [vmem:[#allocation2 + $0xa7c] sm:$0xf]
    %v715 = vld [vmem:[#allocation2 + $0xa80] sm:$0xf]
    %v716 = vld [vmem:[#allocation2 + $0xa84] sm:$0xf]
    %v717 = vld [vmem:[#allocation2 + $0xa88] sm:$0xf]
    %v718 = vld [vmem:[#allocation2 + $0xa8c] sm:$0xf]
    %v719 = vld [vmem:[#allocation2 + $0xa90] sm:$0xf]
    %v720 = vld [vmem:[#allocation2 + $0xa94] sm:$0xf]
    %v721 = vld [vmem:[#allocation2 + $0xa98] sm:$0xf]
    %v722 = vld [vmem:[#allocation2 + $0xa9c] sm:$0xf]
    %v723 = vld [vmem:[#allocation2 + $0xaa0] sm:$0xf]
    %v724 = vld [vmem:[#allocation2 + $0xaa4] sm:$0xf]
    %v725 = vld [vmem:[#allocation2 + $0xaa8] sm:$0xf]
    %v726 = vld [vmem:[#allocation2 + $0xaac] sm:$0xf]
    %v727 = vld [vmem:[#allocation2 + $0xab0] sm:$0xf]
    %v728 = vld [vmem:[#allocation2 + $0xab4] sm:$0xf]
    %v729 = vld [vmem:[#allocation2 + $0xab8] sm:$0xf]
    %v730 = vld [vmem:[#allocation2 + $0xabc] sm:$0xf]
    %v731 = vld [vmem:[#allocation2 + $0xac0] sm:$0xf]
    %v732 = vld [vmem:[#allocation2 + $0xac4] sm:$0xf]
    %v733 = vld [vmem:[#allocation2 + $0xac8] sm:$0xf]
    %v734 = vld [vmem:[#allocation2 + $0xacc] sm:$0xf]
    %v735 = vld [vmem:[#allocation2 + $0xad0] sm:$0xf]
    %v736 = vld [vmem:[#allocation2 + $0xad4] sm:$0xf]
    %v737 = vld [vmem:[#allocation2 + $0xad8] sm:$0xf]
    %v738 = vld [vmem:[#allocation2 + $0xadc] sm:$0xf]
    %v739 = vld [vmem:[#allocation2 + $0xae0] sm:$0xf]
    %v740 = vld [vmem:[#allocation2 + $0xae4] sm:$0xf]
    %v741 = vld [vmem:[#allocation2 + $0xae8] sm:$0xf]
    %v742 = vld [vmem:[#allocation2 + $0xaec] sm:$0xf]
    %v743 = vld [vmem:[#allocation2 + $0xaf0] sm:$0xf]
    %v744 = vld [vmem:[#allocation2 + $0xaf4] sm:$0xf]
    %v745 = vld [vmem:[#allocation2 + $0xaf8] sm:$0xf]
    %v746 = vld [vmem:[#allocation2 + $0xafc] sm:$0xf]
    %v747 = vld [vmem:[#allocation2 + $0xb00] sm:$0xf]
    %v748 = vld [vmem:[#allocation2 + $0xb04] sm:$0xf]
    %v749 = vld [vmem:[#allocation2 + $0xb08] sm:$0xf]
    %v750 = vld [vmem:[#allocation2 + $0xb0c] sm:$0xf]
    %v751 = vld [vmem:[#allocation2 + $0xb10] sm:$0xf]
    %v752 = vld [vmem:[#allocation2 + $0xb14] sm:$0xf]
    %v753 = vld [vmem:[#allocation2 + $0xb18] sm:$0xf]
    %v754 = vld [vmem:[#allocation2 + $0xb1c] sm:$0xf]
    %v755 = vld [vmem:[#allocation2 + $0xb20] sm:$0xf]
    %v756 = vld [vmem:[#allocation2 + $0xb24] sm:$0xf]
    %v757 = vld [vmem:[#allocation2 + $0xb28] sm:$0xf]
    %v758 = vld [vmem:[#allocation2 + $0xb2c] sm:$0xf]
    %v759 = vld [vmem:[#allocation2 + $0xb30] sm:$0xf]
    %v760 = vld [vmem:[#allocation2 + $0xb34] sm:$0xf]
    %v761 = vld [vmem:[#allocation2 + $0xb38] sm:$0xf]
    %v762 = vld [vmem:[#allocation2 + $0xb3c] sm:$0xf]
    %v763 = vld [vmem:[#allocation2 + $0xb40] sm:$0xf]
    %v764 = vld [vmem:[#allocation2 + $0xb44] sm:$0xf]
    %v765 = vld [vmem:[#allocation2 + $0xb48] sm:$0xf]
    %v766 = vld [vmem:[#allocation2 + $0xb4c] sm:$0xf]
    %v767 = vld [vmem:[#allocation2 + $0xb50] sm:$0xf]
    %v768 = vld [vmem:[#allocation2 + $0xb54] sm:$0xf]
    %v769 = vld [vmem:[#allocation2 + $0xb58] sm:$0xf]
    %v770 = vld [vmem:[#allocation2 + $0xb5c] sm:$0xf]
    %v771 = vld [vmem:[#allocation2 + $0xb60] sm:$0xf]
    %v772 = vld [vmem:[#allocation2 + $0xb64] sm:$0xf]
    %v773 = vld [vmem:[#allocation2 + $0xb68] sm:$0xf]
    %v774 = vld [vmem:[#allocation2 + $0xb6c] sm:$0xf]
    %v775 = vld [vmem:[#allocation2 + $0xb70] sm:$0xf]
    %v776 = vld [vmem:[#allocation2 + $0xb74] sm:$0xf]
    %v777 = vld [vmem:[#allocation2 + $0xb78] sm:$0xf]
    %v778 = vld [vmem:[#allocation2 + $0xb7c] sm:$0xf]
    %v779 = vld [vmem:[#allocation2 + $0xb80] sm:$0xf]
    %v780 = vld [vmem:[#allocation2 + $0xb84] sm:$0xf]
    %v781 = vld [vmem:[#allocation2 + $0xb88] sm:$0xf]
    %v782 = vld [vmem:[#allocation2 + $0xb8c] sm:$0xf]
    %v783 = vld [vmem:[#allocation2 + $0xb90] sm:$0xf]
    %v784 = vld [vmem:[#allocation2 + $0xb94] sm:$0xf]
    %v785 = vld [vmem:[#allocation2 + $0xb98] sm:$0xf]
    %v786 = vld [vmem:[#allocation2 + $0xb9c] sm:$0xf]
    %v787 = vld [vmem:[#allocation2 + $0xba0] sm:$0xf]
    %v788 = vld [vmem:[#allocation2 + $0xba4] sm:$0xf]
    %v789 = vld [vmem:[#allocation2 + $0xba8] sm:$0xf]
    %v790 = vld [vmem:[#allocation2 + $0xbac] sm:$0xf]
    %v791 = vld [vmem:[#allocation2 + $0xbb0] sm:$0xf]
    %v792 = vld [vmem:[#allocation2 + $0xbb4] sm:$0xf]
    %v793 = vld [vmem:[#allocation2 + $0xbb8] sm:$0xf]
    %v794 = vld [vmem:[#allocation2 + $0xbbc] sm:$0xf]
    %v795 = vld [vmem:[#allocation2 + $0xbc0] sm:$0xf]
    %v796 = vld [vmem:[#allocation2 + $0xbc4] sm:$0xf]
    %v797 = vld [vmem:[#allocation2 + $0xbc8] sm:$0xf]
    %v798 = vld [vmem:[#allocation2 + $0xbcc] sm:$0xf]
    %v799 = vld [vmem:[#allocation2 + $0xbd0] sm:$0xf]
    %v800 = vld [vmem:[#allocation2 + $0xbd4] sm:$0xf]
    %v801 = vld [vmem:[#allocation2 + $0xbd8] sm:$0xf]
    %v802 = vld [vmem:[#allocation2 + $0xbdc] sm:$0xf]
    %v803 = vld [vmem:[#allocation2 + $0xbe0] sm:$0xf]
    %v804 = vld [vmem:[#allocation2 + $0xbe4] sm:$0xf]
    %v805 = vld [vmem:[#allocation2 + $0xbe8] sm:$0xf]
    %v806 = vld [vmem:[#allocation2 + $0xbec] sm:$0xf]
    %v807 = vld [vmem:[#allocation2 + $0xbf0] sm:$0xf]
    %v808 = vld [vmem:[#allocation2 + $0xbf4] sm:$0xf]
    %v809 = vld [vmem:[#allocation2 + $0xbf8] sm:$0xf]
    %v810 = vld [vmem:[#allocation2 + $0xbfc] sm:$0xf]
    %v811 = vld [vmem:[#allocation2 + $0xc00] sm:$0xf]
    %v812 = vld [vmem:[#allocation2 + $0xc04] sm:$0xf]
    %v813 = vld [vmem:[#allocation2 + $0xc08] sm:$0xf]
    %v814 = vld [vmem:[#allocation2 + $0xc0c] sm:$0xf]
    %v815 = vld [vmem:[#allocation2 + $0xc10] sm:$0xf]
    %v816 = vld [vmem:[#allocation2 + $0xc14] sm:$0xf]
    %v817 = vld [vmem:[#allocation2 + $0xc18] sm:$0xf]
    %v818 = vld [vmem:[#allocation2 + $0xc1c] sm:$0xf]
    %v819 = vld [vmem:[#allocation2 + $0xc20] sm:$0xf]
    %v820 = vld [vmem:[#allocation2 + $0xc24] sm:$0xf]
    %v821 = vld [vmem:[#allocation2 + $0xc28] sm:$0xf]
    %v822 = vld [vmem:[#allocation2 + $0xc2c] sm:$0xf]
    %v823 = vld [vmem:[#allocation2 + $0xc30] sm:$0xf]
    %v824 = vld [vmem:[#allocation2 + $0xc34] sm:$0xf]
    %v825 = vld [vmem:[#allocation2 + $0xc38] sm:$0xf]
    %v826 = vld [vmem:[#allocation2 + $0xc3c] sm:$0xf]
    %v827 = vld [vmem:[#allocation2 + $0xc40] sm:$0xf]
    %v828 = vld [vmem:[#allocation2 + $0xc44] sm:$0xf]
    %v829 = vld [vmem:[#allocation2 + $0xc48] sm:$0xf]
    %v830 = vld [vmem:[#allocation2 + $0xc4c] sm:$0xf]
    %v831 = vld [vmem:[#allocation2 + $0xc50] sm:$0xf]
    %v832 = vld [vmem:[#allocation2 + $0xc54] sm:$0xf]
    %v833 = vld [vmem:[#allocation2 + $0xc58] sm:$0xf]
    %v834 = vld [vmem:[#allocation2 + $0xc5c] sm:$0xf]
    %v835 = vld [vmem:[#allocation2 + $0xc60] sm:$0xf]
    %v836 = vld [vmem:[#allocation2 + $0xc64] sm:$0xf]
    %v837 = vld [vmem:[#allocation2 + $0xc68] sm:$0xf]
    %v838 = vld [vmem:[#allocation2 + $0xc6c] sm:$0xf]
    %v839 = vld [vmem:[#allocation2 + $0xc70] sm:$0xf]
    %v840 = vld [vmem:[#allocation2 + $0xc74] sm:$0xf]
    %v841 = vld [vmem:[#allocation2 + $0xc78] sm:$0xf]
    %v842 = vld [vmem:[#allocation2 + $0xc7c] sm:$0xf]
    %v843 = vld [vmem:[#allocation2 + $0xc80] sm:$0xf]
    %v844 = vld [vmem:[#allocation2 + $0xc84] sm:$0xf]
    %v845 = vld [vmem:[#allocation2 + $0xc88] sm:$0xf]
    %v846 = vld [vmem:[#allocation2 + $0xc8c] sm:$0xf]
    %v847 = vld [vmem:[#allocation2 + $0xc90] sm:$0xf]
    %v848 = vld [vmem:[#allocation2 + $0xc94] sm:$0xf]
    %v849 = vld [vmem:[#allocation2 + $0xc98] sm:$0xf]
    %v850 = vld [vmem:[#allocation2 + $0xc9c] sm:$0xf]
    %v851 = vld [vmem:[#allocation2 + $0xca0] sm:$0xf]
    %v852 = vld [vmem:[#allocation2 + $0xca4] sm:$0xf]
    %v853 = vld [vmem:[#allocation2 + $0xca8] sm:$0xf]
    %v854 = vld [vmem:[#allocation2 + $0xcac] sm:$0xf]
    %v855 = vld [vmem:[#allocation2 + $0xcb0] sm:$0xf]
    %v856 = vld [vmem:[#allocation2 + $0xcb4] sm:$0xf]
    %v857 = vld [vmem:[#allocation2 + $0xcb8] sm:$0xf]
    %v858 = vld [vmem:[#allocation2 + $0xcbc] sm:$0xf]
    %v859 = vld [vmem:[#allocation2 + $0xcc0] sm:$0xf]
    %v860 = vld [vmem:[#allocation2 + $0xcc4] sm:$0xf]
    %v861 = vld [vmem:[#allocation2 + $0xcc8] sm:$0xf]
    %v862 = vld [vmem:[#allocation2 + $0xccc] sm:$0xf]
    %v863 = vld [vmem:[#allocation2 + $0xcd0] sm:$0xf]
    %v864 = vld [vmem:[#allocation2 + $0xcd4] sm:$0xf]
    %v865 = vld [vmem:[#allocation2 + $0xcd8] sm:$0xf]
    %v866 = vld [vmem:[#allocation2 + $0xcdc] sm:$0xf]
    %v867 = vld [vmem:[#allocation2 + $0xce0] sm:$0xf]
    %v868 = vld [vmem:[#allocation2 + $0xce4] sm:$0xf]
    %v869 = vld [vmem:[#allocation2 + $0xce8] sm:$0xf]
    %v870 = vld [vmem:[#allocation2 + $0xcec] sm:$0xf]
    %v871 = vld [vmem:[#allocation2 + $0xcf0] sm:$0xf]
    %v872 = vld [vmem:[#allocation2 + $0xcf4] sm:$0xf]
    %v873 = vld [vmem:[#allocation2 + $0xcf8] sm:$0xf]
    %v874 = vld [vmem:[#allocation2 + $0xcfc] sm:$0xf]
    %v875 = vld [vmem:[#allocation2 + $0xd00] sm:$0xf]
    %v876 = vld [vmem:[#allocation2 + $0xd04] sm:$0xf]
    %v877 = vld [vmem:[#allocation2 + $0xd08] sm:$0xf]
    %v878 = vld [vmem:[#allocation2 + $0xd0c] sm:$0xf]
    %v879 = vld [vmem:[#allocation2 + $0xd10] sm:$0xf]
    %v880 = vld [vmem:[#allocation2 + $0xd14] sm:$0xf]
    %v881 = vld [vmem:[#allocation2 + $0xd18] sm:$0xf]
    %v882 = vld [vmem:[#allocation2 + $0xd1c] sm:$0xf]
    %v883 = vld [vmem:[#allocation2 + $0xd20] sm:$0xf]
    %v884 = vld [vmem:[#allocation2 + $0xd24] sm:$0xf]
    %v885 = vld [vmem:[#allocation2 + $0xd28] sm:$0xf]
    %v886 = vld [vmem:[#allocation2 + $0xd2c] sm:$0xf]
    %v887 = vld [vmem:[#allocation2 + $0xd30] sm:$0xf]
    %v888 = vld [vmem:[#allocation2 + $0xd34] sm:$0xf]
    %v889 = vld [vmem:[#allocation2 + $0xd38] sm:$0xf]
    %v890 = vld [vmem:[#allocation2 + $0xd3c] sm:$0xf]
    %v891 = vld [vmem:[#allocation2 + $0xd40] sm:$0xf]
    %v892 = vld [vmem:[#allocation2 + $0xd44] sm:$0xf]
    %v893 = vld [vmem:[#allocation2 + $0xd48] sm:$0xf]
    %v894 = vld [vmem:[#allocation2 + $0xd4c] sm:$0xf]
    %v895 = vld [vmem:[#allocation2 + $0xd50] sm:$0xf]
    %v896 = vld [vmem:[#allocation2 + $0xd54] sm:$0xf]
    %v897 = vld [vmem:[#allocation2 + $0xd58] sm:$0xf]
    %v898 = vld [vmem:[#allocation2 + $0xd5c] sm:$0xf]
    %v899 = vld [vmem:[#allocation2 + $0xd60] sm:$0xf]
    %v900 = vld [vmem:[#allocation2 + $0xd64] sm:$0xf]
    %v901 = vld [vmem:[#allocation2 + $0xd68] sm:$0xf]
    %v902 = vld [vmem:[#allocation2 + $0xd6c] sm:$0xf]
    %v903 = vld [vmem:[#allocation2 + $0xd70] sm:$0xf]
    %v904 = vld [vmem:[#allocation2 + $0xd74] sm:$0xf]
    %v905 = vld [vmem:[#allocation2 + $0xd78] sm:$0xf]
    %v906 = vld [vmem:[#allocation2 + $0xd7c] sm:$0xf]
    %v907 = vld [vmem:[#allocation2 + $0xd80] sm:$0xf]
    %v908 = vld [vmem:[#allocation2 + $0xd84] sm:$0xf]
    %v909 = vld [vmem:[#allocation2 + $0xd88] sm:$0xf]
    %v910 = vld [vmem:[#allocation2 + $0xd8c] sm:$0xf]
    %v911 = vld [vmem:[#allocation2 + $0xd90] sm:$0xf]
    %v912 = vld [vmem:[#allocation2 + $0xd94] sm:$0xf]
    %v913 = vld [vmem:[#allocation2 + $0xd98] sm:$0xf]
    %v914 = vld [vmem:[#allocation2 + $0xd9c] sm:$0xf]
    %v915 = vld [vmem:[#allocation2 + $0xda0] sm:$0xf]
    %v916 = vld [vmem:[#allocation2 + $0xda4] sm:$0xf]
    %v917 = vld [vmem:[#allocation2 + $0xda8] sm:$0xf]
    %v918 = vld [vmem:[#allocation2 + $0xdac] sm:$0xf]
    %v919 = vld [vmem:[#allocation2 + $0xdb0] sm:$0xf]
    %v920 = vld [vmem:[#allocation2 + $0xdb4] sm:$0xf]
    %v921 = vld [vmem:[#allocation2 + $0xdb8] sm:$0xf]
    %v922 = vld [vmem:[#allocation2 + $0xdbc] sm:$0xf]
    %v923 = vld [vmem:[#allocation2 + $0xdc0] sm:$0xf]
    %v924 = vld [vmem:[#allocation2 + $0xdc4] sm:$0xf]
    %v925 = vld [vmem:[#allocation2 + $0xdc8] sm:$0xf]
    %v926 = vld [vmem:[#allocation2 + $0xdcc] sm:$0xf]
    %v927 = vld [vmem:[#allocation2 + $0xdd0] sm:$0xf]
    %v928 = vld [vmem:[#allocation2 + $0xdd4] sm:$0xf]
    %v929 = vld [vmem:[#allocation2 + $0xdd8] sm:$0xf]
    %v930 = vld [vmem:[#allocation2 + $0xddc] sm:$0xf]
    %v931 = vld [vmem:[#allocation2 + $0xde0] sm:$0xf]
    %v932 = vld [vmem:[#allocation2 + $0xde4] sm:$0xf]
    %v933 = vld [vmem:[#allocation2 + $0xde8] sm:$0xf]
    %v934 = vld [vmem:[#allocation2 + $0xdec] sm:$0xf]
    %v935 = vld [vmem:[#allocation2 + $0xdf0] sm:$0xf]
    %v936 = vld [vmem:[#allocation2 + $0xdf4] sm:$0xf]
    %v937 = vld [vmem:[#allocation2 + $0xdf8] sm:$0xf]
    %v938 = vld [vmem:[#allocation2 + $0xdfc] sm:$0xf]
    %v939 = vld [vmem:[#allocation2 + $0xe00] sm:$0xf]
    %v940 = vld [vmem:[#allocation2 + $0xe04] sm:$0xf]
    %v941 = vld [vmem:[#allocation2 + $0xe08] sm:$0xf]
    %v942 = vld [vmem:[#allocation2 + $0xe0c] sm:$0xf]
    %v943 = vld [vmem:[#allocation2 + $0xe10] sm:$0xf]
    %v944 = vld [vmem:[#allocation2 + $0xe14] sm:$0xf]
    %v945 = vld [vmem:[#allocation2 + $0xe18] sm:$0xf]
    %v946 = vld [vmem:[#allocation2 + $0xe1c] sm:$0xf]
    %v947 = vld [vmem:[#allocation2 + $0xe20] sm:$0xf]
    %v948 = vld [vmem:[#allocation2 + $0xe24] sm:$0xf]
    %v949 = vld [vmem:[#allocation2 + $0xe28] sm:$0xf]
    %v950 = vld [vmem:[#allocation2 + $0xe2c] sm:$0xf]
    %v951 = vld [vmem:[#allocation2 + $0xe30] sm:$0xf]
    %v952 = vld [vmem:[#allocation2 + $0xe34] sm:$0xf]
    %v953 = vld [vmem:[#allocation2 + $0xe38] sm:$0xf]
    %v954 = vld [vmem:[#allocation2 + $0xe3c] sm:$0xf]
    %v955 = vld [vmem:[#allocation2 + $0xe40] sm:$0xf]
    %v956 = vld [vmem:[#allocation2 + $0xe44] sm:$0xf]
    %v957 = vld [vmem:[#allocation2 + $0xe48] sm:$0xf]
    %v958 = vld [vmem:[#allocation2 + $0xe4c] sm:$0xf]
    %v959 = vld [vmem:[#allocation2 + $0xe50] sm:$0xf]
    %v960 = vld [vmem:[#allocation2 + $0xe54] sm:$0xf]
    %v961 = vld [vmem:[#allocation2 + $0xe58] sm:$0xf]
    %v962 = vld [vmem:[#allocation2 + $0xe5c] sm:$0xf]
    %v963 = vld [vmem:[#allocation2 + $0xe60] sm:$0xf]
    %v964 = vld [vmem:[#allocation2 + $0xe64] sm:$0xf]
    %v965 = vld [vmem:[#allocation2 + $0xe68] sm:$0xf]
    %v966 = vld [vmem:[#allocation2 + $0xe6c] sm:$0xf]
    %v967 = vld [vmem:[#allocation2 + $0xe70] sm:$0xf]
    %v968 = vld [vmem:[#allocation2 + $0xe74] sm:$0xf]
    %v969 = vld [vmem:[#allocation2 + $0xe78] sm:$0xf]
    %v970 = vld [vmem:[#allocation2 + $0xe7c] sm:$0xf]
    %v971 = vld [vmem:[#allocation2 + $0xe80] sm:$0xf]
    %v972 = vld [vmem:[#allocation2 + $0xe84] sm:$0xf]
    %v973 = vld [vmem:[#allocation2 + $0xe88] sm:$0xf]
    %v974 = vld [vmem:[#allocation2 + $0xe8c] sm:$0xf]
    %v975 = vld [vmem:[#allocation2 + $0xe90] sm:$0xf]
    %v976 = vld [vmem:[#allocation2 + $0xe94] sm:$0xf]
    %v977 = vld [vmem:[#allocation2 + $0xe98] sm:$0xf]
    %v978 = vld [vmem:[#allocation2 + $0xe9c] sm:$0xf]
    %v979 = vld [vmem:[#allocation2 + $0xea0] sm:$0xf]
    %v980 = vld [vmem:[#allocation2 + $0xea4] sm:$0xf]
    %v981 = vld [vmem:[#allocation2 + $0xea8] sm:$0xf]
    %v982 = vld [vmem:[#allocation2 + $0xeac] sm:$0xf]
    %v983 = vld [vmem:[#allocation2 + $0xeb0] sm:$0xf]
    %v984 = vld [vmem:[#allocation2 + $0xeb4] sm:$0xf]
    %v985 = vld [vmem:[#allocation2 + $0xeb8] sm:$0xf]
    %v986 = vld [vmem:[#allocation2 + $0xebc] sm:$0xf]
    %v987 = vld [vmem:[#allocation2 + $0xec0] sm:$0xf]
    %v988 = vld [vmem:[#allocation2 + $0xec4] sm:$0xf]
    %v989 = vld [vmem:[#allocation2 + $0xec8] sm:$0xf]
    %v990 = vld [vmem:[#allocation2 + $0xecc] sm:$0xf]
    %v991 = vld [vmem:[#allocation2 + $0xed0] sm:$0xf]
    %v992 = vld [vmem:[#allocation2 + $0xed4] sm:$0xf]
    %v993 = vld [vmem:[#allocation2 + $0xed8] sm:$0xf]
    %v994 = vld [vmem:[#allocation2 + $0xedc] sm:$0xf]
    %v995 = vld [vmem:[#allocation2 + $0xee0] sm:$0xf]
    %v996 = vld [vmem:[#allocation2 + $0xee4] sm:$0xf]
    %v997 = vld [vmem:[#allocation2 + $0xee8] sm:$0xf]
    %v998 = vld [vmem:[#allocation2 + $0xeec] sm:$0xf]
    %v999 = vld [vmem:[#allocation2 + $0xef0] sm:$0xf]
    %v1000 = vld [vmem:[#allocation2 + $0xef4] sm:$0xf]
    %v1001 = vld [vmem:[#allocation2 + $0xef8] sm:$0xf]
    %v1002 = vld [vmem:[#allocation2 + $0xefc] sm:$0xf]
    %v1003 = vld [vmem:[#allocation2 + $0xf00] sm:$0xf]
    %v1004 = vld [vmem:[#allocation2 + $0xf04] sm:$0xf]
    %v1005 = vld [vmem:[#allocation2 + $0xf08] sm:$0xf]
    %v1006 = vld [vmem:[#allocation2 + $0xf0c] sm:$0xf]
    %v1007 = vld [vmem:[#allocation2 + $0xf10] sm:$0xf]
    %v1008 = vld [vmem:[#allocation2 + $0xf14] sm:$0xf]
    %v1009 = vld [vmem:[#allocation2 + $0xf18] sm:$0xf]
    %v1010 = vld [vmem:[#allocation2 + $0xf1c] sm:$0xf]
    %v1011 = vld [vmem:[#allocation2 + $0xf20] sm:$0xf]
    %v1012 = vld [vmem:[#allocation2 + $0xf24] sm:$0xf]
    %v1013 = vld [vmem:[#allocation2 + $0xf28] sm:$0xf]
    %v1014 = vld [vmem:[#allocation2 + $0xf2c] sm:$0xf]
    %v1015 = vld [vmem:[#allocation2 + $0xf30] sm:$0xf]
    %v1016 = vld [vmem:[#allocation2 + $0xf34] sm:$0xf]
    %v1017 = vld [vmem:[#allocation2 + $0xf38] sm:$0xf]
    %v1018 = vld [vmem:[#allocation2 + $0xf3c] sm:$0xf]
    %v1019 = vld [vmem:[#allocation2 + $0xf40] sm:$0xf]
    %v1020 = vld [vmem:[#allocation2 + $0xf44] sm:$0xf]
    %v1021 = vld [vmem:[#allocation2 + $0xf48] sm:$0xf]
    %v1022 = vld [vmem:[#allocation2 + $0xf4c] sm:$0xf]
    %v1023 = vld [vmem:[#allocation2 + $0xf50] sm:$0xf]
    %v1024 = vld [vmem:[#allocation2 + $0xf54] sm:$0xf]
    %v1025 = vld [vmem:[#allocation2 + $0xf58] sm:$0xf]
    %v1026 = vld [vmem:[#allocation2 + $0xf5c] sm:$0xf]
    %v1027 = vld [vmem:[#allocation2 + $0xf60] sm:$0xf]
    %v1028 = vld [vmem:[#allocation2 + $0xf64] sm:$0xf]
    %v1029 = vld [vmem:[#allocation2 + $0xf68] sm:$0xf]
    %v1030 = vld [vmem:[#allocation2 + $0xf6c] sm:$0xf]
    %v1031 = vld [vmem:[#allocation2 + $0xf70] sm:$0xf]
    %v1032 = vld [vmem:[#allocation2 + $0xf74] sm:$0xf]
    %v1033 = vld [vmem:[#allocation2 + $0xf78] sm:$0xf]
    %v1034 = vld [vmem:[#allocation2 + $0xf7c] sm:$0xf]
    %v1035 = vld [vmem:[#allocation2 + $0xf80] sm:$0xf]
    %v1036 = vld [vmem:[#allocation2 + $0xf84] sm:$0xf]
    %v1037 = vld [vmem:[#allocation2 + $0xf88] sm:$0xf]
    %v1038 = vld [vmem:[#allocation2 + $0xf8c] sm:$0xf]
    %v1039 = vld [vmem:[#allocation2 + $0xf90] sm:$0xf]
    %v1040 = vld [vmem:[#allocation2 + $0xf94] sm:$0xf]
    %v1041 = vld [vmem:[#allocation2 + $0xf98] sm:$0xf]
    %v1042 = vld [vmem:[#allocation2 + $0xf9c] sm:$0xf]
    %v1043 = vld [vmem:[#allocation2 + $0xfa0] sm:$0xf]
    %v1044 = vld [vmem:[#allocation2 + $0xfa4] sm:$0xf]
    %v1045 = vld [vmem:[#allocation2 + $0xfa8] sm:$0xf]
    %v1046 = vld [vmem:[#allocation2 + $0xfac] sm:$0xf]
    %v1047 = vld [vmem:[#allocation2 + $0xfb0] sm:$0xf]
    %v1048 = vld [vmem:[#allocation2 + $0xfb4] sm:$0xf]
    %v1049 = vld [vmem:[#allocation2 + $0xfb8] sm:$0xf]
    %v1050 = vld [vmem:[#allocation2 + $0xfbc] sm:$0xf]
    %v1051 = vld [vmem:[#allocation2 + $0xfc0] sm:$0xf]
    %v1052 = vld [vmem:[#allocation2 + $0xfc4] sm:$0xf]
    %v1053 = vld [vmem:[#allocation2 + $0xfc8] sm:$0xf]
    %v1054 = vld [vmem:[#allocation2 + $0xfcc] sm:$0xf]
    %v1055 = vld [vmem:[#allocation2 + $0xfd0] sm:$0xf]
    %v1056 = vld [vmem:[#allocation2 + $0xfd4] sm:$0xf]
    %v1057 = vld [vmem:[#allocation2 + $0xfd8] sm:$0xf]
    %v1058 = vld [vmem:[#allocation2 + $0xfdc] sm:$0xf]
    %v1059 = vld [vmem:[#allocation2 + $0xfe0] sm:$0xf]
    %v1060 = vld [vmem:[#allocation2 + $0xfe4] sm:$0xf]
    %v1061 = vld [vmem:[#allocation2 + $0xfe8] sm:$0xf]
    %v1062 = vld [vmem:[#allocation2 + $0xfec] sm:$0xf]
    %v1063 = vld [vmem:[#allocation2 + $0xff0] sm:$0xf]
    %v1064 = vld [vmem:[#allocation2 + $0xff4] sm:$0xf]
    %v1065 = vld [vmem:[#allocation2 + $0xff8] sm:$0xf]
    %v1066 = vld [vmem:[#allocation2 + $0xffc] sm:$0xf]
    %v1067 = vld [vmem:[#allocation2 + $0x1000] sm:$0xf]
    %v1068 = vld [vmem:[#allocation2 + $0x1004] sm:$0xf]
    %v1069 = vld [vmem:[#allocation2 + $0x1008] sm:$0xf]
    %v1070 = vld [vmem:[#allocation2 + $0x100c] sm:$0xf]
    %v1071 = vld [vmem:[#allocation2 + $0x1010] sm:$0xf]
    %v1072 = vld [vmem:[#allocation2 + $0x1014] sm:$0xf]
    %v1073 = vld [vmem:[#allocation2 + $0x1018] sm:$0xf]
    %v1074 = vld [vmem:[#allocation2 + $0x101c] sm:$0xf]
    %v1075 = vld [vmem:[#allocation2 + $0x1020] sm:$0xf]
    %v1076 = vld [vmem:[#allocation2 + $0x1024] sm:$0xf]
    %v1077 = vld [vmem:[#allocation2 + $0x1028] sm:$0xf]
    %v1078 = vld [vmem:[#allocation2 + $0x102c] sm:$0xf]
    %v1079 = vld [vmem:[#allocation2 + $0x1030] sm:$0xf]
    %v1080 = vld [vmem:[#allocation2 + $0x1034] sm:$0xf]
    %v1081 = vld [vmem:[#allocation2 + $0x1038] sm:$0xf]
    %v1082 = vld [vmem:[#allocation2 + $0x103c] sm:$0xf]
    %v1083 = vld [vmem:[#allocation2 + $0x1040] sm:$0xf]
    %v1084 = vld [vmem:[#allocation2 + $0x1044] sm:$0xf]
    %v1085 = vld [vmem:[#allocation2 + $0x1048] sm:$0xf]
    %v1086 = vld [vmem:[#allocation2 + $0x104c] sm:$0xf]
    %v1087 = vld [vmem:[#allocation2 + $0x1050] sm:$0xf]
    %v1088 = vld [vmem:[#allocation2 + $0x1054] sm:$0xf]
    %v1089 = vld [vmem:[#allocation2 + $0x1058] sm:$0xf]
    %v1090 = vld [vmem:[#allocation2 + $0x105c] sm:$0xf]
    %v1091 = vld [vmem:[#allocation2 + $0x1060] sm:$0xf]
    %v1092 = vld [vmem:[#allocation2 + $0x1064] sm:$0xf]
    %v1093 = vld [vmem:[#allocation2 + $0x1068] sm:$0xf]
    %v1094 = vld [vmem:[#allocation2 + $0x106c] sm:$0xf]
    %v1095 = vld [vmem:[#allocation2 + $0x1070] sm:$0xf]
    %v1096 = vld [vmem:[#allocation2 + $0x1074] sm:$0xf]
    %v1097 = vld [vmem:[#allocation2 + $0x1078] sm:$0xf]
    %v1098 = vld [vmem:[#allocation2 + $0x107c] sm:$0xf]
    %v1099 = vld [vmem:[#allocation2 + $0x1080] sm:$0xf]
    %v1100 = vld [vmem:[#allocation2 + $0x1084] sm:$0xf]
    %v1101 = vld [vmem:[#allocation2 + $0x1088] sm:$0xf]
    %v1102 = vld [vmem:[#allocation2 + $0x108c] sm:$0xf]
    %v1103 = vld [vmem:[#allocation2 + $0x1090] sm:$0xf]
    %v1104 = vld [vmem:[#allocation2 + $0x1094] sm:$0xf]
    %v1105 = vld [vmem:[#allocation2 + $0x1098] sm:$0xf]
    %v1106 = vld [vmem:[#allocation2 + $0x109c] sm:$0xf]
    %v1107 = vld [vmem:[#allocation2 + $0x10a0] sm:$0xf]
    %v1108 = vld [vmem:[#allocation2 + $0x10a4] sm:$0xf]
    %v1109 = vld [vmem:[#allocation2 + $0x10a8] sm:$0xf]
    %v1110 = vld [vmem:[#allocation2 + $0x10ac] sm:$0xf]
    %v1111 = vld [vmem:[#allocation2 + $0x10b0] sm:$0xf]
    %v1112 = vld [vmem:[#allocation2 + $0x10b4] sm:$0xf]
    %v1113 = vld [vmem:[#allocation2 + $0x10b8] sm:$0xf]
    %v1114 = vld [vmem:[#allocation2 + $0x10bc] sm:$0xf]
    %v1115 = vld [vmem:[#allocation2 + $0x10c0] sm:$0xf]
    %v1116 = vld [vmem:[#allocation2 + $0x10c4] sm:$0xf]
    %v1117 = vld [vmem:[#allocation2 + $0x10c8] sm:$0xf]
    %v1118 = vld [vmem:[#allocation2 + $0x10cc] sm:$0xf]
    %v1119 = vld [vmem:[#allocation2 + $0x10d0] sm:$0xf]
    %v1120 = vld [vmem:[#allocation2 + $0x10d4] sm:$0xf]
    %v1121 = vld [vmem:[#allocation2 + $0x10d8] sm:$0xf]
    %v1122 = vld [vmem:[#allocation2 + $0x10dc] sm:$0xf]
    %v1123 = vld [vmem:[#allocation2 + $0x10e0] sm:$0xf]
    %v1124 = vld [vmem:[#allocation2 + $0x10e4] sm:$0xf]
    %v1125 = vld [vmem:[#allocation2 + $0x10e8] sm:$0xf]
    %v1126 = vld [vmem:[#allocation2 + $0x10ec] sm:$0xf]
    %v1127 = vld [vmem:[#allocation2 + $0x10f0] sm:$0xf]
    %v1128 = vld [vmem:[#allocation2 + $0x10f4] sm:$0xf]
    %v1129 = vld [vmem:[#allocation2 + $0x10f8] sm:$0xf]
    %v1130 = vld [vmem:[#allocation2 + $0x10fc] sm:$0xf]
    %v1131 = vld [vmem:[#allocation2 + $0x1100] sm:$0xf]
    %v1132 = vld [vmem:[#allocation2 + $0x1104] sm:$0xf]
    %v1133 = vld [vmem:[#allocation2 + $0x1108] sm:$0xf]
    %v1134 = vld [vmem:[#allocation2 + $0x110c] sm:$0xf]
    %v1135 = vld [vmem:[#allocation2 + $0x1110] sm:$0xf]
    %v1136 = vld [vmem:[#allocation2 + $0x1114] sm:$0xf]
    %v1137 = vld [vmem:[#allocation2 + $0x1118] sm:$0xf]
    %v1138 = vld [vmem:[#allocation2 + $0x111c] sm:$0xf]
    %v1139 = vld [vmem:[#allocation2 + $0x1120] sm:$0xf]
    %v1140 = vld [vmem:[#allocation2 + $0x1124] sm:$0xf]
    %v1141 = vld [vmem:[#allocation2 + $0x1128] sm:$0xf]
    %v1142 = vld [vmem:[#allocation2 + $0x112c] sm:$0xf]
    %v1143 = vld [vmem:[#allocation2 + $0x1130] sm:$0xf]
    %v1144 = vld [vmem:[#allocation2 + $0x1134] sm:$0xf]
    %v1145 = vld [vmem:[#allocation2 + $0x1138] sm:$0xf]
    %v1146 = vld [vmem:[#allocation2 + $0x113c] sm:$0xf]
    %v1147 = vld [vmem:[#allocation2 + $0x1140] sm:$0xf]
    %v1148 = vld [vmem:[#allocation2 + $0x1144] sm:$0xf]
    %v1149 = vld [vmem:[#allocation2 + $0x1148] sm:$0xf]
    %v1150 = vld [vmem:[#allocation2 + $0x114c] sm:$0xf]
    %v1151 = vld [vmem:[#allocation2 + $0x1150] sm:$0xf]
    %v1152 = vld [vmem:[#allocation2 + $0x1154] sm:$0xf]
    %v1153 = vld [vmem:[#allocation2 + $0x1158] sm:$0xf]
    %v1154 = vld [vmem:[#allocation2 + $0x115c] sm:$0xf]
    %v1155 = vld [vmem:[#allocation2 + $0x1160] sm:$0xf]
    %v1156 = vld [vmem:[#allocation2 + $0x1164] sm:$0xf]
    %v1157 = vld [vmem:[#allocation2 + $0x1168] sm:$0xf]
    %v1158 = vld [vmem:[#allocation2 + $0x116c] sm:$0xf]
    %v1159 = vld [vmem:[#allocation2 + $0x1170] sm:$0xf]
    %v1160 = vld [vmem:[#allocation2 + $0x1174] sm:$0xf]
    %v1161 = vld [vmem:[#allocation2 + $0x1178] sm:$0xf]
    %v1162 = vld [vmem:[#allocation2 + $0x117c] sm:$0xf]
    %v1163 = vld [vmem:[#allocation2 + $0x1180] sm:$0xf]
    %v1164 = vld [vmem:[#allocation2 + $0x1184] sm:$0xf]
    %v1165 = vld [vmem:[#allocation2 + $0x1188] sm:$0xf]
    %v1166 = vld [vmem:[#allocation2 + $0x118c] sm:$0xf]
    %v1167 = vld [vmem:[#allocation2 + $0x1190] sm:$0xf]
    %v1168 = vld [vmem:[#allocation2 + $0x1194] sm:$0xf]
    %v1169 = vld [vmem:[#allocation2 + $0x1198] sm:$0xf]
    %v1170 = vld [vmem:[#allocation2 + $0x119c] sm:$0xf]
    %v1171 = vld [vmem:[#allocation2 + $0x11a0] sm:$0xf]
    %v1172 = vld [vmem:[#allocation2 + $0x11a4] sm:$0xf]
    %v1173 = vld [vmem:[#allocation2 + $0x11a8] sm:$0xf]
    %v1174 = vld [vmem:[#allocation2 + $0x11ac] sm:$0xf]
    %v1175 = vld [vmem:[#allocation2 + $0x11b0] sm:$0xf]
    %v1176 = vld [vmem:[#allocation2 + $0x11b4] sm:$0xf]
    %v1177 = vld [vmem:[#allocation2 + $0x11b8] sm:$0xf]
    %v1178 = vld [vmem:[#allocation2 + $0x11bc] sm:$0xf]
    %v1179 = vld [vmem:[#allocation2 + $0x11c0] sm:$0xf]
    %v1180 = vld [vmem:[#allocation2 + $0x11c4] sm:$0xf]
    %v1181 = vld [vmem:[#allocation2 + $0x11c8] sm:$0xf]
    %v1182 = vld [vmem:[#allocation2 + $0x11cc] sm:$0xf]
    %v1183 = vld [vmem:[#allocation2 + $0x11d0] sm:$0xf]
    %v1184 = vld [vmem:[#allocation2 + $0x11d4] sm:$0xf]
    %v1185 = vld [vmem:[#allocation2 + $0x11d8] sm:$0xf]
    %v1186 = vld [vmem:[#allocation2 + $0x11dc] sm:$0xf]
    %v1187 = vld [vmem:[#allocation2 + $0x11e0] sm:$0xf]
    %v1188 = vld [vmem:[#allocation2 + $0x11e4] sm:$0xf]
    %v1189 = vld [vmem:[#allocation2 + $0x11e8] sm:$0xf]
    %v1190 = vld [vmem:[#allocation2 + $0x11ec] sm:$0xf]
    %v1191 = vld [vmem:[#allocation2 + $0x11f0] sm:$0xf]
    %v1192 = vld [vmem:[#allocation2 + $0x11f4] sm:$0xf]
    %v1193 = vld [vmem:[#allocation2 + $0x11f8] sm:$0xf]
    %v1194 = vld [vmem:[#allocation2 + $0x11fc] sm:$0xf]
    %v1195 = vld [vmem:[#allocation2 + $0x1200] sm:$0xf]
    %v1196 = vld [vmem:[#allocation2 + $0x1204] sm:$0xf]
    %v1197 = vld [vmem:[#allocation2 + $0x1208] sm:$0xf]
    %v1198 = vld [vmem:[#allocation2 + $0x120c] sm:$0xf]
    %v1199 = vld [vmem:[#allocation2 + $0x1210] sm:$0xf]
    %v1200 = vld [vmem:[#allocation2 + $0x1214] sm:$0xf]
    %v1201 = vld [vmem:[#allocation2 + $0x1218] sm:$0xf]
    %v1202 = vld [vmem:[#allocation2 + $0x121c] sm:$0xf]
    %v1203 = vld [vmem:[#allocation2 + $0x1220] sm:$0xf]
    %v1204 = vld [vmem:[#allocation2 + $0x1224] sm:$0xf]
    %v1205 = vld [vmem:[#allocation2 + $0x1228] sm:$0xf]
    %v1206 = vld [vmem:[#allocation2 + $0x122c] sm:$0xf]
    %v1207 = vld [vmem:[#allocation2 + $0x1230] sm:$0xf]
    %v1208 = vld [vmem:[#allocation2 + $0x1234] sm:$0xf]
    %v1209 = vld [vmem:[#allocation2 + $0x1238] sm:$0xf]
    %v1210 = vld [vmem:[#allocation2 + $0x123c] sm:$0xf]
    %v1211 = vld [vmem:[#allocation2 + $0x1240] sm:$0xf]
    %v1212 = vld [vmem:[#allocation2 + $0x1244] sm:$0xf]
    %v1213 = vld [vmem:[#allocation2 + $0x1248] sm:$0xf]
    %v1214 = vld [vmem:[#allocation2 + $0x124c] sm:$0xf]
    %v1215 = vld [vmem:[#allocation2 + $0x1250] sm:$0xf]
    %v1216 = vld [vmem:[#allocation2 + $0x1254] sm:$0xf]
    %v1217 = vld [vmem:[#allocation2 + $0x1258] sm:$0xf]
    %v1218 = vld [vmem:[#allocation2 + $0x125c] sm:$0xf]
    %v1219 = vld [vmem:[#allocation2 + $0x1260] sm:$0xf]
    %v1220 = vld [vmem:[#allocation2 + $0x1264] sm:$0xf]
    %v1221 = vld [vmem:[#allocation2 + $0x1268] sm:$0xf]
    %v1222 = vld [vmem:[#allocation2 + $0x126c] sm:$0xf]
    %v1223 = vld [vmem:[#allocation2 + $0x1270] sm:$0xf]
    %v1224 = vld [vmem:[#allocation2 + $0x1274] sm:$0xf]
    %v1225 = vld [vmem:[#allocation2 + $0x1278] sm:$0xf]
    %v1226 = vld [vmem:[#allocation2 + $0x127c] sm:$0xf]
    %v1227 = vld [vmem:[#allocation2 + $0x1280] sm:$0xf]
    %v1228 = vld [vmem:[#allocation2 + $0x1284] sm:$0xf]
    %v1229 = vld [vmem:[#allocation2 + $0x1288] sm:$0xf]
    %v1230 = vld [vmem:[#allocation2 + $0x128c] sm:$0xf]
    %v1231 = vld [vmem:[#allocation2 + $0x1290] sm:$0xf]
    %v1232 = vld [vmem:[#allocation2 + $0x1294] sm:$0xf]
    %v1233 = vld [vmem:[#allocation2 + $0x1298] sm:$0xf]
    %v1234 = vld [vmem:[#allocation2 + $0x129c] sm:$0xf]
    %v1235 = vld [vmem:[#allocation2 + $0x12a0] sm:$0xf]
    %v1236 = vld [vmem:[#allocation2 + $0x12a4] sm:$0xf]
    %v1237 = vld [vmem:[#allocation2 + $0x12a8] sm:$0xf]
    %v1238 = vld [vmem:[#allocation2 + $0x12ac] sm:$0xf]
    %v1239 = vld [vmem:[#allocation2 + $0x12b0] sm:$0xf]
    %v1240 = vld [vmem:[#allocation2 + $0x12b4] sm:$0xf]
    %v1241 = vld [vmem:[#allocation2 + $0x12b8] sm:$0xf]
    %v1242 = vld [vmem:[#allocation2 + $0x12bc] sm:$0xf]
    %v1243 = vld [vmem:[#allocation2 + $0x12c0] sm:$0xf]
    %v1244 = vld [vmem:[#allocation2 + $0x12c4] sm:$0xf]
    %v1245 = vld [vmem:[#allocation2 + $0x12c8] sm:$0xf]
    %v1246 = vld [vmem:[#allocation2 + $0x12cc] sm:$0xf]
    %v1247 = vld [vmem:[#allocation2 + $0x12d0] sm:$0xf]
    %v1248 = vld [vmem:[#allocation2 + $0x12d4] sm:$0xf]
    %v1249 = vld [vmem:[#allocation2 + $0x12d8] sm:$0xf]
    %v1250 = vld [vmem:[#allocation2 + $0x12dc] sm:$0xf]
    %v1251 = vld [vmem:[#allocation2 + $0x12e0] sm:$0xf]
    %v1252 = vld [vmem:[#allocation2 + $0x12e4] sm:$0xf]
    %v1253 = vld [vmem:[#allocation2 + $0x12e8] sm:$0xf]
    %v1254 = vld [vmem:[#allocation2 + $0x12ec] sm:$0xf]
    %v1255 = vld [vmem:[#allocation2 + $0x12f0] sm:$0xf]
    %v1256 = vld [vmem:[#allocation2 + $0x12f4] sm:$0xf]
    %v1257 = vld [vmem:[#allocation2 + $0x12f8] sm:$0xf]
    %v1258 = vld [vmem:[#allocation2 + $0x12fc] sm:$0xf]
    %v1259 = vld [vmem:[#allocation2 + $0x1300] sm:$0xf]
    %v1260 = vld [vmem:[#allocation2 + $0x1304] sm:$0xf]
    %v1261 = vld [vmem:[#allocation2 + $0x1308] sm:$0xf]
    %v1262 = vld [vmem:[#allocation2 + $0x130c] sm:$0xf]
    %v1263 = vld [vmem:[#allocation2 + $0x1310] sm:$0xf]
    %v1264 = vld [vmem:[#allocation2 + $0x1314] sm:$0xf]
    %v1265 = vld [vmem:[#allocation2 + $0x1318] sm:$0xf]
    %v1266 = vld [vmem:[#allocation2 + $0x131c] sm:$0xf]
    %v1267 = vld [vmem:[#allocation2 + $0x1320] sm:$0xf]
    %v1268 = vld [vmem:[#allocation2 + $0x1324] sm:$0xf]
    %v1269 = vld [vmem:[#allocation2 + $0x1328] sm:$0xf]
    %v1270 = vld [vmem:[#allocation2 + $0x132c] sm:$0xf]
    %v1271 = vld [vmem:[#allocation2 + $0x1330] sm:$0xf]
    %v1272 = vld [vmem:[#allocation2 + $0x1334] sm:$0xf]
    %v1273 = vld [vmem:[#allocation2 + $0x1338] sm:$0xf]
    %v1274 = vld [vmem:[#allocation2 + $0x133c] sm:$0xf]
    %v1275 = vld [vmem:[#allocation2 + $0x1340] sm:$0xf]
    %v1276 = vld [vmem:[#allocation2 + $0x1344] sm:$0xf]
    %v1277 = vld [vmem:[#allocation2 + $0x1348] sm:$0xf]
    %v1278 = vld [vmem:[#allocation2 + $0x134c] sm:$0xf]
    %v1279 = vld [vmem:[#allocation2 + $0x1350] sm:$0xf]
    %v1280 = vld [vmem:[#allocation2 + $0x1354] sm:$0xf]
    %v1281 = vld [vmem:[#allocation2 + $0x1358] sm:$0xf]
    %v1282 = vld [vmem:[#allocation2 + $0x135c] sm:$0xf]
    %v1283 = vld [vmem:[#allocation2 + $0x1360] sm:$0xf]
    %v1284 = vld [vmem:[#allocation2 + $0x1364] sm:$0xf]
    %v1285 = vld [vmem:[#allocation2 + $0x1368] sm:$0xf]
    %v1286 = vld [vmem:[#allocation2 + $0x136c] sm:$0xf]
    %v1287 = vld [vmem:[#allocation2 + $0x1370] sm:$0xf]
    %v1288 = vld [vmem:[#allocation2 + $0x1374] sm:$0xf]
    %v1289 = vld [vmem:[#allocation2 + $0x1378] sm:$0xf]
    %v1290 = vld [vmem:[#allocation2 + $0x137c] sm:$0xf]
    %v1291 = vld [vmem:[#allocation2 + $0x1380] sm:$0xf]
    %v1292 = vld [vmem:[#allocation2 + $0x1384] sm:$0xf]
    %v1293 = vld [vmem:[#allocation2 + $0x1388] sm:$0xf]
    %v1294 = vld [vmem:[#allocation2 + $0x138c] sm:$0xf]
    %v1295 = vld [vmem:[#allocation2 + $0x1390] sm:$0xf]
    %v1296 = vld [vmem:[#allocation2 + $0x1394] sm:$0xf]
    %v1297 = vld [vmem:[#allocation2 + $0x1398] sm:$0xf]
    %v1298 = vld [vmem:[#allocation2 + $0x139c] sm:$0xf]
    %v1299 = vld [vmem:[#allocation2 + $0x13a0] sm:$0xf]
    %v1300 = vld [vmem:[#allocation2 + $0x13a4] sm:$0xf]
    %v1301 = vld [vmem:[#allocation2 + $0x13a8] sm:$0xf]
    %v1302 = vld [vmem:[#allocation2 + $0x13ac] sm:$0xf]
    %v1303 = vld [vmem:[#allocation2 + $0x13b0] sm:$0xf]
    %v1304 = vld [vmem:[#allocation2 + $0x13b4] sm:$0xf]
    %v1305 = vld [vmem:[#allocation2 + $0x13b8] sm:$0xf]
    %v1306 = vld [vmem:[#allocation2 + $0x13bc] sm:$0xf]
    %v1307 = vld [vmem:[#allocation2 + $0x13c0] sm:$0xf]
    %v1308 = vld [vmem:[#allocation2 + $0x13c4] sm:$0xf]
    %v1309 = vld [vmem:[#allocation2 + $0x13c8] sm:$0xf]
    %v1310 = vld [vmem:[#allocation2 + $0x13cc] sm:$0xf]
    %v1311 = vld [vmem:[#allocation2 + $0x13d0] sm:$0xf]
    %v1312 = vld [vmem:[#allocation2 + $0x13d4] sm:$0xf]
    %v1313 = vld [vmem:[#allocation2 + $0x13d8] sm:$0xf]
    %v1314 = vld [vmem:[#allocation2 + $0x13dc] sm:$0xf]
    %v1315 = vld [vmem:[#allocation2 + $0x13e0] sm:$0xf]
    %v1316 = vld [vmem:[#allocation2 + $0x13e4] sm:$0xf]
    %v1317 = vld [vmem:[#allocation2 + $0x13e8] sm:$0xf]
    %v1318 = vld [vmem:[#allocation2 + $0x13ec] sm:$0xf]
    %v1319 = vld [vmem:[#allocation2 + $0x13f0] sm:$0xf]
    %v1320 = vld [vmem:[#allocation2 + $0x13f4] sm:$0xf]
    %v1321 = vld [vmem:[#allocation2 + $0x13f8] sm:$0xf]
    %v1322 = vld [vmem:[#allocation2 + $0x13fc] sm:$0xf]
    %v1323 = vld [vmem:[#allocation2 + $0x1400] sm:$0xf]
    %v1324 = vld [vmem:[#allocation2 + $0x1404] sm:$0xf]
    %v1325 = vld [vmem:[#allocation2 + $0x1408] sm:$0xf]
    %v1326 = vld [vmem:[#allocation2 + $0x140c] sm:$0xf]
    %v1327 = vld [vmem:[#allocation2 + $0x1410] sm:$0xf]
    %v1328 = vld [vmem:[#allocation2 + $0x1414] sm:$0xf]
    %v1329 = vld [vmem:[#allocation2 + $0x1418] sm:$0xf]
    %v1330 = vld [vmem:[#allocation2 + $0x141c] sm:$0xf]
    %v1331 = vld [vmem:[#allocation2 + $0x1420] sm:$0xf]
    %v1332 = vld [vmem:[#allocation2 + $0x1424] sm:$0xf]
    %v1333 = vld [vmem:[#allocation2 + $0x1428] sm:$0xf]
    %v1334 = vld [vmem:[#allocation2 + $0x142c] sm:$0xf]
    %v1335 = vld [vmem:[#allocation2 + $0x1430] sm:$0xf]
    %v1336 = vld [vmem:[#allocation2 + $0x1434] sm:$0xf]
    %v1337 = vld [vmem:[#allocation2 + $0x1438] sm:$0xf]
    %v1338 = vld [vmem:[#allocation2 + $0x143c] sm:$0xf]
    %v1339 = vld [vmem:[#allocation2 + $0x1440] sm:$0xf]
    %v1340 = vld [vmem:[#allocation2 + $0x1444] sm:$0xf]
    %v1341 = vld [vmem:[#allocation2 + $0x1448] sm:$0xf]
    %v1342 = vld [vmem:[#allocation2 + $0x144c] sm:$0xf]
    %v1343 = vld [vmem:[#allocation2 + $0x1450] sm:$0xf]
    %v1344 = vld [vmem:[#allocation2 + $0x1454] sm:$0xf]
    %v1345 = vld [vmem:[#allocation2 + $0x1458] sm:$0xf]
    %v1346 = vld [vmem:[#allocation2 + $0x145c] sm:$0xf]
    %v1347 = vld [vmem:[#allocation2 + $0x1460] sm:$0xf]
    %v1348 = vld [vmem:[#allocation2 + $0x1464] sm:$0xf]
    %v1349 = vld [vmem:[#allocation2 + $0x1468] sm:$0xf]
    %v1350 = vld [vmem:[#allocation2 + $0x146c] sm:$0xf]
    %v1351 = vld [vmem:[#allocation2 + $0x1470] sm:$0xf]
    %v1352 = vld [vmem:[#allocation2 + $0x1474] sm:$0xf]
    %v1353 = vld [vmem:[#allocation2 + $0x1478] sm:$0xf]
    %v1354 = vld [vmem:[#allocation2 + $0x147c] sm:$0xf]
    %v1355 = vld [vmem:[#allocation2 + $0x1480] sm:$0xf]
    %v1356 = vld [vmem:[#allocation2 + $0x1484] sm:$0xf]
    %v1357 = vld [vmem:[#allocation2 + $0x1488] sm:$0xf]
    %v1358 = vld [vmem:[#allocation2 + $0x148c] sm:$0xf]
    %v1359 = vld [vmem:[#allocation2 + $0x1490] sm:$0xf]
    %v1360 = vld [vmem:[#allocation2 + $0x1494] sm:$0xf]
    %v1361 = vld [vmem:[#allocation2 + $0x1498] sm:$0xf]
    %v1362 = vld [vmem:[#allocation2 + $0x149c] sm:$0xf]
    %v1363 = vld [vmem:[#allocation2 + $0x14a0] sm:$0xf]
    %v1364 = vld [vmem:[#allocation2 + $0x14a4] sm:$0xf]
    %v1365 = vld [vmem:[#allocation2 + $0x14a8] sm:$0xf]
    %v1366 = vld [vmem:[#allocation2 + $0x14ac] sm:$0xf]
    %v1367 = vld [vmem:[#allocation2 + $0x14b0] sm:$0xf]
    %v1368 = vld [vmem:[#allocation2 + $0x14b4] sm:$0xf]
    %v1369 = vld [vmem:[#allocation2 + $0x14b8] sm:$0xf]
    %v1370 = vld [vmem:[#allocation2 + $0x14bc] sm:$0xf]
    %v1371 = vld [vmem:[#allocation2 + $0x14c0] sm:$0xf]
    %v1372 = vld [vmem:[#allocation2 + $0x14c4] sm:$0xf]
    %v1373 = vld [vmem:[#allocation2 + $0x14c8] sm:$0xf]
    %v1374 = vld [vmem:[#allocation2 + $0x14cc] sm:$0xf]
    %v1375 = vld [vmem:[#allocation2 + $0x14d0] sm:$0xf]
    %v1376 = vld [vmem:[#allocation2 + $0x14d4] sm:$0xf]
    %v1377 = vld [vmem:[#allocation2 + $0x14d8] sm:$0xf]
    %v1378 = vld [vmem:[#allocation2 + $0x14dc] sm:$0xf]
    %v1379 = vld [vmem:[#allocation2 + $0x14e0] sm:$0xf]
    %v1380 = vld [vmem:[#allocation2 + $0x14e4] sm:$0xf]
    %v1381 = vld [vmem:[#allocation2 + $0x14e8] sm:$0xf]
    %v1382 = vld [vmem:[#allocation2 + $0x14ec] sm:$0xf]
    %v1383 = vld [vmem:[#allocation2 + $0x14f0] sm:$0xf]
    %v1384 = vld [vmem:[#allocation2 + $0x14f4] sm:$0xf]
    %v1385 = vld [vmem:[#allocation2 + $0x14f8] sm:$0xf]
    %v1386 = vld [vmem:[#allocation2 + $0x14fc] sm:$0xf]
    %v1387 = vld [vmem:[#allocation2 + $0x1500] sm:$0xf]
    %v1388 = vld [vmem:[#allocation2 + $0x1504] sm:$0xf]
    %v1389 = vld [vmem:[#allocation2 + $0x1508] sm:$0xf]
    %v1390 = vld [vmem:[#allocation2 + $0x150c] sm:$0xf]
    %v1391 = vld [vmem:[#allocation2 + $0x1510] sm:$0xf]
    %v1392 = vld [vmem:[#allocation2 + $0x1514] sm:$0xf]
    %v1393 = vld [vmem:[#allocation2 + $0x1518] sm:$0xf]
    %v1394 = vld [vmem:[#allocation2 + $0x151c] sm:$0xf]
    %v1395 = vld [vmem:[#allocation2 + $0x1520] sm:$0xf]
    %v1396 = vld [vmem:[#allocation2 + $0x1524] sm:$0xf]
    %v1397 = vld [vmem:[#allocation2 + $0x1528] sm:$0xf]
    %v1398 = vld [vmem:[#allocation2 + $0x152c] sm:$0xf]
    %v1399 = vld [vmem:[#allocation2 + $0x1530] sm:$0xf]
    %v1400 = vld [vmem:[#allocation2 + $0x1534] sm:$0xf]
    %v1401 = vld [vmem:[#allocation2 + $0x1538] sm:$0xf]
    %v1402 = vld [vmem:[#allocation2 + $0x153c] sm:$0xf]
    %v1403 = vld [vmem:[#allocation2 + $0x1540] sm:$0xf]
    %v1404 = vld [vmem:[#allocation2 + $0x1544] sm:$0xf]
    %v1405 = vld [vmem:[#allocation2 + $0x1548] sm:$0xf]
    %v1406 = vld [vmem:[#allocation2 + $0x154c] sm:$0xf]
    %v1407 = vld [vmem:[#allocation2 + $0x1550] sm:$0xf]
    %v1408 = vld [vmem:[#allocation2 + $0x1554] sm:$0xf]
    %v1409 = vld [vmem:[#allocation2 + $0x1558] sm:$0xf]
    %v1410 = vld [vmem:[#allocation2 + $0x155c] sm:$0xf]
    %v1411 = vld [vmem:[#allocation2 + $0x1560] sm:$0xf]
    %v1412 = vld [vmem:[#allocation2 + $0x1564] sm:$0xf]
    %v1413 = vld [vmem:[#allocation2 + $0x1568] sm:$0xf]
    %v1414 = vld [vmem:[#allocation2 + $0x156c] sm:$0xf]
    %v1415 = vld [vmem:[#allocation2 + $0x1570] sm:$0xf]
    %v1416 = vld [vmem:[#allocation2 + $0x1574] sm:$0xf]
    %v1417 = vld [vmem:[#allocation2 + $0x1578] sm:$0xf]
    %v1418 = vld [vmem:[#allocation2 + $0x157c] sm:$0xf]
    %v1419 = vld [vmem:[#allocation2 + $0x1580] sm:$0xf]
    %v1420 = vld [vmem:[#allocation2 + $0x1584] sm:$0xf]
    %v1421 = vld [vmem:[#allocation2 + $0x1588] sm:$0xf]
    %v1422 = vld [vmem:[#allocation2 + $0x158c] sm:$0xf]
    %v1423 = vld [vmem:[#allocation2 + $0x1590] sm:$0xf]
    %v1424 = vld [vmem:[#allocation2 + $0x1594] sm:$0xf]
    %v1425 = vld [vmem:[#allocation2 + $0x1598] sm:$0xf]
    %v1426 = vld [vmem:[#allocation2 + $0x159c] sm:$0xf]
    %v1427 = vld [vmem:[#allocation2 + $0x15a0] sm:$0xf]
    %v1428 = vld [vmem:[#allocation2 + $0x15a4] sm:$0xf]
    %v1429 = vld [vmem:[#allocation2 + $0x15a8] sm:$0xf]
    %v1430 = vld [vmem:[#allocation2 + $0x15ac] sm:$0xf]
    %v1431 = vld [vmem:[#allocation2 + $0x15b0] sm:$0xf]
    %v1432 = vld [vmem:[#allocation2 + $0x15b4] sm:$0xf]
    %v1433 = vld [vmem:[#allocation2 + $0x15b8] sm:$0xf]
    %v1434 = vld [vmem:[#allocation2 + $0x15bc] sm:$0xf]
    %v1435 = vld [vmem:[#allocation2 + $0x15c0] sm:$0xf]
    %v1436 = vld [vmem:[#allocation2 + $0x15c4] sm:$0xf]
    %v1437 = vld [vmem:[#allocation2 + $0x15c8] sm:$0xf]
    %v1438 = vld [vmem:[#allocation2 + $0x15cc] sm:$0xf]
    %v1439 = vld [vmem:[#allocation2 + $0x15d0] sm:$0xf]
    %v1440 = vld [vmem:[#allocation2 + $0x15d4] sm:$0xf]
    %v1441 = vld [vmem:[#allocation2 + $0x15d8] sm:$0xf]
    %v1442 = vld [vmem:[#allocation2 + $0x15dc] sm:$0xf]
    %v1443 = vld [vmem:[#allocation2 + $0x15e0] sm:$0xf]
    %v1444 = vld [vmem:[#allocation2 + $0x15e4] sm:$0xf]
    %v1445 = vld [vmem:[#allocation2 + $0x15e8] sm:$0xf]
    %v1446 = vld [vmem:[#allocation2 + $0x15ec] sm:$0xf]
    %v1447 = vld [vmem:[#allocation2 + $0x15f0] sm:$0xf]
    %v1448 = vld [vmem:[#allocation2 + $0x15f4] sm:$0xf]
    %v1449 = vld [vmem:[#allocation2 + $0x15f8] sm:$0xf]
    %v1450 = vld [vmem:[#allocation2 + $0x15fc] sm:$0xf]
    %v1451 = vld [vmem:[#allocation2 + $0x1600] sm:$0xf]
    %v1452 = vld [vmem:[#allocation2 + $0x1604] sm:$0xf]
    %v1453 = vld [vmem:[#allocation2 + $0x1608] sm:$0xf]
    %v1454 = vld [vmem:[#allocation2 + $0x160c] sm:$0xf]
    %v1455 = vld [vmem:[#allocation2 + $0x1610] sm:$0xf]
    %v1456 = vld [vmem:[#allocation2 + $0x1614] sm:$0xf]
    %v1457 = vld [vmem:[#allocation2 + $0x1618] sm:$0xf]
    %v1458 = vld [vmem:[#allocation2 + $0x161c] sm:$0xf]
    %v1459 = vld [vmem:[#allocation2 + $0x1620] sm:$0xf]
    %v1460 = vld [vmem:[#allocation2 + $0x1624] sm:$0xf]
    %v1461 = vld [vmem:[#allocation2 + $0x1628] sm:$0xf]
    %v1462 = vld [vmem:[#allocation2 + $0x162c] sm:$0xf]
    %v1463 = vld [vmem:[#allocation2 + $0x1630] sm:$0xf]
    %v1464 = vld [vmem:[#allocation2 + $0x1634] sm:$0xf]
    %v1465 = vld [vmem:[#allocation2 + $0x1638] sm:$0xf]
    %v1466 = vld [vmem:[#allocation2 + $0x163c] sm:$0xf]
    %v1467 = vld [vmem:[#allocation2 + $0x1640] sm:$0xf]
    %v1468 = vld [vmem:[#allocation2 + $0x1644] sm:$0xf]
    %v1469 = vld [vmem:[#allocation2 + $0x1648] sm:$0xf]
    %v1470 = vld [vmem:[#allocation2 + $0x164c] sm:$0xf]
    %v1471 = vld [vmem:[#allocation2 + $0x1650] sm:$0xf]
    %v1472 = vld [vmem:[#allocation2 + $0x1654] sm:$0xf]
    %v1473 = vld [vmem:[#allocation2 + $0x1658] sm:$0xf]
    %v1474 = vld [vmem:[#allocation2 + $0x165c] sm:$0xf]
    %v1475 = vld [vmem:[#allocation2 + $0x1660] sm:$0xf]
    %v1476 = vld [vmem:[#allocation2 + $0x1664] sm:$0xf]
    %v1477 = vld [vmem:[#allocation2 + $0x1668] sm:$0xf]
    %v1478 = vld [vmem:[#allocation2 + $0x166c] sm:$0xf]
    %v1479 = vld [vmem:[#allocation2 + $0x1670] sm:$0xf]
    %v1480 = vld [vmem:[#allocation2 + $0x1674] sm:$0xf]
    %v1481 = vld [vmem:[#allocation2 + $0x1678] sm:$0xf]
    %v1482 = vld [vmem:[#allocation2 + $0x167c] sm:$0xf]
    %v1483 = vld [vmem:[#allocation2 + $0x1680] sm:$0xf]
    %v1484 = vld [vmem:[#allocation2 + $0x1684] sm:$0xf]
    %v1485 = vld [vmem:[#allocation2 + $0x1688] sm:$0xf]
    %v1486 = vld [vmem:[#allocation2 + $0x168c] sm:$0xf]
    %v1487 = vld [vmem:[#allocation2 + $0x1690] sm:$0xf]
    %v1488 = vld [vmem:[#allocation2 + $0x1694] sm:$0xf]
    %v1489 = vld [vmem:[#allocation2 + $0x1698] sm:$0xf]
    %v1490 = vld [vmem:[#allocation2 + $0x169c] sm:$0xf]
    %v1491 = vld [vmem:[#allocation2 + $0x16a0] sm:$0xf]
    %v1492 = vld [vmem:[#allocation2 + $0x16a4] sm:$0xf]
    %v1493 = vld [vmem:[#allocation2 + $0x16a8] sm:$0xf]
    %v1494 = vld [vmem:[#allocation2 + $0x16ac] sm:$0xf]
    %v1495 = vld [vmem:[#allocation2 + $0x16b0] sm:$0xf]
    %v1496 = vld [vmem:[#allocation2 + $0x16b4] sm:$0xf]
    %v1497 = vld [vmem:[#allocation2 + $0x16b8] sm:$0xf]
    %v1498 = vld [vmem:[#allocation2 + $0x16bc] sm:$0xf]
    %v1499 = vld [vmem:[#allocation2 + $0x16c0] sm:$0xf]
    %v1500 = vld [vmem:[#allocation2 + $0x16c4] sm:$0xf]
    %v1501 = vld [vmem:[#allocation2 + $0x16c8] sm:$0xf]
    %v1502 = vld [vmem:[#allocation2 + $0x16cc] sm:$0xf]
    %v1503 = vld [vmem:[#allocation2 + $0x16d0] sm:$0xf]
    %v1504 = vld [vmem:[#allocation2 + $0x16d4] sm:$0xf]
    %v1505 = vld [vmem:[#allocation2 + $0x16d8] sm:$0xf]
    %v1506 = vld [vmem:[#allocation2 + $0x16dc] sm:$0xf]
    %v1507 = vld [vmem:[#allocation2 + $0x16e0] sm:$0xf]
    %v1508 = vld [vmem:[#allocation2 + $0x16e4] sm:$0xf]
    %v1509 = vld [vmem:[#allocation2 + $0x16e8] sm:$0xf]
    %v1510 = vld [vmem:[#allocation2 + $0x16ec] sm:$0xf]
    %v1511 = vld [vmem:[#allocation2 + $0x16f0] sm:$0xf]
    %v1512 = vld [vmem:[#allocation2 + $0x16f4] sm:$0xf]
    %v1513 = vld [vmem:[#allocation2 + $0x16f8] sm:$0xf]
    %v1514 = vld [vmem:[#allocation2 + $0x16fc] sm:$0xf]
    %v1515 = vld [vmem:[#allocation2 + $0x1700] sm:$0xf]
    %v1516 = vld [vmem:[#allocation2 + $0x1704] sm:$0xf]
    %v1517 = vld [vmem:[#allocation2 + $0x1708] sm:$0xf]
    %v1518 = vld [vmem:[#allocation2 + $0x170c] sm:$0xf]
    %v1519 = vld [vmem:[#allocation2 + $0x1710] sm:$0xf]
    %v1520 = vld [vmem:[#allocation2 + $0x1714] sm:$0xf]
    %v1521 = vld [vmem:[#allocation2 + $0x1718] sm:$0xf]
    %v1522 = vld [vmem:[#allocation2 + $0x171c] sm:$0xf]
    %v1523 = vld [vmem:[#allocation2 + $0x1720] sm:$0xf]
    %v1524 = vld [vmem:[#allocation2 + $0x1724] sm:$0xf]
    %v1525 = vld [vmem:[#allocation2 + $0x1728] sm:$0xf]
    %v1526 = vld [vmem:[#allocation2 + $0x172c] sm:$0xf]
    %v1527 = vld [vmem:[#allocation2 + $0x1730] sm:$0xf]
    %v1528 = vld [vmem:[#allocation2 + $0x1734] sm:$0xf]
    %v1529 = vld [vmem:[#allocation2 + $0x1738] sm:$0xf]
    %v1530 = vld [vmem:[#allocation2 + $0x173c] sm:$0xf]
    %v1531 = vld [vmem:[#allocation2 + $0x1740] sm:$0xf]
    %v1532 = vld [vmem:[#allocation2 + $0x1744] sm:$0xf]
    %v1533 = vld [vmem:[#allocation2 + $0x1748] sm:$0xf]
    %v1534 = vld [vmem:[#allocation2 + $0x174c] sm:$0xf]
    %v1535 = vld [vmem:[#allocation2 + $0x1750] sm:$0xf]
    %v1536 = vld [vmem:[#allocation2 + $0x1754] sm:$0xf]
    %v1537 = vld [vmem:[#allocation2 + $0x1758] sm:$0xf]
    %v1538 = vld [vmem:[#allocation2 + $0x175c] sm:$0xf]
    %v1539 = vld [vmem:[#allocation2 + $0x1760] sm:$0xf]
    %v1540 = vld [vmem:[#allocation2 + $0x1764] sm:$0xf]
    %v1541 = vld [vmem:[#allocation2 + $0x1768] sm:$0xf]
    %v1542 = vld [vmem:[#allocation2 + $0x176c] sm:$0xf]
    %v1543 = vld [vmem:[#allocation2 + $0x1770] sm:$0xf]
    %v1544 = vld [vmem:[#allocation2 + $0x1774] sm:$0xf]
    %v1545 = vld [vmem:[#allocation2 + $0x1778] sm:$0xf]
    %v1546 = vld [vmem:[#allocation2 + $0x177c] sm:$0xf]
    %v1547 = vld [vmem:[#allocation2 + $0x1780] sm:$0xf]
    %v1548 = vld [vmem:[#allocation2 + $0x1784] sm:$0xf]
    %v1549 = vld [vmem:[#allocation2 + $0x1788] sm:$0xf]
    %v1550 = vld [vmem:[#allocation2 + $0x178c] sm:$0xf]
    %v1551 = vld [vmem:[#allocation2 + $0x1790] sm:$0xf]
    %v1552 = vld [vmem:[#allocation2 + $0x1794] sm:$0xf]
    %v1553 = vld [vmem:[#allocation2 + $0x1798] sm:$0xf]
    %v1554 = vld [vmem:[#allocation2 + $0x179c] sm:$0xf]
    %v1555 = vld [vmem:[#allocation2 + $0x17a0] sm:$0xf]
    %v1556 = vld [vmem:[#allocation2 + $0x17a4] sm:$0xf]
    %v1557 = vld [vmem:[#allocation2 + $0x17a8] sm:$0xf]
    %v1558 = vld [vmem:[#allocation2 + $0x17ac] sm:$0xf]
    %v1559 = vld [vmem:[#allocation2 + $0x17b0] sm:$0xf]
    %v1560 = vld [vmem:[#allocation2 + $0x17b4] sm:$0xf]
    %v1561 = vld [vmem:[#allocation2 + $0x17b8] sm:$0xf]
    %v1562 = vld [vmem:[#allocation2 + $0x17bc] sm:$0xf]
    %v1563 = vld [vmem:[#allocation2 + $0x17c0] sm:$0xf]
    %v1564 = vld [vmem:[#allocation2 + $0x17c4] sm:$0xf]
    %v1565 = vld [vmem:[#allocation2 + $0x17c8] sm:$0xf]
    %v1566 = vld [vmem:[#allocation2 + $0x17cc] sm:$0xf]
    %v1567 = vld [vmem:[#allocation2 + $0x17d0] sm:$0xf]
    %v1568 = vld [vmem:[#allocation2 + $0x17d4] sm:$0xf]
    %v1569 = vld [vmem:[#allocation2 + $0x17d8] sm:$0xf]
    %v1570 = vld [vmem:[#allocation2 + $0x17dc] sm:$0xf]
    %v1571 = vld [vmem:[#allocation2 + $0x17e0] sm:$0xf]
    %v1572 = vld [vmem:[#allocation2 + $0x17e4] sm:$0xf]
    %v1573 = vld [vmem:[#allocation2 + $0x17e8] sm:$0xf]
    %v1574 = vld [vmem:[#allocation2 + $0x17ec] sm:$0xf]
    %v1575 = vld [vmem:[#allocation2 + $0x17f0] sm:$0xf]
    %v1576 = vld [vmem:[#allocation2 + $0x17f4] sm:$0xf]
    %v1577 = vld [vmem:[#allocation2 + $0x17f8] sm:$0xf]
    %v1578 = vld [vmem:[#allocation2 + $0x17fc] sm:$0xf]
    %v1579 = vld [vmem:[#allocation2 + $0x1800] sm:$0xf]
    %v1580 = vld [vmem:[#allocation2 + $0x1804] sm:$0xf]
    %v1581 = vld [vmem:[#allocation2 + $0x1808] sm:$0xf]
    %v1582 = vld [vmem:[#allocation2 + $0x180c] sm:$0xf]
    %v1583 = vld [vmem:[#allocation2 + $0x1810] sm:$0xf]
    %v1584 = vld [vmem:[#allocation2 + $0x1814] sm:$0xf]
    %v1585 = vld [vmem:[#allocation2 + $0x1818] sm:$0xf]
    %v1586 = vld [vmem:[#allocation2 + $0x181c] sm:$0xf]
    %v1587 = vld [vmem:[#allocation2 + $0x1820] sm:$0xf]
    %v1588 = vld [vmem:[#allocation2 + $0x1824] sm:$0xf]
    %v1589 = vld [vmem:[#allocation2 + $0x1828] sm:$0xf]
    %v1590 = vld [vmem:[#allocation2 + $0x182c] sm:$0xf]
    %v1591 = vld [vmem:[#allocation2 + $0x1830] sm:$0xf]
    %v1592 = vld [vmem:[#allocation2 + $0x1834] sm:$0xf]
    %v1593 = vld [vmem:[#allocation2 + $0x1838] sm:$0xf]
    %v1594 = vld [vmem:[#allocation2 + $0x183c] sm:$0xf]
    %v1595 = vld [vmem:[#allocation2 + $0x1840] sm:$0xf]
    %v1596 = vld [vmem:[#allocation2 + $0x1844] sm:$0xf]
    %v1597 = vld [vmem:[#allocation2 + $0x1848] sm:$0xf]
    %v1598 = vld [vmem:[#allocation2 + $0x184c] sm:$0xf]
    %v1599 = vld [vmem:[#allocation2 + $0x1850] sm:$0xf]
    %v1600 = vld [vmem:[#allocation2 + $0x1854] sm:$0xf]
    %v1601 = vld [vmem:[#allocation2 + $0x1858] sm:$0xf]
    %v1602 = vld [vmem:[#allocation2 + $0x185c] sm:$0xf]
    %v1603 = vld [vmem:[#allocation2 + $0x1860] sm:$0xf]
    %v1604 = vld [vmem:[#allocation2 + $0x1864] sm:$0xf]
    %v1605 = vld [vmem:[#allocation2 + $0x1868] sm:$0xf]
    %v1606 = vld [vmem:[#allocation2 + $0x186c] sm:$0xf]
    %v1607 = vld [vmem:[#allocation2 + $0x1870] sm:$0xf]
    %v1608 = vld [vmem:[#allocation2 + $0x1874] sm:$0xf]
    %v1609 = vld [vmem:[#allocation2 + $0x1878] sm:$0xf]
    %v1610 = vld [vmem:[#allocation2 + $0x187c] sm:$0xf]
    %v1624 = vcombine.high %v30, %v30
    %v1626 = vunpack.c.l.s4 1966171168
    %v1627 = vunpack.c.0.s8 %v1626
    %v1628 = vlaneseq
    %v1629 = vshrl.u32 %v1628, 7
    %v1630 = vsub.s32 %v1627, %v1629
    %v1631 = vrot.slane %v30, %v1630
    %v1633 = vunpack.c.l.s4 1966171168
    %v1634 = vunpack.c.0.s8 %v1633
    %v1635 = vlaneseq
    %v1636 = vshrl.u32 %v1635, 7
    %v1637 = vsub.s32 %v1634, %v1636
    %v1638 = vrot.slane %v1624, %v1637
    %v1639 = vcombine.high %v1631, %v1631
    %v1640 = vcombine.high %v1638, %v1638
    %v1642 = vunpack.c.l.s4 1966171168
    %v1643 = vunpack.c.0.s8 %v1642
    %v1644 = vlaneseq
    %v1645 = vshrl.u32 %v1644, 7
    %v1646 = vsub.s32 %v1643, %v1645
    %v1647 = vrot.slane %v1631, %v1646
    %v1649 = vunpack.c.l.s4 1966171168
    %v1650 = vunpack.c.0.s8 %v1649
    %v1651 = vlaneseq
    %v1652 = vshrl.u32 %v1651, 7
    %v1653 = vsub.s32 %v1650, %v1652
    %v1654 = vrot.slane %v1638, %v1653
    %v1656 = vunpack.c.l.s4 1966171168
    %v1657 = vunpack.c.0.s8 %v1656
    %v1658 = vlaneseq
    %v1659 = vshrl.u32 %v1658, 7
    %v1660 = vsub.s32 %v1657, %v1659
    %v1661 = vrot.slane %v1639, %v1660
    %v1663 = vunpack.c.l.s4 1966171168
    %v1664 = vunpack.c.0.s8 %v1663
    %v1665 = vlaneseq
    %v1666 = vshrl.u32 %v1665, 7
    %v1667 = vsub.s32 %v1664, %v1666
    %v1668 = vrot.slane %v1640, %v1667
    %v1669 = vcombine.high %v1647, %v1647
    %v1670 = vcombine.high %v1654, %v1654
    %v1671 = vcombine.high %v1661, %v1661
    %v1672 = vcombine.high %v1668, %v1668
    %v1673 = vcombine.high %v31, %v31
    %v1675 = vunpack.c.l.s4 1966171168
    %v1676 = vunpack.c.0.s8 %v1675
    %v1677 = vlaneseq
    %v1678 = vshrl.u32 %v1677, 7
    %v1679 = vsub.s32 %v1676, %v1678
    %v1680 = vrot.slane %v31, %v1679
    %v1682 = vunpack.c.l.s4 1966171168
    %v1683 = vunpack.c.0.s8 %v1682
    %v1684 = vlaneseq
    %v1685 = vshrl.u32 %v1684, 7
    %v1686 = vsub.s32 %v1683, %v1685
    %v1687 = vrot.slane %v1673, %v1686
    %v1688 = vcombine.high %v1680, %v1680
    %v1689 = vcombine.high %v1687, %v1687
    %v1691 = vunpack.c.l.s4 1966171168
    %v1692 = vunpack.c.0.s8 %v1691
    %v1693 = vlaneseq
    %v1694 = vshrl.u32 %v1693, 7
    %v1695 = vsub.s32 %v1692, %v1694
    %v1696 = vrot.slane %v1680, %v1695
    %v1698 = vunpack.c.l.s4 1966171168
    %v1699 = vunpack.c.0.s8 %v1698
    %v1700 = vlaneseq
    %v1701 = vshrl.u32 %v1700, 7
    %v1702 = vsub.s32 %v1699, %v1701
    %v1703 = vrot.slane %v1687, %v1702
    %v1705 = vunpack.c.l.s4 1966171168
    %v1706 = vunpack.c.0.s8 %v1705
    %v1707 = vlaneseq
    %v1708 = vshrl.u32 %v1707, 7
    %v1709 = vsub.s32 %v1706, %v1708
    %v1710 = vrot.slane %v1688, %v1709
    %v1712 = vunpack.c.l.s4 1966171168
    %v1713 = vunpack.c.0.s8 %v1712
    %v1714 = vlaneseq
    %v1715 = vshrl.u32 %v1714, 7
    %v1716 = vsub.s32 %v1713, %v1715
    %v1717 = vrot.slane %v1689, %v1716
    %v1718 = vcombine.high %v1696, %v1696
    %v1719 = vcombine.high %v1703, %v1703
    %v1720 = vcombine.high %v1710, %v1710
    %v1721 = vcombine.high %v1717, %v1717
    %v1722 = vcombine.high %v32, %v32
    %v1724 = vunpack.c.l.s4 1966171168
    %v1725 = vunpack.c.0.s8 %v1724
    %v1726 = vlaneseq
    %v1727 = vshrl.u32 %v1726, 7
    %v1728 = vsub.s32 %v1725, %v1727
    %v1729 = vrot.slane %v32, %v1728
    %v1731 = vunpack.c.l.s4 1966171168
    %v1732 = vunpack.c.0.s8 %v1731
    %v1733 = vlaneseq
    %v1734 = vshrl.u32 %v1733, 7
    %v1735 = vsub.s32 %v1732, %v1734
    %v1736 = vrot.slane %v1722, %v1735
    %v1737 = vcombine.high %v1729, %v1729
    %v1738 = vcombine.high %v1736, %v1736
    %v1740 = vunpack.c.l.s4 1966171168
    %v1741 = vunpack.c.0.s8 %v1740
    %v1742 = vlaneseq
    %v1743 = vshrl.u32 %v1742, 7
    %v1744 = vsub.s32 %v1741, %v1743
    %v1745 = vrot.slane %v1729, %v1744
    %v1747 = vunpack.c.l.s4 1966171168
    %v1748 = vunpack.c.0.s8 %v1747
    %v1749 = vlaneseq
    %v1750 = vshrl.u32 %v1749, 7
    %v1751 = vsub.s32 %v1748, %v1750
    %v1752 = vrot.slane %v1736, %v1751
    %v1754 = vunpack.c.l.s4 1966171168
    %v1755 = vunpack.c.0.s8 %v1754
    %v1756 = vlaneseq
    %v1757 = vshrl.u32 %v1756, 7
    %v1758 = vsub.s32 %v1755, %v1757
    %v1759 = vrot.slane %v1737, %v1758
    %v1761 = vunpack.c.l.s4 1966171168
    %v1762 = vunpack.c.0.s8 %v1761
    %v1763 = vlaneseq
    %v1764 = vshrl.u32 %v1763, 7
    %v1765 = vsub.s32 %v1762, %v1764
    %v1766 = vrot.slane %v1738, %v1765
    %v1767 = vcombine.high %v1745, %v1745
    %v1768 = vcombine.high %v1752, %v1752
    %v1769 = vcombine.high %v1759, %v1759
    %v1770 = vcombine.high %v1766, %v1766
    %v1771 = vcombine.high %v33, %v33
    %v1773 = vunpack.c.l.s4 1966171168
    %v1774 = vunpack.c.0.s8 %v1773
    %v1775 = vlaneseq
    %v1776 = vshrl.u32 %v1775, 7
    %v1777 = vsub.s32 %v1774, %v1776
    %v1778 = vrot.slane %v33, %v1777
    %v1780 = vunpack.c.l.s4 1966171168
    %v1781 = vunpack.c.0.s8 %v1780
    %v1782 = vlaneseq
    %v1783 = vshrl.u32 %v1782, 7
    %v1784 = vsub.s32 %v1781, %v1783
    %v1785 = vrot.slane %v1771, %v1784
    %v1786 = vcombine.high %v1778, %v1778
    %v1787 = vcombine.high %v1785, %v1785
    %v1789 = vunpack.c.l.s4 1966171168
    %v1790 = vunpack.c.0.s8 %v1789
    %v1791 = vlaneseq
    %v1792 = vshrl.u32 %v1791, 7
    %v1793 = vsub.s32 %v1790, %v1792
    %v1794 = vrot.slane %v1778, %v1793
    %v1796 = vunpack.c.l.s4 1966171168
    %v1797 = vunpack.c.0.s8 %v1796
    %v1798 = vlaneseq
    %v1799 = vshrl.u32 %v1798, 7
    %v1800 = vsub.s32 %v1797, %v1799
    %v1801 = vrot.slane %v1785, %v1800
    %v1803 = vunpack.c.l.s4 1966171168
    %v1804 = vunpack.c.0.s8 %v1803
    %v1805 = vlaneseq
    %v1806 = vshrl.u32 %v1805, 7
    %v1807 = vsub.s32 %v1804, %v1806
    %v1808 = vrot.slane %v1786, %v1807
    %v1810 = vunpack.c.l.s4 1966171168
    %v1811 = vunpack.c.0.s8 %v1810
    %v1812 = vlaneseq
    %v1813 = vshrl.u32 %v1812, 7
    %v1814 = vsub.s32 %v1811, %v1813
    %v1815 = vrot.slane %v1787, %v1814
    %v1816 = vcombine.high %v1794, %v1794
    %v1817 = vcombine.high %v1801, %v1801
    %v1818 = vcombine.high %v1808, %v1808
    %v1819 = vcombine.high %v1815, %v1815
    %v1820 = vcombine.high %v34, %v34
    %v1822 = vunpack.c.l.s4 1966171168
    %v1823 = vunpack.c.0.s8 %v1822
    %v1824 = vlaneseq
    %v1825 = vshrl.u32 %v1824, 7
    %v1826 = vsub.s32 %v1823, %v1825
    %v1827 = vrot.slane %v34, %v1826
    %v1829 = vunpack.c.l.s4 1966171168
    %v1830 = vunpack.c.0.s8 %v1829
    %v1831 = vlaneseq
    %v1832 = vshrl.u32 %v1831, 7
    %v1833 = vsub.s32 %v1830, %v1832
    %v1834 = vrot.slane %v1820, %v1833
    %v1835 = vcombine.high %v1827, %v1827
    %v1836 = vcombine.high %v1834, %v1834
    %v1838 = vunpack.c.l.s4 1966171168
    %v1839 = vunpack.c.0.s8 %v1838
    %v1840 = vlaneseq
    %v1841 = vshrl.u32 %v1840, 7
    %v1842 = vsub.s32 %v1839, %v1841
    %v1843 = vrot.slane %v1827, %v1842
    %v1845 = vunpack.c.l.s4 1966171168
    %v1846 = vunpack.c.0.s8 %v1845
    %v1847 = vlaneseq
    %v1848 = vshrl.u32 %v1847, 7
    %v1849 = vsub.s32 %v1846, %v1848
    %v1850 = vrot.slane %v1834, %v1849
    %v1852 = vunpack.c.l.s4 1966171168
    %v1853 = vunpack.c.0.s8 %v1852
    %v1854 = vlaneseq
    %v1855 = vshrl.u32 %v1854, 7
    %v1856 = vsub.s32 %v1853, %v1855
    %v1857 = vrot.slane %v1835, %v1856
    %v1859 = vunpack.c.l.s4 1966171168
    %v1860 = vunpack.c.0.s8 %v1859
    %v1861 = vlaneseq
    %v1862 = vshrl.u32 %v1861, 7
    %v1863 = vsub.s32 %v1860, %v1862
    %v1864 = vrot.slane %v1836, %v1863
    %v1865 = vcombine.high %v1843, %v1843
    %v1866 = vcombine.high %v1850, %v1850
    %v1867 = vcombine.high %v1857, %v1857
    %v1868 = vcombine.high %v1864, %v1864
    %v1869 = vcombine.high %v35, %v35
    %v1871 = vunpack.c.l.s4 1966171168
    %v1872 = vunpack.c.0.s8 %v1871
    %v1873 = vlaneseq
    %v1874 = vshrl.u32 %v1873, 7
    %v1875 = vsub.s32 %v1872, %v1874
    %v1876 = vrot.slane %v35, %v1875
    %v1878 = vunpack.c.l.s4 1966171168
    %v1879 = vunpack.c.0.s8 %v1878
    %v1880 = vlaneseq
    %v1881 = vshrl.u32 %v1880, 7
    %v1882 = vsub.s32 %v1879, %v1881
    %v1883 = vrot.slane %v1869, %v1882
    %v1884 = vcombine.high %v1876, %v1876
    %v1885 = vcombine.high %v1883, %v1883
    %v1887 = vunpack.c.l.s4 1966171168
    %v1888 = vunpack.c.0.s8 %v1887
    %v1889 = vlaneseq
    %v1890 = vshrl.u32 %v1889, 7
    %v1891 = vsub.s32 %v1888, %v1890
    %v1892 = vrot.slane %v1876, %v1891
    %v1894 = vunpack.c.l.s4 1966171168
    %v1895 = vunpack.c.0.s8 %v1894
    %v1896 = vlaneseq
    %v1897 = vshrl.u32 %v1896, 7
    %v1898 = vsub.s32 %v1895, %v1897
    %v1899 = vrot.slane %v1883, %v1898
    %v1901 = vunpack.c.l.s4 1966171168
    %v1902 = vunpack.c.0.s8 %v1901
    %v1903 = vlaneseq
    %v1904 = vshrl.u32 %v1903, 7
    %v1905 = vsub.s32 %v1902, %v1904
    %v1906 = vrot.slane %v1884, %v1905
    %v1908 = vunpack.c.l.s4 1966171168
    %v1909 = vunpack.c.0.s8 %v1908
    %v1910 = vlaneseq
    %v1911 = vshrl.u32 %v1910, 7
    %v1912 = vsub.s32 %v1909, %v1911
    %v1913 = vrot.slane %v1885, %v1912
    %v1914 = vcombine.high %v1892, %v1892
    %v1915 = vcombine.high %v1899, %v1899
    %v1916 = vcombine.high %v1906, %v1906
    %v1917 = vcombine.high %v1913, %v1913
    %v1918 = vcombine.high %v36, %v36
    %v1920 = vunpack.c.l.s4 1966171168
    %v1921 = vunpack.c.0.s8 %v1920
    %v1922 = vlaneseq
    %v1923 = vshrl.u32 %v1922, 7
    %v1924 = vsub.s32 %v1921, %v1923
    %v1925 = vrot.slane %v36, %v1924
    %v1927 = vunpack.c.l.s4 1966171168
    %v1928 = vunpack.c.0.s8 %v1927
    %v1929 = vlaneseq
    %v1930 = vshrl.u32 %v1929, 7
    %v1931 = vsub.s32 %v1928, %v1930
    %v1932 = vrot.slane %v1918, %v1931
    %v1933 = vcombine.high %v1925, %v1925
    %v1934 = vcombine.high %v1932, %v1932
    %v1936 = vunpack.c.l.s4 1966171168
    %v1937 = vunpack.c.0.s8 %v1936
    %v1938 = vlaneseq
    %v1939 = vshrl.u32 %v1938, 7
    %v1940 = vsub.s32 %v1937, %v1939
    %v1941 = vrot.slane %v1925, %v1940
    %v1943 = vunpack.c.l.s4 1966171168
    %v1944 = vunpack.c.0.s8 %v1943
    %v1945 = vlaneseq
    %v1946 = vshrl.u32 %v1945, 7
    %v1947 = vsub.s32 %v1944, %v1946
    %v1948 = vrot.slane %v1932, %v1947
    %v1950 = vunpack.c.l.s4 1966171168
    %v1951 = vunpack.c.0.s8 %v1950
    %v1952 = vlaneseq
    %v1953 = vshrl.u32 %v1952, 7
    %v1954 = vsub.s32 %v1951, %v1953
    %v1955 = vrot.slane %v1933, %v1954
    %v1957 = vunpack.c.l.s4 1966171168
    %v1958 = vunpack.c.0.s8 %v1957
    %v1959 = vlaneseq
    %v1960 = vshrl.u32 %v1959, 7
    %v1961 = vsub.s32 %v1958, %v1960
    %v1962 = vrot.slane %v1934, %v1961
    %v1963 = vcombine.high %v1941, %v1941
    %v1964 = vcombine.high %v1948, %v1948
    %v1965 = vcombine.high %v1955, %v1955
    %v1966 = vcombine.high %v1962, %v1962
    %v1967 = vcombine.high %v37, %v37
    %v1969 = vunpack.c.l.s4 1966171168
    %v1970 = vunpack.c.0.s8 %v1969
    %v1971 = vlaneseq
    %v1972 = vshrl.u32 %v1971, 7
    %v1973 = vsub.s32 %v1970, %v1972
    %v1974 = vrot.slane %v37, %v1973
    %v1976 = vunpack.c.l.s4 1966171168
    %v1977 = vunpack.c.0.s8 %v1976
    %v1978 = vlaneseq
    %v1979 = vshrl.u32 %v1978, 7
    %v1980 = vsub.s32 %v1977, %v1979
    %v1981 = vrot.slane %v1967, %v1980
    %v1982 = vcombine.high %v1974, %v1974
    %v1983 = vcombine.high %v1981, %v1981
    %v1985 = vunpack.c.l.s4 1966171168
    %v1986 = vunpack.c.0.s8 %v1985
    %v1987 = vlaneseq
    %v1988 = vshrl.u32 %v1987, 7
    %v1989 = vsub.s32 %v1986, %v1988
    %v1990 = vrot.slane %v1974, %v1989
    %v1992 = vunpack.c.l.s4 1966171168
    %v1993 = vunpack.c.0.s8 %v1992
    %v1994 = vlaneseq
    %v1995 = vshrl.u32 %v1994, 7
    %v1996 = vsub.s32 %v1993, %v1995
    %v1997 = vrot.slane %v1981, %v1996
    %v1999 = vunpack.c.l.s4 1966171168
    %v2000 = vunpack.c.0.s8 %v1999
    %v2001 = vlaneseq
    %v2002 = vshrl.u32 %v2001, 7
    %v2003 = vsub.s32 %v2000, %v2002
    %v2004 = vrot.slane %v1982, %v2003
    %v2006 = vunpack.c.l.s4 1966171168
    %v2007 = vunpack.c.0.s8 %v2006
    %v2008 = vlaneseq
    %v2009 = vshrl.u32 %v2008, 7
    %v2010 = vsub.s32 %v2007, %v2009
    %v2011 = vrot.slane %v1983, %v2010
    %v2012 = vcombine.high %v1990, %v1990
    %v2013 = vcombine.high %v1997, %v1997
    %v2014 = vcombine.high %v2004, %v2004
    %v2015 = vcombine.high %v2011, %v2011
    %v2016 = vcombine.high %v38, %v38
    %v2018 = vunpack.c.l.s4 1966171168
    %v2019 = vunpack.c.0.s8 %v2018
    %v2020 = vlaneseq
    %v2021 = vshrl.u32 %v2020, 7
    %v2022 = vsub.s32 %v2019, %v2021
    %v2023 = vrot.slane %v38, %v2022
    %v2025 = vunpack.c.l.s4 1966171168
    %v2026 = vunpack.c.0.s8 %v2025
    %v2027 = vlaneseq
    %v2028 = vshrl.u32 %v2027, 7
    %v2029 = vsub.s32 %v2026, %v2028
    %v2030 = vrot.slane %v2016, %v2029
    %v2031 = vcombine.high %v2023, %v2023
    %v2032 = vcombine.high %v2030, %v2030
    %v2034 = vunpack.c.l.s4 1966171168
    %v2035 = vunpack.c.0.s8 %v2034
    %v2036 = vlaneseq
    %v2037 = vshrl.u32 %v2036, 7
    %v2038 = vsub.s32 %v2035, %v2037
    %v2039 = vrot.slane %v2023, %v2038
    %v2041 = vunpack.c.l.s4 1966171168
    %v2042 = vunpack.c.0.s8 %v2041
    %v2043 = vlaneseq
    %v2044 = vshrl.u32 %v2043, 7
    %v2045 = vsub.s32 %v2042, %v2044
    %v2046 = vrot.slane %v2030, %v2045
    %v2048 = vunpack.c.l.s4 1966171168
    %v2049 = vunpack.c.0.s8 %v2048
    %v2050 = vlaneseq
    %v2051 = vshrl.u32 %v2050, 7
    %v2052 = vsub.s32 %v2049, %v2051
    %v2053 = vrot.slane %v2031, %v2052
    %v2055 = vunpack.c.l.s4 1966171168
    %v2056 = vunpack.c.0.s8 %v2055
    %v2057 = vlaneseq
    %v2058 = vshrl.u32 %v2057, 7
    %v2059 = vsub.s32 %v2056, %v2058
    %v2060 = vrot.slane %v2032, %v2059
    %v2061 = vcombine.high %v2039, %v2039
    %v2062 = vcombine.high %v2046, %v2046
    %v2063 = vcombine.high %v2053, %v2053
    %v2064 = vcombine.high %v2060, %v2060
    %v2065 = vcombine.high %v39, %v39
    %v2067 = vunpack.c.l.s4 1966171168
    %v2068 = vunpack.c.0.s8 %v2067
    %v2069 = vlaneseq
    %v2070 = vshrl.u32 %v2069, 7
    %v2071 = vsub.s32 %v2068, %v2070
    %v2072 = vrot.slane %v39, %v2071
    %v2074 = vunpack.c.l.s4 1966171168
    %v2075 = vunpack.c.0.s8 %v2074
    %v2076 = vlaneseq
    %v2077 = vshrl.u32 %v2076, 7
    %v2078 = vsub.s32 %v2075, %v2077
    %v2079 = vrot.slane %v2065, %v2078
    %v2080 = vcombine.high %v2072, %v2072
    %v2081 = vcombine.high %v2079, %v2079
    %v2083 = vunpack.c.l.s4 1966171168
    %v2084 = vunpack.c.0.s8 %v2083
    %v2085 = vlaneseq
    %v2086 = vshrl.u32 %v2085, 7
    %v2087 = vsub.s32 %v2084, %v2086
    %v2088 = vrot.slane %v2072, %v2087
    %v2090 = vunpack.c.l.s4 1966171168
    %v2091 = vunpack.c.0.s8 %v2090
    %v2092 = vlaneseq
    %v2093 = vshrl.u32 %v2092, 7
    %v2094 = vsub.s32 %v2091, %v2093
    %v2095 = vrot.slane %v2079, %v2094
    %v2097 = vunpack.c.l.s4 1966171168
    %v2098 = vunpack.c.0.s8 %v2097
    %v2099 = vlaneseq
    %v2100 = vshrl.u32 %v2099, 7
    %v2101 = vsub.s32 %v2098, %v2100
    %v2102 = vrot.slane %v2080, %v2101
    %v2104 = vunpack.c.l.s4 1966171168
    %v2105 = vunpack.c.0.s8 %v2104
    %v2106 = vlaneseq
    %v2107 = vshrl.u32 %v2106, 7
    %v2108 = vsub.s32 %v2105, %v2107
    %v2109 = vrot.slane %v2081, %v2108
    %v2110 = vcombine.high %v2088, %v2088
    %v2111 = vcombine.high %v2095, %v2095
    %v2112 = vcombine.high %v2102, %v2102
    %v2113 = vcombine.high %v2109, %v2109
    %v2114 = vcombine.high %v40, %v40
    %v2116 = vunpack.c.l.s4 1966171168
    %v2117 = vunpack.c.0.s8 %v2116
    %v2118 = vlaneseq
    %v2119 = vshrl.u32 %v2118, 7
    %v2120 = vsub.s32 %v2117, %v2119
    %v2121 = vrot.slane %v40, %v2120
    %v2123 = vunpack.c.l.s4 1966171168
    %v2124 = vunpack.c.0.s8 %v2123
    %v2125 = vlaneseq
    %v2126 = vshrl.u32 %v2125, 7
    %v2127 = vsub.s32 %v2124, %v2126
    %v2128 = vrot.slane %v2114, %v2127
    %v2129 = vcombine.high %v2121, %v2121
    %v2130 = vcombine.high %v2128, %v2128
    %v2132 = vunpack.c.l.s4 1966171168
    %v2133 = vunpack.c.0.s8 %v2132
    %v2134 = vlaneseq
    %v2135 = vshrl.u32 %v2134, 7
    %v2136 = vsub.s32 %v2133, %v2135
    %v2137 = vrot.slane %v2121, %v2136
    %v2139 = vunpack.c.l.s4 1966171168
    %v2140 = vunpack.c.0.s8 %v2139
    %v2141 = vlaneseq
    %v2142 = vshrl.u32 %v2141, 7
    %v2143 = vsub.s32 %v2140, %v2142
    %v2144 = vrot.slane %v2128, %v2143
    %v2146 = vunpack.c.l.s4 1966171168
    %v2147 = vunpack.c.0.s8 %v2146
    %v2148 = vlaneseq
    %v2149 = vshrl.u32 %v2148, 7
    %v2150 = vsub.s32 %v2147, %v2149
    %v2151 = vrot.slane %v2129, %v2150
    %v2153 = vunpack.c.l.s4 1966171168
    %v2154 = vunpack.c.0.s8 %v2153
    %v2155 = vlaneseq
    %v2156 = vshrl.u32 %v2155, 7
    %v2157 = vsub.s32 %v2154, %v2156
    %v2158 = vrot.slane %v2130, %v2157
    %v2159 = vcombine.high %v2137, %v2137
    %v2160 = vcombine.high %v2144, %v2144
    %v2161 = vcombine.high %v2151, %v2151
    %v2162 = vcombine.high %v2158, %v2158
    %v2163 = vcombine.high %v41, %v41
    %v2165 = vunpack.c.l.s4 1966171168
    %v2166 = vunpack.c.0.s8 %v2165
    %v2167 = vlaneseq
    %v2168 = vshrl.u32 %v2167, 7
    %v2169 = vsub.s32 %v2166, %v2168
    %v2170 = vrot.slane %v41, %v2169
    %v2172 = vunpack.c.l.s4 1966171168
    %v2173 = vunpack.c.0.s8 %v2172
    %v2174 = vlaneseq
    %v2175 = vshrl.u32 %v2174, 7
    %v2176 = vsub.s32 %v2173, %v2175
    %v2177 = vrot.slane %v2163, %v2176
    %v2178 = vcombine.high %v2170, %v2170
    %v2179 = vcombine.high %v2177, %v2177
    %v2181 = vunpack.c.l.s4 1966171168
    %v2182 = vunpack.c.0.s8 %v2181
    %v2183 = vlaneseq
    %v2184 = vshrl.u32 %v2183, 7
    %v2185 = vsub.s32 %v2182, %v2184
    %v2186 = vrot.slane %v2170, %v2185
    %v2188 = vunpack.c.l.s4 1966171168
    %v2189 = vunpack.c.0.s8 %v2188
    %v2190 = vlaneseq
    %v2191 = vshrl.u32 %v2190, 7
    %v2192 = vsub.s32 %v2189, %v2191
    %v2193 = vrot.slane %v2177, %v2192
    %v2195 = vunpack.c.l.s4 1966171168
    %v2196 = vunpack.c.0.s8 %v2195
    %v2197 = vlaneseq
    %v2198 = vshrl.u32 %v2197, 7
    %v2199 = vsub.s32 %v2196, %v2198
    %v2200 = vrot.slane %v2178, %v2199
    %v2202 = vunpack.c.l.s4 1966171168
    %v2203 = vunpack.c.0.s8 %v2202
    %v2204 = vlaneseq
    %v2205 = vshrl.u32 %v2204, 7
    %v2206 = vsub.s32 %v2203, %v2205
    %v2207 = vrot.slane %v2179, %v2206
    %v2208 = vcombine.high %v2186, %v2186
    %v2209 = vcombine.high %v2193, %v2193
    %v2210 = vcombine.high %v2200, %v2200
    %v2211 = vcombine.high %v2207, %v2207
    %v2213 = vunpack.c.l.s4 1966171168
    %v2214 = vunpack.c.0.s8 %v2213
    %v2215 = vlaneseq
    %v2216 = vshrl.u32 %v2215, 7
    %v2217 = vsub.s32 %v2214, %v2216
    %v2218 = vrot.slane %v42, %v2217
    %v2219 = vcombine.high %v2218, %v2218
    %v2221 = vunpack.c.l.s4 1966171168
    %v2222 = vunpack.c.0.s8 %v2221
    %v2223 = vlaneseq
    %v2224 = vshrl.u32 %v2223, 7
    %v2225 = vsub.s32 %v2222, %v2224
    %v2226 = vrot.slane %v2218, %v2225
    %v2228 = vunpack.c.l.s4 1966171168
    %v2229 = vunpack.c.0.s8 %v2228
    %v2230 = vlaneseq
    %v2231 = vshrl.u32 %v2230, 7
    %v2232 = vsub.s32 %v2229, %v2231
    %v2233 = vrot.slane %v2219, %v2232
    %v3900 = vunpack.c.l.b16 %v43
    %v3901 = vunpack.c.l.b16 %v44
    %v3902 = vunpack.c.l.b16 %v45
    %v3903 = vunpack.c.l.b16 %v46
    %v3904 = vunpack.c.l.b16 %v47
    %v3905 = vunpack.c.l.b16 %v48
    %v3906 = vunpack.c.l.b16 %v49
    %v3907 = vunpack.c.l.b16 %v50
    %v3908 = vunpack.c.l.b16 %v51
    %v3909 = vunpack.c.l.b16 %v52
    %v3910 = vunpack.c.l.b16 %v53
    %v3911 = vunpack.c.l.b16 %v54
    %v3912 = vunpack.c.l.b16 %v55
    %v3913 = vunpack.c.l.b16 %v56
    %v3914 = vunpack.c.l.b16 %v57
    %v3915 = vunpack.c.l.b16 %v58
    %v3916 = vunpack.c.l.b16 %v59
    %v3917 = vunpack.c.l.b16 %v60
    %v3918 = vunpack.c.l.b16 %v61
    %v3919 = vunpack.c.l.b16 %v62
    %v3920 = vunpack.c.l.b16 %v63
    %v3921 = vunpack.c.l.b16 %v64
    %v3922 = vunpack.c.l.b16 %v65
    %v3923 = vunpack.c.l.b16 %v66
    %v3924 = vunpack.c.l.b16 %v67
    %v3925 = vunpack.c.l.b16 %v68
    %v3926 = vunpack.c.l.b16 %v69
    %v3927 = vunpack.c.l.b16 %v70
    %v3928 = vunpack.c.l.b16 %v71
    %v3929 = vunpack.c.l.b16 %v72
    %v3930 = vunpack.c.l.b16 %v73
    %v3931 = vunpack.c.l.b16 %v74
    %v3932 = vunpack.c.l.b16 %v75
    %v3933 = vunpack.c.l.b16 %v76
    %v3934 = vunpack.c.l.b16 %v77
    %v3935 = vunpack.c.l.b16 %v78
    %v3936 = vunpack.c.l.b16 %v79
    %v3937 = vunpack.c.l.b16 %v80
    %v3938 = vunpack.c.l.b16 %v81
    %v3939 = vunpack.c.l.b16 %v82
    %v3940 = vunpack.c.l.b16 %v83
    %v3941 = vunpack.c.l.b16 %v84
    %v3942 = vunpack.c.l.b16 %v85
    %v3943 = vunpack.c.l.b16 %v86
    %v3944 = vunpack.c.l.b16 %v87
    %v3945 = vunpack.c.l.b16 %v88
    %v3946 = vunpack.c.l.b16 %v89
    %v3947 = vunpack.c.l.b16 %v90
    %v3948 = vunpack.c.l.b16 %v91
    %v3949 = vunpack.c.l.b16 %v92
    %v3950 = vunpack.c.l.b16 %v93
    %v3951 = vunpack.c.l.b16 %v94
    %v3952 = vunpack.c.l.b16 %v95
    %v3953 = vunpack.c.l.b16 %v96
    %v3954 = vunpack.c.l.b16 %v97
    %v3955 = vunpack.c.l.b16 %v98
    %v3956 = vunpack.c.l.b16 %v99
    %v3957 = vunpack.c.l.b16 %v100
    %v3958 = vunpack.c.l.b16 %v101
    %v3959 = vunpack.c.l.b16 %v102
    %v3960 = vunpack.c.l.b16 %v103
    %v3961 = vunpack.c.l.b16 %v104
    %v3962 = vunpack.c.l.b16 %v105
    %v3963 = vunpack.c.l.b16 %v106
    %v3964 = vunpack.c.l.b16 %v107
    %v3965 = vunpack.c.l.b16 %v108
    %v3966 = vunpack.c.l.b16 %v109
    %v3967 = vunpack.c.l.b16 %v110
    %v3968 = vunpack.c.l.b16 %v111
    %v3969 = vunpack.c.l.b16 %v112
    %v3970 = vunpack.c.l.b16 %v113
    %v3971 = vunpack.c.l.b16 %v114
    %v3972 = vunpack.c.l.b16 %v115
    %v3973 = vunpack.c.l.b16 %v116
    %v3974 = vunpack.c.l.b16 %v117
    %v3975 = vunpack.c.l.b16 %v118
    %v3976 = vunpack.c.l.b16 %v119
    %v3977 = vunpack.c.l.b16 %v120
    %v3978 = vunpack.c.l.b16 %v121
    %v3979 = vunpack.c.l.b16 %v122
    %v3980 = vunpack.c.l.b16 %v123
    %v3981 = vunpack.c.l.b16 %v124
    %v3982 = vunpack.c.l.b16 %v125
    %v3983 = vunpack.c.l.b16 %v126
    %v3984 = vunpack.c.l.b16 %v127
    %v3985 = vunpack.c.l.b16 %v128
    %v3986 = vunpack.c.l.b16 %v129
    %v3987 = vunpack.c.l.b16 %v130
    %v3988 = vunpack.c.l.b16 %v131
    %v3989 = vunpack.c.l.b16 %v132
    %v3990 = vunpack.c.l.b16 %v133
    %v3991 = vunpack.c.l.b16 %v134
    %v3992 = vunpack.c.l.b16 %v135
    %v3993 = vunpack.c.l.b16 %v136
    %v3994 = vunpack.c.l.b16 %v137
    %v3995 = vunpack.c.l.b16 %v138
    %v3996 = vunpack.c.l.b16 %v139
    %v3997 = vunpack.c.l.b16 %v140
    %v3998 = vunpack.c.l.b16 %v141
    %v3999 = vunpack.c.l.b16 %v142
    %v4000 = vunpack.c.l.b16 %v143
    %v4001 = vunpack.c.l.b16 %v144
    %v4002 = vunpack.c.l.b16 %v145
    %v4003 = vunpack.c.l.b16 %v146
    %v4004 = vunpack.c.l.b16 %v147
    %v4005 = vunpack.c.l.b16 %v148
    %v4006 = vunpack.c.l.b16 %v149
    %v4007 = vunpack.c.l.b16 %v150
    %v4008 = vunpack.c.l.b16 %v151
    %v4009 = vunpack.c.l.b16 %v152
    %v4010 = vunpack.c.l.b16 %v153
    %v4011 = vunpack.c.l.b16 %v154
    %v4012 = vunpack.c.l.b16 %v155
    %v4013 = vunpack.c.l.b16 %v156
    %v4014 = vunpack.c.l.b16 %v157
    %v4015 = vunpack.c.l.b16 %v158
    %v4016 = vunpack.c.l.b16 %v159
    %v4017 = vunpack.c.l.b16 %v160
    %v4018 = vunpack.c.l.b16 %v161
    %v4019 = vunpack.c.l.b16 %v162
    %v4020 = vunpack.c.l.b16 %v163
    %v4021 = vunpack.c.l.b16 %v164
    %v4022 = vunpack.c.l.b16 %v165
    %v4023 = vunpack.c.l.b16 %v166
    %v4024 = vunpack.c.l.b16 %v167
    %v4025 = vunpack.c.l.b16 %v168
    %v4026 = vunpack.c.l.b16 %v169
    %v4027 = vunpack.c.l.b16 %v170
    %v4028 = vunpack.c.l.b16 %v171
    %v4029 = vunpack.c.l.b16 %v172
    %v4030 = vunpack.c.l.b16 %v173
    %v4031 = vunpack.c.l.b16 %v174
    %v4032 = vunpack.c.l.b16 %v175
    %v4033 = vunpack.c.l.b16 %v176
    %v4034 = vunpack.c.l.b16 %v177
    %v4035 = vunpack.c.l.b16 %v178
    %v4036 = vunpack.c.l.b16 %v179
    %v4037 = vunpack.c.l.b16 %v180
    %v4038 = vunpack.c.l.b16 %v181
    %v4039 = vunpack.c.l.b16 %v182
    %v4040 = vunpack.c.l.b16 %v183
    %v4041 = vunpack.c.l.b16 %v184
    %v4042 = vunpack.c.l.b16 %v185
    %v4043 = vunpack.c.l.b16 %v186
    %v4044 = vunpack.c.l.b16 %v187
    %v4045 = vunpack.c.l.b16 %v188
    %v4046 = vunpack.c.l.b16 %v189
    %v4047 = vunpack.c.l.b16 %v190
    %v4048 = vunpack.c.l.b16 %v191
    %v4049 = vunpack.c.l.b16 %v192
    %v4050 = vunpack.c.l.b16 %v193
    %v4051 = vunpack.c.l.b16 %v194
    %v4052 = vunpack.c.l.b16 %v195
    %v4053 = vunpack.c.l.b16 %v196
    %v4054 = vunpack.c.l.b16 %v197
    %v4055 = vunpack.c.l.b16 %v198
    %v4056 = vunpack.c.l.b16 %v199
    %v4057 = vunpack.c.l.b16 %v200
    %v4058 = vunpack.c.l.b16 %v201
    %v4059 = vunpack.c.l.b16 %v202
    %v4060 = vunpack.c.l.b16 %v203
    %v4061 = vunpack.c.l.b16 %v204
    %v4062 = vunpack.c.l.b16 %v205
    %v4063 = vunpack.c.l.b16 %v206
    %v4064 = vunpack.c.l.b16 %v207
    %v4065 = vunpack.c.l.b16 %v208
    %v4066 = vunpack.c.l.b16 %v209
    %v4067 = vunpack.c.l.b16 %v210
    %v4068 = vunpack.c.l.b16 %v211
    %v4069 = vunpack.c.l.b16 %v212
    %v4070 = vunpack.c.l.b16 %v213
    %v4071 = vunpack.c.l.b16 %v214
    %v4072 = vunpack.c.l.b16 %v215
    %v4073 = vunpack.c.l.b16 %v216
    %v4074 = vunpack.c.l.b16 %v217
    %v4075 = vunpack.c.l.b16 %v218
    %v4076 = vunpack.c.l.b16 %v219
    %v4077 = vunpack.c.l.b16 %v220
    %v4078 = vunpack.c.l.b16 %v221
    %v4079 = vunpack.c.l.b16 %v222
    %v4080 = vunpack.c.l.b16 %v223
    %v4081 = vunpack.c.l.b16 %v224
    %v4082 = vunpack.c.l.b16 %v225
    %v4083 = vunpack.c.l.b16 %v226
    %v4084 = vunpack.c.l.b16 %v227
    %v4085 = vunpack.c.l.b16 %v228
    %v4086 = vunpack.c.l.b16 %v229
    %v4087 = vunpack.c.l.b16 %v230
    %v4088 = vunpack.c.l.b16 %v231
    %v4089 = vunpack.c.l.b16 %v232
    %v4090 = vunpack.c.l.b16 %v233
    %v4091 = vunpack.c.l.b16 %v234
    %v4092 = vunpack.c.l.b16 %v235
    %v4093 = vunpack.c.l.b16 %v236
    %v4094 = vunpack.c.l.b16 %v237
    %v4095 = vunpack.c.l.b16 %v238
    %v4096 = vunpack.c.l.b16 %v239
    %v4097 = vunpack.c.l.b16 %v240
    %v4098 = vunpack.c.l.b16 %v241
    %v4099 = vunpack.c.l.b16 %v242
    %v4100 = vunpack.c.l.b16 %v243
    %v4101 = vunpack.c.l.b16 %v244
    %v4102 = vunpack.c.l.b16 %v245
    %v4103 = vunpack.c.l.b16 %v246
    %v4104 = vunpack.c.l.b16 %v247
    %v4105 = vunpack.c.l.b16 %v248
    %v4106 = vunpack.c.l.b16 %v249
    %v4107 = vunpack.c.l.b16 %v250
    %v4108 = vunpack.c.l.b16 %v251
    %v4109 = vunpack.c.l.b16 %v252
    %v4110 = vunpack.c.l.b16 %v253
    %v4111 = vunpack.c.l.b16 %v254
    %v4112 = vunpack.c.l.b16 %v255
    %v4113 = vunpack.c.l.b16 %v256
    %v4114 = vunpack.c.l.b16 %v257
    %v4115 = vunpack.c.l.b16 %v258
    %v4116 = vunpack.c.l.b16 %v259
    %v4117 = vunpack.c.l.b16 %v260
    %v4118 = vunpack.c.l.b16 %v261
    %v4119 = vunpack.c.l.b16 %v262
    %v4120 = vunpack.c.l.b16 %v263
    %v4121 = vunpack.c.l.b16 %v264
    %v4122 = vunpack.c.l.b16 %v265
    %v4123 = vunpack.c.l.b16 %v266
    %v4124 = vunpack.c.l.b16 %v267
    %v4125 = vunpack.c.l.b16 %v268
    %v4126 = vunpack.c.l.b16 %v269
    %v4127 = vunpack.c.l.b16 %v270
    %v4128 = vunpack.c.l.b16 %v271
    %v4129 = vunpack.c.l.b16 %v272
    %v4130 = vunpack.c.l.b16 %v273
    %v4131 = vunpack.c.l.b16 %v274
    %v4132 = vunpack.c.l.b16 %v275
    %v4133 = vunpack.c.l.b16 %v276
    %v4134 = vunpack.c.l.b16 %v277
    %v4135 = vunpack.c.l.b16 %v278
    %v4136 = vunpack.c.l.b16 %v279
    %v4137 = vunpack.c.l.b16 %v280
    %v4138 = vunpack.c.l.b16 %v281
    %v4139 = vunpack.c.l.b16 %v282
    %v4140 = vunpack.c.l.b16 %v283
    %v4141 = vunpack.c.l.b16 %v284
    %v4142 = vunpack.c.l.b16 %v285
    %v4143 = vunpack.c.l.b16 %v286
    %v4144 = vunpack.c.l.b16 %v287
    %v4145 = vunpack.c.l.b16 %v288
    %v4146 = vunpack.c.l.b16 %v289
    %v4147 = vunpack.c.l.b16 %v290
    %v4148 = vunpack.c.l.b16 %v291
    %v4149 = vunpack.c.l.b16 %v292
    %v4150 = vunpack.c.l.b16 %v293
    %v4151 = vunpack.c.l.b16 %v294
    %v4152 = vunpack.c.l.b16 %v295
    %v4153 = vunpack.c.l.b16 %v296
    %v4154 = vunpack.c.l.b16 %v297
    %v4155 = vunpack.c.l.b16 %v298
    %v4156 = vunpack.c.l.b16 %v299
    %v4157 = vunpack.c.l.b16 %v300
    %v4158 = vunpack.c.l.b16 %v301
    %v4159 = vunpack.c.l.b16 %v302
    %v4160 = vunpack.c.l.b16 %v303
    %v4161 = vunpack.c.l.b16 %v304
    %v4162 = vunpack.c.l.b16 %v305
    %v4163 = vunpack.c.l.b16 %v306
    %v4164 = vunpack.c.l.b16 %v307
    %v4165 = vunpack.c.l.b16 %v308
    %v4166 = vunpack.c.l.b16 %v309
    %v4167 = vunpack.c.l.b16 %v310
    %v4168 = vunpack.c.l.b16 %v311
    %v4169 = vunpack.c.l.b16 %v312
    %v4170 = vunpack.c.l.b16 %v313
    %v4171 = vunpack.c.l.b16 %v314
    %v4172 = vunpack.c.l.b16 %v315
    %v4173 = vunpack.c.l.b16 %v316
    %v4174 = vunpack.c.l.b16 %v317
    %v4175 = vunpack.c.l.b16 %v318
    %v4176 = vunpack.c.l.b16 %v319
    %v4177 = vunpack.c.l.b16 %v320
    %v4178 = vunpack.c.l.b16 %v321
    %v4179 = vunpack.c.l.b16 %v322
    %v4180 = vunpack.c.l.b16 %v323
    %v4181 = vunpack.c.l.b16 %v324
    %v4182 = vunpack.c.l.b16 %v325
    %v4183 = vunpack.c.l.b16 %v326
    %v4184 = vunpack.c.l.b16 %v327
    %v4185 = vunpack.c.l.b16 %v328
    %v4186 = vunpack.c.l.b16 %v329
    %v4187 = vunpack.c.l.b16 %v330
    %v4188 = vunpack.c.l.b16 %v331
    %v4189 = vunpack.c.l.b16 %v332
    %v4190 = vunpack.c.l.b16 %v333
    %v4191 = vunpack.c.l.b16 %v334
    %v4192 = vunpack.c.l.b16 %v335
    %v4193 = vunpack.c.l.b16 %v336
    %v4194 = vunpack.c.l.b16 %v337
    %v4195 = vunpack.c.l.b16 %v338
    %v4196 = vunpack.c.l.b16 %v339
    %v4197 = vunpack.c.l.b16 %v340
    %v4198 = vunpack.c.l.b16 %v341
    %v4199 = vunpack.c.l.b16 %v342
    %v4200 = vunpack.c.l.b16 %v343
    %v4201 = vunpack.c.l.b16 %v344
    %v4202 = vunpack.c.l.b16 %v345
    %v4203 = vunpack.c.l.b16 %v346
    %v4204 = vunpack.c.l.b16 %v347
    %v4205 = vunpack.c.l.b16 %v348
    %v4206 = vunpack.c.l.b16 %v349
    %v4207 = vunpack.c.l.b16 %v350
    %v4208 = vunpack.c.l.b16 %v351
    %v4209 = vunpack.c.l.b16 %v352
    %v4210 = vunpack.c.l.b16 %v353
    %v4211 = vunpack.c.l.b16 %v354
    %v4212 = vunpack.c.l.b16 %v355
    %v4213 = vunpack.c.l.b16 %v356
    %v4214 = vunpack.c.l.b16 %v357
    %v4215 = vunpack.c.l.b16 %v358
    %v4216 = vunpack.c.l.b16 %v359
    %v4217 = vunpack.c.l.b16 %v360
    %v4218 = vunpack.c.l.b16 %v361
    %v4219 = vunpack.c.l.b16 %v362
    %v4220 = vunpack.c.l.b16 %v363
    %v4221 = vunpack.c.l.b16 %v364
    %v4222 = vunpack.c.l.b16 %v365
    %v4223 = vunpack.c.l.b16 %v366
    %v4224 = vunpack.c.l.b16 %v367
    %v4225 = vunpack.c.l.b16 %v368
    %v4226 = vunpack.c.l.b16 %v369
    %v4227 = vunpack.c.l.b16 %v370
    %v4228 = vunpack.c.l.b16 %v371
    %v4229 = vunpack.c.l.b16 %v372
    %v4230 = vunpack.c.l.b16 %v373
    %v4231 = vunpack.c.l.b16 %v374
    %v4232 = vunpack.c.l.b16 %v375
    %v4233 = vunpack.c.l.b16 %v376
    %v4234 = vunpack.c.l.b16 %v377
    %v4235 = vunpack.c.l.b16 %v378
    %v4236 = vunpack.c.l.b16 %v379
    %v4237 = vunpack.c.l.b16 %v380
    %v4238 = vunpack.c.l.b16 %v381
    %v4239 = vunpack.c.l.b16 %v382
    %v4240 = vunpack.c.l.b16 %v383
    %v4241 = vunpack.c.l.b16 %v384
    %v4242 = vunpack.c.l.b16 %v385
    %v4243 = vunpack.c.l.b16 %v386
    %v4244 = vunpack.c.l.b16 %v387
    %v4245 = vunpack.c.l.b16 %v388
    %v4246 = vunpack.c.l.b16 %v389
    %v4247 = vunpack.c.l.b16 %v390
    %v4248 = vunpack.c.l.b16 %v391
    %v4249 = vunpack.c.l.b16 %v392
    %v4250 = vunpack.c.l.b16 %v393
    %v4251 = vunpack.c.l.b16 %v394
    %v4252 = vunpack.c.l.b16 %v395
    %v4253 = vunpack.c.l.b16 %v396
    %v4254 = vunpack.c.l.b16 %v397
    %v4255 = vunpack.c.l.b16 %v398
    %v4256 = vunpack.c.l.b16 %v399
    %v4257 = vunpack.c.l.b16 %v400
    %v4258 = vunpack.c.l.b16 %v401
    %v4259 = vunpack.c.l.b16 %v402
    %v4260 = vunpack.c.l.b16 %v403
    %v4261 = vunpack.c.l.b16 %v404
    %v4262 = vunpack.c.l.b16 %v405
    %v4263 = vunpack.c.l.b16 %v406
    %v4264 = vunpack.c.l.b16 %v407
    %v4265 = vunpack.c.l.b16 %v408
    %v4266 = vunpack.c.l.b16 %v409
    %v4267 = vunpack.c.l.b16 %v410
    %v4268 = vunpack.c.l.b16 %v411
    %v4269 = vunpack.c.l.b16 %v412
    %v4270 = vunpack.c.l.b16 %v413
    %v4271 = vunpack.c.l.b16 %v414
    %v4272 = vunpack.c.l.b16 %v415
    %v4273 = vunpack.c.l.b16 %v416
    %v4274 = vunpack.c.l.b16 %v417
    %v4275 = vunpack.c.l.b16 %v418
    %v4276 = vunpack.c.l.b16 %v419
    %v4277 = vunpack.c.l.b16 %v420
    %v4278 = vunpack.c.l.b16 %v421
    %v4279 = vunpack.c.l.b16 %v422
    %v4280 = vunpack.c.l.b16 %v423
    %v4281 = vunpack.c.l.b16 %v424
    %v4282 = vunpack.c.l.b16 %v425
    %v4283 = vunpack.c.l.b16 %v426
    %v4284 = vunpack.c.l.b16 %v427
    %v4285 = vunpack.c.l.b16 %v428
    %v4286 = vunpack.c.l.b16 %v429
    %v4287 = vunpack.c.l.b16 %v430
    %v4288 = vunpack.c.l.b16 %v431
    %v4289 = vunpack.c.l.b16 %v432
    %v4290 = vunpack.c.l.b16 %v433
    %v4291 = vunpack.c.l.b16 %v434
    %v4292 = vunpack.c.l.b16 %v435
    %v4293 = vunpack.c.l.b16 %v436
    %v4294 = vunpack.c.l.b16 %v437
    %v4295 = vunpack.c.l.b16 %v438
    %v4296 = vunpack.c.l.b16 %v439
    %v4297 = vunpack.c.l.b16 %v440
    %v4298 = vunpack.c.l.b16 %v441
    %v4299 = vunpack.c.l.b16 %v442
    %v4300 = vunpack.c.l.b16 %v443
    %v4301 = vunpack.c.l.b16 %v444
    %v4302 = vunpack.c.l.b16 %v445
    %v4303 = vunpack.c.l.b16 %v446
    %v4304 = vunpack.c.l.b16 %v447
    %v4305 = vunpack.c.l.b16 %v448
    %v4306 = vunpack.c.l.b16 %v449
    %v4307 = vunpack.c.l.b16 %v450
    %v4308 = vunpack.c.l.b16 %v451
    %v4309 = vunpack.c.l.b16 %v452
    %v4310 = vunpack.c.l.b16 %v453
    %v4311 = vunpack.c.l.b16 %v454
    %v4312 = vunpack.c.l.b16 %v455
    %v4313 = vunpack.c.l.b16 %v456
    %v4314 = vunpack.c.l.b16 %v457
    %v4315 = vunpack.c.l.b16 %v458
    %v4316 = vunpack.c.l.b16 %v459
    %v4317 = vunpack.c.l.b16 %v460
    %v4318 = vunpack.c.l.b16 %v461
    %v4319 = vunpack.c.l.b16 %v462
    %v4320 = vunpack.c.l.b16 %v463
    %v4321 = vunpack.c.l.b16 %v464
    %v4322 = vunpack.c.l.b16 %v465
    %v4323 = vunpack.c.l.b16 %v466
    %v4324 = vunpack.c.l.b16 %v467
    %v4325 = vunpack.c.l.b16 %v468
    %v4326 = vunpack.c.l.b16 %v469
    %v4327 = vunpack.c.l.b16 %v470
    %v4328 = vunpack.c.l.b16 %v471
    %v4329 = vunpack.c.l.b16 %v472
    %v4330 = vunpack.c.l.b16 %v473
    %v4331 = vunpack.c.l.b16 %v474
    %v4332 = vunpack.c.l.b16 %v475
    %v4333 = vunpack.c.l.b16 %v476
    %v4334 = vunpack.c.l.b16 %v477
    %v4335 = vunpack.c.l.b16 %v478
    %v4336 = vunpack.c.l.b16 %v479
    %v4337 = vunpack.c.l.b16 %v480
    %v4338 = vunpack.c.l.b16 %v481
    %v4339 = vunpack.c.l.b16 %v482
    %v4340 = vunpack.c.l.b16 %v483
    %v4341 = vunpack.c.l.b16 %v484
    %v4342 = vunpack.c.l.b16 %v485
    %v4343 = vunpack.c.l.b16 %v486
    %v4344 = vunpack.c.l.b16 %v487
    %v4345 = vunpack.c.l.b16 %v488
    %v4346 = vunpack.c.l.b16 %v489
    %v4347 = vunpack.c.l.b16 %v490
    %v4348 = vunpack.c.l.b16 %v491
    %v4349 = vunpack.c.l.b16 %v492
    %v4350 = vunpack.c.l.b16 %v493
    %v4351 = vunpack.c.l.b16 %v494
    %v4352 = vunpack.c.l.b16 %v495
    %v4353 = vunpack.c.l.b16 %v496
    %v4354 = vunpack.c.l.b16 %v497
    %v4355 = vunpack.c.l.b16 %v498
    %v4356 = vunpack.c.l.b16 %v499
    %v4357 = vunpack.c.l.b16 %v500
    %v4358 = vunpack.c.l.b16 %v501
    %v4359 = vunpack.c.l.b16 %v502
    %v4360 = vunpack.c.l.b16 %v503
    %v4361 = vunpack.c.l.b16 %v504
    %v4362 = vunpack.c.l.b16 %v505
    %v4363 = vunpack.c.l.b16 %v506
    %v4364 = vunpack.c.l.b16 %v507
    %v4365 = vunpack.c.l.b16 %v508
    %v4366 = vunpack.c.l.b16 %v509
    %v4367 = vunpack.c.l.b16 %v510
    %v4368 = vunpack.c.l.b16 %v511
    %v4369 = vunpack.c.l.b16 %v512
    %v4370 = vunpack.c.l.b16 %v513
    %v4371 = vunpack.c.l.b16 %v514
    %v4372 = vunpack.c.l.b16 %v515
    %v4373 = vunpack.c.l.b16 %v516
    %v4374 = vunpack.c.l.b16 %v517
    %v4375 = vunpack.c.l.b16 %v518
    %v4376 = vunpack.c.l.b16 %v519
    %v4377 = vunpack.c.l.b16 %v520
    %v4378 = vunpack.c.l.b16 %v521
    %v4379 = vunpack.c.l.b16 %v522
    %v4380 = vunpack.c.l.b16 %v523
    %v4381 = vunpack.c.l.b16 %v524
    %v4382 = vunpack.c.l.b16 %v525
    %v4383 = vunpack.c.l.b16 %v526
    %v4384 = vunpack.c.l.b16 %v527
    %v4385 = vunpack.c.l.b16 %v528
    %v4386 = vunpack.c.l.b16 %v529
    %v4387 = vunpack.c.l.b16 %v530
    %v4388 = vunpack.c.l.b16 %v531
    %v4389 = vunpack.c.l.b16 %v532
    %v4390 = vunpack.c.l.b16 %v533
    %v4391 = vunpack.c.l.b16 %v534
    %v4392 = vunpack.c.l.b16 %v535
    %v4393 = vunpack.c.l.b16 %v536
    %v4394 = vunpack.c.l.b16 %v537
    %v4395 = vunpack.c.l.b16 %v538
    %v4396 = vunpack.c.l.b16 %v539
    %v4397 = vunpack.c.l.b16 %v540
    %v4398 = vunpack.c.l.b16 %v541
    %v4399 = vunpack.c.l.b16 %v542
    %v4400 = vunpack.c.l.b16 %v543
    %v4401 = vunpack.c.l.b16 %v544
    %v4402 = vunpack.c.l.b16 %v545
    %v4403 = vunpack.c.l.b16 %v546
    %v4404 = vunpack.c.l.b16 %v547
    %v4405 = vunpack.c.l.b16 %v548
    %v4406 = vunpack.c.l.b16 %v549
    %v4407 = vunpack.c.l.b16 %v550
    %v4408 = vunpack.c.l.b16 %v551
    %v4409 = vunpack.c.l.b16 %v552
    %v4410 = vunpack.c.l.b16 %v553
    %v4411 = vunpack.c.l.b16 %v554
    %v4412 = vunpack.c.l.b16 %v555
    %v4413 = vunpack.c.l.b16 %v556
    %v4414 = vunpack.c.l.b16 %v557
    %v4415 = vunpack.c.l.b16 %v558
    %v4416 = vunpack.c.l.b16 %v559
    %v4417 = vunpack.c.l.b16 %v560
    %v4418 = vunpack.c.l.b16 %v561
    %v4419 = vunpack.c.l.b16 %v562
    %v4420 = vunpack.c.l.b16 %v563
    %v4421 = vunpack.c.l.b16 %v564
    %v4422 = vunpack.c.l.b16 %v565
    %v4423 = vunpack.c.l.b16 %v566
    %v4424 = vunpack.c.l.b16 %v567
    %v4425 = vunpack.c.l.b16 %v568
    %v4426 = vunpack.c.l.b16 %v569
    %v4427 = vunpack.c.l.b16 %v570
    %v4428 = vunpack.c.l.b16 %v571
    %v4429 = vunpack.c.l.b16 %v572
    %v4430 = vunpack.c.l.b16 %v573
    %v4431 = vunpack.c.l.b16 %v574
    %v4432 = vunpack.c.l.b16 %v575
    %v4433 = vunpack.c.l.b16 %v576
    %v4434 = vunpack.c.l.b16 %v577
    %v4435 = vunpack.c.l.b16 %v578
    %v4436 = vunpack.c.l.b16 %v579
    %v4437 = vunpack.c.l.b16 %v580
    %v4438 = vunpack.c.l.b16 %v581
    %v4439 = vunpack.c.l.b16 %v582
    %v4440 = vunpack.c.l.b16 %v583
    %v4441 = vunpack.c.l.b16 %v584
    %v4442 = vunpack.c.l.b16 %v585
    %v4443 = vunpack.c.l.b16 %v586
    %v4444 = vunpack.c.l.b16 %v587
    %v4445 = vunpack.c.l.b16 %v588
    %v4446 = vunpack.c.l.b16 %v589
    %v4447 = vunpack.c.l.b16 %v590
    %v4448 = vunpack.c.l.b16 %v591
    %v4449 = vunpack.c.l.b16 %v592
    %v4450 = vunpack.c.l.b16 %v593
    %v4451 = vunpack.c.l.b16 %v594
    %v4452 = vunpack.c.l.b16 %v595
    %v4453 = vunpack.c.l.b16 %v596
    %v4454 = vunpack.c.l.b16 %v597
    %v4455 = vunpack.c.l.b16 %v598
    %v4456 = vunpack.c.l.b16 %v599
    %v4457 = vunpack.c.l.b16 %v600
    %v4458 = vunpack.c.l.b16 %v601
    %v4459 = vunpack.c.l.b16 %v602
    %v4460 = vunpack.c.l.b16 %v603
    %v4461 = vunpack.c.l.b16 %v604
    %v4462 = vunpack.c.l.b16 %v605
    %v4463 = vunpack.c.l.b16 %v606
    %v4464 = vunpack.c.l.b16 %v607
    %v4465 = vunpack.c.l.b16 %v608
    %v4466 = vunpack.c.l.b16 %v609
    %v4467 = vunpack.c.l.b16 %v610
    %v4468 = vunpack.c.l.b16 %v611
    %v4469 = vunpack.c.l.b16 %v612
    %v4470 = vunpack.c.l.b16 %v613
    %v4471 = vunpack.c.l.b16 %v614
    %v4472 = vunpack.c.l.b16 %v615
    %v4473 = vunpack.c.l.b16 %v616
    %v4474 = vunpack.c.l.b16 %v617
    %v4475 = vunpack.c.l.b16 %v618
    %v4476 = vunpack.c.l.b16 %v619
    %v4477 = vunpack.c.l.b16 %v620
    %v4478 = vunpack.c.l.b16 %v621
    %v4479 = vunpack.c.l.b16 %v622
    %v4480 = vunpack.c.l.b16 %v623
    %v4481 = vunpack.c.l.b16 %v624
    %v4482 = vunpack.c.l.b16 %v625
    %v4483 = vunpack.c.l.b16 %v626
    %v4484 = vunpack.c.l.b16 %v627
    %v4485 = vunpack.c.l.b16 %v628
    %v4486 = vunpack.c.l.b16 %v629
    %v4487 = vunpack.c.l.b16 %v630
    %v4488 = vunpack.c.l.b16 %v631
    %v4489 = vunpack.c.l.b16 %v632
    %v4490 = vunpack.c.l.b16 %v633
    %v4491 = vunpack.c.l.b16 %v634
    %v4492 = vunpack.c.l.b16 %v635
    %v4493 = vunpack.c.l.b16 %v636
    %v4494 = vunpack.c.l.b16 %v637
    %v4495 = vunpack.c.l.b16 %v638
    %v4496 = vunpack.c.l.b16 %v639
    %v4497 = vunpack.c.l.b16 %v640
    %v4498 = vunpack.c.l.b16 %v641
    %v4499 = vunpack.c.l.b16 %v642
    %v4500 = vunpack.c.l.b16 %v643
    %v4501 = vunpack.c.l.b16 %v644
    %v4502 = vunpack.c.l.b16 %v645
    %v4503 = vunpack.c.l.b16 %v646
    %v4504 = vunpack.c.l.b16 %v647
    %v4505 = vunpack.c.l.b16 %v648
    %v4506 = vunpack.c.l.b16 %v649
    %v4507 = vunpack.c.l.b16 %v650
    %v4508 = vunpack.c.l.b16 %v651
    %v4509 = vunpack.c.l.b16 %v652
    %v4510 = vunpack.c.l.b16 %v653
    %v4511 = vunpack.c.l.b16 %v654
    %v4512 = vunpack.c.l.b16 %v655
    %v4513 = vunpack.c.l.b16 %v656
    %v4514 = vunpack.c.l.b16 %v657
    %v4515 = vunpack.c.l.b16 %v658
    %v4516 = vunpack.c.l.b16 %v659
    %v4517 = vunpack.c.l.b16 %v660
    %v4518 = vunpack.c.l.b16 %v661
    %v4519 = vunpack.c.l.b16 %v662
    %v4520 = vunpack.c.l.b16 %v663
    %v4521 = vunpack.c.l.b16 %v664
    %v4522 = vunpack.c.l.b16 %v665
    %v4523 = vunpack.c.l.b16 %v666
    %v4524 = vunpack.c.l.b16 %v667
    %v4525 = vunpack.c.l.b16 %v668
    %v4526 = vunpack.c.l.b16 %v669
    %v4527 = vunpack.c.l.b16 %v670
    %v4528 = vunpack.c.l.b16 %v671
    %v4529 = vunpack.c.l.b16 %v672
    %v4530 = vunpack.c.l.b16 %v673
    %v4531 = vunpack.c.l.b16 %v674
    %v4532 = vunpack.c.l.b16 %v675
    %v4533 = vunpack.c.l.b16 %v676
    %v4534 = vunpack.c.l.b16 %v677
    %v4535 = vunpack.c.l.b16 %v678
    %v4536 = vunpack.c.l.b16 %v679
    %v4537 = vunpack.c.l.b16 %v680
    %v4538 = vunpack.c.l.b16 %v681
    %v4539 = vunpack.c.l.b16 %v682
    %v4540 = vunpack.c.l.b16 %v683
    %v4541 = vunpack.c.l.b16 %v684
    %v4542 = vunpack.c.l.b16 %v685
    %v4543 = vunpack.c.l.b16 %v686
    %v4544 = vunpack.c.l.b16 %v687
    %v4545 = vunpack.c.l.b16 %v688
    %v4546 = vunpack.c.l.b16 %v689
    %v4547 = vunpack.c.l.b16 %v690
    %v4548 = vunpack.c.l.b16 %v691
    %v4549 = vunpack.c.l.b16 %v692
    %v4550 = vunpack.c.l.b16 %v693
    %v4551 = vunpack.c.l.b16 %v694
    %v4552 = vunpack.c.l.b16 %v695
    %v4553 = vunpack.c.l.b16 %v696
    %v4554 = vunpack.c.l.b16 %v697
    %v4555 = vunpack.c.l.b16 %v698
    %v4556 = vunpack.c.l.b16 %v699
    %v4557 = vunpack.c.l.b16 %v700
    %v4558 = vunpack.c.l.b16 %v701
    %v4559 = vunpack.c.l.b16 %v702
    %v4560 = vunpack.c.l.b16 %v703
    %v4561 = vunpack.c.l.b16 %v704
    %v4562 = vunpack.c.l.b16 %v705
    %v4563 = vunpack.c.l.b16 %v706
    %v4564 = vunpack.c.l.b16 %v707
    %v4565 = vunpack.c.l.b16 %v708
    %v4566 = vunpack.c.l.b16 %v709
    %v4567 = vunpack.c.l.b16 %v710
    %v4568 = vunpack.c.l.b16 %v711
    %v4569 = vunpack.c.l.b16 %v712
    %v4570 = vunpack.c.l.b16 %v713
    %v4571 = vunpack.c.l.b16 %v714
    %v4572 = vunpack.c.l.b16 %v715
    %v4573 = vunpack.c.l.b16 %v716
    %v4574 = vunpack.c.l.b16 %v717
    %v4575 = vunpack.c.l.b16 %v718
    %v4576 = vunpack.c.l.b16 %v719
    %v4577 = vunpack.c.l.b16 %v720
    %v4578 = vunpack.c.l.b16 %v721
    %v4579 = vunpack.c.l.b16 %v722
    %v4580 = vunpack.c.l.b16 %v723
    %v4581 = vunpack.c.l.b16 %v724
    %v4582 = vunpack.c.l.b16 %v725
    %v4583 = vunpack.c.l.b16 %v726
    %v4584 = vunpack.c.l.b16 %v727
    %v4585 = vunpack.c.l.b16 %v728
    %v4586 = vunpack.c.l.b16 %v729
    %v4587 = vunpack.c.l.b16 %v730
    %v4588 = vunpack.c.l.b16 %v731
    %v4589 = vunpack.c.l.b16 %v732
    %v4590 = vunpack.c.l.b16 %v733
    %v4591 = vunpack.c.l.b16 %v734
    %v4592 = vunpack.c.l.b16 %v735
    %v4593 = vunpack.c.l.b16 %v736
    %v4594 = vunpack.c.l.b16 %v737
    %v4595 = vunpack.c.l.b16 %v738
    %v4596 = vunpack.c.l.b16 %v739
    %v4597 = vunpack.c.l.b16 %v740
    %v4598 = vunpack.c.l.b16 %v741
    %v4599 = vunpack.c.l.b16 %v742
    %v4600 = vunpack.c.l.b16 %v743
    %v4601 = vunpack.c.l.b16 %v744
    %v4602 = vunpack.c.l.b16 %v745
    %v4603 = vunpack.c.l.b16 %v746
    %v4604 = vunpack.c.l.b16 %v747
    %v4605 = vunpack.c.l.b16 %v748
    %v4606 = vunpack.c.l.b16 %v749
    %v4607 = vunpack.c.l.b16 %v750
    %v4608 = vunpack.c.l.b16 %v751
    %v4609 = vunpack.c.l.b16 %v752
    %v4610 = vunpack.c.l.b16 %v753
    %v4611 = vunpack.c.l.b16 %v754
    %v4612 = vunpack.c.l.b16 %v755
    %v4613 = vunpack.c.l.b16 %v756
    %v4614 = vunpack.c.l.b16 %v757
    %v4615 = vunpack.c.l.b16 %v758
    %v4616 = vunpack.c.l.b16 %v759
    %v4617 = vunpack.c.l.b16 %v760
    %v4618 = vunpack.c.l.b16 %v761
    %v4619 = vunpack.c.l.b16 %v762
    %v4620 = vunpack.c.l.b16 %v763
    %v4621 = vunpack.c.l.b16 %v764
    %v4622 = vunpack.c.l.b16 %v765
    %v4623 = vunpack.c.l.b16 %v766
    %v4624 = vunpack.c.l.b16 %v767
    %v4625 = vunpack.c.l.b16 %v768
    %v4626 = vunpack.c.l.b16 %v769
    %v4627 = vunpack.c.l.b16 %v770
    %v4628 = vunpack.c.l.b16 %v771
    %v4629 = vunpack.c.l.b16 %v772
    %v4630 = vunpack.c.l.b16 %v773
    %v4631 = vunpack.c.l.b16 %v774
    %v4632 = vunpack.c.l.b16 %v775
    %v4633 = vunpack.c.l.b16 %v776
    %v4634 = vunpack.c.l.b16 %v777
    %v4635 = vunpack.c.l.b16 %v778
    %v4636 = vunpack.c.l.b16 %v779
    %v4637 = vunpack.c.l.b16 %v780
    %v4638 = vunpack.c.l.b16 %v781
    %v4639 = vunpack.c.l.b16 %v782
    %v4640 = vunpack.c.l.b16 %v783
    %v4641 = vunpack.c.l.b16 %v784
    %v4642 = vunpack.c.l.b16 %v785
    %v4643 = vunpack.c.l.b16 %v786
    %v4644 = vunpack.c.l.b16 %v787
    %v4645 = vunpack.c.l.b16 %v788
    %v4646 = vunpack.c.l.b16 %v789
    %v4647 = vunpack.c.l.b16 %v790
    %v4648 = vunpack.c.l.b16 %v791
    %v4649 = vunpack.c.l.b16 %v792
    %v4650 = vunpack.c.l.b16 %v793
    %v4651 = vunpack.c.l.b16 %v794
    %v4652 = vunpack.c.l.b16 %v795
    %v4653 = vunpack.c.l.b16 %v796
    %v4654 = vunpack.c.l.b16 %v797
    %v4655 = vunpack.c.l.b16 %v798
    %v4656 = vunpack.c.l.b16 %v799
    %v4657 = vunpack.c.l.b16 %v800
    %v4658 = vunpack.c.l.b16 %v801
    %v4659 = vunpack.c.l.b16 %v802
    %v4660 = vunpack.c.l.b16 %v803
    %v4661 = vunpack.c.l.b16 %v804
    %v4662 = vunpack.c.l.b16 %v805
    %v4663 = vunpack.c.l.b16 %v806
    %v4664 = vunpack.c.l.b16 %v807
    %v4665 = vunpack.c.l.b16 %v808
    %v4666 = vunpack.c.l.b16 %v809
    %v4667 = vunpack.c.l.b16 %v810
    %v4668 = vunpack.c.l.b16 %v811
    %v4669 = vunpack.c.l.b16 %v812
    %v4670 = vunpack.c.l.b16 %v813
    %v4671 = vunpack.c.l.b16 %v814
    %v4672 = vunpack.c.l.b16 %v815
    %v4673 = vunpack.c.l.b16 %v816
    %v4674 = vunpack.c.l.b16 %v817
    %v4675 = vunpack.c.l.b16 %v818
    %v4676 = vunpack.c.l.b16 %v819
    %v4677 = vunpack.c.l.b16 %v820
    %v4678 = vunpack.c.l.b16 %v821
    %v4679 = vunpack.c.l.b16 %v822
    %v4680 = vunpack.c.l.b16 %v823
    %v4681 = vunpack.c.l.b16 %v824
    %v4682 = vunpack.c.l.b16 %v825
    %v4683 = vunpack.c.l.b16 %v826
    %v4684 = vunpack.c.l.b16 %v827
    %v4685 = vunpack.c.l.b16 %v828
    %v4686 = vunpack.c.l.b16 %v829
    %v4687 = vunpack.c.l.b16 %v830
    %v4688 = vunpack.c.l.b16 %v831
    %v4689 = vunpack.c.l.b16 %v832
    %v4690 = vunpack.c.l.b16 %v833
    %v4691 = vunpack.c.l.b16 %v834
    %v4692 = vunpack.c.l.b16 %v835
    %v4693 = vunpack.c.l.b16 %v836
    %v4694 = vunpack.c.l.b16 %v837
    %v4695 = vunpack.c.l.b16 %v838
    %v4696 = vunpack.c.l.b16 %v839
    %v4697 = vunpack.c.l.b16 %v840
    %v4698 = vunpack.c.l.b16 %v841
    %v4699 = vunpack.c.l.b16 %v842
    %v4700 = vunpack.c.l.b16 %v843
    %v4701 = vunpack.c.l.b16 %v844
    %v4702 = vunpack.c.l.b16 %v845
    %v4703 = vunpack.c.l.b16 %v846
    %v4704 = vunpack.c.l.b16 %v847
    %v4705 = vunpack.c.l.b16 %v848
    %v4706 = vunpack.c.l.b16 %v849
    %v4707 = vunpack.c.l.b16 %v850
    %v4708 = vunpack.c.l.b16 %v851
    %v4709 = vunpack.c.l.b16 %v852
    %v4710 = vunpack.c.l.b16 %v853
    %v4711 = vunpack.c.l.b16 %v854
    %v4712 = vunpack.c.l.b16 %v855
    %v4713 = vunpack.c.l.b16 %v856
    %v4714 = vunpack.c.l.b16 %v857
    %v4715 = vunpack.c.l.b16 %v858
    %v4716 = vunpack.c.l.b16 %v859
    %v4717 = vunpack.c.l.b16 %v860
    %v4718 = vunpack.c.l.b16 %v861
    %v4719 = vunpack.c.l.b16 %v862
    %v4720 = vunpack.c.l.b16 %v863
    %v4721 = vunpack.c.l.b16 %v864
    %v4722 = vunpack.c.l.b16 %v865
    %v4723 = vunpack.c.l.b16 %v866
    %v4724 = vunpack.c.l.b16 %v867
    %v4725 = vunpack.c.l.b16 %v868
    %v4726 = vunpack.c.l.b16 %v869
    %v4727 = vunpack.c.l.b16 %v870
    %v4728 = vunpack.c.l.b16 %v871
    %v4729 = vunpack.c.l.b16 %v872
    %v4730 = vunpack.c.l.b16 %v873
    %v4731 = vunpack.c.l.b16 %v874
    %v4732 = vunpack.c.l.b16 %v875
    %v4733 = vunpack.c.l.b16 %v876
    %v4734 = vunpack.c.l.b16 %v877
    %v4735 = vunpack.c.l.b16 %v878
    %v4736 = vunpack.c.l.b16 %v879
    %v4737 = vunpack.c.l.b16 %v880
    %v4738 = vunpack.c.l.b16 %v881
    %v4739 = vunpack.c.l.b16 %v882
    %v4740 = vunpack.c.l.b16 %v883
    %v4741 = vunpack.c.l.b16 %v884
    %v4742 = vunpack.c.l.b16 %v885
    %v4743 = vunpack.c.l.b16 %v886
    %v4744 = vunpack.c.l.b16 %v887
    %v4745 = vunpack.c.l.b16 %v888
    %v4746 = vunpack.c.l.b16 %v889
    %v4747 = vunpack.c.l.b16 %v890
    %v4748 = vunpack.c.l.b16 %v891
    %v4749 = vunpack.c.l.b16 %v892
    %v4750 = vunpack.c.l.b16 %v893
    %v4751 = vunpack.c.l.b16 %v894
    %v4752 = vunpack.c.l.b16 %v895
    %v4753 = vunpack.c.l.b16 %v896
    %v4754 = vunpack.c.l.b16 %v897
    %v4755 = vunpack.c.l.b16 %v898
    %v4756 = vunpack.c.l.b16 %v899
    %v4757 = vunpack.c.l.b16 %v900
    %v4758 = vunpack.c.l.b16 %v901
    %v4759 = vunpack.c.l.b16 %v902
    %v4760 = vunpack.c.l.b16 %v903
    %v4761 = vunpack.c.l.b16 %v904
    %v4762 = vunpack.c.l.b16 %v905
    %v4763 = vunpack.c.l.b16 %v906
    %v4764 = vunpack.c.l.b16 %v907
    %v4765 = vunpack.c.l.b16 %v908
    %v4766 = vunpack.c.l.b16 %v909
    %v4767 = vunpack.c.l.b16 %v910
    %v4768 = vunpack.c.l.b16 %v911
    %v4769 = vunpack.c.l.b16 %v912
    %v4770 = vunpack.c.l.b16 %v913
    %v4771 = vunpack.c.l.b16 %v914
    %v4772 = vunpack.c.l.b16 %v915
    %v4773 = vunpack.c.l.b16 %v916
    %v4774 = vunpack.c.l.b16 %v917
    %v4775 = vunpack.c.l.b16 %v918
    %v4776 = vunpack.c.l.b16 %v919
    %v4777 = vunpack.c.l.b16 %v920
    %v4778 = vunpack.c.l.b16 %v921
    %v4779 = vunpack.c.l.b16 %v922
    %v4780 = vunpack.c.l.b16 %v923
    %v4781 = vunpack.c.l.b16 %v924
    %v4782 = vunpack.c.l.b16 %v925
    %v4783 = vunpack.c.l.b16 %v926
    %v4784 = vunpack.c.l.b16 %v927
    %v4785 = vunpack.c.l.b16 %v928
    %v4786 = vunpack.c.l.b16 %v929
    %v4787 = vunpack.c.l.b16 %v930
    %v4788 = vunpack.c.l.b16 %v931
    %v4789 = vunpack.c.l.b16 %v932
    %v4790 = vunpack.c.l.b16 %v933
    %v4791 = vunpack.c.l.b16 %v934
    %v4792 = vunpack.c.l.b16 %v935
    %v4793 = vunpack.c.l.b16 %v936
    %v4794 = vunpack.c.l.b16 %v937
    %v4795 = vunpack.c.l.b16 %v938
    %v4796 = vunpack.c.l.b16 %v939
    %v4797 = vunpack.c.l.b16 %v940
    %v4798 = vunpack.c.l.b16 %v941
    %v4799 = vunpack.c.l.b16 %v942
    %v4800 = vunpack.c.l.b16 %v943
    %v4801 = vunpack.c.l.b16 %v944
    %v4802 = vunpack.c.l.b16 %v945
    %v4803 = vunpack.c.l.b16 %v946
    %v4804 = vunpack.c.l.b16 %v947
    %v4805 = vunpack.c.l.b16 %v948
    %v4806 = vunpack.c.l.b16 %v949
    %v4807 = vunpack.c.l.b16 %v950
    %v4808 = vunpack.c.l.b16 %v951
    %v4809 = vunpack.c.l.b16 %v952
    %v4810 = vunpack.c.l.b16 %v953
    %v4811 = vunpack.c.l.b16 %v954
    %v4812 = vunpack.c.l.b16 %v955
    %v4813 = vunpack.c.l.b16 %v956
    %v4814 = vunpack.c.l.b16 %v957
    %v4815 = vunpack.c.l.b16 %v958
    %v4816 = vunpack.c.l.b16 %v959
    %v4817 = vunpack.c.l.b16 %v960
    %v4818 = vunpack.c.l.b16 %v961
    %v4819 = vunpack.c.l.b16 %v962
    %v4820 = vunpack.c.l.b16 %v963
    %v4821 = vunpack.c.l.b16 %v964
    %v4822 = vunpack.c.l.b16 %v965
    %v4823 = vunpack.c.l.b16 %v966
    %v4824 = vunpack.c.l.b16 %v967
    %v4825 = vunpack.c.l.b16 %v968
    %v4826 = vunpack.c.l.b16 %v969
    %v4827 = vunpack.c.l.b16 %v970
    %v4828 = vunpack.c.l.b16 %v971
    %v4829 = vunpack.c.l.b16 %v972
    %v4830 = vunpack.c.l.b16 %v973
    %v4831 = vunpack.c.l.b16 %v974
    %v4832 = vunpack.c.l.b16 %v975
    %v4833 = vunpack.c.l.b16 %v976
    %v4834 = vunpack.c.l.b16 %v977
    %v4835 = vunpack.c.l.b16 %v978
    %v4836 = vunpack.c.l.b16 %v979
    %v4837 = vunpack.c.l.b16 %v980
    %v4838 = vunpack.c.l.b16 %v981
    %v4839 = vunpack.c.l.b16 %v982
    %v4840 = vunpack.c.l.b16 %v983
    %v4841 = vunpack.c.l.b16 %v984
    %v4842 = vunpack.c.l.b16 %v985
    %v4843 = vunpack.c.l.b16 %v986
    %v4844 = vunpack.c.l.b16 %v987
    %v4845 = vunpack.c.l.b16 %v988
    %v4846 = vunpack.c.l.b16 %v989
    %v4847 = vunpack.c.l.b16 %v990
    %v4848 = vunpack.c.l.b16 %v991
    %v4849 = vunpack.c.l.b16 %v992
    %v4850 = vunpack.c.l.b16 %v993
    %v4851 = vunpack.c.l.b16 %v994
    %v4852 = vunpack.c.l.b16 %v995
    %v4853 = vunpack.c.l.b16 %v996
    %v4854 = vunpack.c.l.b16 %v997
    %v4855 = vunpack.c.l.b16 %v998
    %v4856 = vunpack.c.l.b16 %v999
    %v4857 = vunpack.c.l.b16 %v1000
    %v4858 = vunpack.c.l.b16 %v1001
    %v4859 = vunpack.c.l.b16 %v1002
    %v4860 = vunpack.c.l.b16 %v1003
    %v4861 = vunpack.c.l.b16 %v1004
    %v4862 = vunpack.c.l.b16 %v1005
    %v4863 = vunpack.c.l.b16 %v1006
    %v4864 = vunpack.c.l.b16 %v1007
    %v4865 = vunpack.c.l.b16 %v1008
    %v4866 = vunpack.c.l.b16 %v1009
    %v4867 = vunpack.c.l.b16 %v1010
    %v4868 = vunpack.c.l.b16 %v1011
    %v4869 = vunpack.c.l.b16 %v1012
    %v4870 = vunpack.c.l.b16 %v1013
    %v4871 = vunpack.c.l.b16 %v1014
    %v4872 = vunpack.c.l.b16 %v1015
    %v4873 = vunpack.c.l.b16 %v1016
    %v4874 = vunpack.c.l.b16 %v1017
    %v4875 = vunpack.c.l.b16 %v1018
    %v4876 = vunpack.c.l.b16 %v1019
    %v4877 = vunpack.c.l.b16 %v1020
    %v4878 = vunpack.c.l.b16 %v1021
    %v4879 = vunpack.c.l.b16 %v1022
    %v4880 = vunpack.c.l.b16 %v1023
    %v4881 = vunpack.c.l.b16 %v1024
    %v4882 = vunpack.c.l.b16 %v1025
    %v4883 = vunpack.c.l.b16 %v1026
    %v4884 = vunpack.c.l.b16 %v1027
    %v4885 = vunpack.c.l.b16 %v1028
    %v4886 = vunpack.c.l.b16 %v1029
    %v4887 = vunpack.c.l.b16 %v1030
    %v4888 = vunpack.c.l.b16 %v1031
    %v4889 = vunpack.c.l.b16 %v1032
    %v4890 = vunpack.c.l.b16 %v1033
    %v4891 = vunpack.c.l.b16 %v1034
    %v4892 = vunpack.c.l.b16 %v1035
    %v4893 = vunpack.c.l.b16 %v1036
    %v4894 = vunpack.c.l.b16 %v1037
    %v4895 = vunpack.c.l.b16 %v1038
    %v4896 = vunpack.c.l.b16 %v1039
    %v4897 = vunpack.c.l.b16 %v1040
    %v4898 = vunpack.c.l.b16 %v1041
    %v4899 = vunpack.c.l.b16 %v1042
    %v4900 = vunpack.c.l.b16 %v1043
    %v4901 = vunpack.c.l.b16 %v1044
    %v4902 = vunpack.c.l.b16 %v1045
    %v4903 = vunpack.c.l.b16 %v1046
    %v4904 = vunpack.c.l.b16 %v1047
    %v4905 = vunpack.c.l.b16 %v1048
    %v4906 = vunpack.c.l.b16 %v1049
    %v4907 = vunpack.c.l.b16 %v1050
    %v4908 = vunpack.c.l.b16 %v1051
    %v4909 = vunpack.c.l.b16 %v1052
    %v4910 = vunpack.c.l.b16 %v1053
    %v4911 = vunpack.c.l.b16 %v1054
    %v4912 = vunpack.c.l.b16 %v1055
    %v4913 = vunpack.c.l.b16 %v1056
    %v4914 = vunpack.c.l.b16 %v1057
    %v4915 = vunpack.c.l.b16 %v1058
    %v4916 = vunpack.c.l.b16 %v1059
    %v4917 = vunpack.c.l.b16 %v1060
    %v4918 = vunpack.c.l.b16 %v1061
    %v4919 = vunpack.c.l.b16 %v1062
    %v4920 = vunpack.c.l.b16 %v1063
    %v4921 = vunpack.c.l.b16 %v1064
    %v4922 = vunpack.c.l.b16 %v1065
    %v4923 = vunpack.c.l.b16 %v1066
    %v4924 = vunpack.c.l.b16 %v1067
    %v4925 = vunpack.c.l.b16 %v1068
    %v4926 = vunpack.c.l.b16 %v1069
    %v4927 = vunpack.c.l.b16 %v1070
    %v4928 = vunpack.c.l.b16 %v1071
    %v4929 = vunpack.c.l.b16 %v1072
    %v4930 = vunpack.c.l.b16 %v1073
    %v4931 = vunpack.c.l.b16 %v1074
    %v4932 = vunpack.c.l.b16 %v1075
    %v4933 = vunpack.c.l.b16 %v1076
    %v4934 = vunpack.c.l.b16 %v1077
    %v4935 = vunpack.c.l.b16 %v1078
    %v4936 = vunpack.c.l.b16 %v1079
    %v4937 = vunpack.c.l.b16 %v1080
    %v4938 = vunpack.c.l.b16 %v1081
    %v4939 = vunpack.c.l.b16 %v1082
    %v4940 = vunpack.c.l.b16 %v1083
    %v4941 = vunpack.c.l.b16 %v1084
    %v4942 = vunpack.c.l.b16 %v1085
    %v4943 = vunpack.c.l.b16 %v1086
    %v4944 = vunpack.c.l.b16 %v1087
    %v4945 = vunpack.c.l.b16 %v1088
    %v4946 = vunpack.c.l.b16 %v1089
    %v4947 = vunpack.c.l.b16 %v1090
    %v4948 = vunpack.c.l.b16 %v1091
    %v4949 = vunpack.c.l.b16 %v1092
    %v4950 = vunpack.c.l.b16 %v1093
    %v4951 = vunpack.c.l.b16 %v1094
    %v4952 = vunpack.c.l.b16 %v1095
    %v4953 = vunpack.c.l.b16 %v1096
    %v4954 = vunpack.c.l.b16 %v1097
    %v4955 = vunpack.c.l.b16 %v1098
    %v4956 = vunpack.c.l.b16 %v1099
    %v4957 = vunpack.c.l.b16 %v1100
    %v4958 = vunpack.c.l.b16 %v1101
    %v4959 = vunpack.c.l.b16 %v1102
    %v4960 = vunpack.c.l.b16 %v1103
    %v4961 = vunpack.c.l.b16 %v1104
    %v4962 = vunpack.c.l.b16 %v1105
    %v4963 = vunpack.c.l.b16 %v1106
    %v4964 = vunpack.c.l.b16 %v1107
    %v4965 = vunpack.c.l.b16 %v1108
    %v4966 = vunpack.c.l.b16 %v1109
    %v4967 = vunpack.c.l.b16 %v1110
    %v4968 = vunpack.c.l.b16 %v1111
    %v4969 = vunpack.c.l.b16 %v1112
    %v4970 = vunpack.c.l.b16 %v1113
    %v4971 = vunpack.c.l.b16 %v1114
    %v4972 = vunpack.c.l.b16 %v1115
    %v4973 = vunpack.c.l.b16 %v1116
    %v4974 = vunpack.c.l.b16 %v1117
    %v4975 = vunpack.c.l.b16 %v1118
    %v4976 = vunpack.c.l.b16 %v1119
    %v4977 = vunpack.c.l.b16 %v1120
    %v4978 = vunpack.c.l.b16 %v1121
    %v4979 = vunpack.c.l.b16 %v1122
    %v4980 = vunpack.c.l.b16 %v1123
    %v4981 = vunpack.c.l.b16 %v1124
    %v4982 = vunpack.c.l.b16 %v1125
    %v4983 = vunpack.c.l.b16 %v1126
    %v4984 = vunpack.c.l.b16 %v1127
    %v4985 = vunpack.c.l.b16 %v1128
    %v4986 = vunpack.c.l.b16 %v1129
    %v4987 = vunpack.c.l.b16 %v1130
    %v4988 = vunpack.c.l.b16 %v1131
    %v4989 = vunpack.c.l.b16 %v1132
    %v4990 = vunpack.c.l.b16 %v1133
    %v4991 = vunpack.c.l.b16 %v1134
    %v4992 = vunpack.c.l.b16 %v1135
    %v4993 = vunpack.c.l.b16 %v1136
    %v4994 = vunpack.c.l.b16 %v1137
    %v4995 = vunpack.c.l.b16 %v1138
    %v4996 = vunpack.c.l.b16 %v1139
    %v4997 = vunpack.c.l.b16 %v1140
    %v4998 = vunpack.c.l.b16 %v1141
    %v4999 = vunpack.c.l.b16 %v1142
    %v5000 = vunpack.c.l.b16 %v1143
    %v5001 = vunpack.c.l.b16 %v1144
    %v5002 = vunpack.c.l.b16 %v1145
    %v5003 = vunpack.c.l.b16 %v1146
    %v5004 = vunpack.c.l.b16 %v1147
    %v5005 = vunpack.c.l.b16 %v1148
    %v5006 = vunpack.c.l.b16 %v1149
    %v5007 = vunpack.c.l.b16 %v1150
    %v5008 = vunpack.c.l.b16 %v1151
    %v5009 = vunpack.c.l.b16 %v1152
    %v5010 = vunpack.c.l.b16 %v1153
    %v5011 = vunpack.c.l.b16 %v1154
    %v5012 = vunpack.c.l.b16 %v1155
    %v5013 = vunpack.c.l.b16 %v1156
    %v5014 = vunpack.c.l.b16 %v1157
    %v5015 = vunpack.c.l.b16 %v1158
    %v5016 = vunpack.c.l.b16 %v1159
    %v5017 = vunpack.c.l.b16 %v1160
    %v5018 = vunpack.c.l.b16 %v1161
    %v5019 = vunpack.c.l.b16 %v1162
    %v5020 = vunpack.c.l.b16 %v1163
    %v5021 = vunpack.c.l.b16 %v1164
    %v5022 = vunpack.c.l.b16 %v1165
    %v5023 = vunpack.c.l.b16 %v1166
    %v5024 = vunpack.c.l.b16 %v1167
    %v5025 = vunpack.c.l.b16 %v1168
    %v5026 = vunpack.c.l.b16 %v1169
    %v5027 = vunpack.c.l.b16 %v1170
    %v5028 = vunpack.c.l.b16 %v1171
    %v5029 = vunpack.c.l.b16 %v1172
    %v5030 = vunpack.c.l.b16 %v1173
    %v5031 = vunpack.c.l.b16 %v1174
    %v5032 = vunpack.c.l.b16 %v1175
    %v5033 = vunpack.c.l.b16 %v1176
    %v5034 = vunpack.c.l.b16 %v1177
    %v5035 = vunpack.c.l.b16 %v1178
    %v5036 = vunpack.c.l.b16 %v1179
    %v5037 = vunpack.c.l.b16 %v1180
    %v5038 = vunpack.c.l.b16 %v1181
    %v5039 = vunpack.c.l.b16 %v1182
    %v5040 = vunpack.c.l.b16 %v1183
    %v5041 = vunpack.c.l.b16 %v1184
    %v5042 = vunpack.c.l.b16 %v1185
    %v5043 = vunpack.c.l.b16 %v1186
    %v5044 = vunpack.c.l.b16 %v1187
    %v5045 = vunpack.c.l.b16 %v1188
    %v5046 = vunpack.c.l.b16 %v1189
    %v5047 = vunpack.c.l.b16 %v1190
    %v5048 = vunpack.c.l.b16 %v1191
    %v5049 = vunpack.c.l.b16 %v1192
    %v5050 = vunpack.c.l.b16 %v1193
    %v5051 = vunpack.c.l.b16 %v1194
    %v5052 = vunpack.c.l.b16 %v1195
    %v5053 = vunpack.c.l.b16 %v1196
    %v5054 = vunpack.c.l.b16 %v1197
    %v5055 = vunpack.c.l.b16 %v1198
    %v5056 = vunpack.c.l.b16 %v1199
    %v5057 = vunpack.c.l.b16 %v1200
    %v5058 = vunpack.c.l.b16 %v1201
    %v5059 = vunpack.c.l.b16 %v1202
    %v5060 = vunpack.c.l.b16 %v1203
    %v5061 = vunpack.c.l.b16 %v1204
    %v5062 = vunpack.c.l.b16 %v1205
    %v5063 = vunpack.c.l.b16 %v1206
    %v5064 = vunpack.c.l.b16 %v1207
    %v5065 = vunpack.c.l.b16 %v1208
    %v5066 = vunpack.c.l.b16 %v1209
    %v5067 = vunpack.c.l.b16 %v1210
    %v5068 = vunpack.c.l.b16 %v1211
    %v5069 = vunpack.c.l.b16 %v1212
    %v5070 = vunpack.c.l.b16 %v1213
    %v5071 = vunpack.c.l.b16 %v1214
    %v5072 = vunpack.c.l.b16 %v1215
    %v5073 = vunpack.c.l.b16 %v1216
    %v5074 = vunpack.c.l.b16 %v1217
    %v5075 = vunpack.c.l.b16 %v1218
    %v5076 = vunpack.c.l.b16 %v1219
    %v5077 = vunpack.c.l.b16 %v1220
    %v5078 = vunpack.c.l.b16 %v1221
    %v5079 = vunpack.c.l.b16 %v1222
    %v5080 = vunpack.c.l.b16 %v1223
    %v5081 = vunpack.c.l.b16 %v1224
    %v5082 = vunpack.c.l.b16 %v1225
    %v5083 = vunpack.c.l.b16 %v1226
    %v5084 = vunpack.c.l.b16 %v1227
    %v5085 = vunpack.c.l.b16 %v1228
    %v5086 = vunpack.c.l.b16 %v1229
    %v5087 = vunpack.c.l.b16 %v1230
    %v5088 = vunpack.c.l.b16 %v1231
    %v5089 = vunpack.c.l.b16 %v1232
    %v5090 = vunpack.c.l.b16 %v1233
    %v5091 = vunpack.c.l.b16 %v1234
    %v5092 = vunpack.c.l.b16 %v1235
    %v5093 = vunpack.c.l.b16 %v1236
    %v5094 = vunpack.c.l.b16 %v1237
    %v5095 = vunpack.c.l.b16 %v1238
    %v5096 = vunpack.c.l.b16 %v1239
    %v5097 = vunpack.c.l.b16 %v1240
    %v5098 = vunpack.c.l.b16 %v1241
    %v5099 = vunpack.c.l.b16 %v1242
    %v5100 = vunpack.c.l.b16 %v1243
    %v5101 = vunpack.c.l.b16 %v1244
    %v5102 = vunpack.c.l.b16 %v1245
    %v5103 = vunpack.c.l.b16 %v1246
    %v5104 = vunpack.c.l.b16 %v1247
    %v5105 = vunpack.c.l.b16 %v1248
    %v5106 = vunpack.c.l.b16 %v1249
    %v5107 = vunpack.c.l.b16 %v1250
    %v5108 = vunpack.c.l.b16 %v1251
    %v5109 = vunpack.c.l.b16 %v1252
    %v5110 = vunpack.c.l.b16 %v1253
    %v5111 = vunpack.c.l.b16 %v1254
    %v5112 = vunpack.c.l.b16 %v1255
    %v5113 = vunpack.c.l.b16 %v1256
    %v5114 = vunpack.c.l.b16 %v1257
    %v5115 = vunpack.c.l.b16 %v1258
    %v5116 = vunpack.c.l.b16 %v1259
    %v5117 = vunpack.c.l.b16 %v1260
    %v5118 = vunpack.c.l.b16 %v1261
    %v5119 = vunpack.c.l.b16 %v1262
    %v5120 = vunpack.c.l.b16 %v1263
    %v5121 = vunpack.c.l.b16 %v1264
    %v5122 = vunpack.c.l.b16 %v1265
    %v5123 = vunpack.c.l.b16 %v1266
    %v5124 = vunpack.c.l.b16 %v1267
    %v5125 = vunpack.c.l.b16 %v1268
    %v5126 = vunpack.c.l.b16 %v1269
    %v5127 = vunpack.c.l.b16 %v1270
    %v5128 = vunpack.c.l.b16 %v1271
    %v5129 = vunpack.c.l.b16 %v1272
    %v5130 = vunpack.c.l.b16 %v1273
    %v5131 = vunpack.c.l.b16 %v1274
    %v5132 = vunpack.c.l.b16 %v1275
    %v5133 = vunpack.c.l.b16 %v1276
    %v5134 = vunpack.c.l.b16 %v1277
    %v5135 = vunpack.c.l.b16 %v1278
    %v5136 = vunpack.c.l.b16 %v1279
    %v5137 = vunpack.c.l.b16 %v1280
    %v5138 = vunpack.c.l.b16 %v1281
    %v5139 = vunpack.c.l.b16 %v1282
    %v5140 = vunpack.c.l.b16 %v1283
    %v5141 = vunpack.c.l.b16 %v1284
    %v5142 = vunpack.c.l.b16 %v1285
    %v5143 = vunpack.c.l.b16 %v1286
    %v5144 = vunpack.c.l.b16 %v1287
    %v5145 = vunpack.c.l.b16 %v1288
    %v5146 = vunpack.c.l.b16 %v1289
    %v5147 = vunpack.c.l.b16 %v1290
    %v5148 = vunpack.c.l.b16 %v1291
    %v5149 = vunpack.c.l.b16 %v1292
    %v5150 = vunpack.c.l.b16 %v1293
    %v5151 = vunpack.c.l.b16 %v1294
    %v5152 = vunpack.c.l.b16 %v1295
    %v5153 = vunpack.c.l.b16 %v1296
    %v5154 = vunpack.c.l.b16 %v1297
    %v5155 = vunpack.c.l.b16 %v1298
    %v5156 = vunpack.c.l.b16 %v1299
    %v5157 = vunpack.c.l.b16 %v1300
    %v5158 = vunpack.c.l.b16 %v1301
    %v5159 = vunpack.c.l.b16 %v1302
    %v5160 = vunpack.c.l.b16 %v1303
    %v5161 = vunpack.c.l.b16 %v1304
    %v5162 = vunpack.c.l.b16 %v1305
    %v5163 = vunpack.c.l.b16 %v1306
    %v5164 = vunpack.c.l.b16 %v1307
    %v5165 = vunpack.c.l.b16 %v1308
    %v5166 = vunpack.c.l.b16 %v1309
    %v5167 = vunpack.c.l.b16 %v1310
    %v5168 = vunpack.c.l.b16 %v1311
    %v5169 = vunpack.c.l.b16 %v1312
    %v5170 = vunpack.c.l.b16 %v1313
    %v5171 = vunpack.c.l.b16 %v1314
    %v5172 = vunpack.c.l.b16 %v1315
    %v5173 = vunpack.c.l.b16 %v1316
    %v5174 = vunpack.c.l.b16 %v1317
    %v5175 = vunpack.c.l.b16 %v1318
    %v5176 = vunpack.c.l.b16 %v1319
    %v5177 = vunpack.c.l.b16 %v1320
    %v5178 = vunpack.c.l.b16 %v1321
    %v5179 = vunpack.c.l.b16 %v1322
    %v5180 = vunpack.c.l.b16 %v1323
    %v5181 = vunpack.c.l.b16 %v1324
    %v5182 = vunpack.c.l.b16 %v1325
    %v5183 = vunpack.c.l.b16 %v1326
    %v5184 = vunpack.c.l.b16 %v1327
    %v5185 = vunpack.c.l.b16 %v1328
    %v5186 = vunpack.c.l.b16 %v1329
    %v5187 = vunpack.c.l.b16 %v1330
    %v5188 = vunpack.c.l.b16 %v1331
    %v5189 = vunpack.c.l.b16 %v1332
    %v5190 = vunpack.c.l.b16 %v1333
    %v5191 = vunpack.c.l.b16 %v1334
    %v5192 = vunpack.c.l.b16 %v1335
    %v5193 = vunpack.c.l.b16 %v1336
    %v5194 = vunpack.c.l.b16 %v1337
    %v5195 = vunpack.c.l.b16 %v1338
    %v5196 = vunpack.c.l.b16 %v1339
    %v5197 = vunpack.c.l.b16 %v1340
    %v5198 = vunpack.c.l.b16 %v1341
    %v5199 = vunpack.c.l.b16 %v1342
    %v5200 = vunpack.c.l.b16 %v1343
    %v5201 = vunpack.c.l.b16 %v1344
    %v5202 = vunpack.c.l.b16 %v1345
    %v5203 = vunpack.c.l.b16 %v1346
    %v5204 = vunpack.c.l.b16 %v1347
    %v5205 = vunpack.c.l.b16 %v1348
    %v5206 = vunpack.c.l.b16 %v1349
    %v5207 = vunpack.c.l.b16 %v1350
    %v5208 = vunpack.c.l.b16 %v1351
    %v5209 = vunpack.c.l.b16 %v1352
    %v5210 = vunpack.c.l.b16 %v1353
    %v5211 = vunpack.c.l.b16 %v1354
    %v5212 = vunpack.c.l.b16 %v1355
    %v5213 = vunpack.c.l.b16 %v1356
    %v5214 = vunpack.c.l.b16 %v1357
    %v5215 = vunpack.c.l.b16 %v1358
    %v5216 = vunpack.c.l.b16 %v1359
    %v5217 = vunpack.c.l.b16 %v1360
    %v5218 = vunpack.c.l.b16 %v1361
    %v5219 = vunpack.c.l.b16 %v1362
    %v5220 = vunpack.c.l.b16 %v1363
    %v5221 = vunpack.c.l.b16 %v1364
    %v5222 = vunpack.c.l.b16 %v1365
    %v5223 = vunpack.c.l.b16 %v1366
    %v5224 = vunpack.c.l.b16 %v1367
    %v5225 = vunpack.c.l.b16 %v1368
    %v5226 = vunpack.c.l.b16 %v1369
    %v5227 = vunpack.c.l.b16 %v1370
    %v5228 = vunpack.c.l.b16 %v1371
    %v5229 = vunpack.c.l.b16 %v1372
    %v5230 = vunpack.c.l.b16 %v1373
    %v5231 = vunpack.c.l.b16 %v1374
    %v5232 = vunpack.c.l.b16 %v1375
    %v5233 = vunpack.c.l.b16 %v1376
    %v5234 = vunpack.c.l.b16 %v1377
    %v5235 = vunpack.c.l.b16 %v1378
    %v5236 = vunpack.c.l.b16 %v1379
    %v5237 = vunpack.c.l.b16 %v1380
    %v5238 = vunpack.c.l.b16 %v1381
    %v5239 = vunpack.c.l.b16 %v1382
    %v5240 = vunpack.c.l.b16 %v1383
    %v5241 = vunpack.c.l.b16 %v1384
    %v5242 = vunpack.c.l.b16 %v1385
    %v5243 = vunpack.c.l.b16 %v1386
    %v5244 = vunpack.c.l.b16 %v1387
    %v5245 = vunpack.c.l.b16 %v1388
    %v5246 = vunpack.c.l.b16 %v1389
    %v5247 = vunpack.c.l.b16 %v1390
    %v5248 = vunpack.c.l.b16 %v1391
    %v5249 = vunpack.c.l.b16 %v1392
    %v5250 = vunpack.c.l.b16 %v1393
    %v5251 = vunpack.c.l.b16 %v1394
    %v5252 = vunpack.c.l.b16 %v1395
    %v5253 = vunpack.c.l.b16 %v1396
    %v5254 = vunpack.c.l.b16 %v1397
    %v5255 = vunpack.c.l.b16 %v1398
    %v5256 = vunpack.c.l.b16 %v1399
    %v5257 = vunpack.c.l.b16 %v1400
    %v5258 = vunpack.c.l.b16 %v1401
    %v5259 = vunpack.c.l.b16 %v1402
    %v5260 = vunpack.c.l.b16 %v1403
    %v5261 = vunpack.c.l.b16 %v1404
    %v5262 = vunpack.c.l.b16 %v1405
    %v5263 = vunpack.c.l.b16 %v1406
    %v5264 = vunpack.c.l.b16 %v1407
    %v5265 = vunpack.c.l.b16 %v1408
    %v5266 = vunpack.c.l.b16 %v1409
    %v5267 = vunpack.c.l.b16 %v1410
    %v5268 = vunpack.c.l.b16 %v1411
    %v5269 = vunpack.c.l.b16 %v1412
    %v5270 = vunpack.c.l.b16 %v1413
    %v5271 = vunpack.c.l.b16 %v1414
    %v5272 = vunpack.c.l.b16 %v1415
    %v5273 = vunpack.c.l.b16 %v1416
    %v5274 = vunpack.c.l.b16 %v1417
    %v5275 = vunpack.c.l.b16 %v1418
    %v5276 = vunpack.c.l.b16 %v1419
    %v5277 = vunpack.c.l.b16 %v1420
    %v5278 = vunpack.c.l.b16 %v1421
    %v5279 = vunpack.c.l.b16 %v1422
    %v5280 = vunpack.c.l.b16 %v1423
    %v5281 = vunpack.c.l.b16 %v1424
    %v5282 = vunpack.c.l.b16 %v1425
    %v5283 = vunpack.c.l.b16 %v1426
    %v5284 = vunpack.c.l.b16 %v1427
    %v5285 = vunpack.c.l.b16 %v1428
    %v5286 = vunpack.c.l.b16 %v1429
    %v5287 = vunpack.c.l.b16 %v1430
    %v5288 = vunpack.c.l.b16 %v1431
    %v5289 = vunpack.c.l.b16 %v1432
    %v5290 = vunpack.c.l.b16 %v1433
    %v5291 = vunpack.c.l.b16 %v1434
    %v5292 = vunpack.c.l.b16 %v1435
    %v5293 = vunpack.c.l.b16 %v1436
    %v5294 = vunpack.c.l.b16 %v1437
    %v5295 = vunpack.c.l.b16 %v1438
    %v5296 = vunpack.c.l.b16 %v1439
    %v5297 = vunpack.c.l.b16 %v1440
    %v5298 = vunpack.c.l.b16 %v1441
    %v5299 = vunpack.c.l.b16 %v1442
    %v5300 = vunpack.c.l.b16 %v1443
    %v5301 = vunpack.c.l.b16 %v1444
    %v5302 = vunpack.c.l.b16 %v1445
    %v5303 = vunpack.c.l.b16 %v1446
    %v5304 = vunpack.c.l.b16 %v1447
    %v5305 = vunpack.c.l.b16 %v1448
    %v5306 = vunpack.c.l.b16 %v1449
    %v5307 = vunpack.c.l.b16 %v1450
    %v5308 = vunpack.c.l.b16 %v1451
    %v5309 = vunpack.c.l.b16 %v1452
    %v5310 = vunpack.c.l.b16 %v1453
    %v5311 = vunpack.c.l.b16 %v1454
    %v5312 = vunpack.c.l.b16 %v1455
    %v5313 = vunpack.c.l.b16 %v1456
    %v5314 = vunpack.c.l.b16 %v1457
    %v5315 = vunpack.c.l.b16 %v1458
    %v5316 = vunpack.c.l.b16 %v1459
    %v5317 = vunpack.c.l.b16 %v1460
    %v5318 = vunpack.c.l.b16 %v1461
    %v5319 = vunpack.c.l.b16 %v1462
    %v5320 = vunpack.c.l.b16 %v1463
    %v5321 = vunpack.c.l.b16 %v1464
    %v5322 = vunpack.c.l.b16 %v1465
    %v5323 = vunpack.c.l.b16 %v1466
    %v5324 = vunpack.c.l.b16 %v1467
    %v5325 = vunpack.c.l.b16 %v1468
    %v5326 = vunpack.c.l.b16 %v1469
    %v5327 = vunpack.c.l.b16 %v1470
    %v5328 = vunpack.c.l.b16 %v1471
    %v5329 = vunpack.c.l.b16 %v1472
    %v5330 = vunpack.c.l.b16 %v1473
    %v5331 = vunpack.c.l.b16 %v1474
    %v5332 = vunpack.c.l.b16 %v1475
    %v5333 = vunpack.c.l.b16 %v1476
    %v5334 = vunpack.c.l.b16 %v1477
    %v5335 = vunpack.c.l.b16 %v1478
    %v5336 = vunpack.c.l.b16 %v1479
    %v5337 = vunpack.c.l.b16 %v1480
    %v5338 = vunpack.c.l.b16 %v1481
    %v5339 = vunpack.c.l.b16 %v1482
    %v5340 = vunpack.c.l.b16 %v1483
    %v5341 = vunpack.c.l.b16 %v1484
    %v5342 = vunpack.c.l.b16 %v1485
    %v5343 = vunpack.c.l.b16 %v1486
    %v5344 = vunpack.c.l.b16 %v1487
    %v5345 = vunpack.c.l.b16 %v1488
    %v5346 = vunpack.c.l.b16 %v1489
    %v5347 = vunpack.c.l.b16 %v1490
    %v5348 = vunpack.c.l.b16 %v1491
    %v5349 = vunpack.c.l.b16 %v1492
    %v5350 = vunpack.c.l.b16 %v1493
    %v5351 = vunpack.c.l.b16 %v1494
    %v5352 = vunpack.c.l.b16 %v1495
    %v5353 = vunpack.c.l.b16 %v1496
    %v5354 = vunpack.c.l.b16 %v1497
    %v5355 = vunpack.c.l.b16 %v1498
    %v5356 = vunpack.c.l.b16 %v1499
    %v5357 = vunpack.c.l.b16 %v1500
    %v5358 = vunpack.c.l.b16 %v1501
    %v5359 = vunpack.c.l.b16 %v1502
    %v5360 = vunpack.c.l.b16 %v1503
    %v5361 = vunpack.c.l.b16 %v1504
    %v5362 = vunpack.c.l.b16 %v1505
    %v5363 = vunpack.c.l.b16 %v1506
    %v5364 = vunpack.c.l.b16 %v1507
    %v5365 = vunpack.c.l.b16 %v1508
    %v5366 = vunpack.c.l.b16 %v1509
    %v5367 = vunpack.c.l.b16 %v1510
    %v5368 = vunpack.c.l.b16 %v1511
    %v5369 = vunpack.c.l.b16 %v1512
    %v5370 = vunpack.c.l.b16 %v1513
    %v5371 = vunpack.c.l.b16 %v1514
    %v5372 = vunpack.c.l.b16 %v1515
    %v5373 = vunpack.c.l.b16 %v1516
    %v5374 = vunpack.c.l.b16 %v1517
    %v5375 = vunpack.c.l.b16 %v1518
    %v5376 = vunpack.c.l.b16 %v1519
    %v5377 = vunpack.c.l.b16 %v1520
    %v5378 = vunpack.c.l.b16 %v1521
    %v5379 = vunpack.c.l.b16 %v1522
    %v5380 = vunpack.c.l.b16 %v1523
    %v5381 = vunpack.c.l.b16 %v1524
    %v5382 = vunpack.c.l.b16 %v1525
    %v5383 = vunpack.c.l.b16 %v1526
    %v5384 = vunpack.c.l.b16 %v1527
    %v5385 = vunpack.c.l.b16 %v1528
    %v5386 = vunpack.c.l.b16 %v1529
    %v5387 = vunpack.c.l.b16 %v1530
    %v5388 = vunpack.c.l.b16 %v1531
    %v5389 = vunpack.c.l.b16 %v1532
    %v5390 = vunpack.c.l.b16 %v1533
    %v5391 = vunpack.c.l.b16 %v1534
    %v5392 = vunpack.c.l.b16 %v1535
    %v5393 = vunpack.c.l.b16 %v1536
    %v5394 = vunpack.c.l.b16 %v1537
    %v5395 = vunpack.c.l.b16 %v1538
    %v5396 = vunpack.c.l.b16 %v1539
    %v5397 = vunpack.c.l.b16 %v1540
    %v5398 = vunpack.c.l.b16 %v1541
    %v5399 = vunpack.c.l.b16 %v1542
    %v5400 = vunpack.c.l.b16 %v1543
    %v5401 = vunpack.c.l.b16 %v1544
    %v5402 = vunpack.c.l.b16 %v1545
    %v5403 = vunpack.c.l.b16 %v1546
    %v5404 = vunpack.c.l.b16 %v1547
    %v5405 = vunpack.c.l.b16 %v1548
    %v5406 = vunpack.c.l.b16 %v1549
    %v5407 = vunpack.c.l.b16 %v1550
    %v5408 = vunpack.c.l.b16 %v1551
    %v5409 = vunpack.c.l.b16 %v1552
    %v5410 = vunpack.c.l.b16 %v1553
    %v5411 = vunpack.c.l.b16 %v1554
    %v5412 = vunpack.c.l.b16 %v1555
    %v5413 = vunpack.c.l.b16 %v1556
    %v5414 = vunpack.c.l.b16 %v1557
    %v5415 = vunpack.c.l.b16 %v1558
    %v5416 = vunpack.c.l.b16 %v1559
    %v5417 = vunpack.c.l.b16 %v1560
    %v5418 = vunpack.c.l.b16 %v1561
    %v5419 = vunpack.c.l.b16 %v1562
    %v5420 = vunpack.c.l.b16 %v1563
    %v5421 = vunpack.c.l.b16 %v1564
    %v5422 = vunpack.c.l.b16 %v1565
    %v5423 = vunpack.c.l.b16 %v1566
    %v5424 = vunpack.c.l.b16 %v1567
    %v5425 = vunpack.c.l.b16 %v1568
    %v5426 = vunpack.c.l.b16 %v1569
    %v5427 = vunpack.c.l.b16 %v1570
    %v5428 = vunpack.c.l.b16 %v1571
    %v5429 = vunpack.c.l.b16 %v1572
    %v5430 = vunpack.c.l.b16 %v1573
    %v5431 = vunpack.c.l.b16 %v1574
    %v5432 = vunpack.c.l.b16 %v1575
    %v5433 = vunpack.c.l.b16 %v1576
    %v5434 = vunpack.c.l.b16 %v1577
    %v5435 = vunpack.c.l.b16 %v1578
    %v5436 = vunpack.c.l.b16 %v1579
    %v5437 = vunpack.c.l.b16 %v1580
    %v5438 = vunpack.c.l.b16 %v1581
    %v5439 = vunpack.c.l.b16 %v1582
    %v5440 = vunpack.c.l.b16 %v1583
    %v5441 = vunpack.c.l.b16 %v1584
    %v5442 = vunpack.c.l.b16 %v1585
    %v5443 = vunpack.c.l.b16 %v1586
    %v5444 = vunpack.c.l.b16 %v1587
    %v5445 = vunpack.c.l.b16 %v1588
    %v5446 = vunpack.c.l.b16 %v1589
    %v5447 = vunpack.c.l.b16 %v1590
    %v5448 = vunpack.c.l.b16 %v1591
    %v5449 = vunpack.c.l.b16 %v1592
    %v5450 = vunpack.c.l.b16 %v1593
    %v5451 = vunpack.c.l.b16 %v1594
    %v5452 = vunpack.c.l.b16 %v1595
    %v5453 = vunpack.c.l.b16 %v1596
    %v5454 = vunpack.c.l.b16 %v1597
    %v5455 = vunpack.c.l.b16 %v1598
    %v5456 = vunpack.c.l.b16 %v1599
    %v5457 = vunpack.c.l.b16 %v1600
    %v5458 = vunpack.c.l.b16 %v1601
    %v5459 = vunpack.c.l.b16 %v1602
    %v5460 = vunpack.c.l.b16 %v1603
    %v5461 = vunpack.c.l.b16 %v1604
    %v5462 = vunpack.c.l.b16 %v1605
    %v5463 = vunpack.c.l.b16 %v1606
    %v5464 = vunpack.c.l.b16 %v1607
    %v5465 = vunpack.c.l.b16 %v1608
    %v5466 = vunpack.c.l.b16 %v1609
    %v5467 = vunpack.c.l.b16 %v1610
    %v5468 = vpack.c.b16 %v3901, %v3900
    %v5469 = vpack.c.b16 %v3903, %v3902
    %v5470 = vpack.c.b16 %v3905, %v3904
    %v5471 = vpack.c.b16 %v3907, %v3906
    %v5472 = vpack.c.b16 %v3909, %v3908
    %v5473 = vpack.c.b16 %v3911, %v3910
    %v5474 = vpack.c.b16 %v3913, %v3912
    %v5475 = vpack.c.b16 %v3915, %v3914
    %v5476 = vpack.c.b16 %v3917, %v3916
    %v5477 = vpack.c.b16 %v3919, %v3918
    %v5478 = vpack.c.b16 %v3921, %v3920
    %v5479 = vpack.c.b16 %v3923, %v3922
    %v5480 = vpack.c.b16 %v3925, %v3924
    %v5481 = vpack.c.b16 %v3927, %v3926
    %v5482 = vpack.c.b16 %v3929, %v3928
    %v5483 = vpack.c.b16 %v3931, %v3930
    %v5484 = vpack.c.b16 %v3933, %v3932
    %v5485 = vpack.c.b16 %v3935, %v3934
    %v5486 = vpack.c.b16 %v3937, %v3936
    %v5487 = vpack.c.b16 %v3939, %v3938
    %v5488 = vpack.c.b16 %v3941, %v3940
    %v5489 = vpack.c.b16 %v3943, %v3942
    %v5490 = vpack.c.b16 %v3945, %v3944
    %v5491 = vpack.c.b16 %v3947, %v3946
    %v5492 = vpack.c.b16 %v3949, %v3948
    %v5493 = vpack.c.b16 %v3951, %v3950
    %v5494 = vpack.c.b16 %v3953, %v3952
    %v5495 = vpack.c.b16 %v3955, %v3954
    %v5496 = vpack.c.b16 %v3957, %v3956
    %v5497 = vpack.c.b16 %v3959, %v3958
    %v5498 = vpack.c.b16 %v3961, %v3960
    %v5499 = vpack.c.b16 %v3963, %v3962
    %v5500 = vpack.c.b16 %v3965, %v3964
    %v5501 = vpack.c.b16 %v3967, %v3966
    %v5502 = vpack.c.b16 %v3969, %v3968
    %v5503 = vpack.c.b16 %v3971, %v3970
    %v5504 = vpack.c.b16 %v3973, %v3972
    %v5505 = vpack.c.b16 %v3975, %v3974
    %v5506 = vpack.c.b16 %v3977, %v3976
    %v5507 = vpack.c.b16 %v3979, %v3978
    %v5508 = vpack.c.b16 %v3981, %v3980
    %v5509 = vpack.c.b16 %v3983, %v3982
    %v5510 = vpack.c.b16 %v3985, %v3984
    %v5511 = vpack.c.b16 %v3987, %v3986
    %v5512 = vpack.c.b16 %v3989, %v3988
    %v5513 = vpack.c.b16 %v3991, %v3990
    %v5514 = vpack.c.b16 %v3993, %v3992
    %v5515 = vpack.c.b16 %v3995, %v3994
    %v5516 = vpack.c.b16 %v3997, %v3996
    %v5517 = vpack.c.b16 %v3999, %v3998
    %v5518 = vpack.c.b16 %v4001, %v4000
    %v5519 = vpack.c.b16 %v4003, %v4002
    %v5520 = vpack.c.b16 %v4005, %v4004
    %v5521 = vpack.c.b16 %v4007, %v4006
    %v5522 = vpack.c.b16 %v4009, %v4008
    %v5523 = vpack.c.b16 %v4011, %v4010
    %v5524 = vpack.c.b16 %v4013, %v4012
    %v5525 = vpack.c.b16 %v4015, %v4014
    %v5526 = vpack.c.b16 %v4017, %v4016
    %v5527 = vpack.c.b16 %v4019, %v4018
    %v5528 = vpack.c.b16 %v4021, %v4020
    %v5529 = vpack.c.b16 %v4023, %v4022
    %v5530 = vpack.c.b16 %v4025, %v4024
    %v5531 = vpack.c.b16 %v4027, %v4026
    %v5532 = vpack.c.b16 %v4029, %v4028
    %v5533 = vpack.c.b16 %v4031, %v4030
    %v5534 = vpack.c.b16 %v4033, %v4032
    %v5535 = vpack.c.b16 %v4035, %v4034
    %v5536 = vpack.c.b16 %v4037, %v4036
    %v5537 = vpack.c.b16 %v4039, %v4038
    %v5538 = vpack.c.b16 %v4041, %v4040
    %v5539 = vpack.c.b16 %v4043, %v4042
    %v5540 = vpack.c.b16 %v4045, %v4044
    %v5541 = vpack.c.b16 %v4047, %v4046
    %v5542 = vpack.c.b16 %v4049, %v4048
    %v5543 = vpack.c.b16 %v4051, %v4050
    %v5544 = vpack.c.b16 %v4053, %v4052
    %v5545 = vpack.c.b16 %v4055, %v4054
    %v5546 = vpack.c.b16 %v4057, %v4056
    %v5547 = vpack.c.b16 %v4059, %v4058
    %v5548 = vpack.c.b16 %v4061, %v4060
    %v5549 = vpack.c.b16 %v4063, %v4062
    %v5550 = vpack.c.b16 %v4065, %v4064
    %v5551 = vpack.c.b16 %v4067, %v4066
    %v5552 = vpack.c.b16 %v4069, %v4068
    %v5553 = vpack.c.b16 %v4071, %v4070
    %v5554 = vpack.c.b16 %v4073, %v4072
    %v5555 = vpack.c.b16 %v4075, %v4074
    %v5556 = vpack.c.b16 %v4077, %v4076
    %v5557 = vpack.c.b16 %v4079, %v4078
    %v5558 = vpack.c.b16 %v4081, %v4080
    %v5559 = vpack.c.b16 %v4083, %v4082
    %v5560 = vpack.c.b16 %v4085, %v4084
    %v5561 = vpack.c.b16 %v4087, %v4086
    %v5562 = vpack.c.b16 %v4089, %v4088
    %v5563 = vpack.c.b16 %v4091, %v4090
    %v5564 = vpack.c.b16 %v4093, %v4092
    %v5565 = vpack.c.b16 %v4095, %v4094
    %v5566 = vpack.c.b16 %v4097, %v4096
    %v5567 = vpack.c.b16 %v4099, %v4098
    %v5568 = vpack.c.b16 %v4101, %v4100
    %v5569 = vpack.c.b16 %v4103, %v4102
    %v5570 = vpack.c.b16 %v4105, %v4104
    %v5571 = vpack.c.b16 %v4107, %v4106
    %v5572 = vpack.c.b16 %v4109, %v4108
    %v5573 = vpack.c.b16 %v4111, %v4110
    %v5574 = vpack.c.b16 %v4113, %v4112
    %v5575 = vpack.c.b16 %v4115, %v4114
    %v5576 = vpack.c.b16 %v4117, %v4116
    %v5577 = vpack.c.b16 %v4119, %v4118
    %v5578 = vpack.c.b16 %v4121, %v4120
    %v5579 = vpack.c.b16 %v4123, %v4122
    %v5580 = vpack.c.b16 %v4125, %v4124
    %v5581 = vpack.c.b16 %v4127, %v4126
    %v5582 = vpack.c.b16 %v4129, %v4128
    %v5583 = vpack.c.b16 %v4131, %v4130
    %v5584 = vpack.c.b16 %v4133, %v4132
    %v5585 = vpack.c.b16 %v4135, %v4134
    %v5586 = vpack.c.b16 %v4137, %v4136
    %v5587 = vpack.c.b16 %v4139, %v4138
    %v5588 = vpack.c.b16 %v4141, %v4140
    %v5589 = vpack.c.b16 %v4143, %v4142
    %v5590 = vpack.c.b16 %v4145, %v4144
    %v5591 = vpack.c.b16 %v4147, %v4146
    %v5592 = vpack.c.b16 %v4149, %v4148
    %v5593 = vpack.c.b16 %v4151, %v4150
    %v5594 = vpack.c.b16 %v4153, %v4152
    %v5595 = vpack.c.b16 %v4155, %v4154
    %v5596 = vpack.c.b16 %v4157, %v4156
    %v5597 = vpack.c.b16 %v4159, %v4158
    %v5598 = vpack.c.b16 %v4161, %v4160
    %v5599 = vpack.c.b16 %v4163, %v4162
    %v5600 = vpack.c.b16 %v4165, %v4164
    %v5601 = vpack.c.b16 %v4167, %v4166
    %v5602 = vpack.c.b16 %v4169, %v4168
    %v5603 = vpack.c.b16 %v4171, %v4170
    %v5604 = vpack.c.b16 %v4173, %v4172
    %v5605 = vpack.c.b16 %v4175, %v4174
    %v5606 = vpack.c.b16 %v4177, %v4176
    %v5607 = vpack.c.b16 %v4179, %v4178
    %v5608 = vpack.c.b16 %v4181, %v4180
    %v5609 = vpack.c.b16 %v4183, %v4182
    %v5610 = vpack.c.b16 %v4185, %v4184
    %v5611 = vpack.c.b16 %v4187, %v4186
    %v5612 = vpack.c.b16 %v4189, %v4188
    %v5613 = vpack.c.b16 %v4191, %v4190
    %v5614 = vpack.c.b16 %v4193, %v4192
    %v5615 = vpack.c.b16 %v4195, %v4194
    %v5616 = vpack.c.b16 %v4197, %v4196
    %v5617 = vpack.c.b16 %v4199, %v4198
    %v5618 = vpack.c.b16 %v4201, %v4200
    %v5619 = vpack.c.b16 %v4203, %v4202
    %v5620 = vpack.c.b16 %v4205, %v4204
    %v5621 = vpack.c.b16 %v4207, %v4206
    %v5622 = vpack.c.b16 %v4209, %v4208
    %v5623 = vpack.c.b16 %v4211, %v4210
    %v5624 = vpack.c.b16 %v4213, %v4212
    %v5625 = vpack.c.b16 %v4215, %v4214
    %v5626 = vpack.c.b16 %v4217, %v4216
    %v5627 = vpack.c.b16 %v4219, %v4218
    %v5628 = vpack.c.b16 %v4221, %v4220
    %v5629 = vpack.c.b16 %v4223, %v4222
    %v5630 = vpack.c.b16 %v4225, %v4224
    %v5631 = vpack.c.b16 %v4227, %v4226
    %v5632 = vpack.c.b16 %v4229, %v4228
    %v5633 = vpack.c.b16 %v4231, %v4230
    %v5634 = vpack.c.b16 %v4233, %v4232
    %v5635 = vpack.c.b16 %v4235, %v4234
    %v5636 = vpack.c.b16 %v4237, %v4236
    %v5637 = vpack.c.b16 %v4239, %v4238
    %v5638 = vpack.c.b16 %v4241, %v4240
    %v5639 = vpack.c.b16 %v4243, %v4242
    %v5640 = vpack.c.b16 %v4245, %v4244
    %v5641 = vpack.c.b16 %v4247, %v4246
    %v5642 = vpack.c.b16 %v4249, %v4248
    %v5643 = vpack.c.b16 %v4251, %v4250
    %v5644 = vpack.c.b16 %v4253, %v4252
    %v5645 = vpack.c.b16 %v4255, %v4254
    %v5646 = vpack.c.b16 %v4257, %v4256
    %v5647 = vpack.c.b16 %v4259, %v4258
    %v5648 = vpack.c.b16 %v4261, %v4260
    %v5649 = vpack.c.b16 %v4263, %v4262
    %v5650 = vpack.c.b16 %v4265, %v4264
    %v5651 = vpack.c.b16 %v4267, %v4266
    %v5652 = vpack.c.b16 %v4269, %v4268
    %v5653 = vpack.c.b16 %v4271, %v4270
    %v5654 = vpack.c.b16 %v4273, %v4272
    %v5655 = vpack.c.b16 %v4275, %v4274
    %v5656 = vpack.c.b16 %v4277, %v4276
    %v5657 = vpack.c.b16 %v4279, %v4278
    %v5658 = vpack.c.b16 %v4281, %v4280
    %v5659 = vpack.c.b16 %v4283, %v4282
    %v5660 = vpack.c.b16 %v4285, %v4284
    %v5661 = vpack.c.b16 %v4287, %v4286
    %v5662 = vpack.c.b16 %v4289, %v4288
    %v5663 = vpack.c.b16 %v4291, %v4290
    %v5664 = vpack.c.b16 %v4293, %v4292
    %v5665 = vpack.c.b16 %v4295, %v4294
    %v5666 = vpack.c.b16 %v4297, %v4296
    %v5667 = vpack.c.b16 %v4299, %v4298
    %v5668 = vpack.c.b16 %v4301, %v4300
    %v5669 = vpack.c.b16 %v4303, %v4302
    %v5670 = vpack.c.b16 %v4305, %v4304
    %v5671 = vpack.c.b16 %v4307, %v4306
    %v5672 = vpack.c.b16 %v4309, %v4308
    %v5673 = vpack.c.b16 %v4311, %v4310
    %v5674 = vpack.c.b16 %v4313, %v4312
    %v5675 = vpack.c.b16 %v4315, %v4314
    %v5676 = vpack.c.b16 %v4317, %v4316
    %v5677 = vpack.c.b16 %v4319, %v4318
    %v5678 = vpack.c.b16 %v4321, %v4320
    %v5679 = vpack.c.b16 %v4323, %v4322
    %v5680 = vpack.c.b16 %v4325, %v4324
    %v5681 = vpack.c.b16 %v4327, %v4326
    %v5682 = vpack.c.b16 %v4329, %v4328
    %v5683 = vpack.c.b16 %v4331, %v4330
    %v5684 = vpack.c.b16 %v4333, %v4332
    %v5685 = vpack.c.b16 %v4335, %v4334
    %v5686 = vpack.c.b16 %v4337, %v4336
    %v5687 = vpack.c.b16 %v4339, %v4338
    %v5688 = vpack.c.b16 %v4341, %v4340
    %v5689 = vpack.c.b16 %v4343, %v4342
    %v5690 = vpack.c.b16 %v4345, %v4344
    %v5691 = vpack.c.b16 %v4347, %v4346
    %v5692 = vpack.c.b16 %v4349, %v4348
    %v5693 = vpack.c.b16 %v4351, %v4350
    %v5694 = vpack.c.b16 %v4353, %v4352
    %v5695 = vpack.c.b16 %v4355, %v4354
    %v5696 = vpack.c.b16 %v4357, %v4356
    %v5697 = vpack.c.b16 %v4359, %v4358
    %v5698 = vpack.c.b16 %v4361, %v4360
    %v5699 = vpack.c.b16 %v4363, %v4362
    %v5700 = vpack.c.b16 %v4365, %v4364
    %v5701 = vpack.c.b16 %v4367, %v4366
    %v5702 = vpack.c.b16 %v4369, %v4368
    %v5703 = vpack.c.b16 %v4371, %v4370
    %v5704 = vpack.c.b16 %v4373, %v4372
    %v5705 = vpack.c.b16 %v4375, %v4374
    %v5706 = vpack.c.b16 %v4377, %v4376
    %v5707 = vpack.c.b16 %v4379, %v4378
    %v5708 = vpack.c.b16 %v4381, %v4380
    %v5709 = vpack.c.b16 %v4383, %v4382
    %v5710 = vpack.c.b16 %v4385, %v4384
    %v5711 = vpack.c.b16 %v4387, %v4386
    %v5712 = vpack.c.b16 %v4389, %v4388
    %v5713 = vpack.c.b16 %v4391, %v4390
    %v5714 = vpack.c.b16 %v4393, %v4392
    %v5715 = vpack.c.b16 %v4395, %v4394
    %v5716 = vpack.c.b16 %v4397, %v4396
    %v5717 = vpack.c.b16 %v4399, %v4398
    %v5718 = vpack.c.b16 %v4401, %v4400
    %v5719 = vpack.c.b16 %v4403, %v4402
    %v5720 = vpack.c.b16 %v4405, %v4404
    %v5721 = vpack.c.b16 %v4407, %v4406
    %v5722 = vpack.c.b16 %v4409, %v4408
    %v5723 = vpack.c.b16 %v4411, %v4410
    %v5724 = vpack.c.b16 %v4413, %v4412
    %v5725 = vpack.c.b16 %v4415, %v4414
    %v5726 = vpack.c.b16 %v4417, %v4416
    %v5727 = vpack.c.b16 %v4419, %v4418
    %v5728 = vpack.c.b16 %v4421, %v4420
    %v5729 = vpack.c.b16 %v4423, %v4422
    %v5730 = vpack.c.b16 %v4425, %v4424
    %v5731 = vpack.c.b16 %v4427, %v4426
    %v5732 = vpack.c.b16 %v4429, %v4428
    %v5733 = vpack.c.b16 %v4431, %v4430
    %v5734 = vpack.c.b16 %v4433, %v4432
    %v5735 = vpack.c.b16 %v4435, %v4434
    %v5736 = vpack.c.b16 %v4437, %v4436
    %v5737 = vpack.c.b16 %v4439, %v4438
    %v5738 = vpack.c.b16 %v4441, %v4440
    %v5739 = vpack.c.b16 %v4443, %v4442
    %v5740 = vpack.c.b16 %v4445, %v4444
    %v5741 = vpack.c.b16 %v4447, %v4446
    %v5742 = vpack.c.b16 %v4449, %v4448
    %v5743 = vpack.c.b16 %v4451, %v4450
    %v5744 = vpack.c.b16 %v4453, %v4452
    %v5745 = vpack.c.b16 %v4455, %v4454
    %v5746 = vpack.c.b16 %v4457, %v4456
    %v5747 = vpack.c.b16 %v4459, %v4458
    %v5748 = vpack.c.b16 %v4461, %v4460
    %v5749 = vpack.c.b16 %v4463, %v4462
    %v5750 = vpack.c.b16 %v4465, %v4464
    %v5751 = vpack.c.b16 %v4467, %v4466
    %v5752 = vpack.c.b16 %v4469, %v4468
    %v5753 = vpack.c.b16 %v4471, %v4470
    %v5754 = vpack.c.b16 %v4473, %v4472
    %v5755 = vpack.c.b16 %v4475, %v4474
    %v5756 = vpack.c.b16 %v4477, %v4476
    %v5757 = vpack.c.b16 %v4479, %v4478
    %v5758 = vpack.c.b16 %v4481, %v4480
    %v5759 = vpack.c.b16 %v4483, %v4482
    %v5760 = vpack.c.b16 %v4485, %v4484
    %v5761 = vpack.c.b16 %v4487, %v4486
    %v5762 = vpack.c.b16 %v4489, %v4488
    %v5763 = vpack.c.b16 %v4491, %v4490
    %v5764 = vpack.c.b16 %v4493, %v4492
    %v5765 = vpack.c.b16 %v4495, %v4494
    %v5766 = vpack.c.b16 %v4497, %v4496
    %v5767 = vpack.c.b16 %v4499, %v4498
    %v5768 = vpack.c.b16 %v4501, %v4500
    %v5769 = vpack.c.b16 %v4503, %v4502
    %v5770 = vpack.c.b16 %v4505, %v4504
    %v5771 = vpack.c.b16 %v4507, %v4506
    %v5772 = vpack.c.b16 %v4509, %v4508
    %v5773 = vpack.c.b16 %v4511, %v4510
    %v5774 = vpack.c.b16 %v4513, %v4512
    %v5775 = vpack.c.b16 %v4515, %v4514
    %v5776 = vpack.c.b16 %v4517, %v4516
    %v5777 = vpack.c.b16 %v4519, %v4518
    %v5778 = vpack.c.b16 %v4521, %v4520
    %v5779 = vpack.c.b16 %v4523, %v4522
    %v5780 = vpack.c.b16 %v4525, %v4524
    %v5781 = vpack.c.b16 %v4527, %v4526
    %v5782 = vpack.c.b16 %v4529, %v4528
    %v5783 = vpack.c.b16 %v4531, %v4530
    %v5784 = vpack.c.b16 %v4533, %v4532
    %v5785 = vpack.c.b16 %v4535, %v4534
    %v5786 = vpack.c.b16 %v4537, %v4536
    %v5787 = vpack.c.b16 %v4539, %v4538
    %v5788 = vpack.c.b16 %v4541, %v4540
    %v5789 = vpack.c.b16 %v4543, %v4542
    %v5790 = vpack.c.b16 %v4545, %v4544
    %v5791 = vpack.c.b16 %v4547, %v4546
    %v5792 = vpack.c.b16 %v4549, %v4548
    %v5793 = vpack.c.b16 %v4551, %v4550
    %v5794 = vpack.c.b16 %v4553, %v4552
    %v5795 = vpack.c.b16 %v4555, %v4554
    %v5796 = vpack.c.b16 %v4557, %v4556
    %v5797 = vpack.c.b16 %v4559, %v4558
    %v5798 = vpack.c.b16 %v4561, %v4560
    %v5799 = vpack.c.b16 %v4563, %v4562
    %v5800 = vpack.c.b16 %v4565, %v4564
    %v5801 = vpack.c.b16 %v4567, %v4566
    %v5802 = vpack.c.b16 %v4569, %v4568
    %v5803 = vpack.c.b16 %v4571, %v4570
    %v5804 = vpack.c.b16 %v4573, %v4572
    %v5805 = vpack.c.b16 %v4575, %v4574
    %v5806 = vpack.c.b16 %v4577, %v4576
    %v5807 = vpack.c.b16 %v4579, %v4578
    %v5808 = vpack.c.b16 %v4581, %v4580
    %v5809 = vpack.c.b16 %v4583, %v4582
    %v5810 = vpack.c.b16 %v4585, %v4584
    %v5811 = vpack.c.b16 %v4587, %v4586
    %v5812 = vpack.c.b16 %v4589, %v4588
    %v5813 = vpack.c.b16 %v4591, %v4590
    %v5814 = vpack.c.b16 %v4593, %v4592
    %v5815 = vpack.c.b16 %v4595, %v4594
    %v5816 = vpack.c.b16 %v4597, %v4596
    %v5817 = vpack.c.b16 %v4599, %v4598
    %v5818 = vpack.c.b16 %v4601, %v4600
    %v5819 = vpack.c.b16 %v4603, %v4602
    %v5820 = vpack.c.b16 %v4605, %v4604
    %v5821 = vpack.c.b16 %v4607, %v4606
    %v5822 = vpack.c.b16 %v4609, %v4608
    %v5823 = vpack.c.b16 %v4611, %v4610
    %v5824 = vpack.c.b16 %v4613, %v4612
    %v5825 = vpack.c.b16 %v4615, %v4614
    %v5826 = vpack.c.b16 %v4617, %v4616
    %v5827 = vpack.c.b16 %v4619, %v4618
    %v5828 = vpack.c.b16 %v4621, %v4620
    %v5829 = vpack.c.b16 %v4623, %v4622
    %v5830 = vpack.c.b16 %v4625, %v4624
    %v5831 = vpack.c.b16 %v4627, %v4626
    %v5832 = vpack.c.b16 %v4629, %v4628
    %v5833 = vpack.c.b16 %v4631, %v4630
    %v5834 = vpack.c.b16 %v4633, %v4632
    %v5835 = vpack.c.b16 %v4635, %v4634
    %v5836 = vpack.c.b16 %v4637, %v4636
    %v5837 = vpack.c.b16 %v4639, %v4638
    %v5838 = vpack.c.b16 %v4641, %v4640
    %v5839 = vpack.c.b16 %v4643, %v4642
    %v5840 = vpack.c.b16 %v4645, %v4644
    %v5841 = vpack.c.b16 %v4647, %v4646
    %v5842 = vpack.c.b16 %v4649, %v4648
    %v5843 = vpack.c.b16 %v4651, %v4650
    %v5844 = vpack.c.b16 %v4653, %v4652
    %v5845 = vpack.c.b16 %v4655, %v4654
    %v5846 = vpack.c.b16 %v4657, %v4656
    %v5847 = vpack.c.b16 %v4659, %v4658
    %v5848 = vpack.c.b16 %v4661, %v4660
    %v5849 = vpack.c.b16 %v4663, %v4662
    %v5850 = vpack.c.b16 %v4665, %v4664
    %v5851 = vpack.c.b16 %v4667, %v4666
    %v5852 = vpack.c.b16 %v4669, %v4668
    %v5853 = vpack.c.b16 %v4671, %v4670
    %v5854 = vpack.c.b16 %v4673, %v4672
    %v5855 = vpack.c.b16 %v4675, %v4674
    %v5856 = vpack.c.b16 %v4677, %v4676
    %v5857 = vpack.c.b16 %v4679, %v4678
    %v5858 = vpack.c.b16 %v4681, %v4680
    %v5859 = vpack.c.b16 %v4683, %v4682
    %v5860 = vpack.c.b16 %v4685, %v4684
    %v5861 = vpack.c.b16 %v4687, %v4686
    %v5862 = vpack.c.b16 %v4689, %v4688
    %v5863 = vpack.c.b16 %v4691, %v4690
    %v5864 = vpack.c.b16 %v4693, %v4692
    %v5865 = vpack.c.b16 %v4695, %v4694
    %v5866 = vpack.c.b16 %v4697, %v4696
    %v5867 = vpack.c.b16 %v4699, %v4698
    %v5868 = vpack.c.b16 %v4701, %v4700
    %v5869 = vpack.c.b16 %v4703, %v4702
    %v5870 = vpack.c.b16 %v4705, %v4704
    %v5871 = vpack.c.b16 %v4707, %v4706
    %v5872 = vpack.c.b16 %v4709, %v4708
    %v5873 = vpack.c.b16 %v4711, %v4710
    %v5874 = vpack.c.b16 %v4713, %v4712
    %v5875 = vpack.c.b16 %v4715, %v4714
    %v5876 = vpack.c.b16 %v4717, %v4716
    %v5877 = vpack.c.b16 %v4719, %v4718
    %v5878 = vpack.c.b16 %v4721, %v4720
    %v5879 = vpack.c.b16 %v4723, %v4722
    %v5880 = vpack.c.b16 %v4725, %v4724
    %v5881 = vpack.c.b16 %v4727, %v4726
    %v5882 = vpack.c.b16 %v4729, %v4728
    %v5883 = vpack.c.b16 %v4731, %v4730
    %v5884 = vpack.c.b16 %v4733, %v4732
    %v5885 = vpack.c.b16 %v4735, %v4734
    %v5886 = vpack.c.b16 %v4737, %v4736
    %v5887 = vpack.c.b16 %v4739, %v4738
    %v5888 = vpack.c.b16 %v4741, %v4740
    %v5889 = vpack.c.b16 %v4743, %v4742
    %v5890 = vpack.c.b16 %v4745, %v4744
    %v5891 = vpack.c.b16 %v4747, %v4746
    %v5892 = vpack.c.b16 %v4749, %v4748
    %v5893 = vpack.c.b16 %v4751, %v4750
    %v5894 = vpack.c.b16 %v4753, %v4752
    %v5895 = vpack.c.b16 %v4755, %v4754
    %v5896 = vpack.c.b16 %v4757, %v4756
    %v5897 = vpack.c.b16 %v4759, %v4758
    %v5898 = vpack.c.b16 %v4761, %v4760
    %v5899 = vpack.c.b16 %v4763, %v4762
    %v5900 = vpack.c.b16 %v4765, %v4764
    %v5901 = vpack.c.b16 %v4767, %v4766
    %v5902 = vpack.c.b16 %v4769, %v4768
    %v5903 = vpack.c.b16 %v4771, %v4770
    %v5904 = vpack.c.b16 %v4773, %v4772
    %v5905 = vpack.c.b16 %v4775, %v4774
    %v5906 = vpack.c.b16 %v4777, %v4776
    %v5907 = vpack.c.b16 %v4779, %v4778
    %v5908 = vpack.c.b16 %v4781, %v4780
    %v5909 = vpack.c.b16 %v4783, %v4782
    %v5910 = vpack.c.b16 %v4785, %v4784
    %v5911 = vpack.c.b16 %v4787, %v4786
    %v5912 = vpack.c.b16 %v4789, %v4788
    %v5913 = vpack.c.b16 %v4791, %v4790
    %v5914 = vpack.c.b16 %v4793, %v4792
    %v5915 = vpack.c.b16 %v4795, %v4794
    %v5916 = vpack.c.b16 %v4797, %v4796
    %v5917 = vpack.c.b16 %v4799, %v4798
    %v5918 = vpack.c.b16 %v4801, %v4800
    %v5919 = vpack.c.b16 %v4803, %v4802
    %v5920 = vpack.c.b16 %v4805, %v4804
    %v5921 = vpack.c.b16 %v4807, %v4806
    %v5922 = vpack.c.b16 %v4809, %v4808
    %v5923 = vpack.c.b16 %v4811, %v4810
    %v5924 = vpack.c.b16 %v4813, %v4812
    %v5925 = vpack.c.b16 %v4815, %v4814
    %v5926 = vpack.c.b16 %v4817, %v4816
    %v5927 = vpack.c.b16 %v4819, %v4818
    %v5928 = vpack.c.b16 %v4821, %v4820
    %v5929 = vpack.c.b16 %v4823, %v4822
    %v5930 = vpack.c.b16 %v4825, %v4824
    %v5931 = vpack.c.b16 %v4827, %v4826
    %v5932 = vpack.c.b16 %v4829, %v4828
    %v5933 = vpack.c.b16 %v4831, %v4830
    %v5934 = vpack.c.b16 %v4833, %v4832
    %v5935 = vpack.c.b16 %v4835, %v4834
    %v5936 = vpack.c.b16 %v4837, %v4836
    %v5937 = vpack.c.b16 %v4839, %v4838
    %v5938 = vpack.c.b16 %v4841, %v4840
    %v5939 = vpack.c.b16 %v4843, %v4842
    %v5940 = vpack.c.b16 %v4845, %v4844
    %v5941 = vpack.c.b16 %v4847, %v4846
    %v5942 = vpack.c.b16 %v4849, %v4848
    %v5943 = vpack.c.b16 %v4851, %v4850
    %v5944 = vpack.c.b16 %v4853, %v4852
    %v5945 = vpack.c.b16 %v4855, %v4854
    %v5946 = vpack.c.b16 %v4857, %v4856
    %v5947 = vpack.c.b16 %v4859, %v4858
    %v5948 = vpack.c.b16 %v4861, %v4860
    %v5949 = vpack.c.b16 %v4863, %v4862
    %v5950 = vpack.c.b16 %v4865, %v4864
    %v5951 = vpack.c.b16 %v4867, %v4866
    %v5952 = vpack.c.b16 %v4869, %v4868
    %v5953 = vpack.c.b16 %v4871, %v4870
    %v5954 = vpack.c.b16 %v4873, %v4872
    %v5955 = vpack.c.b16 %v4875, %v4874
    %v5956 = vpack.c.b16 %v4877, %v4876
    %v5957 = vpack.c.b16 %v4879, %v4878
    %v5958 = vpack.c.b16 %v4881, %v4880
    %v5959 = vpack.c.b16 %v4883, %v4882
    %v5960 = vpack.c.b16 %v4885, %v4884
    %v5961 = vpack.c.b16 %v4887, %v4886
    %v5962 = vpack.c.b16 %v4889, %v4888
    %v5963 = vpack.c.b16 %v4891, %v4890
    %v5964 = vpack.c.b16 %v4893, %v4892
    %v5965 = vpack.c.b16 %v4895, %v4894
    %v5966 = vpack.c.b16 %v4897, %v4896
    %v5967 = vpack.c.b16 %v4899, %v4898
    %v5968 = vpack.c.b16 %v4901, %v4900
    %v5969 = vpack.c.b16 %v4903, %v4902
    %v5970 = vpack.c.b16 %v4905, %v4904
    %v5971 = vpack.c.b16 %v4907, %v4906
    %v5972 = vpack.c.b16 %v4909, %v4908
    %v5973 = vpack.c.b16 %v4911, %v4910
    %v5974 = vpack.c.b16 %v4913, %v4912
    %v5975 = vpack.c.b16 %v4915, %v4914
    %v5976 = vpack.c.b16 %v4917, %v4916
    %v5977 = vpack.c.b16 %v4919, %v4918
    %v5978 = vpack.c.b16 %v4921, %v4920
    %v5979 = vpack.c.b16 %v4923, %v4922
    %v5980 = vpack.c.b16 %v4925, %v4924
    %v5981 = vpack.c.b16 %v4927, %v4926
    %v5982 = vpack.c.b16 %v4929, %v4928
    %v5983 = vpack.c.b16 %v4931, %v4930
    %v5984 = vpack.c.b16 %v4933, %v4932
    %v5985 = vpack.c.b16 %v4935, %v4934
    %v5986 = vpack.c.b16 %v4937, %v4936
    %v5987 = vpack.c.b16 %v4939, %v4938
    %v5988 = vpack.c.b16 %v4941, %v4940
    %v5989 = vpack.c.b16 %v4943, %v4942
    %v5990 = vpack.c.b16 %v4945, %v4944
    %v5991 = vpack.c.b16 %v4947, %v4946
    %v5992 = vpack.c.b16 %v4949, %v4948
    %v5993 = vpack.c.b16 %v4951, %v4950
    %v5994 = vpack.c.b16 %v4953, %v4952
    %v5995 = vpack.c.b16 %v4955, %v4954
    %v5996 = vpack.c.b16 %v4957, %v4956
    %v5997 = vpack.c.b16 %v4959, %v4958
    %v5998 = vpack.c.b16 %v4961, %v4960
    %v5999 = vpack.c.b16 %v4963, %v4962
    %v6000 = vpack.c.b16 %v4965, %v4964
    %v6001 = vpack.c.b16 %v4967, %v4966
    %v6002 = vpack.c.b16 %v4969, %v4968
    %v6003 = vpack.c.b16 %v4971, %v4970
    %v6004 = vpack.c.b16 %v4973, %v4972
    %v6005 = vpack.c.b16 %v4975, %v4974
    %v6006 = vpack.c.b16 %v4977, %v4976
    %v6007 = vpack.c.b16 %v4979, %v4978
    %v6008 = vpack.c.b16 %v4981, %v4980
    %v6009 = vpack.c.b16 %v4983, %v4982
    %v6010 = vpack.c.b16 %v4985, %v4984
    %v6011 = vpack.c.b16 %v4987, %v4986
    %v6012 = vpack.c.b16 %v4989, %v4988
    %v6013 = vpack.c.b16 %v4991, %v4990
    %v6014 = vpack.c.b16 %v4993, %v4992
    %v6015 = vpack.c.b16 %v4995, %v4994
    %v6016 = vpack.c.b16 %v4997, %v4996
    %v6017 = vpack.c.b16 %v4999, %v4998
    %v6018 = vpack.c.b16 %v5001, %v5000
    %v6019 = vpack.c.b16 %v5003, %v5002
    %v6020 = vpack.c.b16 %v5005, %v5004
    %v6021 = vpack.c.b16 %v5007, %v5006
    %v6022 = vpack.c.b16 %v5009, %v5008
    %v6023 = vpack.c.b16 %v5011, %v5010
    %v6024 = vpack.c.b16 %v5013, %v5012
    %v6025 = vpack.c.b16 %v5015, %v5014
    %v6026 = vpack.c.b16 %v5017, %v5016
    %v6027 = vpack.c.b16 %v5019, %v5018
    %v6028 = vpack.c.b16 %v5021, %v5020
    %v6029 = vpack.c.b16 %v5023, %v5022
    %v6030 = vpack.c.b16 %v5025, %v5024
    %v6031 = vpack.c.b16 %v5027, %v5026
    %v6032 = vpack.c.b16 %v5029, %v5028
    %v6033 = vpack.c.b16 %v5031, %v5030
    %v6034 = vpack.c.b16 %v5033, %v5032
    %v6035 = vpack.c.b16 %v5035, %v5034
    %v6036 = vpack.c.b16 %v5037, %v5036
    %v6037 = vpack.c.b16 %v5039, %v5038
    %v6038 = vpack.c.b16 %v5041, %v5040
    %v6039 = vpack.c.b16 %v5043, %v5042
    %v6040 = vpack.c.b16 %v5045, %v5044
    %v6041 = vpack.c.b16 %v5047, %v5046
    %v6042 = vpack.c.b16 %v5049, %v5048
    %v6043 = vpack.c.b16 %v5051, %v5050
    %v6044 = vpack.c.b16 %v5053, %v5052
    %v6045 = vpack.c.b16 %v5055, %v5054
    %v6046 = vpack.c.b16 %v5057, %v5056
    %v6047 = vpack.c.b16 %v5059, %v5058
    %v6048 = vpack.c.b16 %v5061, %v5060
    %v6049 = vpack.c.b16 %v5063, %v5062
    %v6050 = vpack.c.b16 %v5065, %v5064
    %v6051 = vpack.c.b16 %v5067, %v5066
    %v6052 = vpack.c.b16 %v5069, %v5068
    %v6053 = vpack.c.b16 %v5071, %v5070
    %v6054 = vpack.c.b16 %v5073, %v5072
    %v6055 = vpack.c.b16 %v5075, %v5074
    %v6056 = vpack.c.b16 %v5077, %v5076
    %v6057 = vpack.c.b16 %v5079, %v5078
    %v6058 = vpack.c.b16 %v5081, %v5080
    %v6059 = vpack.c.b16 %v5083, %v5082
    %v6060 = vpack.c.b16 %v5085, %v5084
    %v6061 = vpack.c.b16 %v5087, %v5086
    %v6062 = vpack.c.b16 %v5089, %v5088
    %v6063 = vpack.c.b16 %v5091, %v5090
    %v6064 = vpack.c.b16 %v5093, %v5092
    %v6065 = vpack.c.b16 %v5095, %v5094
    %v6066 = vpack.c.b16 %v5097, %v5096
    %v6067 = vpack.c.b16 %v5099, %v5098
    %v6068 = vpack.c.b16 %v5101, %v5100
    %v6069 = vpack.c.b16 %v5103, %v5102
    %v6070 = vpack.c.b16 %v5105, %v5104
    %v6071 = vpack.c.b16 %v5107, %v5106
    %v6072 = vpack.c.b16 %v5109, %v5108
    %v6073 = vpack.c.b16 %v5111, %v5110
    %v6074 = vpack.c.b16 %v5113, %v5112
    %v6075 = vpack.c.b16 %v5115, %v5114
    %v6076 = vpack.c.b16 %v5117, %v5116
    %v6077 = vpack.c.b16 %v5119, %v5118
    %v6078 = vpack.c.b16 %v5121, %v5120
    %v6079 = vpack.c.b16 %v5123, %v5122
    %v6080 = vpack.c.b16 %v5125, %v5124
    %v6081 = vpack.c.b16 %v5127, %v5126
    %v6082 = vpack.c.b16 %v5129, %v5128
    %v6083 = vpack.c.b16 %v5131, %v5130
    %v6084 = vpack.c.b16 %v5133, %v5132
    %v6085 = vpack.c.b16 %v5135, %v5134
    %v6086 = vpack.c.b16 %v5137, %v5136
    %v6087 = vpack.c.b16 %v5139, %v5138
    %v6088 = vpack.c.b16 %v5141, %v5140
    %v6089 = vpack.c.b16 %v5143, %v5142
    %v6090 = vpack.c.b16 %v5145, %v5144
    %v6091 = vpack.c.b16 %v5147, %v5146
    %v6092 = vpack.c.b16 %v5149, %v5148
    %v6093 = vpack.c.b16 %v5151, %v5150
    %v6094 = vpack.c.b16 %v5153, %v5152
    %v6095 = vpack.c.b16 %v5155, %v5154
    %v6096 = vpack.c.b16 %v5157, %v5156
    %v6097 = vpack.c.b16 %v5159, %v5158
    %v6098 = vpack.c.b16 %v5161, %v5160
    %v6099 = vpack.c.b16 %v5163, %v5162
    %v6100 = vpack.c.b16 %v5165, %v5164
    %v6101 = vpack.c.b16 %v5167, %v5166
    %v6102 = vpack.c.b16 %v5169, %v5168
    %v6103 = vpack.c.b16 %v5171, %v5170
    %v6104 = vpack.c.b16 %v5173, %v5172
    %v6105 = vpack.c.b16 %v5175, %v5174
    %v6106 = vpack.c.b16 %v5177, %v5176
    %v6107 = vpack.c.b16 %v5179, %v5178
    %v6108 = vpack.c.b16 %v5181, %v5180
    %v6109 = vpack.c.b16 %v5183, %v5182
    %v6110 = vpack.c.b16 %v5185, %v5184
    %v6111 = vpack.c.b16 %v5187, %v5186
    %v6112 = vpack.c.b16 %v5189, %v5188
    %v6113 = vpack.c.b16 %v5191, %v5190
    %v6114 = vpack.c.b16 %v5193, %v5192
    %v6115 = vpack.c.b16 %v5195, %v5194
    %v6116 = vpack.c.b16 %v5197, %v5196
    %v6117 = vpack.c.b16 %v5199, %v5198
    %v6118 = vpack.c.b16 %v5201, %v5200
    %v6119 = vpack.c.b16 %v5203, %v5202
    %v6120 = vpack.c.b16 %v5205, %v5204
    %v6121 = vpack.c.b16 %v5207, %v5206
    %v6122 = vpack.c.b16 %v5209, %v5208
    %v6123 = vpack.c.b16 %v5211, %v5210
    %v6124 = vpack.c.b16 %v5213, %v5212
    %v6125 = vpack.c.b16 %v5215, %v5214
    %v6126 = vpack.c.b16 %v5217, %v5216
    %v6127 = vpack.c.b16 %v5219, %v5218
    %v6128 = vpack.c.b16 %v5221, %v5220
    %v6129 = vpack.c.b16 %v5223, %v5222
    %v6130 = vpack.c.b16 %v5225, %v5224
    %v6131 = vpack.c.b16 %v5227, %v5226
    %v6132 = vpack.c.b16 %v5229, %v5228
    %v6133 = vpack.c.b16 %v5231, %v5230
    %v6134 = vpack.c.b16 %v5233, %v5232
    %v6135 = vpack.c.b16 %v5235, %v5234
    %v6136 = vpack.c.b16 %v5237, %v5236
    %v6137 = vpack.c.b16 %v5239, %v5238
    %v6138 = vpack.c.b16 %v5241, %v5240
    %v6139 = vpack.c.b16 %v5243, %v5242
    %v6140 = vpack.c.b16 %v5245, %v5244
    %v6141 = vpack.c.b16 %v5247, %v5246
    %v6142 = vpack.c.b16 %v5249, %v5248
    %v6143 = vpack.c.b16 %v5251, %v5250
    %v6144 = vpack.c.b16 %v5253, %v5252
    %v6145 = vpack.c.b16 %v5255, %v5254
    %v6146 = vpack.c.b16 %v5257, %v5256
    %v6147 = vpack.c.b16 %v5259, %v5258
    %v6148 = vpack.c.b16 %v5261, %v5260
    %v6149 = vpack.c.b16 %v5263, %v5262
    %v6150 = vpack.c.b16 %v5265, %v5264
    %v6151 = vpack.c.b16 %v5267, %v5266
    %v6152 = vpack.c.b16 %v5269, %v5268
    %v6153 = vpack.c.b16 %v5271, %v5270
    %v6154 = vpack.c.b16 %v5273, %v5272
    %v6155 = vpack.c.b16 %v5275, %v5274
    %v6156 = vpack.c.b16 %v5277, %v5276
    %v6157 = vpack.c.b16 %v5279, %v5278
    %v6158 = vpack.c.b16 %v5281, %v5280
    %v6159 = vpack.c.b16 %v5283, %v5282
    %v6160 = vpack.c.b16 %v5285, %v5284
    %v6161 = vpack.c.b16 %v5287, %v5286
    %v6162 = vpack.c.b16 %v5289, %v5288
    %v6163 = vpack.c.b16 %v5291, %v5290
    %v6164 = vpack.c.b16 %v5293, %v5292
    %v6165 = vpack.c.b16 %v5295, %v5294
    %v6166 = vpack.c.b16 %v5297, %v5296
    %v6167 = vpack.c.b16 %v5299, %v5298
    %v6168 = vpack.c.b16 %v5301, %v5300
    %v6169 = vpack.c.b16 %v5303, %v5302
    %v6170 = vpack.c.b16 %v5305, %v5304
    %v6171 = vpack.c.b16 %v5307, %v5306
    %v6172 = vpack.c.b16 %v5309, %v5308
    %v6173 = vpack.c.b16 %v5311, %v5310
    %v6174 = vpack.c.b16 %v5313, %v5312
    %v6175 = vpack.c.b16 %v5315, %v5314
    %v6176 = vpack.c.b16 %v5317, %v5316
    %v6177 = vpack.c.b16 %v5319, %v5318
    %v6178 = vpack.c.b16 %v5321, %v5320
    %v6179 = vpack.c.b16 %v5323, %v5322
    %v6180 = vpack.c.b16 %v5325, %v5324
    %v6181 = vpack.c.b16 %v5327, %v5326
    %v6182 = vpack.c.b16 %v5329, %v5328
    %v6183 = vpack.c.b16 %v5331, %v5330
    %v6184 = vpack.c.b16 %v5333, %v5332
    %v6185 = vpack.c.b16 %v5335, %v5334
    %v6186 = vpack.c.b16 %v5337, %v5336
    %v6187 = vpack.c.b16 %v5339, %v5338
    %v6188 = vpack.c.b16 %v5341, %v5340
    %v6189 = vpack.c.b16 %v5343, %v5342
    %v6190 = vpack.c.b16 %v5345, %v5344
    %v6191 = vpack.c.b16 %v5347, %v5346
    %v6192 = vpack.c.b16 %v5349, %v5348
    %v6193 = vpack.c.b16 %v5351, %v5350
    %v6194 = vpack.c.b16 %v5353, %v5352
    %v6195 = vpack.c.b16 %v5355, %v5354
    %v6196 = vpack.c.b16 %v5357, %v5356
    %v6197 = vpack.c.b16 %v5359, %v5358
    %v6198 = vpack.c.b16 %v5361, %v5360
    %v6199 = vpack.c.b16 %v5363, %v5362
    %v6200 = vpack.c.b16 %v5365, %v5364
    %v6201 = vpack.c.b16 %v5367, %v5366
    %v6202 = vpack.c.b16 %v5369, %v5368
    %v6203 = vpack.c.b16 %v5371, %v5370
    %v6204 = vpack.c.b16 %v5373, %v5372
    %v6205 = vpack.c.b16 %v5375, %v5374
    %v6206 = vpack.c.b16 %v5377, %v5376
    %v6207 = vpack.c.b16 %v5379, %v5378
    %v6208 = vpack.c.b16 %v5381, %v5380
    %v6209 = vpack.c.b16 %v5383, %v5382
    %v6210 = vpack.c.b16 %v5385, %v5384
    %v6211 = vpack.c.b16 %v5387, %v5386
    %v6212 = vpack.c.b16 %v5389, %v5388
    %v6213 = vpack.c.b16 %v5391, %v5390
    %v6214 = vpack.c.b16 %v5393, %v5392
    %v6215 = vpack.c.b16 %v5395, %v5394
    %v6216 = vpack.c.b16 %v5397, %v5396
    %v6217 = vpack.c.b16 %v5399, %v5398
    %v6218 = vpack.c.b16 %v5401, %v5400
    %v6219 = vpack.c.b16 %v5403, %v5402
    %v6220 = vpack.c.b16 %v5405, %v5404
    %v6221 = vpack.c.b16 %v5407, %v5406
    %v6222 = vpack.c.b16 %v5409, %v5408
    %v6223 = vpack.c.b16 %v5411, %v5410
    %v6224 = vpack.c.b16 %v5413, %v5412
    %v6225 = vpack.c.b16 %v5415, %v5414
    %v6226 = vpack.c.b16 %v5417, %v5416
    %v6227 = vpack.c.b16 %v5419, %v5418
    %v6228 = vpack.c.b16 %v5421, %v5420
    %v6229 = vpack.c.b16 %v5423, %v5422
    %v6230 = vpack.c.b16 %v5425, %v5424
    %v6231 = vpack.c.b16 %v5427, %v5426
    %v6232 = vpack.c.b16 %v5429, %v5428
    %v6233 = vpack.c.b16 %v5431, %v5430
    %v6234 = vpack.c.b16 %v5433, %v5432
    %v6235 = vpack.c.b16 %v5435, %v5434
    %v6236 = vpack.c.b16 %v5437, %v5436
    %v6237 = vpack.c.b16 %v5439, %v5438
    %v6238 = vpack.c.b16 %v5441, %v5440
    %v6239 = vpack.c.b16 %v5443, %v5442
    %v6240 = vpack.c.b16 %v5445, %v5444
    %v6241 = vpack.c.b16 %v5447, %v5446
    %v6242 = vpack.c.b16 %v5449, %v5448
    %v6243 = vpack.c.b16 %v5451, %v5450
    %v6244 = vpack.c.b16 %v5453, %v5452
    %v6245 = vpack.c.b16 %v5455, %v5454
    %v6246 = vpack.c.b16 %v5457, %v5456
    %v6247 = vpack.c.b16 %v5459, %v5458
    %v6248 = vpack.c.b16 %v5461, %v5460
    %v6249 = vpack.c.b16 %v5463, %v5462
    %v6250 = vpack.c.b16 %v5465, %v5464
    %v6251 = vpack.c.b16 %v5467, %v5466
    %7036 = vmatprep.subr.bf16.mxu0 0
    %7037 = vmatpush1.bf16.msra.mxu0 %v5468
    %7038 = vmatprep.subr.bf16.mxu0 0
    %7039 = vmatpush1.bf16.msra.mxu0 %v5469
    %7040 = vmatprep.subr.bf16.mxu0 0
    %7041 = vmatpush1.bf16.msra.mxu0 %v5470
    %7042 = vmatprep.subr.bf16.mxu0 0
    %7043 = vmatpush1.bf16.msra.mxu0 %v5471
    %7044 = vmatprep.subr.bf16.mxu0 0
    %7045 = vmatpush1.bf16.msra.mxu0 %v5472
    %7046 = vmatprep.subr.bf16.mxu0 0
    %7047 = vmatpush1.bf16.msra.mxu0 %v5473
    %7048 = vmatprep.subr.bf16.mxu0 0
    %7049 = vmatpush1.bf16.msra.mxu0 %v5474
    %7050 = vmatprep.subr.bf16.mxu0 0
    %7051 = vmatpush1.bf16.msra.mxu0 %v5475
    %7052 = vmatprep.subr.bf16.mxu0 0
    %7053 = vmatpush1.bf16.msra.mxu0 %v5476
    %7054 = vmatprep.subr.bf16.mxu0 0
    %7055 = vmatpush1.bf16.msra.mxu0 %v5477
    %7056 = vmatprep.subr.bf16.mxu0 0
    %7057 = vmatpush1.bf16.msra.mxu0 %v5478
    %7058 = vmatprep.subr.bf16.mxu0 0
    %7059 = vmatpush1.bf16.msra.mxu0 %v5479
    %7060 = vmatprep.subr.bf16.mxu0 0
    %7061 = vmatpush1.bf16.msra.mxu0 %v5480
    %7062 = vmatprep.subr.bf16.mxu0 0
    %7063 = vmatpush1.bf16.msra.mxu0 %v5481
    %7064 = vmatprep.subr.bf16.mxu0 0
    %7065 = vmatpush1.bf16.msra.mxu0 %v5482
    %7066 = vmatprep.subr.bf16.mxu0 0
    %7067 = vmatpush1.bf16.msra.mxu0 %v5483
    %7068 = vmatprep.mubr.bf16.mxu0 %v1661
    %7069 = vmatmul.mubr.bf16.gmra.mrb[0].mxu0 %v1647
    %v7070 = vpop.f32.mrb[0].mxu0
    %v7071 = vadd.f32 0.0, %v7070
    %v7072 = vpop.f32.mrb[0].mxu0
    %v7073 = vpop.f32.mrb[0].mxu0
    %v7074 = vpop.f32.mrb[0].mxu0
    %7075 = vdwg.mxu0
    %7076 = vmatprep.subr.bf16.mxu0 0
    %7077 = vmatpush1.bf16.msra.mxu0 %v5484
    %7078 = vmatprep.subr.bf16.mxu0 0
    %7079 = vmatpush1.bf16.msra.mxu0 %v5485
    %7080 = vmatprep.subr.bf16.mxu0 0
    %7081 = vmatpush1.bf16.msra.mxu0 %v5486
    %7082 = vmatprep.subr.bf16.mxu0 0
    %7083 = vmatpush1.bf16.msra.mxu0 %v5487
    %7084 = vmatprep.subr.bf16.mxu0 0
    %7085 = vmatpush1.bf16.msra.mxu0 %v5488
    %7086 = vmatprep.subr.bf16.mxu0 0
    %7087 = vmatpush1.bf16.msra.mxu0 %v5489
    %7088 = vmatprep.subr.bf16.mxu0 0
    %7089 = vmatpush1.bf16.msra.mxu0 %v5490
    %7090 = vmatprep.subr.bf16.mxu0 0
    %7091 = vmatpush1.bf16.msra.mxu0 %v5491
    %7092 = vmatprep.subr.bf16.mxu0 0
    %7093 = vmatpush1.bf16.msra.mxu0 %v5492
    %7094 = vmatprep.subr.bf16.mxu0 0
    %7095 = vmatpush1.bf16.msra.mxu0 %v5493
    %7096 = vmatprep.subr.bf16.mxu0 0
    %7097 = vmatpush1.bf16.msra.mxu0 %v5494
    %7098 = vmatprep.subr.bf16.mxu0 0
    %7099 = vmatpush1.bf16.msra.mxu0 %v5495
    %7100 = vmatprep.subr.bf16.mxu0 0
    %7101 = vmatpush1.bf16.msra.mxu0 %v5496
    %7102 = vmatprep.subr.bf16.mxu0 0
    %7103 = vmatpush1.bf16.msra.mxu0 %v5497
    %7104 = vmatprep.subr.bf16.mxu0 0
    %7105 = vmatpush1.bf16.msra.mxu0 %v5498
    %7106 = vmatprep.subr.bf16.mxu0 0
    %7107 = vmatpush1.bf16.msra.mxu0 %v5499
    %7108 = vmatprep.mubr.bf16.mxu0 %v1671
    %7109 = vmatmul.mubr.bf16.gmra.mrb[0].mxu0 %v1669
    %v7110 = vpop.f32.mrb[0].mxu0
    %v7111 = vadd.f32 %v7071, %v7110
    %v7112 = vpop.f32.mrb[0].mxu0
    %v7113 = vpop.f32.mrb[0].mxu0
    %v7114 = vpop.f32.mrb[0].mxu0
    %7115 = vdwg.mxu0
    %7116 = vmatprep.subr.bf16.mxu0 0
    %7117 = vmatpush1.bf16.msra.mxu0 %v5500
    %7118 = vmatprep.subr.bf16.mxu0 0
    %7119 = vmatpush1.bf16.msra.mxu0 %v5501
    %7120 = vmatprep.subr.bf16.mxu0 0
    %7121 = vmatpush1.bf16.msra.mxu0 %v5502
    %7122 = vmatprep.subr.bf16.mxu0 0
    %7123 = vmatpush1.bf16.msra.mxu0 %v5503
    %7124 = vmatprep.subr.bf16.mxu0 0
    %7125 = vmatpush1.bf16.msra.mxu0 %v5504
    %7126 = vmatprep.subr.bf16.mxu0 0
    %7127 = vmatpush1.bf16.msra.mxu0 %v5505
    %7128 = vmatprep.subr.bf16.mxu0 0
    %7129 = vmatpush1.bf16.msra.mxu0 %v5506
    %7130 = vmatprep.subr.bf16.mxu0 0
    %7131 = vmatpush1.bf16.msra.mxu0 %v5507
    %7132 = vmatprep.subr.bf16.mxu0 0
    %7133 = vmatpush1.bf16.msra.mxu0 %v5508
    %7134 = vmatprep.subr.bf16.mxu0 0
    %7135 = vmatpush1.bf16.msra.mxu0 %v5509
    %7136 = vmatprep.subr.bf16.mxu0 0
    %7137 = vmatpush1.bf16.msra.mxu0 %v5510
    %7138 = vmatprep.subr.bf16.mxu0 0
    %7139 = vmatpush1.bf16.msra.mxu0 %v5511
    %7140 = vmatprep.subr.bf16.mxu0 0
    %7141 = vmatpush1.bf16.msra.mxu0 %v5512
    %7142 = vmatprep.subr.bf16.mxu0 0
    %7143 = vmatpush1.bf16.msra.mxu0 %v5513
    %7144 = vmatprep.subr.bf16.mxu0 0
    %7145 = vmatpush1.bf16.msra.mxu0 %v5514
    %7146 = vmatprep.subr.bf16.mxu0 0
    %7147 = vmatpush1.bf16.msra.mxu0 %v5515
    %7148 = vmatprep.mubr.bf16.mxu0 %v1668
    %7149 = vmatmul.mubr.bf16.gmra.mrb[0].mxu0 %v1654
    %v7150 = vpop.f32.mrb[0].mxu0
    %v7151 = vadd.f32 %v7111, %v7150
    %v7152 = vpop.f32.mrb[0].mxu0
    %v7153 = vpop.f32.mrb[0].mxu0
    %v7154 = vpop.f32.mrb[0].mxu0
    %7155 = vdwg.mxu0
    %7156 = vmatprep.subr.bf16.mxu0 0
    %7157 = vmatpush1.bf16.msra.mxu0 %v5516
    %7158 = vmatprep.subr.bf16.mxu0 0
    %7159 = vmatpush1.bf16.msra.mxu0 %v5517
    %7160 = vmatprep.subr.bf16.mxu0 0
    %7161 = vmatpush1.bf16.msra.mxu0 %v5518
    %7162 = vmatprep.subr.bf16.mxu0 0
    %7163 = vmatpush1.bf16.msra.mxu0 %v5519
    %7164 = vmatprep.subr.bf16.mxu0 0
    %7165 = vmatpush1.bf16.msra.mxu0 %v5520
    %7166 = vmatprep.subr.bf16.mxu0 0
    %7167 = vmatpush1.bf16.msra.mxu0 %v5521
    %7168 = vmatprep.subr.bf16.mxu0 0
    %7169 = vmatpush1.bf16.msra.mxu0 %v5522
    %7170 = vmatprep.subr.bf16.mxu0 0
    %7171 = vmatpush1.bf16.msra.mxu0 %v5523
    %7172 = vmatprep.subr.bf16.mxu0 0
    %7173 = vmatpush1.bf16.msra.mxu0 %v5524
    %7174 = vmatprep.subr.bf16.mxu0 0
    %7175 = vmatpush1.bf16.msra.mxu0 %v5525
    %7176 = vmatprep.subr.bf16.mxu0 0
    %7177 = vmatpush1.bf16.msra.mxu0 %v5526
    %7178 = vmatprep.subr.bf16.mxu0 0
    %7179 = vmatpush1.bf16.msra.mxu0 %v5527
    %7180 = vmatprep.subr.bf16.mxu0 0
    %7181 = vmatpush1.bf16.msra.mxu0 %v5528
    %7182 = vmatprep.subr.bf16.mxu0 0
    %7183 = vmatpush1.bf16.msra.mxu0 %v5529
    %7184 = vmatprep.subr.bf16.mxu0 0
    %7185 = vmatpush1.bf16.msra.mxu0 %v5530
    %7186 = vmatprep.subr.bf16.mxu0 0
    %7187 = vmatpush1.bf16.msra.mxu0 %v5531
    %7188 = vmatprep.mubr.bf16.mxu0 %v1672
    %7189 = vmatmul.mubr.bf16.gmra.mrb[0].mxu0 %v1670
    %v7190 = vpop.f32.mrb[0].mxu0
    %v7191 = vadd.f32 %v7151, %v7190
    %v7192 = vpop.f32.mrb[0].mxu0
    %v7193 = vpop.f32.mrb[0].mxu0
    %v7194 = vpop.f32.mrb[0].mxu0
    %7195 = vdwg.mxu0
    %7196 = vmatprep.subr.bf16.mxu0 0
    %7197 = vmatpush1.bf16.msra.mxu0 %v5532
    %7198 = vmatprep.subr.bf16.mxu0 0
    %7199 = vmatpush1.bf16.msra.mxu0 %v5533
    %7200 = vmatprep.subr.bf16.mxu0 0
    %7201 = vmatpush1.bf16.msra.mxu0 %v5534
    %7202 = vmatprep.subr.bf16.mxu0 0
    %7203 = vmatpush1.bf16.msra.mxu0 %v5535
    %7204 = vmatprep.subr.bf16.mxu0 0
    %7205 = vmatpush1.bf16.msra.mxu0 %v5536
    %7206 = vmatprep.subr.bf16.mxu0 0
    %7207 = vmatpush1.bf16.msra.mxu0 %v5537
    %7208 = vmatprep.subr.bf16.mxu0 0
    %7209 = vmatpush1.bf16.msra.mxu0 %v5538
    %7210 = vmatprep.subr.bf16.mxu0 0
    %7211 = vmatpush1.bf16.msra.mxu0 %v5539
    %7212 = vmatprep.subr.bf16.mxu0 0
    %7213 = vmatpush1.bf16.msra.mxu0 %v5540
    %7214 = vmatprep.subr.bf16.mxu0 0
    %7215 = vmatpush1.bf16.msra.mxu0 %v5541
    %7216 = vmatprep.subr.bf16.mxu0 0
    %7217 = vmatpush1.bf16.msra.mxu0 %v5542
    %7218 = vmatprep.subr.bf16.mxu0 0
    %7219 = vmatpush1.bf16.msra.mxu0 %v5543
    %7220 = vmatprep.subr.bf16.mxu0 0
    %7221 = vmatpush1.bf16.msra.mxu0 %v5544
    %7222 = vmatprep.subr.bf16.mxu0 0
    %7223 = vmatpush1.bf16.msra.mxu0 %v5545
    %7224 = vmatprep.subr.bf16.mxu0 0
    %7225 = vmatpush1.bf16.msra.mxu0 %v5546
    %7226 = vmatprep.subr.bf16.mxu0 0
    %7227 = vmatpush1.bf16.msra.mxu0 %v5547
    %7228 = vmatprep.mubr.bf16.mxu0 %v1710
    %7229 = vmatmul.mubr.bf16.gmra.mrb[0].mxu0 %v1696
    %v7230 = vpop.f32.mrb[0].mxu0
    %v7231 = vadd.f32 %v7191, %v7230
    %v7232 = vpop.f32.mrb[0].mxu0
    %v7233 = vpop.f32.mrb[0].mxu0
    %v7234 = vpop.f32.mrb[0].mxu0
    %7235 = vdwg.mxu0
    %7236 = vmatprep.subr.bf16.mxu0 0
    %7237 = vmatpush1.bf16.msra.mxu0 %v5548
    %7238 = vmatprep.subr.bf16.mxu0 0
    %7239 = vmatpush1.bf16.msra.mxu0 %v5549
    %7240 = vmatprep.subr.bf16.mxu0 0
    %7241 = vmatpush1.bf16.msra.mxu0 %v5550
    %7242 = vmatprep.subr.bf16.mxu0 0
    %7243 = vmatpush1.bf16.msra.mxu0 %v5551
    %7244 = vmatprep.subr.bf16.mxu0 0
    %7245 = vmatpush1.bf16.msra.mxu0 %v5552
    %7246 = vmatprep.subr.bf16.mxu0 0
    %7247 = vmatpush1.bf16.msra.mxu0 %v5553
    %7248 = vmatprep.subr.bf16.mxu0 0
    %7249 = vmatpush1.bf16.msra.mxu0 %v5554
    %7250 = vmatprep.subr.bf16.mxu0 0
    %7251 = vmatpush1.bf16.msra.mxu0 %v5555
    %7252 = vmatprep.subr.bf16.mxu0 0
    %7253 = vmatpush1.bf16.msra.mxu0 %v5556
    %7254 = vmatprep.subr.bf16.mxu0 0
    %7255 = vmatpush1.bf16.msra.mxu0 %v5557
    %7256 = vmatprep.subr.bf16.mxu0 0
    %7257 = vmatpush1.bf16.msra.mxu0 %v5558
    %7258 = vmatprep.subr.bf16.mxu0 0
    %7259 = vmatpush1.bf16.msra.mxu0 %v5559
    %7260 = vmatprep.subr.bf16.mxu0 0
    %7261 = vmatpush1.bf16.msra.mxu0 %v5560
    %7262 = vmatprep.subr.bf16.mxu0 0
    %7263 = vmatpush1.bf16.msra.mxu0 %v5561
    %7264 = vmatprep.subr.bf16.mxu0 0
    %7265 = vmatpush1.bf16.msra.mxu0 %v5562
    %7266 = vmatprep.subr.bf16.mxu0 0
    %7267 = vmatpush1.bf16.msra.mxu0 %v5563
    %7268 = vmatprep.mubr.bf16.mxu0 %v1720
    %7269 = vmatmul.mubr.bf16.gmra.mrb[0].mxu0 %v1718
    %v7270 = vpop.f32.mrb[0].mxu0
    %v7271 = vadd.f32 %v7231, %v7270
    %v7272 = vpop.f32.mrb[0].mxu0
    %v7273 = vpop.f32.mrb[0].mxu0
    %v7274 = vpop.f32.mrb[0].mxu0
    %7275 = vdwg.mxu0
    %7276 = vmatprep.subr.bf16.mxu0 0
    %7277 = vmatpush1.bf16.msra.mxu0 %v5564
    %7278 = vmatprep.subr.bf16.mxu0 0
    %7279 = vmatpush1.bf16.msra.mxu0 %v5565
    %7280 = vmatprep.subr.bf16.mxu0 0
    %7281 = vmatpush1.bf16.msra.mxu0 %v5566
    %7282 = vmatprep.subr.bf16.mxu0 0
    %7283 = vmatpush1.bf16.msra.mxu0 %v5567
    %7284 = vmatprep.subr.bf16.mxu0 0
    %7285 = vmatpush1.bf16.msra.mxu0 %v5568
    %7286 = vmatprep.subr.bf16.mxu0 0
    %7287 = vmatpush1.bf16.msra.mxu0 %v5569
    %7288 = vmatprep.subr.bf16.mxu0 0
    %7289 = vmatpush1.bf16.msra.mxu0 %v5570
    %7290 = vmatprep.subr.bf16.mxu0 0
    %7291 = vmatpush1.bf16.msra.mxu0 %v5571
    %7292 = vmatprep.subr.bf16.mxu0 0
    %7293 = vmatpush1.bf16.msra.mxu0 %v5572
    %7294 = vmatprep.subr.bf16.mxu0 0
    %7295 = vmatpush1.bf16.msra.mxu0 %v5573
    %7296 = vmatprep.subr.bf16.mxu0 0
    %7297 = vmatpush1.bf16.msra.mxu0 %v5574
    %7298 = vmatprep.subr.bf16.mxu0 0
    %7299 = vmatpush1.bf16.msra.mxu0 %v5575
    %7300 = vmatprep.subr.bf16.mxu0 0
    %7301 = vmatpush1.bf16.msra.mxu0 %v5576
    %7302 = vmatprep.subr.bf16.mxu0 0
    %7303 = vmatpush1.bf16.msra.mxu0 %v5577
    %7304 = vmatprep.subr.bf16.mxu0 0
    %7305 = vmatpush1.bf16.msra.mxu0 %v5578
    %7306 = vmatprep.subr.bf16.mxu0 0
    %7307 = vmatpush1.bf16.msra.mxu0 %v5579
    %7308 = vmatprep.mubr.bf16.mxu0 %v1717
    %7309 = vmatmul.mubr.bf16.gmra.mrb[0].mxu0 %v1703
    %v7310 = vpop.f32.mrb[0].mxu0
    %v7311 = vadd.f32 %v7271, %v7310
    %v7312 = vpop.f32.mrb[0].mxu0
    %v7313 = vpop.f32.mrb[0].mxu0
    %v7314 = vpop.f32.mrb[0].mxu0
    %7315 = vdwg.mxu0
    %7316 = vmatprep.subr.bf16.mxu0 0
    %7317 = vmatpush1.bf16.msra.mxu0 %v5580
    %7318 = vmatprep.subr.bf16.mxu0 0
    %7319 = vmatpush1.bf16.msra.mxu0 %v5581
    %7320 = vmatprep.subr.bf16.mxu0 0
    %7321 = vmatpush1.bf16.msra.mxu0 %v5582
    %7322 = vmatprep.subr.bf16.mxu0 0
    %7323 = vmatpush1.bf16.msra.mxu0 %v5583
    %7324 = vmatprep.subr.bf16.mxu0 0
    %7325 = vmatpush1.bf16.msra.mxu0 %v5584
    %7326 = vmatprep.subr.bf16.mxu0 0
    %7327 = vmatpush1.bf16.msra.mxu0 %v5585
    %7328 = vmatprep.subr.bf16.mxu0 0
    %7329 = vmatpush1.bf16.msra.mxu0 %v5586
    %7330 = vmatprep.subr.bf16.mxu0 0
    %7331 = vmatpush1.bf16.msra.mxu0 %v5587
    %7332 = vmatprep.subr.bf16.mxu0 0
    %7333 = vmatpush1.bf16.msra.mxu0 %v5588
    %7334 = vmatprep.subr.bf16.mxu0 0
    %7335 = vmatpush1.bf16.msra.mxu0 %v5589
    %7336 = vmatprep.subr.bf16.mxu0 0
    %7337 = vmatpush1.bf16.msra.mxu0 %v5590
    %7338 = vmatprep.subr.bf16.mxu0 0
    %7339 = vmatpush1.bf16.msra.mxu0 %v5591
    %7340 = vmatprep.subr.bf16.mxu0 0
    %7341 = vmatpush1.bf16.msra.mxu0 %v5592
    %7342 = vmatprep.subr.bf16.mxu0 0
    %7343 = vmatpush1.bf16.msra.mxu0 %v5593
    %7344 = vmatprep.subr.bf16.mxu0 0
    %7345 = vmatpush1.bf16.msra.mxu0 %v5594
    %7346 = vmatprep.subr.bf16.mxu0 0
    %7347 = vmatpush1.bf16.msra.mxu0 %v5595
    %7348 = vmatprep.mubr.bf16.mxu0 %v1721
    %7349 = vmatmul.mubr.bf16.gmra.mrb[0].mxu0 %v1719
    %v7350 = vpop.f32.mrb[0].mxu0
    %v7351 = vadd.f32 %v7311, %v7350
    %v7352 = vpop.f32.mrb[0].mxu0
    %v7353 = vpop.f32.mrb[0].mxu0
    %v7354 = vpop.f32.mrb[0].mxu0
    %7355 = vdwg.mxu0
    %7356 = vmatprep.subr.bf16.mxu0 0
    %7357 = vmatpush1.bf16.msra.mxu0 %v5596
    %7358 = vmatprep.subr.bf16.mxu0 0
    %7359 = vmatpush1.bf16.msra.mxu0 %v5597
    %7360 = vmatprep.subr.bf16.mxu0 0
    %7361 = vmatpush1.bf16.msra.mxu0 %v5598
    %7362 = vmatprep.subr.bf16.mxu0 0
    %7363 = vmatpush1.bf16.msra.mxu0 %v5599
    %7364 = vmatprep.subr.bf16.mxu0 0
    %7365 = vmatpush1.bf16.msra.mxu0 %v5600
    %7366 = vmatprep.subr.bf16.mxu0 0
    %7367 = vmatpush1.bf16.msra.mxu0 %v5601
    %7368 = vmatprep.subr.bf16.mxu0 0
    %7369 = vmatpush1.bf16.msra.mxu0 %v5602
    %7370 = vmatprep.subr.bf16.mxu0 0
    %7371 = vmatpush1.bf16.msra.mxu0 %v5603
    %7372 = vmatprep.subr.bf16.mxu0 0
    %7373 = vmatpush1.bf16.msra.mxu0 %v5604
    %7374 = vmatprep.subr.bf16.mxu0 0
    %7375 = vmatpush1.bf16.msra.mxu0 %v5605
    %7376 = vmatprep.subr.bf16.mxu0 0
    %7377 = vmatpush1.bf16.msra.mxu0 %v5606
    %7378 = vmatprep.subr.bf16.mxu0 0
    %7379 = vmatpush1.bf16.msra.mxu0 %v5607
    %7380 = vmatprep.subr.bf16.mxu0 0
    %7381 = vmatpush1.bf16.msra.mxu0 %v5608
    %7382 = vmatprep.subr.bf16.mxu0 0
    %7383 = vmatpush1.bf16.msra.mxu0 %v5609
    %7384 = vmatprep.subr.bf16.mxu0 0
    %7385 = vmatpush1.bf16.msra.mxu0 %v5610
    %7386 = vmatprep.subr.bf16.mxu0 0
    %7387 = vmatpush1.bf16.msra.mxu0 %v5611
    %7388 = vmatprep.mubr.bf16.mxu0 %v1759
    %7389 = vmatmul.mubr.bf16.gmra.mrb[0].mxu0 %v1745
    %v7390 = vpop.f32.mrb[0].mxu0
    %v7391 = vadd.f32 %v7351, %v7390
    %v7392 = vpop.f32.mrb[0].mxu0
    %v7393 = vpop.f32.mrb[0].mxu0
    %v7394 = vpop.f32.mrb[0].mxu0
    %7395 = vdwg.mxu0
    %7396 = vmatprep.subr.bf16.mxu0 0
    %7397 = vmatpush1.bf16.msra.mxu0 %v5612
    %7398 = vmatprep.subr.bf16.mxu0 0
    %7399 = vmatpush1.bf16.msra.mxu0 %v5613
    %7400 = vmatprep.subr.bf16.mxu0 0
    %7401 = vmatpush1.bf16.msra.mxu0 %v5614
    %7402 = vmatprep.subr.bf16.mxu0 0
    %7403 = vmatpush1.bf16.msra.mxu0 %v5615
    %7404 = vmatprep.subr.bf16.mxu0 0
    %7405 = vmatpush1.bf16.msra.mxu0 %v5616
    %7406 = vmatprep.subr.bf16.mxu0 0
    %7407 = vmatpush1.bf16.msra.mxu0 %v5617
    %7408 = vmatprep.subr.bf16.mxu0 0
    %7409 = vmatpush1.bf16.msra.mxu0 %v5618
    %7410 = vmatprep.subr.bf16.mxu0 0
    %7411 = vmatpush1.bf16.msra.mxu0 %v5619
    %7412 = vmatprep.subr.bf16.mxu0 0
    %7413 = vmatpush1.bf16.msra.mxu0 %v5620
    %7414 = vmatprep.subr.bf16.mxu0 0
    %7415 = vmatpush1.bf16.msra.mxu0 %v5621
    %7416 = vmatprep.subr.bf16.mxu0 0
    %7417 = vmatpush1.bf16.msra.mxu0 %v5622
    %7418 = vmatprep.subr.bf16.mxu0 0
    %7419 = vmatpush1.bf16.msra.mxu0 %v5623
    %7420 = vmatprep.subr.bf16.mxu0 0
    %7421 = vmatpush1.bf16.msra.mxu0 %v5624
    %7422 = vmatprep.subr.bf16.mxu0 0
    %7423 = vmatpush1.bf16.msra.mxu0 %v5625
    %7424 = vmatprep.subr.bf16.mxu0 0
    %7425 = vmatpush1.bf16.msra.mxu0 %v5626
    %7426 = vmatprep.subr.bf16.mxu0 0
    %7427 = vmatpush1.bf16.msra.mxu0 %v5627
    %7428 = vmatprep.mubr.bf16.mxu0 %v1769
    %7429 = vmatmul.mubr.bf16.gmra.mrb[0].mxu0 %v1767
    %v7430 = vpop.f32.mrb[0].mxu0
    %v7431 = vadd.f32 %v7391, %v7430
    %v7432 = vpop.f32.mrb[0].mxu0
    %v7433 = vpop.f32.mrb[0].mxu0
    %v7434 = vpop.f32.mrb[0].mxu0
    %7435 = vdwg.mxu0
    %7436 = vmatprep.subr.bf16.mxu0 0
    %7437 = vmatpush1.bf16.msra.mxu0 %v5628
    %7438 = vmatprep.subr.bf16.mxu0 0
    %7439 = vmatpush1.bf16.msra.mxu0 %v5629
    %7440 = vmatprep.subr.bf16.mxu0 0
    %7441 = vmatpush1.bf16.msra.mxu0 %v5630
    %7442 = vmatprep.subr.bf16.mxu0 0
    %7443 = vmatpush1.bf16.msra.mxu0 %v5631
    %7444 = vmatprep.subr.bf16.mxu0 0
    %7445 = vmatpush1.bf16.msra.mxu0 %v5632
    %7446 = vmatprep.subr.bf16.mxu0 0
    %7447 = vmatpush1.bf16.msra.mxu0 %v5633
    %7448 = vmatprep.subr.bf16.mxu0 0
    %7449 = vmatpush1.bf16.msra.mxu0 %v5634
    %7450 = vmatprep.subr.bf16.mxu0 0
    %7451 = vmatpush1.bf16.msra.mxu0 %v5635
    %7452 = vmatprep.subr.bf16.mxu0 0
    %7453 = vmatpush1.bf16.msra.mxu0 %v5636
    %7454 = vmatprep.subr.bf16.mxu0 0
    %7455 = vmatpush1.bf16.msra.mxu0 %v5637
    %7456 = vmatprep.subr.bf16.mxu0 0
    %7457 = vmatpush1.bf16.msra.mxu0 %v5638
    %7458 = vmatprep.subr.bf16.mxu0 0
    %7459 = vmatpush1.bf16.msra.mxu0 %v5639
    %7460 = vmatprep.subr.bf16.mxu0 0
    %7461 = vmatpush1.bf16.msra.mxu0 %v5640
    %7462 = vmatprep.subr.bf16.mxu0 0
    %7463 = vmatpush1.bf16.msra.mxu0 %v5641
    %7464 = vmatprep.subr.bf16.mxu0 0
    %7465 = vmatpush1.bf16.msra.mxu0 %v5642
    %7466 = vmatprep.subr.bf16.mxu0 0
    %7467 = vmatpush1.bf16.msra.mxu0 %v5643
    %7468 = vmatprep.mubr.bf16.mxu0 %v1766
    %7469 = vmatmul.mubr.bf16.gmra.mrb[0].mxu0 %v1752
    %v7470 = vpop.f32.mrb[0].mxu0
    %v7471 = vadd.f32 %v7431, %v7470
    %v7472 = vpop.f32.mrb[0].mxu0
    %v7473 = vpop.f32.mrb[0].mxu0
    %v7474 = vpop.f32.mrb[0].mxu0
    %7475 = vdwg.mxu0
    %7476 = vmatprep.subr.bf16.mxu0 0
    %7477 = vmatpush1.bf16.msra.mxu0 %v5644
    %7478 = vmatprep.subr.bf16.mxu0 0
    %7479 = vmatpush1.bf16.msra.mxu0 %v5645
    %7480 = vmatprep.subr.bf16.mxu0 0
    %7481 = vmatpush1.bf16.msra.mxu0 %v5646
    %7482 = vmatprep.subr.bf16.mxu0 0
    %7483 = vmatpush1.bf16.msra.mxu0 %v5647
    %7484 = vmatprep.subr.bf16.mxu0 0
    %7485 = vmatpush1.bf16.msra.mxu0 %v5648
    %7486 = vmatprep.subr.bf16.mxu0 0
    %7487 = vmatpush1.bf16.msra.mxu0 %v5649
    %7488 = vmatprep.subr.bf16.mxu0 0
    %7489 = vmatpush1.bf16.msra.mxu0 %v5650
    %7490 = vmatprep.subr.bf16.mxu0 0
    %7491 = vmatpush1.bf16.msra.mxu0 %v5651
    %7492 = vmatprep.subr.bf16.mxu0 0
    %7493 = vmatpush1.bf16.msra.mxu0 %v5652
    %7494 = vmatprep.subr.bf16.mxu0 0
    %7495 = vmatpush1.bf16.msra.mxu0 %v5653
    %7496 = vmatprep.subr.bf16.mxu0 0
    %7497 = vmatpush1.bf16.msra.mxu0 %v5654
    %7498 = vmatprep.subr.bf16.mxu0 0
    %7499 = vmatpush1.bf16.msra.mxu0 %v5655
    %7500 = vmatprep.subr.bf16.mxu0 0
    %7501 = vmatpush1.bf16.msra.mxu0 %v5656
    %7502 = vmatprep.subr.bf16.mxu0 0
    %7503 = vmatpush1.bf16.msra.mxu0 %v5657
    %7504 = vmatprep.subr.bf16.mxu0 0
    %7505 = vmatpush1.bf16.msra.mxu0 %v5658
    %7506 = vmatprep.subr.bf16.mxu0 0
    %7507 = vmatpush1.bf16.msra.mxu0 %v5659
    %7508 = vmatprep.mubr.bf16.mxu0 %v1770
    %7509 = vmatmul.mubr.bf16.gmra.mrb[0].mxu0 %v1768
    %v7510 = vpop.f32.mrb[0].mxu0
    %v7511 = vadd.f32 %v7471, %v7510
    %v7512 = vpop.f32.mrb[0].mxu0
    %v7513 = vpop.f32.mrb[0].mxu0
    %v7514 = vpop.f32.mrb[0].mxu0
    %7515 = vdwg.mxu0
    %7516 = vmatprep.subr.bf16.mxu0 0
    %7517 = vmatpush1.bf16.msra.mxu0 %v5660
    %7518 = vmatprep.subr.bf16.mxu0 0
    %7519 = vmatpush1.bf16.msra.mxu0 %v5661
    %7520 = vmatprep.subr.bf16.mxu0 0
    %7521 = vmatpush1.bf16.msra.mxu0 %v5662
    %7522 = vmatprep.subr.bf16.mxu0 0
    %7523 = vmatpush1.bf16.msra.mxu0 %v5663
    %7524 = vmatprep.subr.bf16.mxu0 0
    %7525 = vmatpush1.bf16.msra.mxu0 %v5664
    %7526 = vmatprep.subr.bf16.mxu0 0
    %7527 = vmatpush1.bf16.msra.mxu0 %v5665
    %7528 = vmatprep.subr.bf16.mxu0 0
    %7529 = vmatpush1.bf16.msra.mxu0 %v5666
    %7530 = vmatprep.subr.bf16.mxu0 0
    %7531 = vmatpush1.bf16.msra.mxu0 %v5667
    %7532 = vmatprep.subr.bf16.mxu0 0
    %7533 = vmatpush1.bf16.msra.mxu0 %v5668
    %7534 = vmatprep.subr.bf16.mxu0 0
    %7535 = vmatpush1.bf16.msra.mxu0 %v5669
    %7536 = vmatprep.subr.bf16.mxu0 0
    %7537 = vmatpush1.bf16.msra.mxu0 %v5670
    %7538 = vmatprep.subr.bf16.mxu0 0
    %7539 = vmatpush1.bf16.msra.mxu0 %v5671
    %7540 = vmatprep.subr.bf16.mxu0 0
    %7541 = vmatpush1.bf16.msra.mxu0 %v5672
    %7542 = vmatprep.subr.bf16.mxu0 0
    %7543 = vmatpush1.bf16.msra.mxu0 %v5673
    %7544 = vmatprep.subr.bf16.mxu0 0
    %7545 = vmatpush1.bf16.msra.mxu0 %v5674
    %7546 = vmatprep.subr.bf16.mxu0 0
    %7547 = vmatpush1.bf16.msra.mxu0 %v5675
    %7548 = vmatprep.mubr.bf16.mxu0 %v1808
    %7549 = vmatmul.mubr.bf16.gmra.mrb[0].mxu0 %v1794
    %v7550 = vpop.f32.mrb[0].mxu0
    %v7551 = vadd.f32 %v7511, %v7550
    %v7552 = vpop.f32.mrb[0].mxu0
    %v7553 = vpop.f32.mrb[0].mxu0
    %v7554 = vpop.f32.mrb[0].mxu0
    %7555 = vdwg.mxu0
    %7556 = vmatprep.subr.bf16.mxu0 0
    %7557 = vmatpush1.bf16.msra.mxu0 %v5676
    %7558 = vmatprep.subr.bf16.mxu0 0
    %7559 = vmatpush1.bf16.msra.mxu0 %v5677
    %7560 = vmatprep.subr.bf16.mxu0 0
    %7561 = vmatpush1.bf16.msra.mxu0 %v5678
    %7562 = vmatprep.subr.bf16.mxu0 0
    %7563 = vmatpush1.bf16.msra.mxu0 %v5679
    %7564 = vmatprep.subr.bf16.mxu0 0
    %7565 = vmatpush1.bf16.msra.mxu0 %v5680
    %7566 = vmatprep.subr.bf16.mxu0 0
    %7567 = vmatpush1.bf16.msra.mxu0 %v5681
    %7568 = vmatprep.subr.bf16.mxu0 0
    %7569 = vmatpush1.bf16.msra.mxu0 %v5682
    %7570 = vmatprep.subr.bf16.mxu0 0
    %7571 = vmatpush1.bf16.msra.mxu0 %v5683
    %7572 = vmatprep.subr.bf16.mxu0 0
    %7573 = vmatpush1.bf16.msra.mxu0 %v5684
    %7574 = vmatprep.subr.bf16.mxu0 0
    %7575 = vmatpush1.bf16.msra.mxu0 %v5685
    %7576 = vmatprep.subr.bf16.mxu0 0
    %7577 = vmatpush1.bf16.msra.mxu0 %v5686
    %7578 = vmatprep.subr.bf16.mxu0 0
    %7579 = vmatpush1.bf16.msra.mxu0 %v5687
    %7580 = vmatprep.subr.bf16.mxu0 0
    %7581 = vmatpush1.bf16.msra.mxu0 %v5688
    %7582 = vmatprep.subr.bf16.mxu0 0
    %7583 = vmatpush1.bf16.msra.mxu0 %v5689
    %7584 = vmatprep.subr.bf16.mxu0 0
    %7585 = vmatpush1.bf16.msra.mxu0 %v5690
    %7586 = vmatprep.subr.bf16.mxu0 0
    %7587 = vmatpush1.bf16.msra.mxu0 %v5691
    %7588 = vmatprep.mubr.bf16.mxu0 %v1818
    %7589 = vmatmul.mubr.bf16.gmra.mrb[0].mxu0 %v1816
    %v7590 = vpop.f32.mrb[0].mxu0
    %v7591 = vadd.f32 %v7551, %v7590
    %v7592 = vpop.f32.mrb[0].mxu0
    %v7593 = vpop.f32.mrb[0].mxu0
    %v7594 = vpop.f32.mrb[0].mxu0
    %7595 = vdwg.mxu0
    %7596 = vmatprep.subr.bf16.mxu0 0
    %7597 = vmatpush1.bf16.msra.mxu0 %v5692
    %7598 = vmatprep.subr.bf16.mxu0 0
    %7599 = vmatpush1.bf16.msra.mxu0 %v5693
    %7600 = vmatprep.subr.bf16.mxu0 0
    %7601 = vmatpush1.bf16.msra.mxu0 %v5694
    %7602 = vmatprep.subr.bf16.mxu0 0
    %7603 = vmatpush1.bf16.msra.mxu0 %v5695
    %7604 = vmatprep.subr.bf16.mxu0 0
    %7605 = vmatpush1.bf16.msra.mxu0 %v5696
    %7606 = vmatprep.subr.bf16.mxu0 0
    %7607 = vmatpush1.bf16.msra.mxu0 %v5697
    %7608 = vmatprep.subr.bf16.mxu0 0
    %7609 = vmatpush1.bf16.msra.mxu0 %v5698
    %7610 = vmatprep.subr.bf16.mxu0 0
    %7611 = vmatpush1.bf16.msra.mxu0 %v5699
    %7612 = vmatprep.subr.bf16.mxu0 0
    %7613 = vmatpush1.bf16.msra.mxu0 %v5700
    %7614 = vmatprep.subr.bf16.mxu0 0
    %7615 = vmatpush1.bf16.msra.mxu0 %v5701
    %7616 = vmatprep.subr.bf16.mxu0 0
    %7617 = vmatpush1.bf16.msra.mxu0 %v5702
    %7618 = vmatprep.subr.bf16.mxu0 0
    %7619 = vmatpush1.bf16.msra.mxu0 %v5703
    %7620 = vmatprep.subr.bf16.mxu0 0
    %7621 = vmatpush1.bf16.msra.mxu0 %v5704
    %7622 = vmatprep.subr.bf16.mxu0 0
    %7623 = vmatpush1.bf16.msra.mxu0 %v5705
    %7624 = vmatprep.subr.bf16.mxu0 0
    %7625 = vmatpush1.bf16.msra.mxu0 %v5706
    %7626 = vmatprep.subr.bf16.mxu0 0
    %7627 = vmatpush1.bf16.msra.mxu0 %v5707
    %7628 = vmatprep.mubr.bf16.mxu0 %v1815
    %7629 = vmatmul.mubr.bf16.gmra.mrb[0].mxu0 %v1801
    %v7630 = vpop.f32.mrb[0].mxu0
    %v7631 = vadd.f32 %v7591, %v7630
    %v7632 = vpop.f32.mrb[0].mxu0
    %v7633 = vpop.f32.mrb[0].mxu0
    %v7634 = vpop.f32.mrb[0].mxu0
    %7635 = vdwg.mxu0
    %7636 = vmatprep.subr.bf16.mxu0 0
    %7637 = vmatpush1.bf16.msra.mxu0 %v5708
    %7638 = vmatprep.subr.bf16.mxu0 0
    %7639 = vmatpush1.bf16.msra.mxu0 %v5709
    %7640 = vmatprep.subr.bf16.mxu0 0
    %7641 = vmatpush1.bf16.msra.mxu0 %v5710
    %7642 = vmatprep.subr.bf16.mxu0 0
    %7643 = vmatpush1.bf16.msra.mxu0 %v5711
    %7644 = vmatprep.subr.bf16.mxu0 0
    %7645 = vmatpush1.bf16.msra.mxu0 %v5712
    %7646 = vmatprep.subr.bf16.mxu0 0
    %7647 = vmatpush1.bf16.msra.mxu0 %v5713
    %7648 = vmatprep.subr.bf16.mxu0 0
    %7649 = vmatpush1.bf16.msra.mxu0 %v5714
    %7650 = vmatprep.subr.bf16.mxu0 0
    %7651 = vmatpush1.bf16.msra.mxu0 %v5715
    %7652 = vmatprep.subr.bf16.mxu0 0
    %7653 = vmatpush1.bf16.msra.mxu0 %v5716
    %7654 = vmatprep.subr.bf16.mxu0 0
    %7655 = vmatpush1.bf16.msra.mxu0 %v5717
    %7656 = vmatprep.subr.bf16.mxu0 0
    %7657 = vmatpush1.bf16.msra.mxu0 %v5718
    %7658 = vmatprep.subr.bf16.mxu0 0
    %7659 = vmatpush1.bf16.msra.mxu0 %v5719
    %7660 = vmatprep.subr.bf16.mxu0 0
    %7661 = vmatpush1.bf16.msra.mxu0 %v5720
    %7662 = vmatprep.subr.bf16.mxu0 0
    %7663 = vmatpush1.bf16.msra.mxu0 %v5721
    %7664 = vmatprep.subr.bf16.mxu0 0
    %7665 = vmatpush1.bf16.msra.mxu0 %v5722
    %7666 = vmatprep.subr.bf16.mxu0 0
    %7667 = vmatpush1.bf16.msra.mxu0 %v5723
    %7668 = vmatprep.mubr.bf16.mxu0 %v1819
    %7669 = vmatmul.mubr.bf16.gmra.mrb[0].mxu0 %v1817
    %v7670 = vpop.f32.mrb[0].mxu0
    %v7671 = vadd.f32 %v7631, %v7670
    %v7672 = vpop.f32.mrb[0].mxu0
    %v7673 = vpop.f32.mrb[0].mxu0
    %v7674 = vpop.f32.mrb[0].mxu0
    %7675 = vdwg.mxu0
    %7676 = vmatprep.subr.bf16.mxu0 0
    %7677 = vmatpush1.bf16.msra.mxu0 %v5724
    %7678 = vmatprep.subr.bf16.mxu0 0
    %7679 = vmatpush1.bf16.msra.mxu0 %v5725
    %7680 = vmatprep.subr.bf16.mxu0 0
    %7681 = vmatpush1.bf16.msra.mxu0 %v5726
    %7682 = vmatprep.subr.bf16.mxu0 0
    %7683 = vmatpush1.bf16.msra.mxu0 %v5727
    %7684 = vmatprep.subr.bf16.mxu0 0
    %7685 = vmatpush1.bf16.msra.mxu0 %v5728
    %7686 = vmatprep.subr.bf16.mxu0 0
    %7687 = vmatpush1.bf16.msra.mxu0 %v5729
    %7688 = vmatprep.subr.bf16.mxu0 0
    %7689 = vmatpush1.bf16.msra.mxu0 %v5730
    %7690 = vmatprep.subr.bf16.mxu0 0
    %7691 = vmatpush1.bf16.msra.mxu0 %v5731
    %7692 = vmatprep.subr.bf16.mxu0 0
    %7693 = vmatpush1.bf16.msra.mxu0 %v5732
    %7694 = vmatprep.subr.bf16.mxu0 0
    %7695 = vmatpush1.bf16.msra.mxu0 %v5733
    %7696 = vmatprep.subr.bf16.mxu0 0
    %7697 = vmatpush1.bf16.msra.mxu0 %v5734
    %7698 = vmatprep.subr.bf16.mxu0 0
    %7699 = vmatpush1.bf16.msra.mxu0 %v5735
    %7700 = vmatprep.subr.bf16.mxu0 0
    %7701 = vmatpush1.bf16.msra.mxu0 %v5736
    %7702 = vmatprep.subr.bf16.mxu0 0
    %7703 = vmatpush1.bf16.msra.mxu0 %v5737
    %7704 = vmatprep.subr.bf16.mxu0 0
    %7705 = vmatpush1.bf16.msra.mxu0 %v5738
    %7706 = vmatprep.subr.bf16.mxu0 0
    %7707 = vmatpush1.bf16.msra.mxu0 %v5739
    %7708 = vmatprep.mubr.bf16.mxu0 %v1857
    %7709 = vmatmul.mubr.bf16.gmra.mrb[0].mxu0 %v1843
    %v7710 = vpop.f32.mrb[0].mxu0
    %v7711 = vadd.f32 %v7671, %v7710
    %v7712 = vpop.f32.mrb[0].mxu0
    %v7713 = vpop.f32.mrb[0].mxu0
    %v7714 = vpop.f32.mrb[0].mxu0
    %7715 = vdwg.mxu0
    %7716 = vmatprep.subr.bf16.mxu0 0
    %7717 = vmatpush1.bf16.msra.mxu0 %v5740
    %7718 = vmatprep.subr.bf16.mxu0 0
    %7719 = vmatpush1.bf16.msra.mxu0 %v5741
    %7720 = vmatprep.subr.bf16.mxu0 0
    %7721 = vmatpush1.bf16.msra.mxu0 %v5742
    %7722 = vmatprep.subr.bf16.mxu0 0
    %7723 = vmatpush1.bf16.msra.mxu0 %v5743
    %7724 = vmatprep.subr.bf16.mxu0 0
    %7725 = vmatpush1.bf16.msra.mxu0 %v5744
    %7726 = vmatprep.subr.bf16.mxu0 0
    %7727 = vmatpush1.bf16.msra.mxu0 %v5745
    %7728 = vmatprep.subr.bf16.mxu0 0
    %7729 = vmatpush1.bf16.msra.mxu0 %v5746
    %7730 = vmatprep.subr.bf16.mxu0 0
    %7731 = vmatpush1.bf16.msra.mxu0 %v5747
    %7732 = vmatprep.subr.bf16.mxu0 0
    %7733 = vmatpush1.bf16.msra.mxu0 %v5748
    %7734 = vmatprep.subr.bf16.mxu0 0
    %7735 = vmatpush1.bf16.msra.mxu0 %v5749
    %7736 = vmatprep.subr.bf16.mxu0 0
    %7737 = vmatpush1.bf16.msra.mxu0 %v5750
    %7738 = vmatprep.subr.bf16.mxu0 0
    %7739 = vmatpush1.bf16.msra.mxu0 %v5751
    %7740 = vmatprep.subr.bf16.mxu0 0
    %7741 = vmatpush1.bf16.msra.mxu0 %v5752
    %7742 = vmatprep.subr.bf16.mxu0 0
    %7743 = vmatpush1.bf16.msra.mxu0 %v5753
    %7744 = vmatprep.subr.bf16.mxu0 0
    %7745 = vmatpush1.bf16.msra.mxu0 %v5754
    %7746 = vmatprep.subr.bf16.mxu0 0
    %7747 = vmatpush1.bf16.msra.mxu0 %v5755
    %7748 = vmatprep.mubr.bf16.mxu0 %v1867
    %7749 = vmatmul.mubr.bf16.gmra.mrb[0].mxu0 %v1865
    %v7750 = vpop.f32.mrb[0].mxu0
    %v7751 = vadd.f32 %v7711, %v7750
    %v7752 = vpop.f32.mrb[0].mxu0
    %v7753 = vpop.f32.mrb[0].mxu0
    %v7754 = vpop.f32.mrb[0].mxu0
    %7755 = vdwg.mxu0
    %7756 = vmatprep.subr.bf16.mxu0 0
    %7757 = vmatpush1.bf16.msra.mxu0 %v5756
    %7758 = vmatprep.subr.bf16.mxu0 0
    %7759 = vmatpush1.bf16.msra.mxu0 %v5757
    %7760 = vmatprep.subr.bf16.mxu0 0
    %7761 = vmatpush1.bf16.msra.mxu0 %v5758
    %7762 = vmatprep.subr.bf16.mxu0 0
    %7763 = vmatpush1.bf16.msra.mxu0 %v5759
    %7764 = vmatprep.subr.bf16.mxu0 0
    %7765 = vmatpush1.bf16.msra.mxu0 %v5760
    %7766 = vmatprep.subr.bf16.mxu0 0
    %7767 = vmatpush1.bf16.msra.mxu0 %v5761
    %7768 = vmatprep.subr.bf16.mxu0 0
    %7769 = vmatpush1.bf16.msra.mxu0 %v5762
    %7770 = vmatprep.subr.bf16.mxu0 0
    %7771 = vmatpush1.bf16.msra.mxu0 %v5763
    %7772 = vmatprep.subr.bf16.mxu0 0
    %7773 = vmatpush1.bf16.msra.mxu0 %v5764
    %7774 = vmatprep.subr.bf16.mxu0 0
    %7775 = vmatpush1.bf16.msra.mxu0 %v5765
    %7776 = vmatprep.subr.bf16.mxu0 0
    %7777 = vmatpush1.bf16.msra.mxu0 %v5766
    %7778 = vmatprep.subr.bf16.mxu0 0
    %7779 = vmatpush1.bf16.msra.mxu0 %v5767
    %7780 = vmatprep.subr.bf16.mxu0 0
    %7781 = vmatpush1.bf16.msra.mxu0 %v5768
    %7782 = vmatprep.subr.bf16.mxu0 0
    %7783 = vmatpush1.bf16.msra.mxu0 %v5769
    %7784 = vmatprep.subr.bf16.mxu0 0
    %7785 = vmatpush1.bf16.msra.mxu0 %v5770
    %7786 = vmatprep.subr.bf16.mxu0 0
    %7787 = vmatpush1.bf16.msra.mxu0 %v5771
    %7788 = vmatprep.mubr.bf16.mxu0 %v1864
    %7789 = vmatmul.mubr.bf16.gmra.mrb[0].mxu0 %v1850
    %v7790 = vpop.f32.mrb[0].mxu0
    %v7791 = vadd.f32 %v7751, %v7790
    %v7792 = vpop.f32.mrb[0].mxu0
    %v7793 = vpop.f32.mrb[0].mxu0
    %v7794 = vpop.f32.mrb[0].mxu0
    %7795 = vdwg.mxu0
    %7796 = vmatprep.subr.bf16.mxu0 0
    %7797 = vmatpush1.bf16.msra.mxu0 %v5772
    %7798 = vmatprep.subr.bf16.mxu0 0
    %7799 = vmatpush1.bf16.msra.mxu0 %v5773
    %7800 = vmatprep.subr.bf16.mxu0 0
    %7801 = vmatpush1.bf16.msra.mxu0 %v5774
    %7802 = vmatprep.subr.bf16.mxu0 0
    %7803 = vmatpush1.bf16.msra.mxu0 %v5775
    %7804 = vmatprep.subr.bf16.mxu0 0
    %7805 = vmatpush1.bf16.msra.mxu0 %v5776
    %7806 = vmatprep.subr.bf16.mxu0 0
    %7807 = vmatpush1.bf16.msra.mxu0 %v5777
    %7808 = vmatprep.subr.bf16.mxu0 0
    %7809 = vmatpush1.bf16.msra.mxu0 %v5778
    %7810 = vmatprep.subr.bf16.mxu0 0
    %7811 = vmatpush1.bf16.msra.mxu0 %v5779
    %7812 = vmatprep.subr.bf16.mxu0 0
    %7813 = vmatpush1.bf16.msra.mxu0 %v5780
    %7814 = vmatprep.subr.bf16.mxu0 0
    %7815 = vmatpush1.bf16.msra.mxu0 %v5781
    %7816 = vmatprep.subr.bf16.mxu0 0
    %7817 = vmatpush1.bf16.msra.mxu0 %v5782
    %7818 = vmatprep.subr.bf16.mxu0 0
    %7819 = vmatpush1.bf16.msra.mxu0 %v5783
    %7820 = vmatprep.subr.bf16.mxu0 0
    %7821 = vmatpush1.bf16.msra.mxu0 %v5784
    %7822 = vmatprep.subr.bf16.mxu0 0
    %7823 = vmatpush1.bf16.msra.mxu0 %v5785
    %7824 = vmatprep.subr.bf16.mxu0 0
    %7825 = vmatpush1.bf16.msra.mxu0 %v5786
    %7826 = vmatprep.subr.bf16.mxu0 0
    %7827 = vmatpush1.bf16.msra.mxu0 %v5787
    %7828 = vmatprep.mubr.bf16.mxu0 %v1868
    %7829 = vmatmul.mubr.bf16.gmra.mrb[0].mxu0 %v1866
    %v7830 = vpop.f32.mrb[0].mxu0
    %v7831 = vadd.f32 %v7791, %v7830
    %v7832 = vpop.f32.mrb[0].mxu0
    %v7833 = vpop.f32.mrb[0].mxu0
    %v7834 = vpop.f32.mrb[0].mxu0
    %7835 = vdwg.mxu0
    %7836 = vmatprep.subr.bf16.mxu0 0
    %7837 = vmatpush1.bf16.msra.mxu0 %v5788
    %7838 = vmatprep.subr.bf16.mxu0 0
    %7839 = vmatpush1.bf16.msra.mxu0 %v5789
    %7840 = vmatprep.subr.bf16.mxu0 0
    %7841 = vmatpush1.bf16.msra.mxu0 %v5790
    %7842 = vmatprep.subr.bf16.mxu0 0
    %7843 = vmatpush1.bf16.msra.mxu0 %v5791
    %7844 = vmatprep.subr.bf16.mxu0 0
    %7845 = vmatpush1.bf16.msra.mxu0 %v5792
    %7846 = vmatprep.subr.bf16.mxu0 0
    %7847 = vmatpush1.bf16.msra.mxu0 %v5793
    %7848 = vmatprep.subr.bf16.mxu0 0
    %7849 = vmatpush1.bf16.msra.mxu0 %v5794
    %7850 = vmatprep.subr.bf16.mxu0 0
    %7851 = vmatpush1.bf16.msra.mxu0 %v5795
    %7852 = vmatprep.subr.bf16.mxu0 0
    %7853 = vmatpush1.bf16.msra.mxu0 %v5796
    %7854 = vmatprep.subr.bf16.mxu0 0
    %7855 = vmatpush1.bf16.msra.mxu0 %v5797
    %7856 = vmatprep.subr.bf16.mxu0 0
    %7857 = vmatpush1.bf16.msra.mxu0 %v5798
    %7858 = vmatprep.subr.bf16.mxu0 0
    %7859 = vmatpush1.bf16.msra.mxu0 %v5799
    %7860 = vmatprep.subr.bf16.mxu0 0
    %7861 = vmatpush1.bf16.msra.mxu0 %v5800
    %7862 = vmatprep.subr.bf16.mxu0 0
    %7863 = vmatpush1.bf16.msra.mxu0 %v5801
    %7864 = vmatprep.subr.bf16.mxu0 0
    %7865 = vmatpush1.bf16.msra.mxu0 %v5802
    %7866 = vmatprep.subr.bf16.mxu0 0
    %7867 = vmatpush1.bf16.msra.mxu0 %v5803
    %7868 = vmatprep.mubr.bf16.mxu0 %v1906
    %7869 = vmatmul.mubr.bf16.gmra.mrb[0].mxu0 %v1892
    %v7870 = vpop.f32.mrb[0].mxu0
    %v7871 = vadd.f32 %v7831, %v7870
    %v7872 = vpop.f32.mrb[0].mxu0
    %v7873 = vpop.f32.mrb[0].mxu0
    %v7874 = vpop.f32.mrb[0].mxu0
    %7875 = vdwg.mxu0
    %7876 = vmatprep.subr.bf16.mxu0 0
    %7877 = vmatpush1.bf16.msra.mxu0 %v5804
    %7878 = vmatprep.subr.bf16.mxu0 0
    %7879 = vmatpush1.bf16.msra.mxu0 %v5805
    %7880 = vmatprep.subr.bf16.mxu0 0
    %7881 = vmatpush1.bf16.msra.mxu0 %v5806
    %7882 = vmatprep.subr.bf16.mxu0 0
    %7883 = vmatpush1.bf16.msra.mxu0 %v5807
    %7884 = vmatprep.subr.bf16.mxu0 0
    %7885 = vmatpush1.bf16.msra.mxu0 %v5808
    %7886 = vmatprep.subr.bf16.mxu0 0
    %7887 = vmatpush1.bf16.msra.mxu0 %v5809
    %7888 = vmatprep.subr.bf16.mxu0 0
    %7889 = vmatpush1.bf16.msra.mxu0 %v5810
    %7890 = vmatprep.subr.bf16.mxu0 0
    %7891 = vmatpush1.bf16.msra.mxu0 %v5811
    %7892 = vmatprep.subr.bf16.mxu0 0
    %7893 = vmatpush1.bf16.msra.mxu0 %v5812
    %7894 = vmatprep.subr.bf16.mxu0 0
    %7895 = vmatpush1.bf16.msra.mxu0 %v5813
    %7896 = vmatprep.subr.bf16.mxu0 0
    %7897 = vmatpush1.bf16.msra.mxu0 %v5814
    %7898 = vmatprep.subr.bf16.mxu0 0
    %7899 = vmatpush1.bf16.msra.mxu0 %v5815
    %7900 = vmatprep.subr.bf16.mxu0 0
    %7901 = vmatpush1.bf16.msra.mxu0 %v5816
    %7902 = vmatprep.subr.bf16.mxu0 0
    %7903 = vmatpush1.bf16.msra.mxu0 %v5817
    %7904 = vmatprep.subr.bf16.mxu0 0
    %7905 = vmatpush1.bf16.msra.mxu0 %v5818
    %7906 = vmatprep.subr.bf16.mxu0 0
    %7907 = vmatpush1.bf16.msra.mxu0 %v5819
    %7908 = vmatprep.mubr.bf16.mxu0 %v1916
    %7909 = vmatmul.mubr.bf16.gmra.mrb[0].mxu0 %v1914
    %v7910 = vpop.f32.mrb[0].mxu0
    %v7911 = vadd.f32 %v7871, %v7910
    %v7912 = vpop.f32.mrb[0].mxu0
    %v7913 = vpop.f32.mrb[0].mxu0
    %v7914 = vpop.f32.mrb[0].mxu0
    %7915 = vdwg.mxu0
    %7916 = vmatprep.subr.bf16.mxu0 0
    %7917 = vmatpush1.bf16.msra.mxu0 %v5820
    %7918 = vmatprep.subr.bf16.mxu0 0
    %7919 = vmatpush1.bf16.msra.mxu0 %v5821
    %7920 = vmatprep.subr.bf16.mxu0 0
    %7921 = vmatpush1.bf16.msra.mxu0 %v5822
    %7922 = vmatprep.subr.bf16.mxu0 0
    %7923 = vmatpush1.bf16.msra.mxu0 %v5823
    %7924 = vmatprep.subr.bf16.mxu0 0
    %7925 = vmatpush1.bf16.msra.mxu0 %v5824
    %7926 = vmatprep.subr.bf16.mxu0 0
    %7927 = vmatpush1.bf16.msra.mxu0 %v5825
    %7928 = vmatprep.subr.bf16.mxu0 0
    %7929 = vmatpush1.bf16.msra.mxu0 %v5826
    %7930 = vmatprep.subr.bf16.mxu0 0
    %7931 = vmatpush1.bf16.msra.mxu0 %v5827
    %7932 = vmatprep.subr.bf16.mxu0 0
    %7933 = vmatpush1.bf16.msra.mxu0 %v5828
    %7934 = vmatprep.subr.bf16.mxu0 0
    %7935 = vmatpush1.bf16.msra.mxu0 %v5829
    %7936 = vmatprep.subr.bf16.mxu0 0
    %7937 = vmatpush1.bf16.msra.mxu0 %v5830
    %7938 = vmatprep.subr.bf16.mxu0 0
    %7939 = vmatpush1.bf16.msra.mxu0 %v5831
    %7940 = vmatprep.subr.bf16.mxu0 0
    %7941 = vmatpush1.bf16.msra.mxu0 %v5832
    %7942 = vmatprep.subr.bf16.mxu0 0
    %7943 = vmatpush1.bf16.msra.mxu0 %v5833
    %7944 = vmatprep.subr.bf16.mxu0 0
    %7945 = vmatpush1.bf16.msra.mxu0 %v5834
    %7946 = vmatprep.subr.bf16.mxu0 0
    %7947 = vmatpush1.bf16.msra.mxu0 %v5835
    %7948 = vmatprep.mubr.bf16.mxu0 %v1913
    %7949 = vmatmul.mubr.bf16.gmra.mrb[0].mxu0 %v1899
    %v7950 = vpop.f32.mrb[0].mxu0
    %v7951 = vadd.f32 %v7911, %v7950
    %v7952 = vpop.f32.mrb[0].mxu0
    %v7953 = vpop.f32.mrb[0].mxu0
    %v7954 = vpop.f32.mrb[0].mxu0
    %7955 = vdwg.mxu0
    %7956 = vmatprep.subr.bf16.mxu0 0
    %7957 = vmatpush1.bf16.msra.mxu0 %v5836
    %7958 = vmatprep.subr.bf16.mxu0 0
    %7959 = vmatpush1.bf16.msra.mxu0 %v5837
    %7960 = vmatprep.subr.bf16.mxu0 0
    %7961 = vmatpush1.bf16.msra.mxu0 %v5838
    %7962 = vmatprep.subr.bf16.mxu0 0
    %7963 = vmatpush1.bf16.msra.mxu0 %v5839
    %7964 = vmatprep.subr.bf16.mxu0 0
    %7965 = vmatpush1.bf16.msra.mxu0 %v5840
    %7966 = vmatprep.subr.bf16.mxu0 0
    %7967 = vmatpush1.bf16.msra.mxu0 %v5841
    %7968 = vmatprep.subr.bf16.mxu0 0
    %7969 = vmatpush1.bf16.msra.mxu0 %v5842
    %7970 = vmatprep.subr.bf16.mxu0 0
    %7971 = vmatpush1.bf16.msra.mxu0 %v5843
    %7972 = vmatprep.subr.bf16.mxu0 0
    %7973 = vmatpush1.bf16.msra.mxu0 %v5844
    %7974 = vmatprep.subr.bf16.mxu0 0
    %7975 = vmatpush1.bf16.msra.mxu0 %v5845
    %7976 = vmatprep.subr.bf16.mxu0 0
    %7977 = vmatpush1.bf16.msra.mxu0 %v5846
    %7978 = vmatprep.subr.bf16.mxu0 0
    %7979 = vmatpush1.bf16.msra.mxu0 %v5847
    %7980 = vmatprep.subr.bf16.mxu0 0
    %7981 = vmatpush1.bf16.msra.mxu0 %v5848
    %7982 = vmatprep.subr.bf16.mxu0 0
    %7983 = vmatpush1.bf16.msra.mxu0 %v5849
    %7984 = vmatprep.subr.bf16.mxu0 0
    %7985 = vmatpush1.bf16.msra.mxu0 %v5850
    %7986 = vmatprep.subr.bf16.mxu0 0
    %7987 = vmatpush1.bf16.msra.mxu0 %v5851
    %7988 = vmatprep.mubr.bf16.mxu0 %v1917
    %7989 = vmatmul.mubr.bf16.gmra.mrb[0].mxu0 %v1915
    %v7990 = vpop.f32.mrb[0].mxu0
    %v7991 = vadd.f32 %v7951, %v7990
    %v7992 = vpop.f32.mrb[0].mxu0
    %v7993 = vpop.f32.mrb[0].mxu0
    %v7994 = vpop.f32.mrb[0].mxu0
    %7995 = vdwg.mxu0
    %7996 = vmatprep.subr.bf16.mxu0 0
    %7997 = vmatpush1.bf16.msra.mxu0 %v5852
    %7998 = vmatprep.subr.bf16.mxu0 0
    %7999 = vmatpush1.bf16.msra.mxu0 %v5853
    %8000 = vmatprep.subr.bf16.mxu0 0
    %8001 = vmatpush1.bf16.msra.mxu0 %v5854
    %8002 = vmatprep.subr.bf16.mxu0 0
    %8003 = vmatpush1.bf16.msra.mxu0 %v5855
    %8004 = vmatprep.subr.bf16.mxu0 0
    %8005 = vmatpush1.bf16.msra.mxu0 %v5856
    %8006 = vmatprep.subr.bf16.mxu0 0
    %8007 = vmatpush1.bf16.msra.mxu0 %v5857
    %8008 = vmatprep.subr.bf16.mxu0 0
    %8009 = vmatpush1.bf16.msra.mxu0 %v5858
    %8010 = vmatprep.subr.bf16.mxu0 0
    %8011 = vmatpush1.bf16.msra.mxu0 %v5859
    %8012 = vmatprep.subr.bf16.mxu0 0
    %8013 = vmatpush1.bf16.msra.mxu0 %v5860
    %8014 = vmatprep.subr.bf16.mxu0 0
    %8015 = vmatpush1.bf16.msra.mxu0 %v5861
    %8016 = vmatprep.subr.bf16.mxu0 0
    %8017 = vmatpush1.bf16.msra.mxu0 %v5862
    %8018 = vmatprep.subr.bf16.mxu0 0
    %8019 = vmatpush1.bf16.msra.mxu0 %v5863
    %8020 = vmatprep.subr.bf16.mxu0 0
    %8021 = vmatpush1.bf16.msra.mxu0 %v5864
    %8022 = vmatprep.subr.bf16.mxu0 0
    %8023 = vmatpush1.bf16.msra.mxu0 %v5865
    %8024 = vmatprep.subr.bf16.mxu0 0
    %8025 = vmatpush1.bf16.msra.mxu0 %v5866
    %8026 = vmatprep.subr.bf16.mxu0 0
    %8027 = vmatpush1.bf16.msra.mxu0 %v5867
    %8028 = vmatprep.mubr.bf16.mxu0 %v1955
    %8029 = vmatmul.mubr.bf16.gmra.mrb[0].mxu0 %v1941
    %v8030 = vpop.f32.mrb[0].mxu0
    %v8031 = vadd.f32 %v7991, %v8030
    %v8032 = vpop.f32.mrb[0].mxu0
    %v8033 = vpop.f32.mrb[0].mxu0
    %v8034 = vpop.f32.mrb[0].mxu0
    %8035 = vdwg.mxu0
    %8036 = vmatprep.subr.bf16.mxu0 0
    %8037 = vmatpush1.bf16.msra.mxu0 %v5868
    %8038 = vmatprep.subr.bf16.mxu0 0
    %8039 = vmatpush1.bf16.msra.mxu0 %v5869
    %8040 = vmatprep.subr.bf16.mxu0 0
    %8041 = vmatpush1.bf16.msra.mxu0 %v5870
    %8042 = vmatprep.subr.bf16.mxu0 0
    %8043 = vmatpush1.bf16.msra.mxu0 %v5871
    %8044 = vmatprep.subr.bf16.mxu0 0
    %8045 = vmatpush1.bf16.msra.mxu0 %v5872
    %8046 = vmatprep.subr.bf16.mxu0 0
    %8047 = vmatpush1.bf16.msra.mxu0 %v5873
    %8048 = vmatprep.subr.bf16.mxu0 0
    %8049 = vmatpush1.bf16.msra.mxu0 %v5874
    %8050 = vmatprep.subr.bf16.mxu0 0
    %8051 = vmatpush1.bf16.msra.mxu0 %v5875
    %8052 = vmatprep.subr.bf16.mxu0 0
    %8053 = vmatpush1.bf16.msra.mxu0 %v5876
    %8054 = vmatprep.subr.bf16.mxu0 0
    %8055 = vmatpush1.bf16.msra.mxu0 %v5877
    %8056 = vmatprep.subr.bf16.mxu0 0
    %8057 = vmatpush1.bf16.msra.mxu0 %v5878
    %8058 = vmatprep.subr.bf16.mxu0 0
    %8059 = vmatpush1.bf16.msra.mxu0 %v5879
    %8060 = vmatprep.subr.bf16.mxu0 0
    %8061 = vmatpush1.bf16.msra.mxu0 %v5880
    %8062 = vmatprep.subr.bf16.mxu0 0
    %8063 = vmatpush1.bf16.msra.mxu0 %v5881
    %8064 = vmatprep.subr.bf16.mxu0 0
    %8065 = vmatpush1.bf16.msra.mxu0 %v5882
    %8066 = vmatprep.subr.bf16.mxu0 0
    %8067 = vmatpush1.bf16.msra.mxu0 %v5883
    %8068 = vmatprep.mubr.bf16.mxu0 %v1965
    %8069 = vmatmul.mubr.bf16.gmra.mrb[0].mxu0 %v1963
    %v8070 = vpop.f32.mrb[0].mxu0
    %v8071 = vadd.f32 %v8031, %v8070
    %v8072 = vpop.f32.mrb[0].mxu0
    %v8073 = vpop.f32.mrb[0].mxu0
    %v8074 = vpop.f32.mrb[0].mxu0
    %8075 = vdwg.mxu0
    %8076 = vmatprep.subr.bf16.mxu0 0
    %8077 = vmatpush1.bf16.msra.mxu0 %v5884
    %8078 = vmatprep.subr.bf16.mxu0 0
    %8079 = vmatpush1.bf16.msra.mxu0 %v5885
    %8080 = vmatprep.subr.bf16.mxu0 0
    %8081 = vmatpush1.bf16.msra.mxu0 %v5886
    %8082 = vmatprep.subr.bf16.mxu0 0
    %8083 = vmatpush1.bf16.msra.mxu0 %v5887
    %8084 = vmatprep.subr.bf16.mxu0 0
    %8085 = vmatpush1.bf16.msra.mxu0 %v5888
    %8086 = vmatprep.subr.bf16.mxu0 0
    %8087 = vmatpush1.bf16.msra.mxu0 %v5889
    %8088 = vmatprep.subr.bf16.mxu0 0
    %8089 = vmatpush1.bf16.msra.mxu0 %v5890
    %8090 = vmatprep.subr.bf16.mxu0 0
    %8091 = vmatpush1.bf16.msra.mxu0 %v5891
    %8092 = vmatprep.subr.bf16.mxu0 0
    %8093 = vmatpush1.bf16.msra.mxu0 %v5892
    %8094 = vmatprep.subr.bf16.mxu0 0
    %8095 = vmatpush1.bf16.msra.mxu0 %v5893
    %8096 = vmatprep.subr.bf16.mxu0 0
    %8097 = vmatpush1.bf16.msra.mxu0 %v5894
    %8098 = vmatprep.subr.bf16.mxu0 0
    %8099 = vmatpush1.bf16.msra.mxu0 %v5895
    %8100 = vmatprep.subr.bf16.mxu0 0
    %8101 = vmatpush1.bf16.msra.mxu0 %v5896
    %8102 = vmatprep.subr.bf16.mxu0 0
    %8103 = vmatpush1.bf16.msra.mxu0 %v5897
    %8104 = vmatprep.subr.bf16.mxu0 0
    %8105 = vmatpush1.bf16.msra.mxu0 %v5898
    %8106 = vmatprep.subr.bf16.mxu0 0
    %8107 = vmatpush1.bf16.msra.mxu0 %v5899
    %8108 = vmatprep.mubr.bf16.mxu0 %v1962
    %8109 = vmatmul.mubr.bf16.gmra.mrb[0].mxu0 %v1948
    %v8110 = vpop.f32.mrb[0].mxu0
    %v8111 = vadd.f32 %v8071, %v8110
    %v8112 = vpop.f32.mrb[0].mxu0
    %v8113 = vpop.f32.mrb[0].mxu0
    %v8114 = vpop.f32.mrb[0].mxu0
    %8115 = vdwg.mxu0
    %8116 = vmatprep.subr.bf16.mxu0 0
    %8117 = vmatpush1.bf16.msra.mxu0 %v5900
    %8118 = vmatprep.subr.bf16.mxu0 0
    %8119 = vmatpush1.bf16.msra.mxu0 %v5901
    %8120 = vmatprep.subr.bf16.mxu0 0
    %8121 = vmatpush1.bf16.msra.mxu0 %v5902
    %8122 = vmatprep.subr.bf16.mxu0 0
    %8123 = vmatpush1.bf16.msra.mxu0 %v5903
    %8124 = vmatprep.subr.bf16.mxu0 0
    %8125 = vmatpush1.bf16.msra.mxu0 %v5904
    %8126 = vmatprep.subr.bf16.mxu0 0
    %8127 = vmatpush1.bf16.msra.mxu0 %v5905
    %8128 = vmatprep.subr.bf16.mxu0 0
    %8129 = vmatpush1.bf16.msra.mxu0 %v5906
    %8130 = vmatprep.subr.bf16.mxu0 0
    %8131 = vmatpush1.bf16.msra.mxu0 %v5907
    %8132 = vmatprep.subr.bf16.mxu0 0
    %8133 = vmatpush1.bf16.msra.mxu0 %v5908
    %8134 = vmatprep.subr.bf16.mxu0 0
    %8135 = vmatpush1.bf16.msra.mxu0 %v5909
    %8136 = vmatprep.subr.bf16.mxu0 0
    %8137 = vmatpush1.bf16.msra.mxu0 %v5910
    %8138 = vmatprep.subr.bf16.mxu0 0
    %8139 = vmatpush1.bf16.msra.mxu0 %v5911
    %8140 = vmatprep.subr.bf16.mxu0 0
    %8141 = vmatpush1.bf16.msra.mxu0 %v5912
    %8142 = vmatprep.subr.bf16.mxu0 0
    %8143 = vmatpush1.bf16.msra.mxu0 %v5913
    %8144 = vmatprep.subr.bf16.mxu0 0
    %8145 = vmatpush1.bf16.msra.mxu0 %v5914
    %8146 = vmatprep.subr.bf16.mxu0 0
    %8147 = vmatpush1.bf16.msra.mxu0 %v5915
    %8148 = vmatprep.mubr.bf16.mxu0 %v1966
    %8149 = vmatmul.mubr.bf16.gmra.mrb[0].mxu0 %v1964
    %v8150 = vpop.f32.mrb[0].mxu0
    %v8151 = vadd.f32 %v8111, %v8150
    %v8152 = vpop.f32.mrb[0].mxu0
    %v8153 = vpop.f32.mrb[0].mxu0
    %v8154 = vpop.f32.mrb[0].mxu0
    %8155 = vdwg.mxu0
    %8156 = vmatprep.subr.bf16.mxu0 0
    %8157 = vmatpush1.bf16.msra.mxu0 %v5916
    %8158 = vmatprep.subr.bf16.mxu0 0
    %8159 = vmatpush1.bf16.msra.mxu0 %v5917
    %8160 = vmatprep.subr.bf16.mxu0 0
    %8161 = vmatpush1.bf16.msra.mxu0 %v5918
    %8162 = vmatprep.subr.bf16.mxu0 0
    %8163 = vmatpush1.bf16.msra.mxu0 %v5919
    %8164 = vmatprep.subr.bf16.mxu0 0
    %8165 = vmatpush1.bf16.msra.mxu0 %v5920
    %8166 = vmatprep.subr.bf16.mxu0 0
    %8167 = vmatpush1.bf16.msra.mxu0 %v5921
    %8168 = vmatprep.subr.bf16.mxu0 0
    %8169 = vmatpush1.bf16.msra.mxu0 %v5922
    %8170 = vmatprep.subr.bf16.mxu0 0
    %8171 = vmatpush1.bf16.msra.mxu0 %v5923
    %8172 = vmatprep.subr.bf16.mxu0 0
    %8173 = vmatpush1.bf16.msra.mxu0 %v5924
    %8174 = vmatprep.subr.bf16.mxu0 0
    %8175 = vmatpush1.bf16.msra.mxu0 %v5925
    %8176 = vmatprep.subr.bf16.mxu0 0
    %8177 = vmatpush1.bf16.msra.mxu0 %v5926
    %8178 = vmatprep.subr.bf16.mxu0 0
    %8179 = vmatpush1.bf16.msra.mxu0 %v5927
    %8180 = vmatprep.subr.bf16.mxu0 0
    %8181 = vmatpush1.bf16.msra.mxu0 %v5928
    %8182 = vmatprep.subr.bf16.mxu0 0
    %8183 = vmatpush1.bf16.msra.mxu0 %v5929
    %8184 = vmatprep.subr.bf16.mxu0 0
    %8185 = vmatpush1.bf16.msra.mxu0 %v5930
    %8186 = vmatprep.subr.bf16.mxu0 0
    %8187 = vmatpush1.bf16.msra.mxu0 %v5931
    %8188 = vmatprep.mubr.bf16.mxu0 %v2004
    %8189 = vmatmul.mubr.bf16.gmra.mrb[0].mxu0 %v1990
    %v8190 = vpop.f32.mrb[0].mxu0
    %v8191 = vadd.f32 %v8151, %v8190
    %v8192 = vpop.f32.mrb[0].mxu0
    %v8193 = vpop.f32.mrb[0].mxu0
    %v8194 = vpop.f32.mrb[0].mxu0
    %8195 = vdwg.mxu0
    %8196 = vmatprep.subr.bf16.mxu0 0
    %8197 = vmatpush1.bf16.msra.mxu0 %v5932
    %8198 = vmatprep.subr.bf16.mxu0 0
    %8199 = vmatpush1.bf16.msra.mxu0 %v5933
    %8200 = vmatprep.subr.bf16.mxu0 0
    %8201 = vmatpush1.bf16.msra.mxu0 %v5934
    %8202 = vmatprep.subr.bf16.mxu0 0
    %8203 = vmatpush1.bf16.msra.mxu0 %v5935
    %8204 = vmatprep.subr.bf16.mxu0 0
    %8205 = vmatpush1.bf16.msra.mxu0 %v5936
    %8206 = vmatprep.subr.bf16.mxu0 0
    %8207 = vmatpush1.bf16.msra.mxu0 %v5937
    %8208 = vmatprep.subr.bf16.mxu0 0
    %8209 = vmatpush1.bf16.msra.mxu0 %v5938
    %8210 = vmatprep.subr.bf16.mxu0 0
    %8211 = vmatpush1.bf16.msra.mxu0 %v5939
    %8212 = vmatprep.subr.bf16.mxu0 0
    %8213 = vmatpush1.bf16.msra.mxu0 %v5940
    %8214 = vmatprep.subr.bf16.mxu0 0
    %8215 = vmatpush1.bf16.msra.mxu0 %v5941
    %8216 = vmatprep.subr.bf16.mxu0 0
    %8217 = vmatpush1.bf16.msra.mxu0 %v5942
    %8218 = vmatprep.subr.bf16.mxu0 0
    %8219 = vmatpush1.bf16.msra.mxu0 %v5943
    %8220 = vmatprep.subr.bf16.mxu0 0
    %8221 = vmatpush1.bf16.msra.mxu0 %v5944
    %8222 = vmatprep.subr.bf16.mxu0 0
    %8223 = vmatpush1.bf16.msra.mxu0 %v5945
    %8224 = vmatprep.subr.bf16.mxu0 0
    %8225 = vmatpush1.bf16.msra.mxu0 %v5946
    %8226 = vmatprep.subr.bf16.mxu0 0
    %8227 = vmatpush1.bf16.msra.mxu0 %v5947
    %8228 = vmatprep.mubr.bf16.mxu0 %v2014
    %8229 = vmatmul.mubr.bf16.gmra.mrb[0].mxu0 %v2012
    %v8230 = vpop.f32.mrb[0].mxu0
    %v8231 = vadd.f32 %v8191, %v8230
    %v8232 = vpop.f32.mrb[0].mxu0
    %v8233 = vpop.f32.mrb[0].mxu0
    %v8234 = vpop.f32.mrb[0].mxu0
    %8235 = vdwg.mxu0
    %8236 = vmatprep.subr.bf16.mxu0 0
    %8237 = vmatpush1.bf16.msra.mxu0 %v5948
    %8238 = vmatprep.subr.bf16.mxu0 0
    %8239 = vmatpush1.bf16.msra.mxu0 %v5949
    %8240 = vmatprep.subr.bf16.mxu0 0
    %8241 = vmatpush1.bf16.msra.mxu0 %v5950
    %8242 = vmatprep.subr.bf16.mxu0 0
    %8243 = vmatpush1.bf16.msra.mxu0 %v5951
    %8244 = vmatprep.subr.bf16.mxu0 0
    %8245 = vmatpush1.bf16.msra.mxu0 %v5952
    %8246 = vmatprep.subr.bf16.mxu0 0
    %8247 = vmatpush1.bf16.msra.mxu0 %v5953
    %8248 = vmatprep.subr.bf16.mxu0 0
    %8249 = vmatpush1.bf16.msra.mxu0 %v5954
    %8250 = vmatprep.subr.bf16.mxu0 0
    %8251 = vmatpush1.bf16.msra.mxu0 %v5955
    %8252 = vmatprep.subr.bf16.mxu0 0
    %8253 = vmatpush1.bf16.msra.mxu0 %v5956
    %8254 = vmatprep.subr.bf16.mxu0 0
    %8255 = vmatpush1.bf16.msra.mxu0 %v5957
    %8256 = vmatprep.subr.bf16.mxu0 0
    %8257 = vmatpush1.bf16.msra.mxu0 %v5958
    %8258 = vmatprep.subr.bf16.mxu0 0
    %8259 = vmatpush1.bf16.msra.mxu0 %v5959
    %8260 = vmatprep.subr.bf16.mxu0 0
    %8261 = vmatpush1.bf16.msra.mxu0 %v5960
    %8262 = vmatprep.subr.bf16.mxu0 0
    %8263 = vmatpush1.bf16.msra.mxu0 %v5961
    %8264 = vmatprep.subr.bf16.mxu0 0
    %8265 = vmatpush1.bf16.msra.mxu0 %v5962
    %8266 = vmatprep.subr.bf16.mxu0 0
    %8267 = vmatpush1.bf16.msra.mxu0 %v5963
    %8268 = vmatprep.mubr.bf16.mxu0 %v2011
    %8269 = vmatmul.mubr.bf16.gmra.mrb[0].mxu0 %v1997
    %v8270 = vpop.f32.mrb[0].mxu0
    %v8271 = vadd.f32 %v8231, %v8270
    %v8272 = vpop.f32.mrb[0].mxu0
    %v8273 = vpop.f32.mrb[0].mxu0
    %v8274 = vpop.f32.mrb[0].mxu0
    %8275 = vdwg.mxu0
    %8276 = vmatprep.subr.bf16.mxu0 0
    %8277 = vmatpush1.bf16.msra.mxu0 %v5964
    %8278 = vmatprep.subr.bf16.mxu0 0
    %8279 = vmatpush1.bf16.msra.mxu0 %v5965
    %8280 = vmatprep.subr.bf16.mxu0 0
    %8281 = vmatpush1.bf16.msra.mxu0 %v5966
    %8282 = vmatprep.subr.bf16.mxu0 0
    %8283 = vmatpush1.bf16.msra.mxu0 %v5967
    %8284 = vmatprep.subr.bf16.mxu0 0
    %8285 = vmatpush1.bf16.msra.mxu0 %v5968
    %8286 = vmatprep.subr.bf16.mxu0 0
    %8287 = vmatpush1.bf16.msra.mxu0 %v5969
    %8288 = vmatprep.subr.bf16.mxu0 0
    %8289 = vmatpush1.bf16.msra.mxu0 %v5970
    %8290 = vmatprep.subr.bf16.mxu0 0
    %8291 = vmatpush1.bf16.msra.mxu0 %v5971
    %8292 = vmatprep.subr.bf16.mxu0 0
    %8293 = vmatpush1.bf16.msra.mxu0 %v5972
    %8294 = vmatprep.subr.bf16.mxu0 0
    %8295 = vmatpush1.bf16.msra.mxu0 %v5973
    %8296 = vmatprep.subr.bf16.mxu0 0
    %8297 = vmatpush1.bf16.msra.mxu0 %v5974
    %8298 = vmatprep.subr.bf16.mxu0 0
    %8299 = vmatpush1.bf16.msra.mxu0 %v5975
    %8300 = vmatprep.subr.bf16.mxu0 0
    %8301 = vmatpush1.bf16.msra.mxu0 %v5976
    %8302 = vmatprep.subr.bf16.mxu0 0
    %8303 = vmatpush1.bf16.msra.mxu0 %v5977
    %8304 = vmatprep.subr.bf16.mxu0 0
    %8305 = vmatpush1.bf16.msra.mxu0 %v5978
    %8306 = vmatprep.subr.bf16.mxu0 0
    %8307 = vmatpush1.bf16.msra.mxu0 %v5979
    %8308 = vmatprep.mubr.bf16.mxu0 %v2015
    %8309 = vmatmul.mubr.bf16.gmra.mrb[0].mxu0 %v2013
    %v8310 = vpop.f32.mrb[0].mxu0
    %v8311 = vadd.f32 %v8271, %v8310
    %v8312 = vpop.f32.mrb[0].mxu0
    %v8313 = vpop.f32.mrb[0].mxu0
    %v8314 = vpop.f32.mrb[0].mxu0
    %8315 = vdwg.mxu0
    %8316 = vmatprep.subr.bf16.mxu0 0
    %8317 = vmatpush1.bf16.msra.mxu0 %v5980
    %8318 = vmatprep.subr.bf16.mxu0 0
    %8319 = vmatpush1.bf16.msra.mxu0 %v5981
    %8320 = vmatprep.subr.bf16.mxu0 0
    %8321 = vmatpush1.bf16.msra.mxu0 %v5982
    %8322 = vmatprep.subr.bf16.mxu0 0
    %8323 = vmatpush1.bf16.msra.mxu0 %v5983
    %8324 = vmatprep.subr.bf16.mxu0 0
    %8325 = vmatpush1.bf16.msra.mxu0 %v5984
    %8326 = vmatprep.subr.bf16.mxu0 0
    %8327 = vmatpush1.bf16.msra.mxu0 %v5985
    %8328 = vmatprep.subr.bf16.mxu0 0
    %8329 = vmatpush1.bf16.msra.mxu0 %v5986
    %8330 = vmatprep.subr.bf16.mxu0 0
    %8331 = vmatpush1.bf16.msra.mxu0 %v5987
    %8332 = vmatprep.subr.bf16.mxu0 0
    %8333 = vmatpush1.bf16.msra.mxu0 %v5988
    %8334 = vmatprep.subr.bf16.mxu0 0
    %8335 = vmatpush1.bf16.msra.mxu0 %v5989
    %8336 = vmatprep.subr.bf16.mxu0 0
    %8337 = vmatpush1.bf16.msra.mxu0 %v5990
    %8338 = vmatprep.subr.bf16.mxu0 0
    %8339 = vmatpush1.bf16.msra.mxu0 %v5991
    %8340 = vmatprep.subr.bf16.mxu0 0
    %8341 = vmatpush1.bf16.msra.mxu0 %v5992
    %8342 = vmatprep.subr.bf16.mxu0 0
    %8343 = vmatpush1.bf16.msra.mxu0 %v5993
    %8344 = vmatprep.subr.bf16.mxu0 0
    %8345 = vmatpush1.bf16.msra.mxu0 %v5994
    %8346 = vmatprep.subr.bf16.mxu0 0
    %8347 = vmatpush1.bf16.msra.mxu0 %v5995
    %8348 = vmatprep.mubr.bf16.mxu0 %v2053
    %8349 = vmatmul.mubr.bf16.gmra.mrb[0].mxu0 %v2039
    %v8350 = vpop.f32.mrb[0].mxu0
    %v8351 = vadd.f32 %v8311, %v8350
    %v8352 = vpop.f32.mrb[0].mxu0
    %v8353 = vpop.f32.mrb[0].mxu0
    %v8354 = vpop.f32.mrb[0].mxu0
    %8355 = vdwg.mxu0
    %8356 = vmatprep.subr.bf16.mxu0 0
    %8357 = vmatpush1.bf16.msra.mxu0 %v5996
    %8358 = vmatprep.subr.bf16.mxu0 0
    %8359 = vmatpush1.bf16.msra.mxu0 %v5997
    %8360 = vmatprep.subr.bf16.mxu0 0
    %8361 = vmatpush1.bf16.msra.mxu0 %v5998
    %8362 = vmatprep.subr.bf16.mxu0 0
    %8363 = vmatpush1.bf16.msra.mxu0 %v5999
    %8364 = vmatprep.subr.bf16.mxu0 0
    %8365 = vmatpush1.bf16.msra.mxu0 %v6000
    %8366 = vmatprep.subr.bf16.mxu0 0
    %8367 = vmatpush1.bf16.msra.mxu0 %v6001
    %8368 = vmatprep.subr.bf16.mxu0 0
    %8369 = vmatpush1.bf16.msra.mxu0 %v6002
    %8370 = vmatprep.subr.bf16.mxu0 0
    %8371 = vmatpush1.bf16.msra.mxu0 %v6003
    %8372 = vmatprep.subr.bf16.mxu0 0
    %8373 = vmatpush1.bf16.msra.mxu0 %v6004
    %8374 = vmatprep.subr.bf16.mxu0 0
    %8375 = vmatpush1.bf16.msra.mxu0 %v6005
    %8376 = vmatprep.subr.bf16.mxu0 0
    %8377 = vmatpush1.bf16.msra.mxu0 %v6006
    %8378 = vmatprep.subr.bf16.mxu0 0
    %8379 = vmatpush1.bf16.msra.mxu0 %v6007
    %8380 = vmatprep.subr.bf16.mxu0 0
    %8381 = vmatpush1.bf16.msra.mxu0 %v6008
    %8382 = vmatprep.subr.bf16.mxu0 0
    %8383 = vmatpush1.bf16.msra.mxu0 %v6009
    %8384 = vmatprep.subr.bf16.mxu0 0
    %8385 = vmatpush1.bf16.msra.mxu0 %v6010
    %8386 = vmatprep.subr.bf16.mxu0 0
    %8387 = vmatpush1.bf16.msra.mxu0 %v6011
    %8388 = vmatprep.mubr.bf16.mxu0 %v2063
    %8389 = vmatmul.mubr.bf16.gmra.mrb[0].mxu0 %v2061
    %v8390 = vpop.f32.mrb[0].mxu0
    %v8391 = vadd.f32 %v8351, %v8390
    %v8392 = vpop.f32.mrb[0].mxu0
    %v8393 = vpop.f32.mrb[0].mxu0
    %v8394 = vpop.f32.mrb[0].mxu0
    %8395 = vdwg.mxu0
    %8396 = vmatprep.subr.bf16.mxu0 0
    %8397 = vmatpush1.bf16.msra.mxu0 %v6012
    %8398 = vmatprep.subr.bf16.mxu0 0
    %8399 = vmatpush1.bf16.msra.mxu0 %v6013
    %8400 = vmatprep.subr.bf16.mxu0 0
    %8401 = vmatpush1.bf16.msra.mxu0 %v6014
    %8402 = vmatprep.subr.bf16.mxu0 0
    %8403 = vmatpush1.bf16.msra.mxu0 %v6015
    %8404 = vmatprep.subr.bf16.mxu0 0
    %8405 = vmatpush1.bf16.msra.mxu0 %v6016
    %8406 = vmatprep.subr.bf16.mxu0 0
    %8407 = vmatpush1.bf16.msra.mxu0 %v6017
    %8408 = vmatprep.subr.bf16.mxu0 0
    %8409 = vmatpush1.bf16.msra.mxu0 %v6018
    %8410 = vmatprep.subr.bf16.mxu0 0
    %8411 = vmatpush1.bf16.msra.mxu0 %v6019
    %8412 = vmatprep.subr.bf16.mxu0 0
    %8413 = vmatpush1.bf16.msra.mxu0 %v6020
    %8414 = vmatprep.subr.bf16.mxu0 0
    %8415 = vmatpush1.bf16.msra.mxu0 %v6021
    %8416 = vmatprep.subr.bf16.mxu0 0
    %8417 = vmatpush1.bf16.msra.mxu0 %v6022
    %8418 = vmatprep.subr.bf16.mxu0 0
    %8419 = vmatpush1.bf16.msra.mxu0 %v6023
    %8420 = vmatprep.subr.bf16.mxu0 0
    %8421 = vmatpush1.bf16.msra.mxu0 %v6024
    %8422 = vmatprep.subr.bf16.mxu0 0
    %8423 = vmatpush1.bf16.msra.mxu0 %v6025
    %8424 = vmatprep.subr.bf16.mxu0 0
    %8425 = vmatpush1.bf16.msra.mxu0 %v6026
    %8426 = vmatprep.subr.bf16.mxu0 0
    %8427 = vmatpush1.bf16.msra.mxu0 %v6027
    %8428 = vmatprep.mubr.bf16.mxu0 %v2060
    %8429 = vmatmul.mubr.bf16.gmra.mrb[0].mxu0 %v2046
    %v8430 = vpop.f32.mrb[0].mxu0
    %v8431 = vadd.f32 %v8391, %v8430
    %v8432 = vpop.f32.mrb[0].mxu0
    %v8433 = vpop.f32.mrb[0].mxu0
    %v8434 = vpop.f32.mrb[0].mxu0
    %8435 = vdwg.mxu0
    %8436 = vmatprep.subr.bf16.mxu0 0
    %8437 = vmatpush1.bf16.msra.mxu0 %v6028
    %8438 = vmatprep.subr.bf16.mxu0 0
    %8439 = vmatpush1.bf16.msra.mxu0 %v6029
    %8440 = vmatprep.subr.bf16.mxu0 0
    %8441 = vmatpush1.bf16.msra.mxu0 %v6030
    %8442 = vmatprep.subr.bf16.mxu0 0
    %8443 = vmatpush1.bf16.msra.mxu0 %v6031
    %8444 = vmatprep.subr.bf16.mxu0 0
    %8445 = vmatpush1.bf16.msra.mxu0 %v6032
    %8446 = vmatprep.subr.bf16.mxu0 0
    %8447 = vmatpush1.bf16.msra.mxu0 %v6033
    %8448 = vmatprep.subr.bf16.mxu0 0
    %8449 = vmatpush1.bf16.msra.mxu0 %v6034
    %8450 = vmatprep.subr.bf16.mxu0 0
    %8451 = vmatpush1.bf16.msra.mxu0 %v6035
    %8452 = vmatprep.subr.bf16.mxu0 0
    %8453 = vmatpush1.bf16.msra.mxu0 %v6036
    %8454 = vmatprep.subr.bf16.mxu0 0
    %8455 = vmatpush1.bf16.msra.mxu0 %v6037
    %8456 = vmatprep.subr.bf16.mxu0 0
    %8457 = vmatpush1.bf16.msra.mxu0 %v6038
    %8458 = vmatprep.subr.bf16.mxu0 0
    %8459 = vmatpush1.bf16.msra.mxu0 %v6039
    %8460 = vmatprep.subr.bf16.mxu0 0
    %8461 = vmatpush1.bf16.msra.mxu0 %v6040
    %8462 = vmatprep.subr.bf16.mxu0 0
    %8463 = vmatpush1.bf16.msra.mxu0 %v6041
    %8464 = vmatprep.subr.bf16.mxu0 0
    %8465 = vmatpush1.bf16.msra.mxu0 %v6042
    %8466 = vmatprep.subr.bf16.mxu0 0
    %8467 = vmatpush1.bf16.msra.mxu0 %v6043
    %8468 = vmatprep.mubr.bf16.mxu0 %v2064
    %8469 = vmatmul.mubr.bf16.gmra.mrb[0].mxu0 %v2062
    %v8470 = vpop.f32.mrb[0].mxu0
    %v8471 = vadd.f32 %v8431, %v8470
    %v8472 = vpop.f32.mrb[0].mxu0
    %v8473 = vpop.f32.mrb[0].mxu0
    %v8474 = vpop.f32.mrb[0].mxu0
    %8475 = vdwg.mxu0
    %8476 = vmatprep.subr.bf16.mxu0 0
    %8477 = vmatpush1.bf16.msra.mxu0 %v6044
    %8478 = vmatprep.subr.bf16.mxu0 0
    %8479 = vmatpush1.bf16.msra.mxu0 %v6045
    %8480 = vmatprep.subr.bf16.mxu0 0
    %8481 = vmatpush1.bf16.msra.mxu0 %v6046
    %8482 = vmatprep.subr.bf16.mxu0 0
    %8483 = vmatpush1.bf16.msra.mxu0 %v6047
    %8484 = vmatprep.subr.bf16.mxu0 0
    %8485 = vmatpush1.bf16.msra.mxu0 %v6048
    %8486 = vmatprep.subr.bf16.mxu0 0
    %8487 = vmatpush1.bf16.msra.mxu0 %v6049
    %8488 = vmatprep.subr.bf16.mxu0 0
    %8489 = vmatpush1.bf16.msra.mxu0 %v6050
    %8490 = vmatprep.subr.bf16.mxu0 0
    %8491 = vmatpush1.bf16.msra.mxu0 %v6051
    %8492 = vmatprep.subr.bf16.mxu0 0
    %8493 = vmatpush1.bf16.msra.mxu0 %v6052
    %8494 = vmatprep.subr.bf16.mxu0 0
    %8495 = vmatpush1.bf16.msra.mxu0 %v6053
    %8496 = vmatprep.subr.bf16.mxu0 0
    %8497 = vmatpush1.bf16.msra.mxu0 %v6054
    %8498 = vmatprep.subr.bf16.mxu0 0
    %8499 = vmatpush1.bf16.msra.mxu0 %v6055
    %8500 = vmatprep.subr.bf16.mxu0 0
    %8501 = vmatpush1.bf16.msra.mxu0 %v6056
    %8502 = vmatprep.subr.bf16.mxu0 0
    %8503 = vmatpush1.bf16.msra.mxu0 %v6057
    %8504 = vmatprep.subr.bf16.mxu0 0
    %8505 = vmatpush1.bf16.msra.mxu0 %v6058
    %8506 = vmatprep.subr.bf16.mxu0 0
    %8507 = vmatpush1.bf16.msra.mxu0 %v6059
    %8508 = vmatprep.mubr.bf16.mxu0 %v2102
    %8509 = vmatmul.mubr.bf16.gmra.mrb[0].mxu0 %v2088
    %v8510 = vpop.f32.mrb[0].mxu0
    %v8511 = vadd.f32 %v8471, %v8510
    %v8512 = vpop.f32.mrb[0].mxu0
    %v8513 = vpop.f32.mrb[0].mxu0
    %v8514 = vpop.f32.mrb[0].mxu0
    %8515 = vdwg.mxu0
    %8516 = vmatprep.subr.bf16.mxu0 0
    %8517 = vmatpush1.bf16.msra.mxu0 %v6060
    %8518 = vmatprep.subr.bf16.mxu0 0
    %8519 = vmatpush1.bf16.msra.mxu0 %v6061
    %8520 = vmatprep.subr.bf16.mxu0 0
    %8521 = vmatpush1.bf16.msra.mxu0 %v6062
    %8522 = vmatprep.subr.bf16.mxu0 0
    %8523 = vmatpush1.bf16.msra.mxu0 %v6063
    %8524 = vmatprep.subr.bf16.mxu0 0
    %8525 = vmatpush1.bf16.msra.mxu0 %v6064
    %8526 = vmatprep.subr.bf16.mxu0 0
    %8527 = vmatpush1.bf16.msra.mxu0 %v6065
    %8528 = vmatprep.subr.bf16.mxu0 0
    %8529 = vmatpush1.bf16.msra.mxu0 %v6066
    %8530 = vmatprep.subr.bf16.mxu0 0
    %8531 = vmatpush1.bf16.msra.mxu0 %v6067
    %8532 = vmatprep.subr.bf16.mxu0 0
    %8533 = vmatpush1.bf16.msra.mxu0 %v6068
    %8534 = vmatprep.subr.bf16.mxu0 0
    %8535 = vmatpush1.bf16.msra.mxu0 %v6069
    %8536 = vmatprep.subr.bf16.mxu0 0
    %8537 = vmatpush1.bf16.msra.mxu0 %v6070
    %8538 = vmatprep.subr.bf16.mxu0 0
    %8539 = vmatpush1.bf16.msra.mxu0 %v6071
    %8540 = vmatprep.subr.bf16.mxu0 0
    %8541 = vmatpush1.bf16.msra.mxu0 %v6072
    %8542 = vmatprep.subr.bf16.mxu0 0
    %8543 = vmatpush1.bf16.msra.mxu0 %v6073
    %8544 = vmatprep.subr.bf16.mxu0 0
    %8545 = vmatpush1.bf16.msra.mxu0 %v6074
    %8546 = vmatprep.subr.bf16.mxu0 0
    %8547 = vmatpush1.bf16.msra.mxu0 %v6075
    %8548 = vmatprep.mubr.bf16.mxu0 %v2112
    %8549 = vmatmul.mubr.bf16.gmra.mrb[0].mxu0 %v2110
    %v8550 = vpop.f32.mrb[0].mxu0
    %v8551 = vadd.f32 %v8511, %v8550
    %v8552 = vpop.f32.mrb[0].mxu0
    %v8553 = vpop.f32.mrb[0].mxu0
    %v8554 = vpop.f32.mrb[0].mxu0
    %8555 = vdwg.mxu0
    %8556 = vmatprep.subr.bf16.mxu0 0
    %8557 = vmatpush1.bf16.msra.mxu0 %v6076
    %8558 = vmatprep.subr.bf16.mxu0 0
    %8559 = vmatpush1.bf16.msra.mxu0 %v6077
    %8560 = vmatprep.subr.bf16.mxu0 0
    %8561 = vmatpush1.bf16.msra.mxu0 %v6078
    %8562 = vmatprep.subr.bf16.mxu0 0
    %8563 = vmatpush1.bf16.msra.mxu0 %v6079
    %8564 = vmatprep.subr.bf16.mxu0 0
    %8565 = vmatpush1.bf16.msra.mxu0 %v6080
    %8566 = vmatprep.subr.bf16.mxu0 0
    %8567 = vmatpush1.bf16.msra.mxu0 %v6081
    %8568 = vmatprep.subr.bf16.mxu0 0
    %8569 = vmatpush1.bf16.msra.mxu0 %v6082
    %8570 = vmatprep.subr.bf16.mxu0 0
    %8571 = vmatpush1.bf16.msra.mxu0 %v6083
    %8572 = vmatprep.subr.bf16.mxu0 0
    %8573 = vmatpush1.bf16.msra.mxu0 %v6084
    %8574 = vmatprep.subr.bf16.mxu0 0
    %8575 = vmatpush1.bf16.msra.mxu0 %v6085
    %8576 = vmatprep.subr.bf16.mxu0 0
    %8577 = vmatpush1.bf16.msra.mxu0 %v6086
    %8578 = vmatprep.subr.bf16.mxu0 0
    %8579 = vmatpush1.bf16.msra.mxu0 %v6087
    %8580 = vmatprep.subr.bf16.mxu0 0
    %8581 = vmatpush1.bf16.msra.mxu0 %v6088
    %8582 = vmatprep.subr.bf16.mxu0 0
    %8583 = vmatpush1.bf16.msra.mxu0 %v6089
    %8584 = vmatprep.subr.bf16.mxu0 0
    %8585 = vmatpush1.bf16.msra.mxu0 %v6090
    %8586 = vmatprep.subr.bf16.mxu0 0
    %8587 = vmatpush1.bf16.msra.mxu0 %v6091
    %8588 = vmatprep.mubr.bf16.mxu0 %v2109
    %8589 = vmatmul.mubr.bf16.gmra.mrb[0].mxu0 %v2095
    %v8590 = vpop.f32.mrb[0].mxu0
    %v8591 = vadd.f32 %v8551, %v8590
    %v8592 = vpop.f32.mrb[0].mxu0
    %v8593 = vpop.f32.mrb[0].mxu0
    %v8594 = vpop.f32.mrb[0].mxu0
    %8595 = vdwg.mxu0
    %8596 = vmatprep.subr.bf16.mxu0 0
    %8597 = vmatpush1.bf16.msra.mxu0 %v6092
    %8598 = vmatprep.subr.bf16.mxu0 0
    %8599 = vmatpush1.bf16.msra.mxu0 %v6093
    %8600 = vmatprep.subr.bf16.mxu0 0
    %8601 = vmatpush1.bf16.msra.mxu0 %v6094
    %8602 = vmatprep.subr.bf16.mxu0 0
    %8603 = vmatpush1.bf16.msra.mxu0 %v6095
    %8604 = vmatprep.subr.bf16.mxu0 0
    %8605 = vmatpush1.bf16.msra.mxu0 %v6096
    %8606 = vmatprep.subr.bf16.mxu0 0
    %8607 = vmatpush1.bf16.msra.mxu0 %v6097
    %8608 = vmatprep.subr.bf16.mxu0 0
    %8609 = vmatpush1.bf16.msra.mxu0 %v6098
    %8610 = vmatprep.subr.bf16.mxu0 0
    %8611 = vmatpush1.bf16.msra.mxu0 %v6099
    %8612 = vmatprep.subr.bf16.mxu0 0
    %8613 = vmatpush1.bf16.msra.mxu0 %v6100
    %8614 = vmatprep.subr.bf16.mxu0 0
    %8615 = vmatpush1.bf16.msra.mxu0 %v6101
    %8616 = vmatprep.subr.bf16.mxu0 0
    %8617 = vmatpush1.bf16.msra.mxu0 %v6102
    %8618 = vmatprep.subr.bf16.mxu0 0
    %8619 = vmatpush1.bf16.msra.mxu0 %v6103
    %8620 = vmatprep.subr.bf16.mxu0 0
    %8621 = vmatpush1.bf16.msra.mxu0 %v6104
    %8622 = vmatprep.subr.bf16.mxu0 0
    %8623 = vmatpush1.bf16.msra.mxu0 %v6105
    %8624 = vmatprep.subr.bf16.mxu0 0
    %8625 = vmatpush1.bf16.msra.mxu0 %v6106
    %8626 = vmatprep.subr.bf16.mxu0 0
    %8627 = vmatpush1.bf16.msra.mxu0 %v6107
    %8628 = vmatprep.mubr.bf16.mxu0 %v2113
    %8629 = vmatmul.mubr.bf16.gmra.mrb[0].mxu0 %v2111
    %v8630 = vpop.f32.mrb[0].mxu0
    %v8631 = vadd.f32 %v8591, %v8630
    %v8632 = vpop.f32.mrb[0].mxu0
    %v8633 = vpop.f32.mrb[0].mxu0
    %v8634 = vpop.f32.mrb[0].mxu0
    %8635 = vdwg.mxu0
    %8636 = vmatprep.subr.bf16.mxu0 0
    %8637 = vmatpush1.bf16.msra.mxu0 %v6108
    %8638 = vmatprep.subr.bf16.mxu0 0
    %8639 = vmatpush1.bf16.msra.mxu0 %v6109
    %8640 = vmatprep.subr.bf16.mxu0 0
    %8641 = vmatpush1.bf16.msra.mxu0 %v6110
    %8642 = vmatprep.subr.bf16.mxu0 0
    %8643 = vmatpush1.bf16.msra.mxu0 %v6111
    %8644 = vmatprep.subr.bf16.mxu0 0
    %8645 = vmatpush1.bf16.msra.mxu0 %v6112
    %8646 = vmatprep.subr.bf16.mxu0 0
    %8647 = vmatpush1.bf16.msra.mxu0 %v6113
    %8648 = vmatprep.subr.bf16.mxu0 0
    %8649 = vmatpush1.bf16.msra.mxu0 %v6114
    %8650 = vmatprep.subr.bf16.mxu0 0
    %8651 = vmatpush1.bf16.msra.mxu0 %v6115
    %8652 = vmatprep.subr.bf16.mxu0 0
    %8653 = vmatpush1.bf16.msra.mxu0 %v6116
    %8654 = vmatprep.subr.bf16.mxu0 0
    %8655 = vmatpush1.bf16.msra.mxu0 %v6117
    %8656 = vmatprep.subr.bf16.mxu0 0
    %8657 = vmatpush1.bf16.msra.mxu0 %v6118
    %8658 = vmatprep.subr.bf16.mxu0 0
    %8659 = vmatpush1.bf16.msra.mxu0 %v6119
    %8660 = vmatprep.subr.bf16.mxu0 0
    %8661 = vmatpush1.bf16.msra.mxu0 %v6120
    %8662 = vmatprep.subr.bf16.mxu0 0
    %8663 = vmatpush1.bf16.msra.mxu0 %v6121
    %8664 = vmatprep.subr.bf16.mxu0 0
    %8665 = vmatpush1.bf16.msra.mxu0 %v6122
    %8666 = vmatprep.subr.bf16.mxu0 0
    %8667 = vmatpush1.bf16.msra.mxu0 %v6123
    %8668 = vmatprep.mubr.bf16.mxu0 %v2151
    %8669 = vmatmul.mubr.bf16.gmra.mrb[0].mxu0 %v2137
    %v8670 = vpop.f32.mrb[0].mxu0
    %v8671 = vadd.f32 %v8631, %v8670
    %v8672 = vpop.f32.mrb[0].mxu0
    %v8673 = vpop.f32.mrb[0].mxu0
    %v8674 = vpop.f32.mrb[0].mxu0
    %8675 = vdwg.mxu0
    %8676 = vmatprep.subr.bf16.mxu0 0
    %8677 = vmatpush1.bf16.msra.mxu0 %v6124
    %8678 = vmatprep.subr.bf16.mxu0 0
    %8679 = vmatpush1.bf16.msra.mxu0 %v6125
    %8680 = vmatprep.subr.bf16.mxu0 0
    %8681 = vmatpush1.bf16.msra.mxu0 %v6126
    %8682 = vmatprep.subr.bf16.mxu0 0
    %8683 = vmatpush1.bf16.msra.mxu0 %v6127
    %8684 = vmatprep.subr.bf16.mxu0 0
    %8685 = vmatpush1.bf16.msra.mxu0 %v6128
    %8686 = vmatprep.subr.bf16.mxu0 0
    %8687 = vmatpush1.bf16.msra.mxu0 %v6129
    %8688 = vmatprep.subr.bf16.mxu0 0
    %8689 = vmatpush1.bf16.msra.mxu0 %v6130
    %8690 = vmatprep.subr.bf16.mxu0 0
    %8691 = vmatpush1.bf16.msra.mxu0 %v6131
    %8692 = vmatprep.subr.bf16.mxu0 0
    %8693 = vmatpush1.bf16.msra.mxu0 %v6132
    %8694 = vmatprep.subr.bf16.mxu0 0
    %8695 = vmatpush1.bf16.msra.mxu0 %v6133
    %8696 = vmatprep.subr.bf16.mxu0 0
    %8697 = vmatpush1.bf16.msra.mxu0 %v6134
    %8698 = vmatprep.subr.bf16.mxu0 0
    %8699 = vmatpush1.bf16.msra.mxu0 %v6135
    %8700 = vmatprep.subr.bf16.mxu0 0
    %8701 = vmatpush1.bf16.msra.mxu0 %v6136
    %8702 = vmatprep.subr.bf16.mxu0 0
    %8703 = vmatpush1.bf16.msra.mxu0 %v6137
    %8704 = vmatprep.subr.bf16.mxu0 0
    %8705 = vmatpush1.bf16.msra.mxu0 %v6138
    %8706 = vmatprep.subr.bf16.mxu0 0
    %8707 = vmatpush1.bf16.msra.mxu0 %v6139
    %8708 = vmatprep.mubr.bf16.mxu0 %v2161
    %8709 = vmatmul.mubr.bf16.gmra.mrb[0].mxu0 %v2159
    %v8710 = vpop.f32.mrb[0].mxu0
    %v8711 = vadd.f32 %v8671, %v8710
    %v8712 = vpop.f32.mrb[0].mxu0
    %v8713 = vpop.f32.mrb[0].mxu0
    %v8714 = vpop.f32.mrb[0].mxu0
    %8715 = vdwg.mxu0
    %8716 = vmatprep.subr.bf16.mxu0 0
    %8717 = vmatpush1.bf16.msra.mxu0 %v6140
    %8718 = vmatprep.subr.bf16.mxu0 0
    %8719 = vmatpush1.bf16.msra.mxu0 %v6141
    %8720 = vmatprep.subr.bf16.mxu0 0
    %8721 = vmatpush1.bf16.msra.mxu0 %v6142
    %8722 = vmatprep.subr.bf16.mxu0 0
    %8723 = vmatpush1.bf16.msra.mxu0 %v6143
    %8724 = vmatprep.subr.bf16.mxu0 0
    %8725 = vmatpush1.bf16.msra.mxu0 %v6144
    %8726 = vmatprep.subr.bf16.mxu0 0
    %8727 = vmatpush1.bf16.msra.mxu0 %v6145
    %8728 = vmatprep.subr.bf16.mxu0 0
    %8729 = vmatpush1.bf16.msra.mxu0 %v6146
    %8730 = vmatprep.subr.bf16.mxu0 0
    %8731 = vmatpush1.bf16.msra.mxu0 %v6147
    %8732 = vmatprep.subr.bf16.mxu0 0
    %8733 = vmatpush1.bf16.msra.mxu0 %v6148
    %8734 = vmatprep.subr.bf16.mxu0 0
    %8735 = vmatpush1.bf16.msra.mxu0 %v6149
    %8736 = vmatprep.subr.bf16.mxu0 0
    %8737 = vmatpush1.bf16.msra.mxu0 %v6150
    %8738 = vmatprep.subr.bf16.mxu0 0
    %8739 = vmatpush1.bf16.msra.mxu0 %v6151
    %8740 = vmatprep.subr.bf16.mxu0 0
    %8741 = vmatpush1.bf16.msra.mxu0 %v6152
    %8742 = vmatprep.subr.bf16.mxu0 0
    %8743 = vmatpush1.bf16.msra.mxu0 %v6153
    %8744 = vmatprep.subr.bf16.mxu0 0
    %8745 = vmatpush1.bf16.msra.mxu0 %v6154
    %8746 = vmatprep.subr.bf16.mxu0 0
    %8747 = vmatpush1.bf16.msra.mxu0 %v6155
    %8748 = vmatprep.mubr.bf16.mxu0 %v2158
    %8749 = vmatmul.mubr.bf16.gmra.mrb[0].mxu0 %v2144
    %v8750 = vpop.f32.mrb[0].mxu0
    %v8751 = vadd.f32 %v8711, %v8750
    %v8752 = vpop.f32.mrb[0].mxu0
    %v8753 = vpop.f32.mrb[0].mxu0
    %v8754 = vpop.f32.mrb[0].mxu0
    %8755 = vdwg.mxu0
    %8756 = vmatprep.subr.bf16.mxu0 0
    %8757 = vmatpush1.bf16.msra.mxu0 %v6156
    %8758 = vmatprep.subr.bf16.mxu0 0
    %8759 = vmatpush1.bf16.msra.mxu0 %v6157
    %8760 = vmatprep.subr.bf16.mxu0 0
    %8761 = vmatpush1.bf16.msra.mxu0 %v6158
    %8762 = vmatprep.subr.bf16.mxu0 0
    %8763 = vmatpush1.bf16.msra.mxu0 %v6159
    %8764 = vmatprep.subr.bf16.mxu0 0
    %8765 = vmatpush1.bf16.msra.mxu0 %v6160
    %8766 = vmatprep.subr.bf16.mxu0 0
    %8767 = vmatpush1.bf16.msra.mxu0 %v6161
    %8768 = vmatprep.subr.bf16.mxu0 0
    %8769 = vmatpush1.bf16.msra.mxu0 %v6162
    %8770 = vmatprep.subr.bf16.mxu0 0
    %8771 = vmatpush1.bf16.msra.mxu0 %v6163
    %8772 = vmatprep.subr.bf16.mxu0 0
    %8773 = vmatpush1.bf16.msra.mxu0 %v6164
    %8774 = vmatprep.subr.bf16.mxu0 0
    %8775 = vmatpush1.bf16.msra.mxu0 %v6165
    %8776 = vmatprep.subr.bf16.mxu0 0
    %8777 = vmatpush1.bf16.msra.mxu0 %v6166
    %8778 = vmatprep.subr.bf16.mxu0 0
    %8779 = vmatpush1.bf16.msra.mxu0 %v6167
    %8780 = vmatprep.subr.bf16.mxu0 0
    %8781 = vmatpush1.bf16.msra.mxu0 %v6168
    %8782 = vmatprep.subr.bf16.mxu0 0
    %8783 = vmatpush1.bf16.msra.mxu0 %v6169
    %8784 = vmatprep.subr.bf16.mxu0 0
    %8785 = vmatpush1.bf16.msra.mxu0 %v6170
    %8786 = vmatprep.subr.bf16.mxu0 0
    %8787 = vmatpush1.bf16.msra.mxu0 %v6171
    %8788 = vmatprep.mubr.bf16.mxu0 %v2162
    %8789 = vmatmul.mubr.bf16.gmra.mrb[0].mxu0 %v2160
    %v8790 = vpop.f32.mrb[0].mxu0
    %v8791 = vadd.f32 %v8751, %v8790
    %v8792 = vpop.f32.mrb[0].mxu0
    %v8793 = vpop.f32.mrb[0].mxu0
    %v8794 = vpop.f32.mrb[0].mxu0
    %8795 = vdwg.mxu0
    %8796 = vmatprep.subr.bf16.mxu0 0
    %8797 = vmatpush1.bf16.msra.mxu0 %v6172
    %8798 = vmatprep.subr.bf16.mxu0 0
    %8799 = vmatpush1.bf16.msra.mxu0 %v6173
    %8800 = vmatprep.subr.bf16.mxu0 0
    %8801 = vmatpush1.bf16.msra.mxu0 %v6174
    %8802 = vmatprep.subr.bf16.mxu0 0
    %8803 = vmatpush1.bf16.msra.mxu0 %v6175
    %8804 = vmatprep.subr.bf16.mxu0 0
    %8805 = vmatpush1.bf16.msra.mxu0 %v6176
    %8806 = vmatprep.subr.bf16.mxu0 0
    %8807 = vmatpush1.bf16.msra.mxu0 %v6177
    %8808 = vmatprep.subr.bf16.mxu0 0
    %8809 = vmatpush1.bf16.msra.mxu0 %v6178
    %8810 = vmatprep.subr.bf16.mxu0 0
    %8811 = vmatpush1.bf16.msra.mxu0 %v6179
    %8812 = vmatprep.subr.bf16.mxu0 0
    %8813 = vmatpush1.bf16.msra.mxu0 %v6180
    %8814 = vmatprep.subr.bf16.mxu0 0
    %8815 = vmatpush1.bf16.msra.mxu0 %v6181
    %8816 = vmatprep.subr.bf16.mxu0 0
    %8817 = vmatpush1.bf16.msra.mxu0 %v6182
    %8818 = vmatprep.subr.bf16.mxu0 0
    %8819 = vmatpush1.bf16.msra.mxu0 %v6183
    %8820 = vmatprep.subr.bf16.mxu0 0
    %8821 = vmatpush1.bf16.msra.mxu0 %v6184
    %8822 = vmatprep.subr.bf16.mxu0 0
    %8823 = vmatpush1.bf16.msra.mxu0 %v6185
    %8824 = vmatprep.subr.bf16.mxu0 0
    %8825 = vmatpush1.bf16.msra.mxu0 %v6186
    %8826 = vmatprep.subr.bf16.mxu0 0
    %8827 = vmatpush1.bf16.msra.mxu0 %v6187
    %8828 = vmatprep.mubr.bf16.mxu0 %v2200
    %8829 = vmatmul.mubr.bf16.gmra.mrb[0].mxu0 %v2186
    %v8830 = vpop.f32.mrb[0].mxu0
    %v8831 = vadd.f32 %v8791, %v8830
    %v8832 = vpop.f32.mrb[0].mxu0
    %v8833 = vpop.f32.mrb[0].mxu0
    %v8834 = vpop.f32.mrb[0].mxu0
    %8835 = vdwg.mxu0
    %8836 = vmatprep.subr.bf16.mxu0 0
    %8837 = vmatpush1.bf16.msra.mxu0 %v6188
    %8838 = vmatprep.subr.bf16.mxu0 0
    %8839 = vmatpush1.bf16.msra.mxu0 %v6189
    %8840 = vmatprep.subr.bf16.mxu0 0
    %8841 = vmatpush1.bf16.msra.mxu0 %v6190
    %8842 = vmatprep.subr.bf16.mxu0 0
    %8843 = vmatpush1.bf16.msra.mxu0 %v6191
    %8844 = vmatprep.subr.bf16.mxu0 0
    %8845 = vmatpush1.bf16.msra.mxu0 %v6192
    %8846 = vmatprep.subr.bf16.mxu0 0
    %8847 = vmatpush1.bf16.msra.mxu0 %v6193
    %8848 = vmatprep.subr.bf16.mxu0 0
    %8849 = vmatpush1.bf16.msra.mxu0 %v6194
    %8850 = vmatprep.subr.bf16.mxu0 0
    %8851 = vmatpush1.bf16.msra.mxu0 %v6195
    %8852 = vmatprep.subr.bf16.mxu0 0
    %8853 = vmatpush1.bf16.msra.mxu0 %v6196
    %8854 = vmatprep.subr.bf16.mxu0 0
    %8855 = vmatpush1.bf16.msra.mxu0 %v6197
    %8856 = vmatprep.subr.bf16.mxu0 0
    %8857 = vmatpush1.bf16.msra.mxu0 %v6198
    %8858 = vmatprep.subr.bf16.mxu0 0
    %8859 = vmatpush1.bf16.msra.mxu0 %v6199
    %8860 = vmatprep.subr.bf16.mxu0 0
    %8861 = vmatpush1.bf16.msra.mxu0 %v6200
    %8862 = vmatprep.subr.bf16.mxu0 0
    %8863 = vmatpush1.bf16.msra.mxu0 %v6201
    %8864 = vmatprep.subr.bf16.mxu0 0
    %8865 = vmatpush1.bf16.msra.mxu0 %v6202
    %8866 = vmatprep.subr.bf16.mxu0 0
    %8867 = vmatpush1.bf16.msra.mxu0 %v6203
    %8868 = vmatprep.mubr.bf16.mxu0 %v2210
    %8869 = vmatmul.mubr.bf16.gmra.mrb[0].mxu0 %v2208
    %v8870 = vpop.f32.mrb[0].mxu0
    %v8871 = vadd.f32 %v8831, %v8870
    %v8872 = vpop.f32.mrb[0].mxu0
    %v8873 = vpop.f32.mrb[0].mxu0
    %v8874 = vpop.f32.mrb[0].mxu0
    %8875 = vdwg.mxu0
    %8876 = vmatprep.subr.bf16.mxu0 0
    %8877 = vmatpush1.bf16.msra.mxu0 %v6204
    %8878 = vmatprep.subr.bf16.mxu0 0
    %8879 = vmatpush1.bf16.msra.mxu0 %v6205
    %8880 = vmatprep.subr.bf16.mxu0 0
    %8881 = vmatpush1.bf16.msra.mxu0 %v6206
    %8882 = vmatprep.subr.bf16.mxu0 0
    %8883 = vmatpush1.bf16.msra.mxu0 %v6207
    %8884 = vmatprep.subr.bf16.mxu0 0
    %8885 = vmatpush1.bf16.msra.mxu0 %v6208
    %8886 = vmatprep.subr.bf16.mxu0 0
    %8887 = vmatpush1.bf16.msra.mxu0 %v6209
    %8888 = vmatprep.subr.bf16.mxu0 0
    %8889 = vmatpush1.bf16.msra.mxu0 %v6210
    %8890 = vmatprep.subr.bf16.mxu0 0
    %8891 = vmatpush1.bf16.msra.mxu0 %v6211
    %8892 = vmatprep.subr.bf16.mxu0 0
    %8893 = vmatpush1.bf16.msra.mxu0 %v6212
    %8894 = vmatprep.subr.bf16.mxu0 0
    %8895 = vmatpush1.bf16.msra.mxu0 %v6213
    %8896 = vmatprep.subr.bf16.mxu0 0
    %8897 = vmatpush1.bf16.msra.mxu0 %v6214
    %8898 = vmatprep.subr.bf16.mxu0 0
    %8899 = vmatpush1.bf16.msra.mxu0 %v6215
    %8900 = vmatprep.subr.bf16.mxu0 0
    %8901 = vmatpush1.bf16.msra.mxu0 %v6216
    %8902 = vmatprep.subr.bf16.mxu0 0
    %8903 = vmatpush1.bf16.msra.mxu0 %v6217
    %8904 = vmatprep.subr.bf16.mxu0 0
    %8905 = vmatpush1.bf16.msra.mxu0 %v6218
    %8906 = vmatprep.subr.bf16.mxu0 0
    %8907 = vmatpush1.bf16.msra.mxu0 %v6219
    %8908 = vmatprep.mubr.bf16.mxu0 %v2207
    %8909 = vmatmul.mubr.bf16.gmra.mrb[0].mxu0 %v2193
    %v8910 = vpop.f32.mrb[0].mxu0
    %v8911 = vadd.f32 %v8871, %v8910
    %v8912 = vpop.f32.mrb[0].mxu0
    %v8913 = vpop.f32.mrb[0].mxu0
    %v8914 = vpop.f32.mrb[0].mxu0
    %8915 = vdwg.mxu0
    %8916 = vmatprep.subr.bf16.mxu0 0
    %8917 = vmatpush1.bf16.msra.mxu0 %v6220
    %8918 = vmatprep.subr.bf16.mxu0 0
    %8919 = vmatpush1.bf16.msra.mxu0 %v6221
    %8920 = vmatprep.subr.bf16.mxu0 0
    %8921 = vmatpush1.bf16.msra.mxu0 %v6222
    %8922 = vmatprep.subr.bf16.mxu0 0
    %8923 = vmatpush1.bf16.msra.mxu0 %v6223
    %8924 = vmatprep.subr.bf16.mxu0 0
    %8925 = vmatpush1.bf16.msra.mxu0 %v6224
    %8926 = vmatprep.subr.bf16.mxu0 0
    %8927 = vmatpush1.bf16.msra.mxu0 %v6225
    %8928 = vmatprep.subr.bf16.mxu0 0
    %8929 = vmatpush1.bf16.msra.mxu0 %v6226
    %8930 = vmatprep.subr.bf16.mxu0 0
    %8931 = vmatpush1.bf16.msra.mxu0 %v6227
    %8932 = vmatprep.subr.bf16.mxu0 0
    %8933 = vmatpush1.bf16.msra.mxu0 %v6228
    %8934 = vmatprep.subr.bf16.mxu0 0
    %8935 = vmatpush1.bf16.msra.mxu0 %v6229
    %8936 = vmatprep.subr.bf16.mxu0 0
    %8937 = vmatpush1.bf16.msra.mxu0 %v6230
    %8938 = vmatprep.subr.bf16.mxu0 0
    %8939 = vmatpush1.bf16.msra.mxu0 %v6231
    %8940 = vmatprep.subr.bf16.mxu0 0
    %8941 = vmatpush1.bf16.msra.mxu0 %v6232
    %8942 = vmatprep.subr.bf16.mxu0 0
    %8943 = vmatpush1.bf16.msra.mxu0 %v6233
    %8944 = vmatprep.subr.bf16.mxu0 0
    %8945 = vmatpush1.bf16.msra.mxu0 %v6234
    %8946 = vmatprep.subr.bf16.mxu0 0
    %8947 = vmatpush1.bf16.msra.mxu0 %v6235
    %8948 = vmatprep.mubr.bf16.mxu0 %v2211
    %8949 = vmatmul.mubr.bf16.gmra.mrb[0].mxu0 %v2209
    %v8950 = vpop.f32.mrb[0].mxu0
    %v8951 = vadd.f32 %v8911, %v8950
    %v8952 = vpop.f32.mrb[0].mxu0
    %v8953 = vpop.f32.mrb[0].mxu0
    %v8954 = vpop.f32.mrb[0].mxu0
    %8955 = vdwg.mxu0
    %8956 = vmatprep.subr.bf16.mxu0 0
    %8957 = vmatpush1.bf16.msra.mxu0 %v6236
    %8958 = vmatprep.subr.bf16.mxu0 0
    %8959 = vmatpush1.bf16.msra.mxu0 %v6237
    %8960 = vmatprep.subr.bf16.mxu0 0
    %8961 = vmatpush1.bf16.msra.mxu0 %v6238
    %8962 = vmatprep.subr.bf16.mxu0 0
    %8963 = vmatpush1.bf16.msra.mxu0 %v6239
    %8964 = vmatprep.subr.bf16.mxu0 0
    %8965 = vmatpush1.bf16.msra.mxu0 %v6240
    %8966 = vmatprep.subr.bf16.mxu0 0
    %8967 = vmatpush1.bf16.msra.mxu0 %v6241
    %8968 = vmatprep.subr.bf16.mxu0 0
    %8969 = vmatpush1.bf16.msra.mxu0 %v6242
    %8970 = vmatprep.subr.bf16.mxu0 0
    %8971 = vmatpush1.bf16.msra.mxu0 %v6243
    %8972 = vmatprep.subr.bf16.mxu0 0
    %8973 = vmatpush1.bf16.msra.mxu0 %v6244
    %8974 = vmatprep.subr.bf16.mxu0 0
    %8975 = vmatpush1.bf16.msra.mxu0 %v6245
    %8976 = vmatprep.subr.bf16.mxu0 0
    %8977 = vmatpush1.bf16.msra.mxu0 %v6246
    %8978 = vmatprep.subr.bf16.mxu0 0
    %8979 = vmatpush1.bf16.msra.mxu0 %v6247
    %8980 = vmatprep.subr.bf16.mxu0 0
    %8981 = vmatpush1.bf16.msra.mxu0 %v6248
    %8982 = vmatprep.subr.bf16.mxu0 0
    %8983 = vmatpush1.bf16.msra.mxu0 %v6249
    %8984 = vmatprep.subr.bf16.mxu0 0
    %8985 = vmatpush1.bf16.msra.mxu0 %v6250
    %8986 = vmatprep.subr.bf16.mxu0 0
    %8987 = vmatpush1.bf16.msra.mxu0 %v6251
    %8988 = vmatprep.mubr.bf16.mxu0 %v2233
    %8989 = vmatmul.mubr.bf16.gmra.mrb[0].mxu0 %v2226
    %v8990 = vpop.f32.mrb[0].mxu0
    %v8991 = vadd.f32 %v8951, %v8990
    %v8992 = vpop.f32.mrb[0].mxu0
    %v8993 = vpop.f32.mrb[0].mxu0
    %v8994 = vpop.f32.mrb[0].mxu0
    %8995 = vdwg.mxu0
    %v8996 = vmax.f32 %v8991, 0.0
    %v8997 = vpack.c.bf16 %v8996, %v8996
    %v8998 = vld [vmem:[%s2] sm:$0xf]
    %v8999 = vld [vmem:[%s2 + $0x4] sm:$0xf]
    %v9000 = vld [vmem:[%s2 + $0x8] sm:$0xf]
    %v9001 = vld [vmem:[%s2 + $0xc] sm:$0xf]
    %v9002 = vld [vmem:[%s2 + $0x10] sm:$0xf]
    %v9003 = vld [vmem:[%s2 + $0x14] sm:$0xf]
    %v9004 = vld [vmem:[%s2 + $0x18] sm:$0xf]
    %v9005 = vld [vmem:[%s2 + $0x1c] sm:$0xf]
    %v9006 = vld [vmem:[%s2 + $0x20] sm:$0xf]
    %v9007 = vld [vmem:[%s2 + $0x24] sm:$0xf]
    %v9008 = vld [vmem:[%s2 + $0x28] sm:$0xf]
    %v9009 = vld [vmem:[%s2 + $0x2c] sm:$0xf]
    %v9010 = vld [vmem:[%s2 + $0x30] sm:$0xf]
    %v9011 = vld [vmem:[%s2 + $0x34] sm:$0xf]
    %v9012 = vld [vmem:[%s2 + $0x38] sm:$0xf]
    %v9013 = vld [vmem:[%s2 + $0x3c] sm:$0xf]
    %v9030 = vunpack.c.l.b16 %v8998
    %v9031 = vunpack.c.l.b16 %v8999
    %v9032 = vunpack.c.l.b16 %v9000
    %v9033 = vunpack.c.l.b16 %v9001
    %v9034 = vunpack.c.l.b16 %v9002
    %v9035 = vunpack.c.l.b16 %v9003
    %v9036 = vunpack.c.l.b16 %v9004
    %v9037 = vunpack.c.l.b16 %v9005
    %v9038 = vunpack.c.l.b16 %v9006
    %v9039 = vunpack.c.l.b16 %v9007
    %v9040 = vunpack.c.l.b16 %v9008
    %v9041 = vunpack.c.l.b16 %v9009
    %v9042 = vunpack.c.l.b16 %v9010
    %v9043 = vunpack.c.l.b16 %v9011
    %v9044 = vunpack.c.l.b16 %v9012
    %v9045 = vunpack.c.l.b16 %v9013
    %v9046 = vpack.c.b16 %v9031, %v9030
    %v9047 = vpack.c.b16 %v9033, %v9032
    %v9048 = vpack.c.b16 %v9035, %v9034
    %v9049 = vpack.c.b16 %v9037, %v9036
    %v9050 = vpack.c.b16 %v9039, %v9038
    %v9051 = vpack.c.b16 %v9041, %v9040
    %v9052 = vpack.c.b16 %v9043, %v9042
    %v9053 = vpack.c.b16 %v9045, %v9044
    %9062 = vmatprep.subr.bf16.mxu0 0
    %9063 = vmatpush1.bf16.msra.mxu0 %v9046
    %9064 = vmatprep.subr.bf16.mxu0 0
    %9065 = vmatpush1.bf16.msra.mxu0 %v9047
    %9066 = vmatprep.subr.bf16.mxu0 0
    %9067 = vmatpush1.bf16.msra.mxu0 %v9048
    %9068 = vmatprep.subr.bf16.mxu0 0
    %9069 = vmatpush1.bf16.msra.mxu0 %v9049
    %9070 = vmatprep.subr.bf16.mxu0 0
    %9071 = vmatpush1.bf16.msra.mxu0 %v9050
    %9072 = vmatprep.subr.bf16.mxu0 0
    %9073 = vmatpush1.bf16.msra.mxu0 %v9051
    %9074 = vmatprep.subr.bf16.mxu0 0
    %9075 = vmatpush1.bf16.msra.mxu0 %v9052
    %9076 = vmatprep.subr.bf16.mxu0 0
    %9077 = vmatpush1.bf16.msra.mxu0 %v9053
    %9078 = vmatprep.subr.bf16.mxu0 0
    %9079 = vmatpush1.bf16.msra.mxu0 0
    %9080 = vmatprep.subr.bf16.mxu0 0
    %9081 = vmatpush1.bf16.msra.mxu0 0
    %9082 = vmatprep.subr.bf16.mxu0 0
    %9083 = vmatpush1.bf16.msra.mxu0 0
    %9084 = vmatprep.subr.bf16.mxu0 0
    %9085 = vmatpush1.bf16.msra.mxu0 0
    %9086 = vmatprep.subr.bf16.mxu0 0
    %9087 = vmatpush1.bf16.msra.mxu0 0
    %9088 = vmatprep.subr.bf16.mxu0 0
    %9089 = vmatpush1.bf16.msra.mxu0 0
    %9090 = vmatprep.subr.bf16.mxu0 0
    %9091 = vmatpush1.bf16.msra.mxu0 0
    %9092 = vmatprep.subr.bf16.mxu0 0
    %9093 = vmatpush1.bf16.msra.mxu0 0
    %9094 = vmatprep.mubr.bf16.mxu0 0
    %9095 = vmatmul.mubr.bf16.gmra.mrb[0].mxu0 %v8997
    %v9096 = vpop.f32.mrb[0].mxu0
    %v9097 = vadd.f32 0.0, %v9096
    %v9098 = vpop.f32.mrb[0].mxu0
    %v9099 = vpop.f32.mrb[0].mxu0
    %v9100 = vpop.f32.mrb[0].mxu0
    %9101 = vdwg.mxu0
    %vm9102 = vcmask 74752
    %9103 = vst.msk [vmem:[#allocation5] sm:$0x3] %vm9102, %v9097
    // Predicated region
    $region18: #{lenet_forward.3} parent=1 // pred_check
      _
    $region19: #{lenet_forward.3} parent=1 // pred_check_branch
      %9105 = sbr.rel (0) target = $region21
    $region20: #{lenet_forward.3} parent=1 // pred_region
      %s9107 = ssub.s32 32, 32
      %9108 = vsyncadd [#allocation4], %s9107
      %s9110 = sshll.u32 [#allocation5], 4
      %s9111 = int_to_ptr.vmem [resolvable:$true] %s9110
      %9113 = dma.vmem_to_hbm [thread:$0]  %s9111, 32, %s3, [#allocation4]
    $region21: #{lenet_forward.3} parent=1 // pred_fallthru
      _
    // Predicated region
    $region22: #{lenet_forward.3} parent=1 // pred_check
      _
    $region23: #{lenet_forward.3} parent=1 // pred_check_branch
      %9115 = sbr.rel (0) target = $region25
    $region24: #{lenet_forward.3} parent=1 // pred_region
      %9116 = dma.done [#allocation4], 32
    $region25: #{lenet_forward.3} parent=1 // pred_fallthru
      _
    %9117 = vsyncpa [#allocation3], 1
    %9118 = vsyncpa [#allocation4], 1

</llo_original>
